<compile_context>
chip_gen: v7x
topology: tpu7x:2x2x1
jax: 0.10.0
libtpu: 0.0.40
codegen_flags: <defaults>
</compile_context>

<pallas_src>
import functools
import math

import jax
import jax.numpy as jnp
from jax.experimental import pallas as pl
from jax.experimental.pallas import tpu as pltpu

EPS = 1e-5           # nn.BatchNorm1d default eps
TILE_M = 2048        # points per grid step (lane axis); multiple of 128.  Safe for
                     # v5e's 16 MiB default scoped VMEM; sweep to 4096 on v6e/v7x.
STAT_LANES = 128     # per-tile stats block width: lane 0 = sum, lane 1 = centered SS


def _stats_kernel(*refs, layer, m_true, tile_m):
    """Per-tile BN statistics for layer `layer` in {1,2,3}, channel-major compute.

    Writes, for each M tile, lane 0 = per-channel sum and lane 1 = per-channel sum of
    squared deviations from the *tile* mean (shift-stabilized).  Cross-tile pooling and
    gamma/beta folding happen in tiny XLA ops in the wrapper, so there is no resident
    accumulator: every tile owns its output block and the grid axis is "parallel"
    (v7x megacore can split it).  Conv biases are omitted everywhere: they cancel
    exactly under training-mode batch norm.
    """
    if layer == 1:
        x_ref, w1_ref, out_ref = refs
    elif layer == 2:
        x_ref, w1_ref, w2_ref, sc1_ref, sh1_ref, out_ref = refs
    else:
        x_ref, w1_ref, w2_ref, w3_ref, sc1_ref, sh1_ref, sc2_ref, sh2_ref, out_ref = refs

    m = pl.program_id(0)
    start = m * tile_m
    cnt = jnp.minimum(m_true - start, tile_m).astype(jnp.float32)        # valid pts, >= 1
    col = jax.lax.broadcasted_iota(jnp.int32, (1, tile_m), 1)
    maskf = (col + start < m_true).astype(jnp.float32)                   # (1, TM)

    x = x_ref[...]                                                       # (5, TM); padded cols are 0
    y = jnp.dot(w1_ref[...], x, preferred_element_type=jnp.float32)      # (8, TM)
    if layer >= 2:
        # Mask keeps padded columns at exactly 0 through the next matmul.
        h = jnp.maximum(sc1_ref[...] * y + sh1_ref[...], 0.0) * maskf
        y = jnp.dot(w2_ref[...], h, preferred_element_type=jnp.float32)  # (16, TM)
    if layer == 3:
        h = jnp.maximum(sc2_ref[...] * y + sh2_ref[...], 0.0) * maskf
        y = jnp.dot(w3_ref[...], h, preferred_element_type=jnp.float32)  # (24, TM)

    s = jnp.sum(y, axis=1, keepdims=True)            # (C, 1); padded cols contribute 0
    mu_t = s * (1.0 / cnt)                           # tile mean
    d = (y - mu_t) * maskf
    css = jnp.sum(d * d, axis=1, keepdims=True)      # (C, 1) tile-centered sum of squares

    lane = jax.lax.broadcasted_iota(jnp.int32, out_ref.shape, 1)
    out_ref[...] = jnp.where(lane == 0, s, 0.0) + jnp.where(lane == 1, css, 0.0)


def _apply_kernel(x_ref, w1_ref, w2_ref, w3_ref,
                  sc1_ref, sh1_ref, sc2_ref, sh2_ref, sc3_ref, sh3_ref,
                  out_ref):
    """Normalize + ReLU all three layers (channel-major) and write the fused
    (raw || learned) (TILE_M, 29) output tile with a single store."""
    x = x_ref[...]                                                        # (TM, 5) points-major
    # Layer 1: contract over the 5 raw channels; result channel-major (8, TM).
    y1 = jax.lax.dot_general(w1_ref[...], x, (((1,), (1,)), ((), ())),
                             preferred_element_type=jnp.float32)
    h1 = jnp.maximum(sc1_ref[...] * y1 + sh1_ref[...], 0.0)               # (8, TM)
    y2 = jnp.dot(w2_ref[...], h1, preferred_element_type=jnp.float32)     # (16, TM)
    h2 = jnp.maximum(sc2_ref[...] * y2 + sh2_ref[...], 0.0)
    # Layer 3 weight-stationary (w3 @ h2): far fewer MXU pushes than (TM,16)x(16,24).
    y3 = jnp.dot(w3_ref[...], h2, preferred_element_type=jnp.float32)     # (24, TM)
    h3 = jnp.maximum(sc3_ref[...] * y3 + sh3_ref[...], 0.0)               # (24, TM)
    # (24,TM)->(TM,24) transpose rides the otherwise-idle XLU; fused torch.cat with
    # the raw 5 columns keeps a single full-tile HBM write (proven lowering path).
    out_ref[...] = jnp.concatenate([x, h3.T], axis=1)                     # (TM, 29)


def _fold_bn(raw, gamma, beta, m_true, n_tiles):
    """Pool per-tile (sum, centered SS) into biased batch mean/var and fold the BN
    affine into one per-channel (scale, shift) pair.  Tiny XLA ops."""
    c = gamma.shape[0]
    r = raw.reshape(c, n_tiles, STAT_LANES)
    sums = r[:, :, 0]                                                    # (C, T)
    css = r[:, :, 1]                                                     # (C, T)
    cnts = jnp.minimum(m_true - jnp.arange(n_tiles) * TILE_M,
                       TILE_M).astype(jnp.float32)                       # (T,)
    mu_t = sums / cnts                                                   # per-tile means
    mu = jnp.sum(sums, axis=1) / m_true                                  # (C,)
    ss = jnp.sum(css, axis=1) + jnp.sum(cnts * (mu_t - mu[:, None]) ** 2, axis=1)
    var = ss / m_true                                                    # biased (training BN)
    scale = gamma * jax.lax.rsqrt(var + EPS)
    shift = beta - scale * mu
    return scale.reshape(c, 1), shift.reshape(c, 1)


def init_params(key):
    """Deterministic synthetic parameters matching the module's shapes.

    Conv weight (Cout, Cin); conv bias (Cout,) is generated (the reference uses it)
    but the kernels never need it: it cancels under training-mode BN."""
    dims = [(5, 8), (8, 16), (16, 24)]
    params = []
    for i, (cin, cout) in enumerate(dims):
        kw, kb, kg, ke = jax.random.split(jax.random.fold_in(key, i), 4)
        bound = 1.0 / math.sqrt(cin)
        params.append(dict(
            w=jax.random.uniform(kw, (cout, cin), jnp.float32, -bound, bound),
            b=jax.random.uniform(kb, (cout,), jnp.float32, -bound, bound),
            gamma=jax.random.uniform(kg, (cout,), jnp.float32, 0.9, 1.1),
            beta=jax.random.uniform(ke, (cout,), jnp.float32, -0.1, 0.1),
        ))
    return params


@jax.jit
def base_point_tinet(in_mat, params):
    """in_mat: (B, N, 5) -> (B, N, 29), training-mode BN over the B*N points."""
    B, N, Cin = in_mat.shape
    assert Cin == 5
    M = B * N
    n_tiles = pl.cdiv(M, TILE_M)
    M_pad = n_tiles * TILE_M

    x_pm = in_mat.reshape(M, 5).astype(jnp.float32)   # points-major (apply + raw columns)
    x_cm = x_pm.T                                     # channel-major (stats), lane-dense
    if M_pad != M:
        x_pm = jnp.pad(x_pm, ((0, M_pad - M), (0, 0)))
        x_cm = jnp.pad(x_cm, ((0, 0), (0, M_pad - M)))

    w1, w2, w3 = (p["w"] for p in params)
    g1, b1 = params[0]["gamma"], params[0]["beta"]
    g2, b2 = params[1]["gamma"], params[1]["beta"]
    g3, b3 = params[2]["gamma"], params[2]["beta"]

    def const(shape):   # full-array block, constant across the tile grid
        return pl.BlockSpec(shape, lambda m: (0, 0))

    x_cm_spec = pl.BlockSpec((5, TILE_M), lambda m: (0, m))

    def stats_call(layer, cout, *operands):
        return pl.pallas_call(
            functools.partial(_stats_kernel, layer=layer, m_true=M, tile_m=TILE_M),
            grid=(n_tiles,),
            in_specs=[x_cm_spec] + [const(op.shape) for op in operands],
            out_specs=pl.BlockSpec((cout, STAT_LANES), lambda m: (0, m)),
            out_shape=jax.ShapeDtypeStruct((cout, n_tiles * STAT_LANES), jnp.float32),
            compiler_params=pltpu.CompilerParams(dimension_semantics=("parallel",)),
        )(x_cm, *operands)

    # Phase 1: per-layer batch statistics (parallel tile grid) + tiny XLA folding.
    raw1 = stats_call(1, 8, w1)
    sc1, sh1 = _fold_bn(raw1, g1, b1, M, n_tiles)
    raw2 = stats_call(2, 16, w1, w2, sc1, sh1)
    sc2, sh2 = _fold_bn(raw2, g2, b2, M, n_tiles)
    raw3 = stats_call(3, 24, w1, w2, w3, sc1, sh1, sc2, sh2)
    sc3, sh3 = _fold_bn(raw3, g3, b3, M, n_tiles)

    # Phase 2: normalize + ReLU + fused concat; tiles independent -> "parallel".
    out_pad = pl.pallas_call(
        _apply_kernel,
        grid=(n_tiles,),
        in_specs=[pl.BlockSpec((TILE_M, 5), lambda m: (m, 0)),
                  const((8, 5)), const((16, 8)), const((24, 16)),
                  const((8, 1)), const((8, 1)), const((16, 1)), const((16, 1)),
                  const((24, 1)), const((24, 1))],
        out_specs=pl.BlockSpec((TILE_M, 29), lambda m: (m, 0)),
        out_shape=jax.ShapeDtypeStruct((M_pad, 29), jnp.float32),
        compiler_params=pltpu.CompilerParams(dimension_semantics=("parallel",)),
    )(x_pm, w1, w2, w3, sc1, sh1, sc2, sh2, sc3, sh3)

    return out_pad[:M].reshape(B, N, 29)


def _reference(in_mat, params):
    """Pure-JAX replica of the PyTorch forward (training-mode BatchNorm1d)."""
    B, N, _ = in_mat.shape
    h = in_mat.reshape(B * N, 5).astype(jnp.float32)
    for p in params:
        y = jnp.dot(h, p["w"].T, precision=jax.lax.Precision.HIGHEST) + p["b"]
        mu = jnp.mean(y, axis=0, keepdims=True)
        var = jnp.mean((y - mu) ** 2, axis=0, keepdims=True)     # biased (training)
        y = p["gamma"] * (y - mu) / jnp.sqrt(var + EPS) + p["beta"]
        h = jnp.maximum(y, 0.0)
    h = h.reshape(B, N, 24)
    return jnp.concatenate([in_mat[:, :, :5], h], axis=-1)


if __name__ == "__main__":
    key = jax.random.PRNGKey(0)
    k_in, k_par, k_in2 = jax.random.split(key, 3)
    params = init_params(k_par)

    # Small shape consistent with the module: (B, N, 5) -> (B, N, 29).
    B, N = 2, 16
    in_mat = jax.random.normal(k_in, (B, N, 5), jnp.float32)
    out = jax.block_until_ready(base_point_tinet(in_mat, params))
    ref = _reference(in_mat, params)
    assert out.shape == (B, N, 29), out.shape
    err = float(jnp.max(jnp.abs(out - ref)))
    assert jnp.allclose(out, ref, atol=1e-4, rtol=1e-4), err

    # Second case exercises multiple M tiles + the padding mask / pooled variance:
    # M = 4*1300 = 5200 -> 3 tiles of 2048 with a partial last tile.
    B2, N2 = 4, 1300
    in_mat2 = jax.random.normal(k_in2, (B2, N2, 5), jnp.float32)
    out2 = jax.block_until_ready(base_point_tinet(in_mat2, params))
    ref2 = _reference(in_mat2, params)
    err2 = float(jnp.max(jnp.abs(out2 - ref2)))
    assert jnp.allclose(out2, ref2, atol=1e-4, rtol=1e-4), err2

    print("KERNEL_OK")
</pallas_src>

<mosaic_0001>
module attributes {stable_mosaic.version = 11 : i64} {
  func.func @_stats_kernel(%arg0: i32, %arg1: memref<5x2048xf32, #tpu.memory_space<vmem>>, %arg2: memref<8x5xf32, #tpu.memory_space<vmem>>, %arg3: memref<8x128xf32, #tpu.memory_space<vmem>>) attributes {dimension_semantics = [#tpu.dimension_semantics<parallel>], iteration_bounds = array<i64: 1>, scalar_prefetch = 0 : i64, scratch_operands = 0 : i64, tpu.core_type = #tpu.core_type<tc>, window_params = [{transform_indices = @transform_0, window_bounds = array<i64: 5, 2048>}, {pipeline_mode = #tpu.pipeline_mode<synchronous>, transform_indices = @transform_1, window_bounds = array<i64: 8, 5>}, {transform_indices = @transform_2, window_bounds = array<i64: 8, 128>}]} {
    %c2048_i32 = arith.constant 2048 : i32
    %0 = arith.muli %arg0, %c2048_i32 : i32
    %c32_i32 = arith.constant 32 : i32
    %1 = arith.subi %c32_i32, %0 : i32
    %c2048_i32_0 = arith.constant 2048 : i32
    %2 = arith.minsi %1, %c2048_i32_0 : i32
    %3 = arith.sitofp %2 : i32 to f32
    %4 = tpu.iota {dimensions = array<i32: 1>} : vector<1x2048xi32>
    %5 = vector.broadcast %0 : i32 to vector<1x2048xi32>
    %6 = arith.addi %4, %5 : vector<1x2048xi32>
    %c32_i32_1 = arith.constant 32 : i32
    %7 = vector.broadcast %c32_i32_1 : i32 to vector<1x2048xi32>
    %8 = arith.cmpi slt, %6, %7 : vector<1x2048xi32>
    %9 = arith.extui %8 : vector<1x2048xi1> to vector<1x2048xi32>
    %10 = arith.sitofp %9 : vector<1x2048xi32> to vector<1x2048xf32>
    %c0 = arith.constant 0 : index
    %c0_2 = arith.constant 0 : index
    %11 = vector.load %arg1[%c0, %c0_2] : memref<5x2048xf32, #tpu.memory_space<vmem>>, vector<5x2048xf32>
    %c0_3 = arith.constant 0 : index
    %c0_4 = arith.constant 0 : index
    %12 = vector.load %arg2[%c0_3, %c0_4] : memref<8x5xf32, #tpu.memory_space<vmem>>, vector<8x5xf32>
    %cst = arith.constant dense<0.000000e+00> : vector<8x2048xf32>
    %13 = tpu.matmul %12, %11, %cst {dimension_numbers = #tpu.dot_dimension_numbers<[1], [0], [0], [1], [0, 0, 1, 1], [], []>} : vector<8x5xf32>, vector<5x2048xf32>, vector<8x2048xf32> -> vector<8x2048xf32>
    %cst_5 = arith.constant dense<0.000000e+00> : vector<8xf32>
    %14 = vector.multi_reduction <add>, %13, %cst_5 [1] : vector<8x2048xf32> to vector<8xf32>
    %15 = vector.shape_cast %14 : vector<8xf32> to vector<8x1xf32>
    %cst_6 = arith.constant 1.000000e+00 : f32
    %16 = arith.divf %cst_6, %3 : f32
    %17 = vector.broadcast %16 : f32 to vector<8x1xf32>
    %18 = arith.mulf %15, %17 : vector<8x1xf32>
    %19 = vector.broadcast %18 : vector<8x1xf32> to vector<8x2048xf32>
    %20 = arith.subf %13, %19 : vector<8x2048xf32>
    %21 = vector.broadcast %10 : vector<1x2048xf32> to vector<8x2048xf32>
    %22 = arith.mulf %20, %21 : vector<8x2048xf32>
    %23 = arith.mulf %22, %22 : vector<8x2048xf32>
    %cst_7 = arith.constant dense<0.000000e+00> : vector<8xf32>
    %24 = vector.multi_reduction <add>, %23, %cst_7 [1] : vector<8x2048xf32> to vector<8xf32>
    %25 = vector.shape_cast %24 : vector<8xf32> to vector<8x1xf32>
    %26 = tpu.iota {dimensions = array<i32: 1>} : vector<8x128xi32>
    %c0_i32 = arith.constant 0 : i32
    %27 = vector.broadcast %c0_i32 : i32 to vector<8x128xi32>
    %28 = arith.cmpi eq, %26, %27 : vector<8x128xi32>
    %cst_8 = arith.constant 0.000000e+00 : f32
    %29 = vector.shape_cast %15 : vector<8x1xf32> to vector<8x1xf32>
    %30 = vector.broadcast %29 : vector<8x1xf32> to vector<8x128xf32>
    %31 = vector.broadcast %cst_8 : f32 to vector<8x128xf32>
    %32 = arith.select %28, %30, %31 : vector<8x128xi1>, vector<8x128xf32>
    %c1_i32 = arith.constant 1 : i32
    %33 = vector.broadcast %c1_i32 : i32 to vector<8x128xi32>
    %34 = arith.cmpi eq, %26, %33 : vector<8x128xi32>
    %cst_9 = arith.constant 0.000000e+00 : f32
    %35 = vector.shape_cast %25 : vector<8x1xf32> to vector<8x1xf32>
    %36 = vector.broadcast %35 : vector<8x1xf32> to vector<8x128xf32>
    %37 = vector.broadcast %cst_9 : f32 to vector<8x128xf32>
    %38 = arith.select %34, %36, %37 : vector<8x128xi1>, vector<8x128xf32>
    %39 = arith.addf %32, %38 : vector<8x128xf32>
    %c0_10 = arith.constant 0 : index
    %c0_11 = arith.constant 0 : index
    %40 = vector.load %arg3[%c0_10, %c0_11] : memref<8x128xf32, #tpu.memory_space<vmem>>, vector<8x128xf32>
    tpu.vector_store %arg3[%c0_10, %c0_11], %39 {strides = array<i32>} : memref<8x128xf32, #tpu.memory_space<vmem>>, vector<8x128xf32>,
    return
  }
  func.func @transform_0(%arg0: i32) -> (i32, i32) {
    %c0_i32 = arith.constant 0 : i32
    %c0_i32_0 = arith.constant 0 : i32
    return %c0_i32, %arg0 : i32, i32
  }
  func.func @transform_1(%arg0: i32) -> (i32, i32) {
    %c0_i32 = arith.constant 0 : i32
    %c0_i32_0 = arith.constant 0 : i32
    %c0_i32_1 = arith.constant 0 : i32
    return %c0_i32, %c0_i32_0 : i32, i32
  }
  func.func @transform_2(%arg0: i32) -> (i32, i32) {
    %c0_i32 = arith.constant 0 : i32
    %c0_i32_0 = arith.constant 0 : i32
    return %c0_i32, %arg0 : i32, i32
  }
}

module attributes {stable_mosaic.version = 11 : i64} {
  func.func @_stats_kernel(%arg0: i32, %arg1: memref<5x2048xf32, #tpu.memory_space<vmem>>, %arg2: memref<8x5xf32, #tpu.memory_space<vmem>>, %arg3: memref<16x8xf32, #tpu.memory_space<vmem>>, %arg4: memref<8x1xf32, #tpu.memory_space<vmem>>, %arg5: memref<8x1xf32, #tpu.memory_space<vmem>>, %arg6: memref<16x128xf32, #tpu.memory_space<vmem>>) attributes {dimension_semantics = [#tpu.dimension_semantics<parallel>], iteration_bounds = array<i64: 1>, scalar_prefetch = 0 : i64, scratch_operands = 0 : i64, tpu.core_type = #tpu.core_type<tc>, window_params = [{transform_indices = @transform_0, window_bounds = array<i64: 5, 2048>}, {pipeline_mode = #tpu.pipeline_mode<synchronous>, transform_indices = @transform_1, window_bounds = array<i64: 8, 5>}, {pipeline_mode = #tpu.pipeline_mode<synchronous>, transform_indices = @transform_2, window_bounds = array<i64: 16, 8>}, {pipeline_mode = #tpu.pipeline_mode<synchronous>, transform_indices = @transform_3, window_bounds = array<i64: 8, 1>}, {pipeline_mode = #tpu.pipeline_mode<synchronous>, transform_indices = @transform_4, window_bounds = array<i64: 8, 1>}, {transform_indices = @transform_5, window_bounds = array<i64: 16, 128>}]} {
    %c2048_i32 = arith.constant 2048 : i32
    %0 = arith.muli %arg0, %c2048_i32 : i32
    %c32_i32 = arith.constant 32 : i32
    %1 = arith.subi %c32_i32, %0 : i32
    %c2048_i32_0 = arith.constant 2048 : i32
    %2 = arith.minsi %1, %c2048_i32_0 : i32
    %3 = arith.sitofp %2 : i32 to f32
    %4 = tpu.iota {dimensions = array<i32: 1>} : vector<1x2048xi32>
    %5 = vector.broadcast %0 : i32 to vector<1x2048xi32>
    %6 = arith.addi %4, %5 : vector<1x2048xi32>
    %c32_i32_1 = arith.constant 32 : i32
    %7 = vector.broadcast %c32_i32_1 : i32 to vector<1x2048xi32>
    %8 = arith.cmpi slt, %6, %7 : vector<1x2048xi32>
    %9 = arith.extui %8 : vector<1x2048xi1> to vector<1x2048xi32>
    %10 = arith.sitofp %9 : vector<1x2048xi32> to vector<1x2048xf32>
    %c0 = arith.constant 0 : index
    %c0_2 = arith.constant 0 : index
    %11 = vector.load %arg1[%c0, %c0_2] : memref<5x2048xf32, #tpu.memory_space<vmem>>, vector<5x2048xf32>
    %c0_3 = arith.constant 0 : index
    %c0_4 = arith.constant 0 : index
    %12 = vector.load %arg2[%c0_3, %c0_4] : memref<8x5xf32, #tpu.memory_space<vmem>>, vector<8x5xf32>
    %cst = arith.constant dense<0.000000e+00> : vector<8x2048xf32>
    %13 = tpu.matmul %12, %11, %cst {dimension_numbers = #tpu.dot_dimension_numbers<[1], [0], [0], [1], [0, 0, 1, 1], [], []>} : vector<8x5xf32>, vector<5x2048xf32>, vector<8x2048xf32> -> vector<8x2048xf32>
    %c0_5 = arith.constant 0 : index
    %c0_6 = arith.constant 0 : index
    %14 = vector.load %arg4[%c0_5, %c0_6] : memref<8x1xf32, #tpu.memory_space<vmem>>, vector<8x1xf32>
    %15 = vector.broadcast %14 : vector<8x1xf32> to vector<8x2048xf32>
    %16 = arith.mulf %15, %13 : vector<8x2048xf32>
    %c0_7 = arith.constant 0 : index
    %c0_8 = arith.constant 0 : index
    %17 = vector.load %arg5[%c0_7, %c0_8] : memref<8x1xf32, #tpu.memory_space<vmem>>, vector<8x1xf32>
    %18 = vector.broadcast %17 : vector<8x1xf32> to vector<8x2048xf32>
    %19 = arith.addf %16, %18 : vector<8x2048xf32>
    %cst_9 = arith.constant 0.000000e+00 : f32
    %20 = vector.broadcast %cst_9 : f32 to vector<8x2048xf32>
    %21 = arith.maximumf %19, %20 : vector<8x2048xf32>
    %22 = vector.broadcast %10 : vector<1x2048xf32> to vector<8x2048xf32>
    %23 = arith.mulf %21, %22 : vector<8x2048xf32>
    %c0_10 = arith.constant 0 : index
    %c0_11 = arith.constant 0 : index
    %24 = vector.load %arg3[%c0_10, %c0_11] : memref<16x8xf32, #tpu.memory_space<vmem>>, vector<16x8xf32>
    %cst_12 = arith.constant dense<0.000000e+00> : vector<16x2048xf32>
    %25 = tpu.matmul %24, %23, %cst_12 {dimension_numbers = #tpu.dot_dimension_numbers<[1], [0], [0], [1], [0, 0, 1, 1], [], []>} : vector<16x8xf32>, vector<8x2048xf32>, vector<16x2048xf32> -> vector<16x2048xf32>
    %cst_13 = arith.constant dense<0.000000e+00> : vector<16xf32>
    %26 = vector.multi_reduction <add>, %25, %cst_13 [1] : vector<16x2048xf32> to vector<16xf32>
    %27 = vector.shape_cast %26 : vector<16xf32> to vector<16x1xf32>
    %cst_14 = arith.constant 1.000000e+00 : f32
    %28 = arith.divf %cst_14, %3 : f32
    %29 = vector.broadcast %28 : f32 to vector<16x1xf32>
    %30 = arith.mulf %27, %29 : vector<16x1xf32>
    %31 = vector.broadcast %30 : vector<16x1xf32> to vector<16x2048xf32>
    %32 = arith.subf %25, %31 : vector<16x2048xf32>
    %33 = vector.broadcast %10 : vector<1x2048xf32> to vector<16x2048xf32>
    %34 = arith.mulf %32, %33 : vector<16x2048xf32>
    %35 = arith.mulf %34, %34 : vector<16x2048xf32>
    %cst_15 = arith.constant dense<0.000000e+00> : vector<16xf32>
    %36 = vector.multi_reduction <add>, %35, %cst_15 [1] : vector<16x2048xf32> to vector<16xf32>
    %37 = vector.shape_cast %36 : vector<16xf32> to vector<16x1xf32>
    %38 = tpu.iota {dimensions = array<i32: 1>} : vector<16x128xi32>
    %c0_i32 = arith.constant 0 : i32
    %39 = vector.broadcast %c0_i32 : i32 to vector<16x128xi32>
    %40 = arith.cmpi eq, %38, %39 : vector<16x128xi32>
    %cst_16 = arith.constant 0.000000e+00 : f32
    %41 = vector.shape_cast %27 : vector<16x1xf32> to vector<16x1xf32>
    %42 = vector.broadcast %41 : vector<16x1xf32> to vector<16x128xf32>
    %43 = vector.broadcast %cst_16 : f32 to vector<16x128xf32>
    %44 = arith.select %40, %42, %43 : vector<16x128xi1>, vector<16x128xf32>
    %c1_i32 = arith.constant 1 : i32
    %45 = vector.broadcast %c1_i32 : i32 to vector<16x128xi32>
    %46 = arith.cmpi eq, %38, %45 : vector<16x128xi32>
    %cst_17 = arith.constant 0.000000e+00 : f32
    %47 = vector.shape_cast %37 : vector<16x1xf32> to vector<16x1xf32>
    %48 = vector.broadcast %47 : vector<16x1xf32> to vector<16x128xf32>
    %49 = vector.broadcast %cst_17 : f32 to vector<16x128xf32>
    %50 = arith.select %46, %48, %49 : vector<16x128xi1>, vector<16x128xf32>
    %51 = arith.addf %44, %50 : vector<16x128xf32>
    %c0_18 = arith.constant 0 : index
    %c0_19 = arith.constant 0 : index
    %52 = vector.load %arg6[%c0_18, %c0_19] : memref<16x128xf32, #tpu.memory_space<vmem>>, vector<16x128xf32>
    tpu.vector_store %arg6[%c0_18, %c0_19], %51 {strides = array<i32>} : memref<16x128xf32, #tpu.memory_space<vmem>>, vector<16x128xf32>,
    return
  }
  func.func @transform_0(%arg0: i32) -> (i32, i32) {
    %c0_i32 = arith.constant 0 : i32
    %c0_i32_0 = arith.constant 0 : i32
    return %c0_i32, %arg0 : i32, i32
  }
  func.func @transform_1(%arg0: i32) -> (i32, i32) {
    %c0_i32 = arith.constant 0 : i32
    %c0_i32_0 = arith.constant 0 : i32
    %c0_i32_1 = arith.constant 0 : i32
    return %c0_i32, %c0_i32_0 : i32, i32
  }
  func.func @transform_2(%arg0: i32) -> (i32, i32) {
    %c0_i32 = arith.constant 0 : i32
    %c0_i32_0 = arith.constant 0 : i32
    %c0_i32_1 = arith.constant 0 : i32
    return %c0_i32, %c0_i32_0 : i32, i32
  }
  func.func @transform_3(%arg0: i32) -> (i32, i32) {
    %c0_i32 = arith.constant 0 : i32
    %c0_i32_0 = arith.constant 0 : i32
    %c0_i32_1 = arith.constant 0 : i32
    return %c0_i32, %c0_i32_0 : i32, i32
  }
  func.func @transform_4(%arg0: i32) -> (i32, i32) {
    %c0_i32 = arith.constant 0 : i32
    %c0_i32_0 = arith.constant 0 : i32
    %c0_i32_1 = arith.constant 0 : i32
    return %c0_i32, %c0_i32_0 : i32, i32
  }
  func.func @transform_5(%arg0: i32) -> (i32, i32) {
    %c0_i32 = arith.constant 0 : i32
    %c0_i32_0 = arith.constant 0 : i32
    return %c0_i32, %arg0 : i32, i32
  }
}

module attributes {stable_mosaic.version = 11 : i64} {
  func.func @_stats_kernel(%arg0: i32, %arg1: memref<5x2048xf32, #tpu.memory_space<vmem>>, %arg2: memref<8x5xf32, #tpu.memory_space<vmem>>, %arg3: memref<16x8xf32, #tpu.memory_space<vmem>>, %arg4: memref<24x16xf32, #tpu.memory_space<vmem>>, %arg5: memref<8x1xf32, #tpu.memory_space<vmem>>, %arg6: memref<8x1xf32, #tpu.memory_space<vmem>>, %arg7: memref<16x1xf32, #tpu.memory_space<vmem>>, %arg8: memref<16x1xf32, #tpu.memory_space<vmem>>, %arg9: memref<24x128xf32, #tpu.memory_space<vmem>>) attributes {dimension_semantics = [#tpu.dimension_semantics<parallel>], iteration_bounds = array<i64: 1>, scalar_prefetch = 0 : i64, scratch_operands = 0 : i64, tpu.core_type = #tpu.core_type<tc>, window_params = [{transform_indices = @transform_0, window_bounds = array<i64: 5, 2048>}, {pipeline_mode = #tpu.pipeline_mode<synchronous>, transform_indices = @transform_1, window_bounds = array<i64: 8, 5>}, {pipeline_mode = #tpu.pipeline_mode<synchronous>, transform_indices = @transform_2, window_bounds = array<i64: 16, 8>}, {pipeline_mode = #tpu.pipeline_mode<synchronous>, transform_indices = @transform_3, window_bounds = array<i64: 24, 16>}, {pipeline_mode = #tpu.pipeline_mode<synchronous>, transform_indices = @transform_4, window_bounds = array<i64: 8, 1>}, {pipeline_mode = #tpu.pipeline_mode<synchronous>, transform_indices = @transform_5, window_bounds = array<i64: 8, 1>}, {pipeline_mode = #tpu.pipeline_mode<synchronous>, transform_indices = @transform_6, window_bounds = array<i64: 16, 1>}, {pipeline_mode = #tpu.pipeline_mode<synchronous>, transform_indices = @transform_7, window_bounds = array<i64: 16, 1>}, {transform_indices = @transform_8, window_bounds = array<i64: 24, 128>}]} {
    %c2048_i32 = arith.constant 2048 : i32
    %0 = arith.muli %arg0, %c2048_i32 : i32
    %c32_i32 = arith.constant 32 : i32
    %1 = arith.subi %c32_i32, %0 : i32
    %c2048_i32_0 = arith.constant 2048 : i32
    %2 = arith.minsi %1, %c2048_i32_0 : i32
    %3 = arith.sitofp %2 : i32 to f32
    %4 = tpu.iota {dimensions = array<i32: 1>} : vector<1x2048xi32>
    %5 = vector.broadcast %0 : i32 to vector<1x2048xi32>
    %6 = arith.addi %4, %5 : vector<1x2048xi32>
    %c32_i32_1 = arith.constant 32 : i32
    %7 = vector.broadcast %c32_i32_1 : i32 to vector<1x2048xi32>
    %8 = arith.cmpi slt, %6, %7 : vector<1x2048xi32>
    %9 = arith.extui %8 : vector<1x2048xi1> to vector<1x2048xi32>
    %10 = arith.sitofp %9 : vector<1x2048xi32> to vector<1x2048xf32>
    %c0 = arith.constant 0 : index
    %c0_2 = arith.constant 0 : index
    %11 = vector.load %arg1[%c0, %c0_2] : memref<5x2048xf32, #tpu.memory_space<vmem>>, vector<5x2048xf32>
    %c0_3 = arith.constant 0 : index
    %c0_4 = arith.constant 0 : index
    %12 = vector.load %arg2[%c0_3, %c0_4] : memref<8x5xf32, #tpu.memory_space<vmem>>, vector<8x5xf32>
    %cst = arith.constant dense<0.000000e+00> : vector<8x2048xf32>
    %13 = tpu.matmul %12, %11, %cst {dimension_numbers = #tpu.dot_dimension_numbers<[1], [0], [0], [1], [0, 0, 1, 1], [], []>} : vector<8x5xf32>, vector<5x2048xf32>, vector<8x2048xf32> -> vector<8x2048xf32>
    %c0_5 = arith.constant 0 : index
    %c0_6 = arith.constant 0 : index
    %14 = vector.load %arg5[%c0_5, %c0_6] : memref<8x1xf32, #tpu.memory_space<vmem>>, vector<8x1xf32>
    %15 = vector.broadcast %14 : vector<8x1xf32> to vector<8x2048xf32>
    %16 = arith.mulf %15, %13 : vector<8x2048xf32>
    %c0_7 = arith.constant 0 : index
    %c0_8 = arith.constant 0 : index
    %17 = vector.load %arg6[%c0_7, %c0_8] : memref<8x1xf32, #tpu.memory_space<vmem>>, vector<8x1xf32>
    %18 = vector.broadcast %17 : vector<8x1xf32> to vector<8x2048xf32>
    %19 = arith.addf %16, %18 : vector<8x2048xf32>
    %cst_9 = arith.constant 0.000000e+00 : f32
    %20 = vector.broadcast %cst_9 : f32 to vector<8x2048xf32>
    %21 = arith.maximumf %19, %20 : vector<8x2048xf32>
    %22 = vector.broadcast %10 : vector<1x2048xf32> to vector<8x2048xf32>
    %23 = arith.mulf %21, %22 : vector<8x2048xf32>
    %c0_10 = arith.constant 0 : index
    %c0_11 = arith.constant 0 : index
    %24 = vector.load %arg3[%c0_10, %c0_11] : memref<16x8xf32, #tpu.memory_space<vmem>>, vector<16x8xf32>
    %cst_12 = arith.constant dense<0.000000e+00> : vector<16x2048xf32>
    %25 = tpu.matmul %24, %23, %cst_12 {dimension_numbers = #tpu.dot_dimension_numbers<[1], [0], [0], [1], [0, 0, 1, 1], [], []>} : vector<16x8xf32>, vector<8x2048xf32>, vector<16x2048xf32> -> vector<16x2048xf32>
    %c0_13 = arith.constant 0 : index
    %c0_14 = arith.constant 0 : index
    %26 = vector.load %arg7[%c0_13, %c0_14] : memref<16x1xf32, #tpu.memory_space<vmem>>, vector<16x1xf32>
    %27 = vector.broadcast %26 : vector<16x1xf32> to vector<16x2048xf32>
    %28 = arith.mulf %27, %25 : vector<16x2048xf32>
    %c0_15 = arith.constant 0 : index
    %c0_16 = arith.constant 0 : index
    %29 = vector.load %arg8[%c0_15, %c0_16] : memref<16x1xf32, #tpu.memory_space<vmem>>, vector<16x1xf32>
    %30 = vector.broadcast %29 : vector<16x1xf32> to vector<16x2048xf32>
    %31 = arith.addf %28, %30 : vector<16x2048xf32>
    %cst_17 = arith.constant 0.000000e+00 : f32
    %32 = vector.broadcast %cst_17 : f32 to vector<16x2048xf32>
    %33 = arith.maximumf %31, %32 : vector<16x2048xf32>
    %34 = vector.broadcast %10 : vector<1x2048xf32> to vector<16x2048xf32>
    %35 = arith.mulf %33, %34 : vector<16x2048xf32>
    %c0_18 = arith.constant 0 : index
    %c0_19 = arith.constant 0 : index
    %36 = vector.load %arg4[%c0_18, %c0_19] : memref<24x16xf32, #tpu.memory_space<vmem>>, vector<24x16xf32>
    %cst_20 = arith.constant dense<0.000000e+00> : vector<24x2048xf32>
    %37 = tpu.matmul %36, %35, %cst_20 {dimension_numbers = #tpu.dot_dimension_numbers<[1], [0], [0], [1], [0, 0, 1, 1], [], []>} : vector<24x16xf32>, vector<16x2048xf32>, vector<24x2048xf32> -> vector<24x2048xf32>
    %cst_21 = arith.constant dense<0.000000e+00> : vector<24xf32>
    %38 = vector.multi_reduction <add>, %37, %cst_21 [1] : vector<24x2048xf32> to vector<24xf32>
    %39 = vector.shape_cast %38 : vector<24xf32> to vector<24x1xf32>
    %cst_22 = arith.constant 1.000000e+00 : f32
    %40 = arith.divf %cst_22, %3 : f32
    %41 = vector.broadcast %40 : f32 to vector<24x1xf32>
    %42 = arith.mulf %39, %41 : vector<24x1xf32>
    %43 = vector.broadcast %42 : vector<24x1xf32> to vector<24x2048xf32>
    %44 = arith.subf %37, %43 : vector<24x2048xf32>
    %45 = vector.broadcast %10 : vector<1x2048xf32> to vector<24x2048xf32>
    %46 = arith.mulf %44, %45 : vector<24x2048xf32>
    %47 = arith.mulf %46, %46 : vector<24x2048xf32>
    %cst_23 = arith.constant dense<0.000000e+00> : vector<24xf32>
    %48 = vector.multi_reduction <add>, %47, %cst_23 [1] : vector<24x2048xf32> to vector<24xf32>
    %49 = vector.shape_cast %48 : vector<24xf32> to vector<24x1xf32>
    %50 = tpu.iota {dimensions = array<i32: 1>} : vector<24x128xi32>
    %c0_i32 = arith.constant 0 : i32
    %51 = vector.broadcast %c0_i32 : i32 to vector<24x128xi32>
    %52 = arith.cmpi eq, %50, %51 : vector<24x128xi32>
    %cst_24 = arith.constant 0.000000e+00 : f32
    %53 = vector.shape_cast %39 : vector<24x1xf32> to vector<24x1xf32>
    %54 = vector.broadcast %53 : vector<24x1xf32> to vector<24x128xf32>
    %55 = vector.broadcast %cst_24 : f32 to vector<24x128xf32>
    %56 = arith.select %52, %54, %55 : vector<24x128xi1>, vector<24x128xf32>
    %c1_i32 = arith.constant 1 : i32
    %57 = vector.broadcast %c1_i32 : i32 to vector<24x128xi32>
    %58 = arith.cmpi eq, %50, %57 : vector<24x128xi32>
    %cst_25 = arith.constant 0.000000e+00 : f32
    %59 = vector.shape_cast %49 : vector<24x1xf32> to vector<24x1xf32>
    %60 = vector.broadcast %59 : vector<24x1xf32> to vector<24x128xf32>
    %61 = vector.broadcast %cst_25 : f32 to vector<24x128xf32>
    %62 = arith.select %58, %60, %61 : vector<24x128xi1>, vector<24x128xf32>
    %63 = arith.addf %56, %62 : vector<24x128xf32>
    %c0_26 = arith.constant 0 : index
    %c0_27 = arith.constant 0 : index
    %64 = vector.load %arg9[%c0_26, %c0_27] : memref<24x128xf32, #tpu.memory_space<vmem>>, vector<24x128xf32>
    tpu.vector_store %arg9[%c0_26, %c0_27], %63 {strides = array<i32>} : memref<24x128xf32, #tpu.memory_space<vmem>>, vector<24x128xf32>,
    return
  }
  func.func @transform_0(%arg0: i32) -> (i32, i32) {
    %c0_i32 = arith.constant 0 : i32
    %c0_i32_0 = arith.constant 0 : i32
    return %c0_i32, %arg0 : i32, i32
  }
  func.func @transform_1(%arg0: i32) -> (i32, i32) {
    %c0_i32 = arith.constant 0 : i32
    %c0_i32_0 = arith.constant 0 : i32
    %c0_i32_1 = arith.constant 0 : i32
    return %c0_i32, %c0_i32_0 : i32, i32
  }
  func.func @transform_2(%arg0: i32) -> (i32, i32) {
    %c0_i32 = arith.constant 0 : i32
    %c0_i32_0 = arith.constant 0 : i32
    %c0_i32_1 = arith.constant 0 : i32
    return %c0_i32, %c0_i32_0 : i32, i32
  }
  func.func @transform_3(%arg0: i32) -> (i32, i32) {
    %c0_i32 = arith.constant 0 : i32
    %c0_i32_0 = arith.constant 0 : i32
    %c0_i32_1 = arith.constant 0 : i32
    return %c0_i32, %c0_i32_0 : i32, i32
  }
  func.func @transform_4(%arg0: i32) -> (i32, i32) {
    %c0_i32 = arith.constant 0 : i32
    %c0_i32_0 = arith.constant 0 : i32
    %c0_i32_1 = arith.constant 0 : i32
    return %c0_i32, %c0_i32_0 : i32, i32
  }
  func.func @transform_5(%arg0: i32) -> (i32, i32) {
    %c0_i32 = arith.constant 0 : i32
    %c0_i32_0 = arith.constant 0 : i32
    %c0_i32_1 = arith.constant 0 : i32
    return %c0_i32, %c0_i32_0 : i32, i32
  }
  func.func @transform_6(%arg0: i32) -> (i32, i32) {
    %c0_i32 = arith.constant 0 : i32
    %c0_i32_0 = arith.constant 0 : i32
    %c0_i32_1 = arith.constant 0 : i32
    return %c0_i32, %c0_i32_0 : i32, i32
  }
  func.func @transform_7(%arg0: i32) -> (i32, i32) {
    %c0_i32 = arith.constant 0 : i32
    %c0_i32_0 = arith.constant 0 : i32
    %c0_i32_1 = arith.constant 0 : i32
    return %c0_i32, %c0_i32_0 : i32, i32
  }
  func.func @transform_8(%arg0: i32) -> (i32, i32) {
    %c0_i32 = arith.constant 0 : i32
    %c0_i32_0 = arith.constant 0 : i32
    return %c0_i32, %arg0 : i32, i32
  }
}

module attributes {stable_mosaic.version = 11 : i64} {
  func.func @_apply_kernel(%arg0: i32, %arg1: memref<2048x5xf32, #tpu.memory_space<vmem>>, %arg2: memref<8x5xf32, #tpu.memory_space<vmem>>, %arg3: memref<16x8xf32, #tpu.memory_space<vmem>>, %arg4: memref<24x16xf32, #tpu.memory_space<vmem>>, %arg5: memref<8x1xf32, #tpu.memory_space<vmem>>, %arg6: memref<8x1xf32, #tpu.memory_space<vmem>>, %arg7: memref<16x1xf32, #tpu.memory_space<vmem>>, %arg8: memref<16x1xf32, #tpu.memory_space<vmem>>, %arg9: memref<24x1xf32, #tpu.memory_space<vmem>>, %arg10: memref<24x1xf32, #tpu.memory_space<vmem>>, %arg11: memref<2048x29xf32, #tpu.memory_space<vmem>>) attributes {dimension_semantics = [#tpu.dimension_semantics<parallel>], iteration_bounds = array<i64: 1>, scalar_prefetch = 0 : i64, scratch_operands = 0 : i64, tpu.core_type = #tpu.core_type<tc>, window_params = [{transform_indices = @transform_0, window_bounds = array<i64: 2048, 5>}, {pipeline_mode = #tpu.pipeline_mode<synchronous>, transform_indices = @transform_1, window_bounds = array<i64: 8, 5>}, {pipeline_mode = #tpu.pipeline_mode<synchronous>, transform_indices = @transform_2, window_bounds = array<i64: 16, 8>}, {pipeline_mode = #tpu.pipeline_mode<synchronous>, transform_indices = @transform_3, window_bounds = array<i64: 24, 16>}, {pipeline_mode = #tpu.pipeline_mode<synchronous>, transform_indices = @transform_4, window_bounds = array<i64: 8, 1>}, {pipeline_mode = #tpu.pipeline_mode<synchronous>, transform_indices = @transform_5, window_bounds = array<i64: 8, 1>}, {pipeline_mode = #tpu.pipeline_mode<synchronous>, transform_indices = @transform_6, window_bounds = array<i64: 16, 1>}, {pipeline_mode = #tpu.pipeline_mode<synchronous>, transform_indices = @transform_7, window_bounds = array<i64: 16, 1>}, {pipeline_mode = #tpu.pipeline_mode<synchronous>, transform_indices = @transform_8, window_bounds = array<i64: 24, 1>}, {pipeline_mode = #tpu.pipeline_mode<synchronous>, transform_indices = @transform_9, window_bounds = array<i64: 24, 1>}, {transform_indices = @transform_10, window_bounds = array<i64: 2048, 29>}]} {
    %c0 = arith.constant 0 : index
    %c0_0 = arith.constant 0 : index
    %0 = vector.load %arg1[%c0, %c0_0] : memref<2048x5xf32, #tpu.memory_space<vmem>>, vector<2048x5xf32>
    %c0_1 = arith.constant 0 : index
    %c0_2 = arith.constant 0 : index
    %1 = vector.load %arg2[%c0_1, %c0_2] : memref<8x5xf32, #tpu.memory_space<vmem>>, vector<8x5xf32>
    %cst = arith.constant dense<0.000000e+00> : vector<8x2048xf32>
    %2 = tpu.matmul %1, %0, %cst {dimension_numbers = #tpu.dot_dimension_numbers<[1], [1], [0], [0], [0, 0, 1, 0], [], []>} : vector<8x5xf32>, vector<2048x5xf32>, vector<8x2048xf32> -> vector<8x2048xf32>
    %c0_3 = arith.constant 0 : index
    %c0_4 = arith.constant 0 : index
    %3 = vector.load %arg5[%c0_3, %c0_4] : memref<8x1xf32, #tpu.memory_space<vmem>>, vector<8x1xf32>
    %4 = vector.broadcast %3 : vector<8x1xf32> to vector<8x2048xf32>
    %5 = arith.mulf %4, %2 : vector<8x2048xf32>
    %c0_5 = arith.constant 0 : index
    %c0_6 = arith.constant 0 : index
    %6 = vector.load %arg6[%c0_5, %c0_6] : memref<8x1xf32, #tpu.memory_space<vmem>>, vector<8x1xf32>
    %7 = vector.broadcast %6 : vector<8x1xf32> to vector<8x2048xf32>
    %8 = arith.addf %5, %7 : vector<8x2048xf32>
    %cst_7 = arith.constant 0.000000e+00 : f32
    %9 = vector.broadcast %cst_7 : f32 to vector<8x2048xf32>
    %10 = arith.maximumf %8, %9 : vector<8x2048xf32>
    %c0_8 = arith.constant 0 : index
    %c0_9 = arith.constant 0 : index
    %11 = vector.load %arg3[%c0_8, %c0_9] : memref<16x8xf32, #tpu.memory_space<vmem>>, vector<16x8xf32>
    %cst_10 = arith.constant dense<0.000000e+00> : vector<16x2048xf32>
    %12 = tpu.matmul %11, %10, %cst_10 {dimension_numbers = #tpu.dot_dimension_numbers<[1], [0], [0], [1], [0, 0, 1, 1], [], []>} : vector<16x8xf32>, vector<8x2048xf32>, vector<16x2048xf32> -> vector<16x2048xf32>
    %c0_11 = arith.constant 0 : index
    %c0_12 = arith.constant 0 : index
    %13 = vector.load %arg7[%c0_11, %c0_12] : memref<16x1xf32, #tpu.memory_space<vmem>>, vector<16x1xf32>
    %14 = vector.broadcast %13 : vector<16x1xf32> to vector<16x2048xf32>
    %15 = arith.mulf %14, %12 : vector<16x2048xf32>
    %c0_13 = arith.constant 0 : index
    %c0_14 = arith.constant 0 : index
    %16 = vector.load %arg8[%c0_13, %c0_14] : memref<16x1xf32, #tpu.memory_space<vmem>>, vector<16x1xf32>
    %17 = vector.broadcast %16 : vector<16x1xf32> to vector<16x2048xf32>
    %18 = arith.addf %15, %17 : vector<16x2048xf32>
    %cst_15 = arith.constant 0.000000e+00 : f32
    %19 = vector.broadcast %cst_15 : f32 to vector<16x2048xf32>
    %20 = arith.maximumf %18, %19 : vector<16x2048xf32>
    %c0_16 = arith.constant 0 : index
    %c0_17 = arith.constant 0 : index
    %21 = vector.load %arg4[%c0_16, %c0_17] : memref<24x16xf32, #tpu.memory_space<vmem>>, vector<24x16xf32>
    %cst_18 = arith.constant dense<0.000000e+00> : vector<24x2048xf32>
    %22 = tpu.matmul %21, %20, %cst_18 {dimension_numbers = #tpu.dot_dimension_numbers<[1], [0], [0], [1], [0, 0, 1, 1], [], []>} : vector<24x16xf32>, vector<16x2048xf32>, vector<24x2048xf32> -> vector<24x2048xf32>
    %c0_19 = arith.constant 0 : index
    %c0_20 = arith.constant 0 : index
    %23 = vector.load %arg9[%c0_19, %c0_20] : memref<24x1xf32, #tpu.memory_space<vmem>>, vector<24x1xf32>
    %24 = vector.broadcast %23 : vector<24x1xf32> to vector<24x2048xf32>
    %25 = arith.mulf %24, %22 : vector<24x2048xf32>
    %c0_21 = arith.constant 0 : index
    %c0_22 = arith.constant 0 : index
    %26 = vector.load %arg10[%c0_21, %c0_22] : memref<24x1xf32, #tpu.memory_space<vmem>>, vector<24x1xf32>
    %27 = vector.broadcast %26 : vector<24x1xf32> to vector<24x2048xf32>
    %28 = arith.addf %25, %27 : vector<24x2048xf32>
    %cst_23 = arith.constant 0.000000e+00 : f32
    %29 = vector.broadcast %cst_23 : f32 to vector<24x2048xf32>
    %30 = arith.maximumf %28, %29 : vector<24x2048xf32>
    %31 = tpu.transpose %30, [1, 0] : vector<24x2048xf32> -> vector<2048x24xf32>
    %32 = tpu.concatenate %0, %31 in 1 : vector<2048x5xf32>, vector<2048x24xf32> -> vector<2048x29xf32>
    %c0_24 = arith.constant 0 : index
    %c0_25 = arith.constant 0 : index
    %33 = vector.load %arg11[%c0_24, %c0_25] : memref<2048x29xf32, #tpu.memory_space<vmem>>, vector<2048x29xf32>
    tpu.vector_store %arg11[%c0_24, %c0_25], %32 {strides = array<i32>} : memref<2048x29xf32, #tpu.memory_space<vmem>>, vector<2048x29xf32>,
    return
  }
  func.func @transform_0(%arg0: i32) -> (i32, i32) {
    %c0_i32 = arith.constant 0 : i32
    %c0_i32_0 = arith.constant 0 : i32
    return %arg0, %c0_i32 : i32, i32
  }
  func.func @transform_1(%arg0: i32) -> (i32, i32) {
    %c0_i32 = arith.constant 0 : i32
    %c0_i32_0 = arith.constant 0 : i32
    %c0_i32_1 = arith.constant 0 : i32
    return %c0_i32, %c0_i32_0 : i32, i32
  }
  func.func @transform_2(%arg0: i32) -> (i32, i32) {
    %c0_i32 = arith.constant 0 : i32
    %c0_i32_0 = arith.constant 0 : i32
    %c0_i32_1 = arith.constant 0 : i32
    return %c0_i32, %c0_i32_0 : i32, i32
  }
  func.func @transform_3(%arg0: i32) -> (i32, i32) {
    %c0_i32 = arith.constant 0 : i32
    %c0_i32_0 = arith.constant 0 : i32
    %c0_i32_1 = arith.constant 0 : i32
    return %c0_i32, %c0_i32_0 : i32, i32
  }
  func.func @transform_4(%arg0: i32) -> (i32, i32) {
    %c0_i32 = arith.constant 0 : i32
    %c0_i32_0 = arith.constant 0 : i32
    %c0_i32_1 = arith.constant 0 : i32
    return %c0_i32, %c0_i32_0 : i32, i32
  }
  func.func @transform_5(%arg0: i32) -> (i32, i32) {
    %c0_i32 = arith.constant 0 : i32
    %c0_i32_0 = arith.constant 0 : i32
    %c0_i32_1 = arith.constant 0 : i32
    return %c0_i32, %c0_i32_0 : i32, i32
  }
  func.func @transform_6(%arg0: i32) -> (i32, i32) {
    %c0_i32 = arith.constant 0 : i32
    %c0_i32_0 = arith.constant 0 : i32
    %c0_i32_1 = arith.constant 0 : i32
    return %c0_i32, %c0_i32_0 : i32, i32
  }
  func.func @transform_7(%arg0: i32) -> (i32, i32) {
    %c0_i32 = arith.constant 0 : i32
    %c0_i32_0 = arith.constant 0 : i32
    %c0_i32_1 = arith.constant 0 : i32
    return %c0_i32, %c0_i32_0 : i32, i32
  }
  func.func @transform_8(%arg0: i32) -> (i32, i32) {
    %c0_i32 = arith.constant 0 : i32
    %c0_i32_0 = arith.constant 0 : i32
    %c0_i32_1 = arith.constant 0 : i32
    return %c0_i32, %c0_i32_0 : i32, i32
  }
  func.func @transform_9(%arg0: i32) -> (i32, i32) {
    %c0_i32 = arith.constant 0 : i32
    %c0_i32_0 = arith.constant 0 : i32
    %c0_i32_1 = arith.constant 0 : i32
    return %c0_i32, %c0_i32_0 : i32, i32
  }
  func.func @transform_10(%arg0: i32) -> (i32, i32) {
    %c0_i32 = arith.constant 0 : i32
    %c0_i32_0 = arith.constant 0 : i32
    return %arg0, %c0_i32 : i32, i32
  }
}

</mosaic_0001>

<llo_original>
// kernel: base_point_tinet.4
$region0: #{base_point_tinet.4}
  #allocation0 [shape = 'u32[]', space=smem, size = 0x4, offset = 0x4, fixed_abs, tag = 'smem constant byte address 0x4 - core index']
  #allocation1 [shape = 'u32[144,128]{1,0:T(1,128)}', space=vmem, size = 0x12000, scoped, tag = 'internal scratch']
  %s0 = inlined_call_operand.vmem [shape: f32[5,2048], index: 0, kind: input, shape index: {}]
  %s1 = inlined_call_operand.vmem [shape: f32[8,5], index: 1, kind: input, shape index: {}]
  %s2 = inlined_call_operand.vmem [shape: f32[8,128], index: 2, kind: output, shape index: {}]
  %s3 = sld [smem:[#allocation0]]
  $region18: #{base_point_tinet.4} parent=0
    _
  %s5 = ssub.s32 1, %s3
  %s6 = scalar_select 0, %s5, %s3
  // Predicated region
  $region2: #{base_point_tinet.4} parent=0 // pred_check
    _
  $region3: #{base_point_tinet.4} parent=0 // pred_check_branch
    %8 = sbr.rel (0) target = $region5
  $region4: #{base_point_tinet.4} parent=0 // pred_region
    _
  $region5: #{base_point_tinet.4} parent=0 // pred_fallthru
    _
  // Predicated region
  $region6: #{base_point_tinet.4} parent=0 // pred_check
    _
  $region7: #{base_point_tinet.4} parent=0 // pred_check_branch
    %10 = sbr.rel (0) target = $region9
  $region8: #{base_point_tinet.4} parent=0 // pred_region
    _
  $region9: #{base_point_tinet.4} parent=0 // pred_fallthru
    _
  %s11 = smul.u32 0, 2048
  %s12 = ssub.s32 32, %s11
  %p13 = scmp.lt.s32.totalorder %s12, 2048
  %s14 = scalar_select %p13, %s12, 2048
  %s15 = scvt.s32.f32 %s14
  %v16 = vlaneseq
  %v17 = vand.u32 %v16, 127
  %v18 = vadd.s32 %v17, 128
  %v19 = vadd.s32 %v17, 256
  %v20 = vadd.s32 %v17, 384
  %v21 = vadd.s32 %v17, 512
  %v22 = vadd.s32 %v17, 640
  %v23 = vadd.s32 %v17, 768
  %v24 = vadd.s32 %v17, 896
  %v25 = vadd.s32 %v17, 1024
  %v26 = vadd.s32 %v17, 1152
  %v27 = vadd.s32 %v17, 1280
  %v28 = vadd.s32 %v17, 1408
  %v29 = vadd.s32 %v17, 1536
  %v30 = vadd.s32 %v17, 1664
  %v31 = vadd.s32 %v17, 1792
  %v32 = vadd.s32 %v17, 1920
  %v33 = vstv %s11
  %v34 = vadd.s32 %v17, %v33
  %v35 = vadd.s32 %v18, %v33
  %v36 = vadd.s32 %v19, %v33
  %v37 = vadd.s32 %v20, %v33
  %v38 = vadd.s32 %v21, %v33
  %v39 = vadd.s32 %v22, %v33
  %v40 = vadd.s32 %v23, %v33
  %v41 = vadd.s32 %v24, %v33
  %v42 = vadd.s32 %v25, %v33
  %v43 = vadd.s32 %v26, %v33
  %v44 = vadd.s32 %v27, %v33
  %v45 = vadd.s32 %v28, %v33
  %v46 = vadd.s32 %v29, %v33
  %v47 = vadd.s32 %v30, %v33
  %v48 = vadd.s32 %v31, %v33
  %v49 = vadd.s32 %v32, %v33
  %vm50 = vcmp.lt.s32.totalorder %v34, 32
  %vm51 = vcmp.lt.s32.totalorder %v35, 32
  %vm52 = vcmp.lt.s32.totalorder %v36, 32
  %vm53 = vcmp.lt.s32.totalorder %v37, 32
  %vm54 = vcmp.lt.s32.totalorder %v38, 32
  %vm55 = vcmp.lt.s32.totalorder %v39, 32
  %vm56 = vcmp.lt.s32.totalorder %v40, 32
  %vm57 = vcmp.lt.s32.totalorder %v41, 32
  %vm58 = vcmp.lt.s32.totalorder %v42, 32
  %vm59 = vcmp.lt.s32.totalorder %v43, 32
  %vm60 = vcmp.lt.s32.totalorder %v44, 32
  %vm61 = vcmp.lt.s32.totalorder %v45, 32
  %vm62 = vcmp.lt.s32.totalorder %v46, 32
  %vm63 = vcmp.lt.s32.totalorder %v47, 32
  %vm64 = vcmp.lt.s32.totalorder %v48, 32
  %vm65 = vcmp.lt.s32.totalorder %v49, 32
  %v66 = vsel %vm50, 1, 0
  %v67 = vsel %vm51, 1, 0
  %v68 = vsel %vm52, 1, 0
  %v69 = vsel %vm53, 1, 0
  %v70 = vsel %vm54, 1, 0
  %v71 = vsel %vm55, 1, 0
  %v72 = vsel %vm56, 1, 0
  %v73 = vsel %vm57, 1, 0
  %v74 = vsel %vm58, 1, 0
  %v75 = vsel %vm59, 1, 0
  %v76 = vsel %vm60, 1, 0
  %v77 = vsel %vm61, 1, 0
  %v78 = vsel %vm62, 1, 0
  %v79 = vsel %vm63, 1, 0
  %v80 = vsel %vm64, 1, 0
  %v81 = vsel %vm65, 1, 0
  %v82 = vcvt.s32.f32 %v66
  %v83 = vcvt.s32.f32 %v67
  %v84 = vcvt.s32.f32 %v68
  %v85 = vcvt.s32.f32 %v69
  %v86 = vcvt.s32.f32 %v70
  %v87 = vcvt.s32.f32 %v71
  %v88 = vcvt.s32.f32 %v72
  %v89 = vcvt.s32.f32 %v73
  %v90 = vcvt.s32.f32 %v74
  %v91 = vcvt.s32.f32 %v75
  %v92 = vcvt.s32.f32 %v76
  %v93 = vcvt.s32.f32 %v77
  %v94 = vcvt.s32.f32 %v78
  %v95 = vcvt.s32.f32 %v79
  %v96 = vcvt.s32.f32 %v80
  %v97 = vcvt.s32.f32 %v81
  %v98 = vld [vmem:[%s0] sm:$0x1f]
  %v99 = vld [vmem:[%s0 + $0x8] sm:$0x1f]
  %v100 = vld [vmem:[%s0 + $0x10] sm:$0x1f]
  %v101 = vld [vmem:[%s0 + $0x18] sm:$0x1f]
  %v102 = vld [vmem:[%s0 + $0x20] sm:$0x1f]
  %v103 = vld [vmem:[%s0 + $0x28] sm:$0x1f]
  %v104 = vld [vmem:[%s0 + $0x30] sm:$0x1f]
  %v105 = vld [vmem:[%s0 + $0x38] sm:$0x1f]
  %v106 = vld [vmem:[%s0 + $0x40] sm:$0x1f]
  %v107 = vld [vmem:[%s0 + $0x48] sm:$0x1f]
  %v108 = vld [vmem:[%s0 + $0x50] sm:$0x1f]
  %v109 = vld [vmem:[%s0 + $0x58] sm:$0x1f]
  %v110 = vld [vmem:[%s0 + $0x60] sm:$0x1f]
  %v111 = vld [vmem:[%s0 + $0x68] sm:$0x1f]
  %v112 = vld [vmem:[%s0 + $0x70] sm:$0x1f]
  %v113 = vld [vmem:[%s0 + $0x78] sm:$0x1f]
  %v114 = vld [vmem:[%s1] sm:$0xff]
  %vm115 = vcmask 39936
  %v117 = vsel %vm115, %v114, 0
  %vm119 = vcmask 1044480
  %v121 = vsel %vm119, %v98, 0
  %v124 = vsel %vm119, %v99, 0
  %v127 = vsel %vm119, %v100, 0
  %v130 = vsel %vm119, %v101, 0
  %v133 = vsel %vm119, %v102, 0
  %v136 = vsel %vm119, %v103, 0
  %v139 = vsel %vm119, %v104, 0
  %v142 = vsel %vm119, %v105, 0
  %v145 = vsel %vm119, %v106, 0
  %v148 = vsel %vm119, %v107, 0
  %v151 = vsel %vm119, %v108, 0
  %v154 = vsel %vm119, %v109, 0
  %v157 = vsel %vm119, %v110, 0
  %v160 = vsel %vm119, %v111, 0
  %v163 = vsel %vm119, %v112, 0
  %v166 = vsel %vm119, %v113, 0
  %168 = vmatprep.subr.mxu0 %v124
  %169 = vmatpush1.msra.mxu0 %v121
  %170 = vmatprep.subr.mxu0 0.0
  %171 = vmatpush1.msra.mxu0 0.0
  %172 = vmatprep.subr.mxu0 0.0
  %173 = vmatpush1.msra.mxu0 0.0
  %174 = vmatprep.subr.mxu0 0.0
  %175 = vmatpush1.msra.mxu0 0.0
  %176 = vmatprep.subr.mxu0 0.0
  %177 = vmatpush1.msra.mxu0 0.0
  %178 = vmatprep.subr.mxu0 0.0
  %179 = vmatpush1.msra.mxu0 0.0
  %180 = vmatprep.subr.mxu0 0.0
  %181 = vmatpush1.msra.mxu0 0.0
  %182 = vmatprep.subr.mxu0 0.0
  %183 = vmatpush1.msra.mxu0 0.0
  %184 = vmatprep.subr.mxu0 0.0
  %185 = vmatpush1.msra.mxu0 0.0
  %186 = vmatprep.subr.mxu0 0.0
  %187 = vmatpush1.msra.mxu0 0.0
  %188 = vmatprep.subr.mxu0 0.0
  %189 = vmatpush1.msra.mxu0 0.0
  %190 = vmatprep.subr.mxu0 0.0
  %191 = vmatpush1.msra.mxu0 0.0
  %192 = vmatprep.subr.mxu0 0.0
  %193 = vmatpush1.msra.mxu0 0.0
  %194 = vmatprep.subr.mxu0 0.0
  %195 = vmatpush1.msra.mxu0 0.0
  %196 = vmatprep.subr.mxu0 0.0
  %197 = vmatpush1.msra.mxu0 0.0
  %198 = vmatprep.subr.mxu0 0.0
  %199 = vmatpush1.msra.mxu0 0.0
  %200 = vmatprep.subr.mxu0 0.0
  %201 = vmatpush1.msra.mxu0 0.0
  %202 = vmatprep.subr.mxu0 0.0
  %203 = vmatpush1.msra.mxu0 0.0
  %204 = vmatprep.subr.mxu0 0.0
  %205 = vmatpush1.msra.mxu0 0.0
  %206 = vmatprep.subr.mxu0 0.0
  %207 = vmatpush1.msra.mxu0 0.0
  %208 = vmatprep.subr.mxu0 0.0
  %209 = vmatpush1.msra.mxu0 0.0
  %210 = vmatprep.subr.mxu0 0.0
  %211 = vmatpush1.msra.mxu0 0.0
  %212 = vmatprep.subr.mxu0 0.0
  %213 = vmatpush1.msra.mxu0 0.0
  %214 = vmatprep.subr.mxu0 0.0
  %215 = vmatpush1.msra.mxu0 0.0
  %216 = vmatprep.subr.mxu0 0.0
  %217 = vmatpush1.msra.mxu0 0.0
  %218 = vmatprep.subr.mxu0 0.0
  %219 = vmatpush1.msra.mxu0 0.0
  %220 = vmatprep.subr.mxu0 0.0
  %221 = vmatpush1.msra.mxu0 0.0
  %222 = vmatprep.subr.mxu0 0.0
  %223 = vmatpush1.msra.mxu0 0.0
  %224 = vmatprep.subr.mxu0 0.0
  %225 = vmatpush1.msra.mxu0 0.0
  %226 = vmatprep.subr.mxu0 0.0
  %227 = vmatpush1.msra.mxu0 0.0
  %228 = vmatprep.subr.mxu0 0.0
  %229 = vmatpush1.msra.mxu0 0.0
  %230 = vmatprep.subr.mxu0 0.0
  %231 = vmatpush1.msra.mxu0 0.0
  %232 = vmatprep.mubr.f32.mxu0 0.0
  %233 = vmatmul.mubr.f32.gmra.mrb[0].mxu0 %v117
  %v234 = vpop.f32.mrb[0].mxu0
  %v235 = vadd.f32 0.0, %v234
  %v236 = vpop.f32.mrb[0].mxu0
  %v237 = vadd.f32 0.0, %v236
  %238 = vdwg.mxu0
  %239 = vmatprep.subr.mxu0 %v130
  %240 = vmatpush1.msra.mxu0 %v127
  %241 = vmatprep.subr.mxu0 0.0
  %242 = vmatpush1.msra.mxu0 0.0
  %243 = vmatprep.subr.mxu0 0.0
  %244 = vmatpush1.msra.mxu0 0.0
  %245 = vmatprep.subr.mxu0 0.0
  %246 = vmatpush1.msra.mxu0 0.0
  %247 = vmatprep.subr.mxu0 0.0
  %248 = vmatpush1.msra.mxu0 0.0
  %249 = vmatprep.subr.mxu0 0.0
  %250 = vmatpush1.msra.mxu0 0.0
  %251 = vmatprep.subr.mxu0 0.0
  %252 = vmatpush1.msra.mxu0 0.0
  %253 = vmatprep.subr.mxu0 0.0
  %254 = vmatpush1.msra.mxu0 0.0
  %255 = vmatprep.subr.mxu0 0.0
  %256 = vmatpush1.msra.mxu0 0.0
  %257 = vmatprep.subr.mxu0 0.0
  %258 = vmatpush1.msra.mxu0 0.0
  %259 = vmatprep.subr.mxu0 0.0
  %260 = vmatpush1.msra.mxu0 0.0
  %261 = vmatprep.subr.mxu0 0.0
  %262 = vmatpush1.msra.mxu0 0.0
  %263 = vmatprep.subr.mxu0 0.0
  %264 = vmatpush1.msra.mxu0 0.0
  %265 = vmatprep.subr.mxu0 0.0
  %266 = vmatpush1.msra.mxu0 0.0
  %267 = vmatprep.subr.mxu0 0.0
  %268 = vmatpush1.msra.mxu0 0.0
  %269 = vmatprep.subr.mxu0 0.0
  %270 = vmatpush1.msra.mxu0 0.0
  %271 = vmatprep.subr.mxu0 0.0
  %272 = vmatpush1.msra.mxu0 0.0
  %273 = vmatprep.subr.mxu0 0.0
  %274 = vmatpush1.msra.mxu0 0.0
  %275 = vmatprep.subr.mxu0 0.0
  %276 = vmatpush1.msra.mxu0 0.0
  %277 = vmatprep.subr.mxu0 0.0
  %278 = vmatpush1.msra.mxu0 0.0
  %279 = vmatprep.subr.mxu0 0.0
  %280 = vmatpush1.msra.mxu0 0.0
  %281 = vmatprep.subr.mxu0 0.0
  %282 = vmatpush1.msra.mxu0 0.0
  %283 = vmatprep.subr.mxu0 0.0
  %284 = vmatpush1.msra.mxu0 0.0
  %285 = vmatprep.subr.mxu0 0.0
  %286 = vmatpush1.msra.mxu0 0.0
  %287 = vmatprep.subr.mxu0 0.0
  %288 = vmatpush1.msra.mxu0 0.0
  %289 = vmatprep.subr.mxu0 0.0
  %290 = vmatpush1.msra.mxu0 0.0
  %291 = vmatprep.subr.mxu0 0.0
  %292 = vmatpush1.msra.mxu0 0.0
  %293 = vmatprep.subr.mxu0 0.0
  %294 = vmatpush1.msra.mxu0 0.0
  %295 = vmatprep.subr.mxu0 0.0
  %296 = vmatpush1.msra.mxu0 0.0
  %297 = vmatprep.subr.mxu0 0.0
  %298 = vmatpush1.msra.mxu0 0.0
  %299 = vmatprep.subr.mxu0 0.0
  %300 = vmatpush1.msra.mxu0 0.0
  %301 = vmatprep.subr.mxu0 0.0
  %302 = vmatpush1.msra.mxu0 0.0
  %303 = vmatprep.mubr.f32.mxu0 0.0
  %304 = vmatmul.mubr.f32.gmra.mrb[0].mxu0 %v117
  %v305 = vpop.f32.mrb[0].mxu0
  %v306 = vadd.f32 0.0, %v305
  %v307 = vpop.f32.mrb[0].mxu0
  %v308 = vadd.f32 0.0, %v307
  %309 = vdwg.mxu0
  %310 = vmatprep.subr.mxu0 %v136
  %311 = vmatpush1.msra.mxu0 %v133
  %312 = vmatprep.subr.mxu0 0.0
  %313 = vmatpush1.msra.mxu0 0.0
  %314 = vmatprep.subr.mxu0 0.0
  %315 = vmatpush1.msra.mxu0 0.0
  %316 = vmatprep.subr.mxu0 0.0
  %317 = vmatpush1.msra.mxu0 0.0
  %318 = vmatprep.subr.mxu0 0.0
  %319 = vmatpush1.msra.mxu0 0.0
  %320 = vmatprep.subr.mxu0 0.0
  %321 = vmatpush1.msra.mxu0 0.0
  %322 = vmatprep.subr.mxu0 0.0
  %323 = vmatpush1.msra.mxu0 0.0
  %324 = vmatprep.subr.mxu0 0.0
  %325 = vmatpush1.msra.mxu0 0.0
  %326 = vmatprep.subr.mxu0 0.0
  %327 = vmatpush1.msra.mxu0 0.0
  %328 = vmatprep.subr.mxu0 0.0
  %329 = vmatpush1.msra.mxu0 0.0
  %330 = vmatprep.subr.mxu0 0.0
  %331 = vmatpush1.msra.mxu0 0.0
  %332 = vmatprep.subr.mxu0 0.0
  %333 = vmatpush1.msra.mxu0 0.0
  %334 = vmatprep.subr.mxu0 0.0
  %335 = vmatpush1.msra.mxu0 0.0
  %336 = vmatprep.subr.mxu0 0.0
  %337 = vmatpush1.msra.mxu0 0.0
  %338 = vmatprep.subr.mxu0 0.0
  %339 = vmatpush1.msra.mxu0 0.0
  %340 = vmatprep.subr.mxu0 0.0
  %341 = vmatpush1.msra.mxu0 0.0
  %342 = vmatprep.subr.mxu0 0.0
  %343 = vmatpush1.msra.mxu0 0.0
  %344 = vmatprep.subr.mxu0 0.0
  %345 = vmatpush1.msra.mxu0 0.0
  %346 = vmatprep.subr.mxu0 0.0
  %347 = vmatpush1.msra.mxu0 0.0
  %348 = vmatprep.subr.mxu0 0.0
  %349 = vmatpush1.msra.mxu0 0.0
  %350 = vmatprep.subr.mxu0 0.0
  %351 = vmatpush1.msra.mxu0 0.0
  %352 = vmatprep.subr.mxu0 0.0
  %353 = vmatpush1.msra.mxu0 0.0
  %354 = vmatprep.subr.mxu0 0.0
  %355 = vmatpush1.msra.mxu0 0.0
  %356 = vmatprep.subr.mxu0 0.0
  %357 = vmatpush1.msra.mxu0 0.0
  %358 = vmatprep.subr.mxu0 0.0
  %359 = vmatpush1.msra.mxu0 0.0
  %360 = vmatprep.subr.mxu0 0.0
  %361 = vmatpush1.msra.mxu0 0.0
  %362 = vmatprep.subr.mxu0 0.0
  %363 = vmatpush1.msra.mxu0 0.0
  %364 = vmatprep.subr.mxu0 0.0
  %365 = vmatpush1.msra.mxu0 0.0
  %366 = vmatprep.subr.mxu0 0.0
  %367 = vmatpush1.msra.mxu0 0.0
  %368 = vmatprep.subr.mxu0 0.0
  %369 = vmatpush1.msra.mxu0 0.0
  %370 = vmatprep.subr.mxu0 0.0
  %371 = vmatpush1.msra.mxu0 0.0
  %372 = vmatprep.subr.mxu0 0.0
  %373 = vmatpush1.msra.mxu0 0.0
  %374 = vmatprep.mubr.f32.mxu0 0.0
  %375 = vmatmul.mubr.f32.gmra.mrb[0].mxu0 %v117
  %v376 = vpop.f32.mrb[0].mxu0
  %v377 = vadd.f32 0.0, %v376
  %v378 = vpop.f32.mrb[0].mxu0
  %v379 = vadd.f32 0.0, %v378
  %380 = vdwg.mxu0
  %381 = vmatprep.subr.mxu0 %v142
  %382 = vmatpush1.msra.mxu0 %v139
  %383 = vmatprep.subr.mxu0 0.0
  %384 = vmatpush1.msra.mxu0 0.0
  %385 = vmatprep.subr.mxu0 0.0
  %386 = vmatpush1.msra.mxu0 0.0
  %387 = vmatprep.subr.mxu0 0.0
  %388 = vmatpush1.msra.mxu0 0.0
  %389 = vmatprep.subr.mxu0 0.0
  %390 = vmatpush1.msra.mxu0 0.0
  %391 = vmatprep.subr.mxu0 0.0
  %392 = vmatpush1.msra.mxu0 0.0
  %393 = vmatprep.subr.mxu0 0.0
  %394 = vmatpush1.msra.mxu0 0.0
  %395 = vmatprep.subr.mxu0 0.0
  %396 = vmatpush1.msra.mxu0 0.0
  %397 = vmatprep.subr.mxu0 0.0
  %398 = vmatpush1.msra.mxu0 0.0
  %399 = vmatprep.subr.mxu0 0.0
  %400 = vmatpush1.msra.mxu0 0.0
  %401 = vmatprep.subr.mxu0 0.0
  %402 = vmatpush1.msra.mxu0 0.0
  %403 = vmatprep.subr.mxu0 0.0
  %404 = vmatpush1.msra.mxu0 0.0
  %405 = vmatprep.subr.mxu0 0.0
  %406 = vmatpush1.msra.mxu0 0.0
  %407 = vmatprep.subr.mxu0 0.0
  %408 = vmatpush1.msra.mxu0 0.0
  %409 = vmatprep.subr.mxu0 0.0
  %410 = vmatpush1.msra.mxu0 0.0
  %411 = vmatprep.subr.mxu0 0.0
  %412 = vmatpush1.msra.mxu0 0.0
  %413 = vmatprep.subr.mxu0 0.0
  %414 = vmatpush1.msra.mxu0 0.0
  %415 = vmatprep.subr.mxu0 0.0
  %416 = vmatpush1.msra.mxu0 0.0
  %417 = vmatprep.subr.mxu0 0.0
  %418 = vmatpush1.msra.mxu0 0.0
  %419 = vmatprep.subr.mxu0 0.0
  %420 = vmatpush1.msra.mxu0 0.0
  %421 = vmatprep.subr.mxu0 0.0
  %422 = vmatpush1.msra.mxu0 0.0
  %423 = vmatprep.subr.mxu0 0.0
  %424 = vmatpush1.msra.mxu0 0.0
  %425 = vmatprep.subr.mxu0 0.0
  %426 = vmatpush1.msra.mxu0 0.0
  %427 = vmatprep.subr.mxu0 0.0
  %428 = vmatpush1.msra.mxu0 0.0
  %429 = vmatprep.subr.mxu0 0.0
  %430 = vmatpush1.msra.mxu0 0.0
  %431 = vmatprep.subr.mxu0 0.0
  %432 = vmatpush1.msra.mxu0 0.0
  %433 = vmatprep.subr.mxu0 0.0
  %434 = vmatpush1.msra.mxu0 0.0
  %435 = vmatprep.subr.mxu0 0.0
  %436 = vmatpush1.msra.mxu0 0.0
  %437 = vmatprep.subr.mxu0 0.0
  %438 = vmatpush1.msra.mxu0 0.0
  %439 = vmatprep.subr.mxu0 0.0
  %440 = vmatpush1.msra.mxu0 0.0
  %441 = vmatprep.subr.mxu0 0.0
  %442 = vmatpush1.msra.mxu0 0.0
  %443 = vmatprep.subr.mxu0 0.0
  %444 = vmatpush1.msra.mxu0 0.0
  %445 = vmatprep.mubr.f32.mxu0 0.0
  %446 = vmatmul.mubr.f32.gmra.mrb[0].mxu0 %v117
  %v447 = vpop.f32.mrb[0].mxu0
  %v448 = vadd.f32 0.0, %v447
  %v449 = vpop.f32.mrb[0].mxu0
  %v450 = vadd.f32 0.0, %v449
  %451 = vdwg.mxu0
  %452 = vmatprep.subr.mxu0 %v148
  %453 = vmatpush1.msra.mxu0 %v145
  %454 = vmatprep.subr.mxu0 0.0
  %455 = vmatpush1.msra.mxu0 0.0
  %456 = vmatprep.subr.mxu0 0.0
  %457 = vmatpush1.msra.mxu0 0.0
  %458 = vmatprep.subr.mxu0 0.0
  %459 = vmatpush1.msra.mxu0 0.0
  %460 = vmatprep.subr.mxu0 0.0
  %461 = vmatpush1.msra.mxu0 0.0
  %462 = vmatprep.subr.mxu0 0.0
  %463 = vmatpush1.msra.mxu0 0.0
  %464 = vmatprep.subr.mxu0 0.0
  %465 = vmatpush1.msra.mxu0 0.0
  %466 = vmatprep.subr.mxu0 0.0
  %467 = vmatpush1.msra.mxu0 0.0
  %468 = vmatprep.subr.mxu0 0.0
  %469 = vmatpush1.msra.mxu0 0.0
  %470 = vmatprep.subr.mxu0 0.0
  %471 = vmatpush1.msra.mxu0 0.0
  %472 = vmatprep.subr.mxu0 0.0
  %473 = vmatpush1.msra.mxu0 0.0
  %474 = vmatprep.subr.mxu0 0.0
  %475 = vmatpush1.msra.mxu0 0.0
  %476 = vmatprep.subr.mxu0 0.0
  %477 = vmatpush1.msra.mxu0 0.0
  %478 = vmatprep.subr.mxu0 0.0
  %479 = vmatpush1.msra.mxu0 0.0
  %480 = vmatprep.subr.mxu0 0.0
  %481 = vmatpush1.msra.mxu0 0.0
  %482 = vmatprep.subr.mxu0 0.0
  %483 = vmatpush1.msra.mxu0 0.0
  %484 = vmatprep.subr.mxu0 0.0
  %485 = vmatpush1.msra.mxu0 0.0
  %486 = vmatprep.subr.mxu0 0.0
  %487 = vmatpush1.msra.mxu0 0.0
  %488 = vmatprep.subr.mxu0 0.0
  %489 = vmatpush1.msra.mxu0 0.0
  %490 = vmatprep.subr.mxu0 0.0
  %491 = vmatpush1.msra.mxu0 0.0
  %492 = vmatprep.subr.mxu0 0.0
  %493 = vmatpush1.msra.mxu0 0.0
  %494 = vmatprep.subr.mxu0 0.0
  %495 = vmatpush1.msra.mxu0 0.0
  %496 = vmatprep.subr.mxu0 0.0
  %497 = vmatpush1.msra.mxu0 0.0
  %498 = vmatprep.subr.mxu0 0.0
  %499 = vmatpush1.msra.mxu0 0.0
  %500 = vmatprep.subr.mxu0 0.0
  %501 = vmatpush1.msra.mxu0 0.0
  %502 = vmatprep.subr.mxu0 0.0
  %503 = vmatpush1.msra.mxu0 0.0
  %504 = vmatprep.subr.mxu0 0.0
  %505 = vmatpush1.msra.mxu0 0.0
  %506 = vmatprep.subr.mxu0 0.0
  %507 = vmatpush1.msra.mxu0 0.0
  %508 = vmatprep.subr.mxu0 0.0
  %509 = vmatpush1.msra.mxu0 0.0
  %510 = vmatprep.subr.mxu0 0.0
  %511 = vmatpush1.msra.mxu0 0.0
  %512 = vmatprep.subr.mxu0 0.0
  %513 = vmatpush1.msra.mxu0 0.0
  %514 = vmatprep.subr.mxu0 0.0
  %515 = vmatpush1.msra.mxu0 0.0
  %516 = vmatprep.mubr.f32.mxu0 0.0
  %517 = vmatmul.mubr.f32.gmra.mrb[0].mxu0 %v117
  %v518 = vpop.f32.mrb[0].mxu0
  %v519 = vadd.f32 0.0, %v518
  %v520 = vpop.f32.mrb[0].mxu0
  %v521 = vadd.f32 0.0, %v520
  %522 = vdwg.mxu0
  %523 = vmatprep.subr.mxu0 %v154
  %524 = vmatpush1.msra.mxu0 %v151
  %525 = vmatprep.subr.mxu0 0.0
  %526 = vmatpush1.msra.mxu0 0.0
  %527 = vmatprep.subr.mxu0 0.0
  %528 = vmatpush1.msra.mxu0 0.0
  %529 = vmatprep.subr.mxu0 0.0
  %530 = vmatpush1.msra.mxu0 0.0
  %531 = vmatprep.subr.mxu0 0.0
  %532 = vmatpush1.msra.mxu0 0.0
  %533 = vmatprep.subr.mxu0 0.0
  %534 = vmatpush1.msra.mxu0 0.0
  %535 = vmatprep.subr.mxu0 0.0
  %536 = vmatpush1.msra.mxu0 0.0
  %537 = vmatprep.subr.mxu0 0.0
  %538 = vmatpush1.msra.mxu0 0.0
  %539 = vmatprep.subr.mxu0 0.0
  %540 = vmatpush1.msra.mxu0 0.0
  %541 = vmatprep.subr.mxu0 0.0
  %542 = vmatpush1.msra.mxu0 0.0
  %543 = vmatprep.subr.mxu0 0.0
  %544 = vmatpush1.msra.mxu0 0.0
  %545 = vmatprep.subr.mxu0 0.0
  %546 = vmatpush1.msra.mxu0 0.0
  %547 = vmatprep.subr.mxu0 0.0
  %548 = vmatpush1.msra.mxu0 0.0
  %549 = vmatprep.subr.mxu0 0.0
  %550 = vmatpush1.msra.mxu0 0.0
  %551 = vmatprep.subr.mxu0 0.0
  %552 = vmatpush1.msra.mxu0 0.0
  %553 = vmatprep.subr.mxu0 0.0
  %554 = vmatpush1.msra.mxu0 0.0
  %555 = vmatprep.subr.mxu0 0.0
  %556 = vmatpush1.msra.mxu0 0.0
  %557 = vmatprep.subr.mxu0 0.0
  %558 = vmatpush1.msra.mxu0 0.0
  %559 = vmatprep.subr.mxu0 0.0
  %560 = vmatpush1.msra.mxu0 0.0
  %561 = vmatprep.subr.mxu0 0.0
  %562 = vmatpush1.msra.mxu0 0.0
  %563 = vmatprep.subr.mxu0 0.0
  %564 = vmatpush1.msra.mxu0 0.0
  %565 = vmatprep.subr.mxu0 0.0
  %566 = vmatpush1.msra.mxu0 0.0
  %567 = vmatprep.subr.mxu0 0.0
  %568 = vmatpush1.msra.mxu0 0.0
  %569 = vmatprep.subr.mxu0 0.0
  %570 = vmatpush1.msra.mxu0 0.0
  %571 = vmatprep.subr.mxu0 0.0
  %572 = vmatpush1.msra.mxu0 0.0
  %573 = vmatprep.subr.mxu0 0.0
  %574 = vmatpush1.msra.mxu0 0.0
  %575 = vmatprep.subr.mxu0 0.0
  %576 = vmatpush1.msra.mxu0 0.0
  %577 = vmatprep.subr.mxu0 0.0
  %578 = vmatpush1.msra.mxu0 0.0
  %579 = vmatprep.subr.mxu0 0.0
  %580 = vmatpush1.msra.mxu0 0.0
  %581 = vmatprep.subr.mxu0 0.0
  %582 = vmatpush1.msra.mxu0 0.0
  %583 = vmatprep.subr.mxu0 0.0
  %584 = vmatpush1.msra.mxu0 0.0
  %585 = vmatprep.subr.mxu0 0.0
  %586 = vmatpush1.msra.mxu0 0.0
  %587 = vmatprep.mubr.f32.mxu0 0.0
  %588 = vmatmul.mubr.f32.gmra.mrb[0].mxu0 %v117
  %v589 = vpop.f32.mrb[0].mxu0
  %v590 = vadd.f32 0.0, %v589
  %v591 = vpop.f32.mrb[0].mxu0
  %v592 = vadd.f32 0.0, %v591
  %593 = vdwg.mxu0
  %594 = vmatprep.subr.mxu0 %v160
  %595 = vmatpush1.msra.mxu0 %v157
  %596 = vmatprep.subr.mxu0 0.0
  %597 = vmatpush1.msra.mxu0 0.0
  %598 = vmatprep.subr.mxu0 0.0
  %599 = vmatpush1.msra.mxu0 0.0
  %600 = vmatprep.subr.mxu0 0.0
  %601 = vmatpush1.msra.mxu0 0.0
  %602 = vmatprep.subr.mxu0 0.0
  %603 = vmatpush1.msra.mxu0 0.0
  %604 = vmatprep.subr.mxu0 0.0
  %605 = vmatpush1.msra.mxu0 0.0
  %606 = vmatprep.subr.mxu0 0.0
  %607 = vmatpush1.msra.mxu0 0.0
  %608 = vmatprep.subr.mxu0 0.0
  %609 = vmatpush1.msra.mxu0 0.0
  %610 = vmatprep.subr.mxu0 0.0
  %611 = vmatpush1.msra.mxu0 0.0
  %612 = vmatprep.subr.mxu0 0.0
  %613 = vmatpush1.msra.mxu0 0.0
  %614 = vmatprep.subr.mxu0 0.0
  %615 = vmatpush1.msra.mxu0 0.0
  %616 = vmatprep.subr.mxu0 0.0
  %617 = vmatpush1.msra.mxu0 0.0
  %618 = vmatprep.subr.mxu0 0.0
  %619 = vmatpush1.msra.mxu0 0.0
  %620 = vmatprep.subr.mxu0 0.0
  %621 = vmatpush1.msra.mxu0 0.0
  %622 = vmatprep.subr.mxu0 0.0
  %623 = vmatpush1.msra.mxu0 0.0
  %624 = vmatprep.subr.mxu0 0.0
  %625 = vmatpush1.msra.mxu0 0.0
  %626 = vmatprep.subr.mxu0 0.0
  %627 = vmatpush1.msra.mxu0 0.0
  %628 = vmatprep.subr.mxu0 0.0
  %629 = vmatpush1.msra.mxu0 0.0
  %630 = vmatprep.subr.mxu0 0.0
  %631 = vmatpush1.msra.mxu0 0.0
  %632 = vmatprep.subr.mxu0 0.0
  %633 = vmatpush1.msra.mxu0 0.0
  %634 = vmatprep.subr.mxu0 0.0
  %635 = vmatpush1.msra.mxu0 0.0
  %636 = vmatprep.subr.mxu0 0.0
  %637 = vmatpush1.msra.mxu0 0.0
  %638 = vmatprep.subr.mxu0 0.0
  %639 = vmatpush1.msra.mxu0 0.0
  %640 = vmatprep.subr.mxu0 0.0
  %641 = vmatpush1.msra.mxu0 0.0
  %642 = vmatprep.subr.mxu0 0.0
  %643 = vmatpush1.msra.mxu0 0.0
  %644 = vmatprep.subr.mxu0 0.0
  %645 = vmatpush1.msra.mxu0 0.0
  %646 = vmatprep.subr.mxu0 0.0
  %647 = vmatpush1.msra.mxu0 0.0
  %648 = vmatprep.subr.mxu0 0.0
  %649 = vmatpush1.msra.mxu0 0.0
  %650 = vmatprep.subr.mxu0 0.0
  %651 = vmatpush1.msra.mxu0 0.0
  %652 = vmatprep.subr.mxu0 0.0
  %653 = vmatpush1.msra.mxu0 0.0
  %654 = vmatprep.subr.mxu0 0.0
  %655 = vmatpush1.msra.mxu0 0.0
  %656 = vmatprep.subr.mxu0 0.0
  %657 = vmatpush1.msra.mxu0 0.0
  %658 = vmatprep.mubr.f32.mxu0 0.0
  %659 = vmatmul.mubr.f32.gmra.mrb[0].mxu0 %v117
  %v660 = vpop.f32.mrb[0].mxu0
  %v661 = vadd.f32 0.0, %v660
  %v662 = vpop.f32.mrb[0].mxu0
  %v663 = vadd.f32 0.0, %v662
  %664 = vdwg.mxu0
  %665 = vmatprep.subr.mxu0 %v166
  %666 = vmatpush1.msra.mxu0 %v163
  %667 = vmatprep.subr.mxu0 0.0
  %668 = vmatpush1.msra.mxu0 0.0
  %669 = vmatprep.subr.mxu0 0.0
  %670 = vmatpush1.msra.mxu0 0.0
  %671 = vmatprep.subr.mxu0 0.0
  %672 = vmatpush1.msra.mxu0 0.0
  %673 = vmatprep.subr.mxu0 0.0
  %674 = vmatpush1.msra.mxu0 0.0
  %675 = vmatprep.subr.mxu0 0.0
  %676 = vmatpush1.msra.mxu0 0.0
  %677 = vmatprep.subr.mxu0 0.0
  %678 = vmatpush1.msra.mxu0 0.0
  %679 = vmatprep.subr.mxu0 0.0
  %680 = vmatpush1.msra.mxu0 0.0
  %681 = vmatprep.subr.mxu0 0.0
  %682 = vmatpush1.msra.mxu0 0.0
  %683 = vmatprep.subr.mxu0 0.0
  %684 = vmatpush1.msra.mxu0 0.0
  %685 = vmatprep.subr.mxu0 0.0
  %686 = vmatpush1.msra.mxu0 0.0
  %687 = vmatprep.subr.mxu0 0.0
  %688 = vmatpush1.msra.mxu0 0.0
  %689 = vmatprep.subr.mxu0 0.0
  %690 = vmatpush1.msra.mxu0 0.0
  %691 = vmatprep.subr.mxu0 0.0
  %692 = vmatpush1.msra.mxu0 0.0
  %693 = vmatprep.subr.mxu0 0.0
  %694 = vmatpush1.msra.mxu0 0.0
  %695 = vmatprep.subr.mxu0 0.0
  %696 = vmatpush1.msra.mxu0 0.0
  %697 = vmatprep.subr.mxu0 0.0
  %698 = vmatpush1.msra.mxu0 0.0
  %699 = vmatprep.subr.mxu0 0.0
  %700 = vmatpush1.msra.mxu0 0.0
  %701 = vmatprep.subr.mxu0 0.0
  %702 = vmatpush1.msra.mxu0 0.0
  %703 = vmatprep.subr.mxu0 0.0
  %704 = vmatpush1.msra.mxu0 0.0
  %705 = vmatprep.subr.mxu0 0.0
  %706 = vmatpush1.msra.mxu0 0.0
  %707 = vmatprep.subr.mxu0 0.0
  %708 = vmatpush1.msra.mxu0 0.0
  %709 = vmatprep.subr.mxu0 0.0
  %710 = vmatpush1.msra.mxu0 0.0
  %711 = vmatprep.subr.mxu0 0.0
  %712 = vmatpush1.msra.mxu0 0.0
  %713 = vmatprep.subr.mxu0 0.0
  %714 = vmatpush1.msra.mxu0 0.0
  %715 = vmatprep.subr.mxu0 0.0
  %716 = vmatpush1.msra.mxu0 0.0
  %717 = vmatprep.subr.mxu0 0.0
  %718 = vmatpush1.msra.mxu0 0.0
  %719 = vmatprep.subr.mxu0 0.0
  %720 = vmatpush1.msra.mxu0 0.0
  %721 = vmatprep.subr.mxu0 0.0
  %722 = vmatpush1.msra.mxu0 0.0
  %723 = vmatprep.subr.mxu0 0.0
  %724 = vmatpush1.msra.mxu0 0.0
  %725 = vmatprep.subr.mxu0 0.0
  %726 = vmatpush1.msra.mxu0 0.0
  %727 = vmatprep.subr.mxu0 0.0
  %728 = vmatpush1.msra.mxu0 0.0
  %729 = vmatprep.mubr.f32.mxu0 0.0
  %730 = vmatmul.mubr.f32.gmra.mrb[0].mxu0 %v117
  %v731 = vpop.f32.mrb[0].mxu0
  %v732 = vadd.f32 0.0, %v731
  %v733 = vpop.f32.mrb[0].mxu0
  %v734 = vadd.f32 0.0, %v733
  %735 = vdwg.mxu0
  %v736 = vadd.f32 %v235, %v237
  %v737 = vadd.f32 %v736, %v306
  %v738 = vadd.f32 %v737, %v308
  %v739 = vadd.f32 %v738, %v377
  %v740 = vadd.f32 %v739, %v379
  %v741 = vadd.f32 %v740, %v448
  %v742 = vadd.f32 %v741, %v450
  %v743 = vadd.f32 %v742, %v519
  %v744 = vadd.f32 %v743, %v521
  %v745 = vadd.f32 %v744, %v590
  %v746 = vadd.f32 %v745, %v592
  %v747 = vadd.f32 %v746, %v661
  %v748 = vadd.f32 %v747, %v663
  %v749 = vadd.f32 %v748, %v732
  %v750 = vadd.f32 %v749, %v734
  %751 = vadd.xlane.f32.xlu0 %v750
  %v752 = vpop.xlane.xlu0 %751
  %v753 = vstv %s15
  %v754 = vrcp.pop %v753
  %s755 = vtos %v754
  %v756 = vstv %s755
  %v757 = vmul.f32 %v752, %v756
  %v758 = vsub.f32 %v235, %v757
  %v759 = vsub.f32 %v237, %v757
  %v760 = vsub.f32 %v306, %v757
  %v761 = vsub.f32 %v308, %v757
  %v762 = vsub.f32 %v377, %v757
  %v763 = vsub.f32 %v379, %v757
  %v764 = vsub.f32 %v448, %v757
  %v765 = vsub.f32 %v450, %v757
  %v766 = vsub.f32 %v519, %v757
  %v767 = vsub.f32 %v521, %v757
  %v768 = vsub.f32 %v590, %v757
  %v769 = vsub.f32 %v592, %v757
  %v770 = vsub.f32 %v661, %v757
  %v771 = vsub.f32 %v663, %v757
  %v772 = vsub.f32 %v732, %v757
  %v773 = vsub.f32 %v734, %v757
  %v774 = vmul.f32 %v758, %v82
  %v775 = vmul.f32 %v759, %v83
  %v776 = vmul.f32 %v760, %v84
  %v777 = vmul.f32 %v761, %v85
  %v778 = vmul.f32 %v762, %v86
  %v779 = vmul.f32 %v763, %v87
  %v780 = vmul.f32 %v764, %v88
  %v781 = vmul.f32 %v765, %v89
  %v782 = vmul.f32 %v766, %v90
  %v783 = vmul.f32 %v767, %v91
  %v784 = vmul.f32 %v768, %v92
  %v785 = vmul.f32 %v769, %v93
  %v786 = vmul.f32 %v770, %v94
  %v787 = vmul.f32 %v771, %v95
  %v788 = vmul.f32 %v772, %v96
  %v789 = vmul.f32 %v773, %v97
  %v790 = vmul.f32 %v774, %v774
  %v791 = vmul.f32 %v775, %v775
  %v792 = vmul.f32 %v776, %v776
  %v793 = vmul.f32 %v777, %v777
  %v794 = vmul.f32 %v778, %v778
  %v795 = vmul.f32 %v779, %v779
  %v796 = vmul.f32 %v780, %v780
  %v797 = vmul.f32 %v781, %v781
  %v798 = vmul.f32 %v782, %v782
  %v799 = vmul.f32 %v783, %v783
  %v800 = vmul.f32 %v784, %v784
  %v801 = vmul.f32 %v785, %v785
  %v802 = vmul.f32 %v786, %v786
  %v803 = vmul.f32 %v787, %v787
  %v804 = vmul.f32 %v788, %v788
  %v805 = vmul.f32 %v789, %v789
  %v806 = vadd.f32 %v790, %v791
  %v807 = vadd.f32 %v806, %v792
  %v808 = vadd.f32 %v807, %v793
  %v809 = vadd.f32 %v808, %v794
  %v810 = vadd.f32 %v809, %v795
  %v811 = vadd.f32 %v810, %v796
  %v812 = vadd.f32 %v811, %v797
  %v813 = vadd.f32 %v812, %v798
  %v814 = vadd.f32 %v813, %v799
  %v815 = vadd.f32 %v814, %v800
  %v816 = vadd.f32 %v815, %v801
  %v817 = vadd.f32 %v816, %v802
  %v818 = vadd.f32 %v817, %v803
  %v819 = vadd.f32 %v818, %v804
  %v820 = vadd.f32 %v819, %v805
  %821 = vadd.xlane.f32.xlu0 %v820
  %v822 = vpop.xlane.xlu0 %821
  %vm823 = vcmp.eq.s32.totalorder %v17, 0
  %v824 = vsel %vm823, %v752, 0.0
  %vm825 = vcmp.eq.s32.totalorder %v17, 1
  %v826 = vsel %vm825, %v822, 0.0
  %v827 = vadd.f32 %v824, %v826
  %828 = vst [vmem:[%s2] sm:$0xff] %v827
  // Predicated region
  $region10: #{base_point_tinet.4} parent=0 // pred_check
    _
  $region11: #{base_point_tinet.4} parent=0 // pred_check_branch
    %830 = sbr.rel (0) target = $region13
  $region12: #{base_point_tinet.4} parent=0 // pred_region
    _
  $region13: #{base_point_tinet.4} parent=0 // pred_fallthru
    _
  // Predicated region
  $region14: #{base_point_tinet.4} parent=0 // pred_check
    _
  $region15: #{base_point_tinet.4} parent=0 // pred_check_branch
    %832 = sbr.rel (0) target = $region17
  $region16: #{base_point_tinet.4} parent=0 // pred_region
    _
  $region17: #{base_point_tinet.4} parent=0 // pred_fallthru
    _

// kernel: base_point_tinet.5
$region0: #{base_point_tinet.5}
  #allocation0 [shape = 'u32[]', space=smem, size = 0x4, offset = 0x4, fixed_abs, tag = 'smem constant byte address 0x4 - core index']
  #allocation1 [shape = 'u32[144,128]{1,0:T(1,128)}', space=vmem, size = 0x12000, scoped, tag = 'internal scratch']
  %s0 = inlined_call_operand.vmem [shape: f32[5,2048], index: 0, kind: input, shape index: {}]
  %s1 = inlined_call_operand.vmem [shape: f32[8,5], index: 1, kind: input, shape index: {}]
  %s2 = inlined_call_operand.vmem [shape: f32[16,8], index: 2, kind: input, shape index: {}]
  %s3 = inlined_call_operand.vmem [shape: f32[8,1], index: 3, kind: input, shape index: {}]
  %s4 = inlined_call_operand.vmem [shape: f32[8,1], index: 4, kind: input, shape index: {}]
  %s5 = inlined_call_operand.vmem [shape: f32[16,128], index: 5, kind: output, shape index: {}]
  %s6 = sld [smem:[#allocation0]]
  $region30: #{base_point_tinet.5} parent=0
    _
  %s8 = ssub.s32 1, %s6
  %s9 = scalar_select 0, %s8, %s6
  // Predicated region
  $region2: #{base_point_tinet.5} parent=0 // pred_check
    _
  $region3: #{base_point_tinet.5} parent=0 // pred_check_branch
    %11 = sbr.rel (0) target = $region5
  $region4: #{base_point_tinet.5} parent=0 // pred_region
    _
  $region5: #{base_point_tinet.5} parent=0 // pred_fallthru
    _
  // Predicated region
  $region6: #{base_point_tinet.5} parent=0 // pred_check
    _
  $region7: #{base_point_tinet.5} parent=0 // pred_check_branch
    %13 = sbr.rel (0) target = $region9
  $region8: #{base_point_tinet.5} parent=0 // pred_region
    _
  $region9: #{base_point_tinet.5} parent=0 // pred_fallthru
    _
  // Predicated region
  $region10: #{base_point_tinet.5} parent=0 // pred_check
    _
  $region11: #{base_point_tinet.5} parent=0 // pred_check_branch
    %15 = sbr.rel (0) target = $region13
  $region12: #{base_point_tinet.5} parent=0 // pred_region
    _
  $region13: #{base_point_tinet.5} parent=0 // pred_fallthru
    _
  // Predicated region
  $region14: #{base_point_tinet.5} parent=0 // pred_check
    _
  $region15: #{base_point_tinet.5} parent=0 // pred_check_branch
    %17 = sbr.rel (0) target = $region17
  $region16: #{base_point_tinet.5} parent=0 // pred_region
    _
  $region17: #{base_point_tinet.5} parent=0 // pred_fallthru
    _
  // Predicated region
  $region18: #{base_point_tinet.5} parent=0 // pred_check
    _
  $region19: #{base_point_tinet.5} parent=0 // pred_check_branch
    %19 = sbr.rel (0) target = $region21
  $region20: #{base_point_tinet.5} parent=0 // pred_region
    _
  $region21: #{base_point_tinet.5} parent=0 // pred_fallthru
    _
  %s20 = smul.u32 0, 2048
  %s21 = ssub.s32 32, %s20
  %p22 = scmp.lt.s32.totalorder %s21, 2048
  %s23 = scalar_select %p22, %s21, 2048
  %s24 = scvt.s32.f32 %s23
  %v25 = vlaneseq
  %v26 = vand.u32 %v25, 127
  %v27 = vadd.s32 %v26, 128
  %v28 = vadd.s32 %v26, 256
  %v29 = vadd.s32 %v26, 384
  %v30 = vadd.s32 %v26, 512
  %v31 = vadd.s32 %v26, 640
  %v32 = vadd.s32 %v26, 768
  %v33 = vadd.s32 %v26, 896
  %v34 = vadd.s32 %v26, 1024
  %v35 = vadd.s32 %v26, 1152
  %v36 = vadd.s32 %v26, 1280
  %v37 = vadd.s32 %v26, 1408
  %v38 = vadd.s32 %v26, 1536
  %v39 = vadd.s32 %v26, 1664
  %v40 = vadd.s32 %v26, 1792
  %v41 = vadd.s32 %v26, 1920
  %v42 = vstv %s20
  %v43 = vadd.s32 %v26, %v42
  %v44 = vadd.s32 %v27, %v42
  %v45 = vadd.s32 %v28, %v42
  %v46 = vadd.s32 %v29, %v42
  %v47 = vadd.s32 %v30, %v42
  %v48 = vadd.s32 %v31, %v42
  %v49 = vadd.s32 %v32, %v42
  %v50 = vadd.s32 %v33, %v42
  %v51 = vadd.s32 %v34, %v42
  %v52 = vadd.s32 %v35, %v42
  %v53 = vadd.s32 %v36, %v42
  %v54 = vadd.s32 %v37, %v42
  %v55 = vadd.s32 %v38, %v42
  %v56 = vadd.s32 %v39, %v42
  %v57 = vadd.s32 %v40, %v42
  %v58 = vadd.s32 %v41, %v42
  %vm59 = vcmp.lt.s32.totalorder %v43, 32
  %vm60 = vcmp.lt.s32.totalorder %v44, 32
  %vm61 = vcmp.lt.s32.totalorder %v45, 32
  %vm62 = vcmp.lt.s32.totalorder %v46, 32
  %vm63 = vcmp.lt.s32.totalorder %v47, 32
  %vm64 = vcmp.lt.s32.totalorder %v48, 32
  %vm65 = vcmp.lt.s32.totalorder %v49, 32
  %vm66 = vcmp.lt.s32.totalorder %v50, 32
  %vm67 = vcmp.lt.s32.totalorder %v51, 32
  %vm68 = vcmp.lt.s32.totalorder %v52, 32
  %vm69 = vcmp.lt.s32.totalorder %v53, 32
  %vm70 = vcmp.lt.s32.totalorder %v54, 32
  %vm71 = vcmp.lt.s32.totalorder %v55, 32
  %vm72 = vcmp.lt.s32.totalorder %v56, 32
  %vm73 = vcmp.lt.s32.totalorder %v57, 32
  %vm74 = vcmp.lt.s32.totalorder %v58, 32
  %v75 = vsel %vm59, 1, 0
  %v76 = vsel %vm60, 1, 0
  %v77 = vsel %vm61, 1, 0
  %v78 = vsel %vm62, 1, 0
  %v79 = vsel %vm63, 1, 0
  %v80 = vsel %vm64, 1, 0
  %v81 = vsel %vm65, 1, 0
  %v82 = vsel %vm66, 1, 0
  %v83 = vsel %vm67, 1, 0
  %v84 = vsel %vm68, 1, 0
  %v85 = vsel %vm69, 1, 0
  %v86 = vsel %vm70, 1, 0
  %v87 = vsel %vm71, 1, 0
  %v88 = vsel %vm72, 1, 0
  %v89 = vsel %vm73, 1, 0
  %v90 = vsel %vm74, 1, 0
  %v91 = vcvt.s32.f32 %v75
  %v92 = vcvt.s32.f32 %v76
  %v93 = vcvt.s32.f32 %v77
  %v94 = vcvt.s32.f32 %v78
  %v95 = vcvt.s32.f32 %v79
  %v96 = vcvt.s32.f32 %v80
  %v97 = vcvt.s32.f32 %v81
  %v98 = vcvt.s32.f32 %v82
  %v99 = vcvt.s32.f32 %v83
  %v100 = vcvt.s32.f32 %v84
  %v101 = vcvt.s32.f32 %v85
  %v102 = vcvt.s32.f32 %v86
  %v103 = vcvt.s32.f32 %v87
  %v104 = vcvt.s32.f32 %v88
  %v105 = vcvt.s32.f32 %v89
  %v106 = vcvt.s32.f32 %v90
  %v107 = vld [vmem:[%s0] sm:$0x1f]
  %v108 = vld [vmem:[%s0 + $0x8] sm:$0x1f]
  %v109 = vld [vmem:[%s0 + $0x10] sm:$0x1f]
  %v110 = vld [vmem:[%s0 + $0x18] sm:$0x1f]
  %v111 = vld [vmem:[%s0 + $0x20] sm:$0x1f]
  %v112 = vld [vmem:[%s0 + $0x28] sm:$0x1f]
  %v113 = vld [vmem:[%s0 + $0x30] sm:$0x1f]
  %v114 = vld [vmem:[%s0 + $0x38] sm:$0x1f]
  %v115 = vld [vmem:[%s0 + $0x40] sm:$0x1f]
  %v116 = vld [vmem:[%s0 + $0x48] sm:$0x1f]
  %v117 = vld [vmem:[%s0 + $0x50] sm:$0x1f]
  %v118 = vld [vmem:[%s0 + $0x58] sm:$0x1f]
  %v119 = vld [vmem:[%s0 + $0x60] sm:$0x1f]
  %v120 = vld [vmem:[%s0 + $0x68] sm:$0x1f]
  %v121 = vld [vmem:[%s0 + $0x70] sm:$0x1f]
  %v122 = vld [vmem:[%s0 + $0x78] sm:$0x1f]
  %v123 = vld [vmem:[%s1] sm:$0xff]
  %vm124 = vcmask 39936
  %v126 = vsel %vm124, %v123, 0
  %vm128 = vcmask 1044480
  %v130 = vsel %vm128, %v107, 0
  %v133 = vsel %vm128, %v108, 0
  %v136 = vsel %vm128, %v109, 0
  %v139 = vsel %vm128, %v110, 0
  %v142 = vsel %vm128, %v111, 0
  %v145 = vsel %vm128, %v112, 0
  %v148 = vsel %vm128, %v113, 0
  %v151 = vsel %vm128, %v114, 0
  %v154 = vsel %vm128, %v115, 0
  %v157 = vsel %vm128, %v116, 0
  %v160 = vsel %vm128, %v117, 0
  %v163 = vsel %vm128, %v118, 0
  %v166 = vsel %vm128, %v119, 0
  %v169 = vsel %vm128, %v120, 0
  %v172 = vsel %vm128, %v121, 0
  %v175 = vsel %vm128, %v122, 0
  %177 = vmatprep.subr.mxu0 %v133
  %178 = vmatpush1.msra.mxu0 %v130
  %179 = vmatprep.subr.mxu0 0.0
  %180 = vmatpush1.msra.mxu0 0.0
  %181 = vmatprep.subr.mxu0 0.0
  %182 = vmatpush1.msra.mxu0 0.0
  %183 = vmatprep.subr.mxu0 0.0
  %184 = vmatpush1.msra.mxu0 0.0
  %185 = vmatprep.subr.mxu0 0.0
  %186 = vmatpush1.msra.mxu0 0.0
  %187 = vmatprep.subr.mxu0 0.0
  %188 = vmatpush1.msra.mxu0 0.0
  %189 = vmatprep.subr.mxu0 0.0
  %190 = vmatpush1.msra.mxu0 0.0
  %191 = vmatprep.subr.mxu0 0.0
  %192 = vmatpush1.msra.mxu0 0.0
  %193 = vmatprep.subr.mxu0 0.0
  %194 = vmatpush1.msra.mxu0 0.0
  %195 = vmatprep.subr.mxu0 0.0
  %196 = vmatpush1.msra.mxu0 0.0
  %197 = vmatprep.subr.mxu0 0.0
  %198 = vmatpush1.msra.mxu0 0.0
  %199 = vmatprep.subr.mxu0 0.0
  %200 = vmatpush1.msra.mxu0 0.0
  %201 = vmatprep.subr.mxu0 0.0
  %202 = vmatpush1.msra.mxu0 0.0
  %203 = vmatprep.subr.mxu0 0.0
  %204 = vmatpush1.msra.mxu0 0.0
  %205 = vmatprep.subr.mxu0 0.0
  %206 = vmatpush1.msra.mxu0 0.0
  %207 = vmatprep.subr.mxu0 0.0
  %208 = vmatpush1.msra.mxu0 0.0
  %209 = vmatprep.subr.mxu0 0.0
  %210 = vmatpush1.msra.mxu0 0.0
  %211 = vmatprep.subr.mxu0 0.0
  %212 = vmatpush1.msra.mxu0 0.0
  %213 = vmatprep.subr.mxu0 0.0
  %214 = vmatpush1.msra.mxu0 0.0
  %215 = vmatprep.subr.mxu0 0.0
  %216 = vmatpush1.msra.mxu0 0.0
  %217 = vmatprep.subr.mxu0 0.0
  %218 = vmatpush1.msra.mxu0 0.0
  %219 = vmatprep.subr.mxu0 0.0
  %220 = vmatpush1.msra.mxu0 0.0
  %221 = vmatprep.subr.mxu0 0.0
  %222 = vmatpush1.msra.mxu0 0.0
  %223 = vmatprep.subr.mxu0 0.0
  %224 = vmatpush1.msra.mxu0 0.0
  %225 = vmatprep.subr.mxu0 0.0
  %226 = vmatpush1.msra.mxu0 0.0
  %227 = vmatprep.subr.mxu0 0.0
  %228 = vmatpush1.msra.mxu0 0.0
  %229 = vmatprep.subr.mxu0 0.0
  %230 = vmatpush1.msra.mxu0 0.0
  %231 = vmatprep.subr.mxu0 0.0
  %232 = vmatpush1.msra.mxu0 0.0
  %233 = vmatprep.subr.mxu0 0.0
  %234 = vmatpush1.msra.mxu0 0.0
  %235 = vmatprep.subr.mxu0 0.0
  %236 = vmatpush1.msra.mxu0 0.0
  %237 = vmatprep.subr.mxu0 0.0
  %238 = vmatpush1.msra.mxu0 0.0
  %239 = vmatprep.subr.mxu0 0.0
  %240 = vmatpush1.msra.mxu0 0.0
  %241 = vmatprep.mubr.f32.mxu0 0.0
  %242 = vmatmul.mubr.f32.gmra.mrb[0].mxu0 %v126
  %v243 = vpop.f32.mrb[0].mxu0
  %v244 = vadd.f32 0.0, %v243
  %v245 = vpop.f32.mrb[0].mxu0
  %v246 = vadd.f32 0.0, %v245
  %247 = vdwg.mxu0
  %248 = vmatprep.subr.mxu0 %v139
  %249 = vmatpush1.msra.mxu0 %v136
  %250 = vmatprep.subr.mxu0 0.0
  %251 = vmatpush1.msra.mxu0 0.0
  %252 = vmatprep.subr.mxu0 0.0
  %253 = vmatpush1.msra.mxu0 0.0
  %254 = vmatprep.subr.mxu0 0.0
  %255 = vmatpush1.msra.mxu0 0.0
  %256 = vmatprep.subr.mxu0 0.0
  %257 = vmatpush1.msra.mxu0 0.0
  %258 = vmatprep.subr.mxu0 0.0
  %259 = vmatpush1.msra.mxu0 0.0
  %260 = vmatprep.subr.mxu0 0.0
  %261 = vmatpush1.msra.mxu0 0.0
  %262 = vmatprep.subr.mxu0 0.0
  %263 = vmatpush1.msra.mxu0 0.0
  %264 = vmatprep.subr.mxu0 0.0
  %265 = vmatpush1.msra.mxu0 0.0
  %266 = vmatprep.subr.mxu0 0.0
  %267 = vmatpush1.msra.mxu0 0.0
  %268 = vmatprep.subr.mxu0 0.0
  %269 = vmatpush1.msra.mxu0 0.0
  %270 = vmatprep.subr.mxu0 0.0
  %271 = vmatpush1.msra.mxu0 0.0
  %272 = vmatprep.subr.mxu0 0.0
  %273 = vmatpush1.msra.mxu0 0.0
  %274 = vmatprep.subr.mxu0 0.0
  %275 = vmatpush1.msra.mxu0 0.0
  %276 = vmatprep.subr.mxu0 0.0
  %277 = vmatpush1.msra.mxu0 0.0
  %278 = vmatprep.subr.mxu0 0.0
  %279 = vmatpush1.msra.mxu0 0.0
  %280 = vmatprep.subr.mxu0 0.0
  %281 = vmatpush1.msra.mxu0 0.0
  %282 = vmatprep.subr.mxu0 0.0
  %283 = vmatpush1.msra.mxu0 0.0
  %284 = vmatprep.subr.mxu0 0.0
  %285 = vmatpush1.msra.mxu0 0.0
  %286 = vmatprep.subr.mxu0 0.0
  %287 = vmatpush1.msra.mxu0 0.0
  %288 = vmatprep.subr.mxu0 0.0
  %289 = vmatpush1.msra.mxu0 0.0
  %290 = vmatprep.subr.mxu0 0.0
  %291 = vmatpush1.msra.mxu0 0.0
  %292 = vmatprep.subr.mxu0 0.0
  %293 = vmatpush1.msra.mxu0 0.0
  %294 = vmatprep.subr.mxu0 0.0
  %295 = vmatpush1.msra.mxu0 0.0
  %296 = vmatprep.subr.mxu0 0.0
  %297 = vmatpush1.msra.mxu0 0.0
  %298 = vmatprep.subr.mxu0 0.0
  %299 = vmatpush1.msra.mxu0 0.0
  %300 = vmatprep.subr.mxu0 0.0
  %301 = vmatpush1.msra.mxu0 0.0
  %302 = vmatprep.subr.mxu0 0.0
  %303 = vmatpush1.msra.mxu0 0.0
  %304 = vmatprep.subr.mxu0 0.0
  %305 = vmatpush1.msra.mxu0 0.0
  %306 = vmatprep.subr.mxu0 0.0
  %307 = vmatpush1.msra.mxu0 0.0
  %308 = vmatprep.subr.mxu0 0.0
  %309 = vmatpush1.msra.mxu0 0.0
  %310 = vmatprep.subr.mxu0 0.0
  %311 = vmatpush1.msra.mxu0 0.0
  %312 = vmatprep.mubr.f32.mxu0 0.0
  %313 = vmatmul.mubr.f32.gmra.mrb[0].mxu0 %v126
  %v314 = vpop.f32.mrb[0].mxu0
  %v315 = vadd.f32 0.0, %v314
  %v316 = vpop.f32.mrb[0].mxu0
  %v317 = vadd.f32 0.0, %v316
  %318 = vdwg.mxu0
  %319 = vmatprep.subr.mxu0 %v145
  %320 = vmatpush1.msra.mxu0 %v142
  %321 = vmatprep.subr.mxu0 0.0
  %322 = vmatpush1.msra.mxu0 0.0
  %323 = vmatprep.subr.mxu0 0.0
  %324 = vmatpush1.msra.mxu0 0.0
  %325 = vmatprep.subr.mxu0 0.0
  %326 = vmatpush1.msra.mxu0 0.0
  %327 = vmatprep.subr.mxu0 0.0
  %328 = vmatpush1.msra.mxu0 0.0
  %329 = vmatprep.subr.mxu0 0.0
  %330 = vmatpush1.msra.mxu0 0.0
  %331 = vmatprep.subr.mxu0 0.0
  %332 = vmatpush1.msra.mxu0 0.0
  %333 = vmatprep.subr.mxu0 0.0
  %334 = vmatpush1.msra.mxu0 0.0
  %335 = vmatprep.subr.mxu0 0.0
  %336 = vmatpush1.msra.mxu0 0.0
  %337 = vmatprep.subr.mxu0 0.0
  %338 = vmatpush1.msra.mxu0 0.0
  %339 = vmatprep.subr.mxu0 0.0
  %340 = vmatpush1.msra.mxu0 0.0
  %341 = vmatprep.subr.mxu0 0.0
  %342 = vmatpush1.msra.mxu0 0.0
  %343 = vmatprep.subr.mxu0 0.0
  %344 = vmatpush1.msra.mxu0 0.0
  %345 = vmatprep.subr.mxu0 0.0
  %346 = vmatpush1.msra.mxu0 0.0
  %347 = vmatprep.subr.mxu0 0.0
  %348 = vmatpush1.msra.mxu0 0.0
  %349 = vmatprep.subr.mxu0 0.0
  %350 = vmatpush1.msra.mxu0 0.0
  %351 = vmatprep.subr.mxu0 0.0
  %352 = vmatpush1.msra.mxu0 0.0
  %353 = vmatprep.subr.mxu0 0.0
  %354 = vmatpush1.msra.mxu0 0.0
  %355 = vmatprep.subr.mxu0 0.0
  %356 = vmatpush1.msra.mxu0 0.0
  %357 = vmatprep.subr.mxu0 0.0
  %358 = vmatpush1.msra.mxu0 0.0
  %359 = vmatprep.subr.mxu0 0.0
  %360 = vmatpush1.msra.mxu0 0.0
  %361 = vmatprep.subr.mxu0 0.0
  %362 = vmatpush1.msra.mxu0 0.0
  %363 = vmatprep.subr.mxu0 0.0
  %364 = vmatpush1.msra.mxu0 0.0
  %365 = vmatprep.subr.mxu0 0.0
  %366 = vmatpush1.msra.mxu0 0.0
  %367 = vmatprep.subr.mxu0 0.0
  %368 = vmatpush1.msra.mxu0 0.0
  %369 = vmatprep.subr.mxu0 0.0
  %370 = vmatpush1.msra.mxu0 0.0
  %371 = vmatprep.subr.mxu0 0.0
  %372 = vmatpush1.msra.mxu0 0.0
  %373 = vmatprep.subr.mxu0 0.0
  %374 = vmatpush1.msra.mxu0 0.0
  %375 = vmatprep.subr.mxu0 0.0
  %376 = vmatpush1.msra.mxu0 0.0
  %377 = vmatprep.subr.mxu0 0.0
  %378 = vmatpush1.msra.mxu0 0.0
  %379 = vmatprep.subr.mxu0 0.0
  %380 = vmatpush1.msra.mxu0 0.0
  %381 = vmatprep.subr.mxu0 0.0
  %382 = vmatpush1.msra.mxu0 0.0
  %383 = vmatprep.mubr.f32.mxu0 0.0
  %384 = vmatmul.mubr.f32.gmra.mrb[0].mxu0 %v126
  %v385 = vpop.f32.mrb[0].mxu0
  %v386 = vadd.f32 0.0, %v385
  %v387 = vpop.f32.mrb[0].mxu0
  %v388 = vadd.f32 0.0, %v387
  %389 = vdwg.mxu0
  %390 = vmatprep.subr.mxu0 %v151
  %391 = vmatpush1.msra.mxu0 %v148
  %392 = vmatprep.subr.mxu0 0.0
  %393 = vmatpush1.msra.mxu0 0.0
  %394 = vmatprep.subr.mxu0 0.0
  %395 = vmatpush1.msra.mxu0 0.0
  %396 = vmatprep.subr.mxu0 0.0
  %397 = vmatpush1.msra.mxu0 0.0
  %398 = vmatprep.subr.mxu0 0.0
  %399 = vmatpush1.msra.mxu0 0.0
  %400 = vmatprep.subr.mxu0 0.0
  %401 = vmatpush1.msra.mxu0 0.0
  %402 = vmatprep.subr.mxu0 0.0
  %403 = vmatpush1.msra.mxu0 0.0
  %404 = vmatprep.subr.mxu0 0.0
  %405 = vmatpush1.msra.mxu0 0.0
  %406 = vmatprep.subr.mxu0 0.0
  %407 = vmatpush1.msra.mxu0 0.0
  %408 = vmatprep.subr.mxu0 0.0
  %409 = vmatpush1.msra.mxu0 0.0
  %410 = vmatprep.subr.mxu0 0.0
  %411 = vmatpush1.msra.mxu0 0.0
  %412 = vmatprep.subr.mxu0 0.0
  %413 = vmatpush1.msra.mxu0 0.0
  %414 = vmatprep.subr.mxu0 0.0
  %415 = vmatpush1.msra.mxu0 0.0
  %416 = vmatprep.subr.mxu0 0.0
  %417 = vmatpush1.msra.mxu0 0.0
  %418 = vmatprep.subr.mxu0 0.0
  %419 = vmatpush1.msra.mxu0 0.0
  %420 = vmatprep.subr.mxu0 0.0
  %421 = vmatpush1.msra.mxu0 0.0
  %422 = vmatprep.subr.mxu0 0.0
  %423 = vmatpush1.msra.mxu0 0.0
  %424 = vmatprep.subr.mxu0 0.0
  %425 = vmatpush1.msra.mxu0 0.0
  %426 = vmatprep.subr.mxu0 0.0
  %427 = vmatpush1.msra.mxu0 0.0
  %428 = vmatprep.subr.mxu0 0.0
  %429 = vmatpush1.msra.mxu0 0.0
  %430 = vmatprep.subr.mxu0 0.0
  %431 = vmatpush1.msra.mxu0 0.0
  %432 = vmatprep.subr.mxu0 0.0
  %433 = vmatpush1.msra.mxu0 0.0
  %434 = vmatprep.subr.mxu0 0.0
  %435 = vmatpush1.msra.mxu0 0.0
  %436 = vmatprep.subr.mxu0 0.0
  %437 = vmatpush1.msra.mxu0 0.0
  %438 = vmatprep.subr.mxu0 0.0
  %439 = vmatpush1.msra.mxu0 0.0
  %440 = vmatprep.subr.mxu0 0.0
  %441 = vmatpush1.msra.mxu0 0.0
  %442 = vmatprep.subr.mxu0 0.0
  %443 = vmatpush1.msra.mxu0 0.0
  %444 = vmatprep.subr.mxu0 0.0
  %445 = vmatpush1.msra.mxu0 0.0
  %446 = vmatprep.subr.mxu0 0.0
  %447 = vmatpush1.msra.mxu0 0.0
  %448 = vmatprep.subr.mxu0 0.0
  %449 = vmatpush1.msra.mxu0 0.0
  %450 = vmatprep.subr.mxu0 0.0
  %451 = vmatpush1.msra.mxu0 0.0
  %452 = vmatprep.subr.mxu0 0.0
  %453 = vmatpush1.msra.mxu0 0.0
  %454 = vmatprep.mubr.f32.mxu0 0.0
  %455 = vmatmul.mubr.f32.gmra.mrb[0].mxu0 %v126
  %v456 = vpop.f32.mrb[0].mxu0
  %v457 = vadd.f32 0.0, %v456
  %v458 = vpop.f32.mrb[0].mxu0
  %v459 = vadd.f32 0.0, %v458
  %460 = vdwg.mxu0
  %461 = vmatprep.subr.mxu0 %v157
  %462 = vmatpush1.msra.mxu0 %v154
  %463 = vmatprep.subr.mxu0 0.0
  %464 = vmatpush1.msra.mxu0 0.0
  %465 = vmatprep.subr.mxu0 0.0
  %466 = vmatpush1.msra.mxu0 0.0
  %467 = vmatprep.subr.mxu0 0.0
  %468 = vmatpush1.msra.mxu0 0.0
  %469 = vmatprep.subr.mxu0 0.0
  %470 = vmatpush1.msra.mxu0 0.0
  %471 = vmatprep.subr.mxu0 0.0
  %472 = vmatpush1.msra.mxu0 0.0
  %473 = vmatprep.subr.mxu0 0.0
  %474 = vmatpush1.msra.mxu0 0.0
  %475 = vmatprep.subr.mxu0 0.0
  %476 = vmatpush1.msra.mxu0 0.0
  %477 = vmatprep.subr.mxu0 0.0
  %478 = vmatpush1.msra.mxu0 0.0
  %479 = vmatprep.subr.mxu0 0.0
  %480 = vmatpush1.msra.mxu0 0.0
  %481 = vmatprep.subr.mxu0 0.0
  %482 = vmatpush1.msra.mxu0 0.0
  %483 = vmatprep.subr.mxu0 0.0
  %484 = vmatpush1.msra.mxu0 0.0
  %485 = vmatprep.subr.mxu0 0.0
  %486 = vmatpush1.msra.mxu0 0.0
  %487 = vmatprep.subr.mxu0 0.0
  %488 = vmatpush1.msra.mxu0 0.0
  %489 = vmatprep.subr.mxu0 0.0
  %490 = vmatpush1.msra.mxu0 0.0
  %491 = vmatprep.subr.mxu0 0.0
  %492 = vmatpush1.msra.mxu0 0.0
  %493 = vmatprep.subr.mxu0 0.0
  %494 = vmatpush1.msra.mxu0 0.0
  %495 = vmatprep.subr.mxu0 0.0
  %496 = vmatpush1.msra.mxu0 0.0
  %497 = vmatprep.subr.mxu0 0.0
  %498 = vmatpush1.msra.mxu0 0.0
  %499 = vmatprep.subr.mxu0 0.0
  %500 = vmatpush1.msra.mxu0 0.0
  %501 = vmatprep.subr.mxu0 0.0
  %502 = vmatpush1.msra.mxu0 0.0
  %503 = vmatprep.subr.mxu0 0.0
  %504 = vmatpush1.msra.mxu0 0.0
  %505 = vmatprep.subr.mxu0 0.0
  %506 = vmatpush1.msra.mxu0 0.0
  %507 = vmatprep.subr.mxu0 0.0
  %508 = vmatpush1.msra.mxu0 0.0
  %509 = vmatprep.subr.mxu0 0.0
  %510 = vmatpush1.msra.mxu0 0.0
  %511 = vmatprep.subr.mxu0 0.0
  %512 = vmatpush1.msra.mxu0 0.0
  %513 = vmatprep.subr.mxu0 0.0
  %514 = vmatpush1.msra.mxu0 0.0
  %515 = vmatprep.subr.mxu0 0.0
  %516 = vmatpush1.msra.mxu0 0.0
  %517 = vmatprep.subr.mxu0 0.0
  %518 = vmatpush1.msra.mxu0 0.0
  %519 = vmatprep.subr.mxu0 0.0
  %520 = vmatpush1.msra.mxu0 0.0
  %521 = vmatprep.subr.mxu0 0.0
  %522 = vmatpush1.msra.mxu0 0.0
  %523 = vmatprep.subr.mxu0 0.0
  %524 = vmatpush1.msra.mxu0 0.0
  %525 = vmatprep.mubr.f32.mxu0 0.0
  %526 = vmatmul.mubr.f32.gmra.mrb[0].mxu0 %v126
  %v527 = vpop.f32.mrb[0].mxu0
  %v528 = vadd.f32 0.0, %v527
  %v529 = vpop.f32.mrb[0].mxu0
  %v530 = vadd.f32 0.0, %v529
  %531 = vdwg.mxu0
  %532 = vmatprep.subr.mxu0 %v163
  %533 = vmatpush1.msra.mxu0 %v160
  %534 = vmatprep.subr.mxu0 0.0
  %535 = vmatpush1.msra.mxu0 0.0
  %536 = vmatprep.subr.mxu0 0.0
  %537 = vmatpush1.msra.mxu0 0.0
  %538 = vmatprep.subr.mxu0 0.0
  %539 = vmatpush1.msra.mxu0 0.0
  %540 = vmatprep.subr.mxu0 0.0
  %541 = vmatpush1.msra.mxu0 0.0
  %542 = vmatprep.subr.mxu0 0.0
  %543 = vmatpush1.msra.mxu0 0.0
  %544 = vmatprep.subr.mxu0 0.0
  %545 = vmatpush1.msra.mxu0 0.0
  %546 = vmatprep.subr.mxu0 0.0
  %547 = vmatpush1.msra.mxu0 0.0
  %548 = vmatprep.subr.mxu0 0.0
  %549 = vmatpush1.msra.mxu0 0.0
  %550 = vmatprep.subr.mxu0 0.0
  %551 = vmatpush1.msra.mxu0 0.0
  %552 = vmatprep.subr.mxu0 0.0
  %553 = vmatpush1.msra.mxu0 0.0
  %554 = vmatprep.subr.mxu0 0.0
  %555 = vmatpush1.msra.mxu0 0.0
  %556 = vmatprep.subr.mxu0 0.0
  %557 = vmatpush1.msra.mxu0 0.0
  %558 = vmatprep.subr.mxu0 0.0
  %559 = vmatpush1.msra.mxu0 0.0
  %560 = vmatprep.subr.mxu0 0.0
  %561 = vmatpush1.msra.mxu0 0.0
  %562 = vmatprep.subr.mxu0 0.0
  %563 = vmatpush1.msra.mxu0 0.0
  %564 = vmatprep.subr.mxu0 0.0
  %565 = vmatpush1.msra.mxu0 0.0
  %566 = vmatprep.subr.mxu0 0.0
  %567 = vmatpush1.msra.mxu0 0.0
  %568 = vmatprep.subr.mxu0 0.0
  %569 = vmatpush1.msra.mxu0 0.0
  %570 = vmatprep.subr.mxu0 0.0
  %571 = vmatpush1.msra.mxu0 0.0
  %572 = vmatprep.subr.mxu0 0.0
  %573 = vmatpush1.msra.mxu0 0.0
  %574 = vmatprep.subr.mxu0 0.0
  %575 = vmatpush1.msra.mxu0 0.0
  %576 = vmatprep.subr.mxu0 0.0
  %577 = vmatpush1.msra.mxu0 0.0
  %578 = vmatprep.subr.mxu0 0.0
  %579 = vmatpush1.msra.mxu0 0.0
  %580 = vmatprep.subr.mxu0 0.0
  %581 = vmatpush1.msra.mxu0 0.0
  %582 = vmatprep.subr.mxu0 0.0
  %583 = vmatpush1.msra.mxu0 0.0
  %584 = vmatprep.subr.mxu0 0.0
  %585 = vmatpush1.msra.mxu0 0.0
  %586 = vmatprep.subr.mxu0 0.0
  %587 = vmatpush1.msra.mxu0 0.0
  %588 = vmatprep.subr.mxu0 0.0
  %589 = vmatpush1.msra.mxu0 0.0
  %590 = vmatprep.subr.mxu0 0.0
  %591 = vmatpush1.msra.mxu0 0.0
  %592 = vmatprep.subr.mxu0 0.0
  %593 = vmatpush1.msra.mxu0 0.0
  %594 = vmatprep.subr.mxu0 0.0
  %595 = vmatpush1.msra.mxu0 0.0
  %596 = vmatprep.mubr.f32.mxu0 0.0
  %597 = vmatmul.mubr.f32.gmra.mrb[0].mxu0 %v126
  %v598 = vpop.f32.mrb[0].mxu0
  %v599 = vadd.f32 0.0, %v598
  %v600 = vpop.f32.mrb[0].mxu0
  %v601 = vadd.f32 0.0, %v600
  %602 = vdwg.mxu0
  %603 = vmatprep.subr.mxu0 %v169
  %604 = vmatpush1.msra.mxu0 %v166
  %605 = vmatprep.subr.mxu0 0.0
  %606 = vmatpush1.msra.mxu0 0.0
  %607 = vmatprep.subr.mxu0 0.0
  %608 = vmatpush1.msra.mxu0 0.0
  %609 = vmatprep.subr.mxu0 0.0
  %610 = vmatpush1.msra.mxu0 0.0
  %611 = vmatprep.subr.mxu0 0.0
  %612 = vmatpush1.msra.mxu0 0.0
  %613 = vmatprep.subr.mxu0 0.0
  %614 = vmatpush1.msra.mxu0 0.0
  %615 = vmatprep.subr.mxu0 0.0
  %616 = vmatpush1.msra.mxu0 0.0
  %617 = vmatprep.subr.mxu0 0.0
  %618 = vmatpush1.msra.mxu0 0.0
  %619 = vmatprep.subr.mxu0 0.0
  %620 = vmatpush1.msra.mxu0 0.0
  %621 = vmatprep.subr.mxu0 0.0
  %622 = vmatpush1.msra.mxu0 0.0
  %623 = vmatprep.subr.mxu0 0.0
  %624 = vmatpush1.msra.mxu0 0.0
  %625 = vmatprep.subr.mxu0 0.0
  %626 = vmatpush1.msra.mxu0 0.0
  %627 = vmatprep.subr.mxu0 0.0
  %628 = vmatpush1.msra.mxu0 0.0
  %629 = vmatprep.subr.mxu0 0.0
  %630 = vmatpush1.msra.mxu0 0.0
  %631 = vmatprep.subr.mxu0 0.0
  %632 = vmatpush1.msra.mxu0 0.0
  %633 = vmatprep.subr.mxu0 0.0
  %634 = vmatpush1.msra.mxu0 0.0
  %635 = vmatprep.subr.mxu0 0.0
  %636 = vmatpush1.msra.mxu0 0.0
  %637 = vmatprep.subr.mxu0 0.0
  %638 = vmatpush1.msra.mxu0 0.0
  %639 = vmatprep.subr.mxu0 0.0
  %640 = vmatpush1.msra.mxu0 0.0
  %641 = vmatprep.subr.mxu0 0.0
  %642 = vmatpush1.msra.mxu0 0.0
  %643 = vmatprep.subr.mxu0 0.0
  %644 = vmatpush1.msra.mxu0 0.0
  %645 = vmatprep.subr.mxu0 0.0
  %646 = vmatpush1.msra.mxu0 0.0
  %647 = vmatprep.subr.mxu0 0.0
  %648 = vmatpush1.msra.mxu0 0.0
  %649 = vmatprep.subr.mxu0 0.0
  %650 = vmatpush1.msra.mxu0 0.0
  %651 = vmatprep.subr.mxu0 0.0
  %652 = vmatpush1.msra.mxu0 0.0
  %653 = vmatprep.subr.mxu0 0.0
  %654 = vmatpush1.msra.mxu0 0.0
  %655 = vmatprep.subr.mxu0 0.0
  %656 = vmatpush1.msra.mxu0 0.0
  %657 = vmatprep.subr.mxu0 0.0
  %658 = vmatpush1.msra.mxu0 0.0
  %659 = vmatprep.subr.mxu0 0.0
  %660 = vmatpush1.msra.mxu0 0.0
  %661 = vmatprep.subr.mxu0 0.0
  %662 = vmatpush1.msra.mxu0 0.0
  %663 = vmatprep.subr.mxu0 0.0
  %664 = vmatpush1.msra.mxu0 0.0
  %665 = vmatprep.subr.mxu0 0.0
  %666 = vmatpush1.msra.mxu0 0.0
  %667 = vmatprep.mubr.f32.mxu0 0.0
  %668 = vmatmul.mubr.f32.gmra.mrb[0].mxu0 %v126
  %v669 = vpop.f32.mrb[0].mxu0
  %v670 = vadd.f32 0.0, %v669
  %v671 = vpop.f32.mrb[0].mxu0
  %v672 = vadd.f32 0.0, %v671
  %673 = vdwg.mxu0
  %674 = vmatprep.subr.mxu0 %v175
  %675 = vmatpush1.msra.mxu0 %v172
  %676 = vmatprep.subr.mxu0 0.0
  %677 = vmatpush1.msra.mxu0 0.0
  %678 = vmatprep.subr.mxu0 0.0
  %679 = vmatpush1.msra.mxu0 0.0
  %680 = vmatprep.subr.mxu0 0.0
  %681 = vmatpush1.msra.mxu0 0.0
  %682 = vmatprep.subr.mxu0 0.0
  %683 = vmatpush1.msra.mxu0 0.0
  %684 = vmatprep.subr.mxu0 0.0
  %685 = vmatpush1.msra.mxu0 0.0
  %686 = vmatprep.subr.mxu0 0.0
  %687 = vmatpush1.msra.mxu0 0.0
  %688 = vmatprep.subr.mxu0 0.0
  %689 = vmatpush1.msra.mxu0 0.0
  %690 = vmatprep.subr.mxu0 0.0
  %691 = vmatpush1.msra.mxu0 0.0
  %692 = vmatprep.subr.mxu0 0.0
  %693 = vmatpush1.msra.mxu0 0.0
  %694 = vmatprep.subr.mxu0 0.0
  %695 = vmatpush1.msra.mxu0 0.0
  %696 = vmatprep.subr.mxu0 0.0
  %697 = vmatpush1.msra.mxu0 0.0
  %698 = vmatprep.subr.mxu0 0.0
  %699 = vmatpush1.msra.mxu0 0.0
  %700 = vmatprep.subr.mxu0 0.0
  %701 = vmatpush1.msra.mxu0 0.0
  %702 = vmatprep.subr.mxu0 0.0
  %703 = vmatpush1.msra.mxu0 0.0
  %704 = vmatprep.subr.mxu0 0.0
  %705 = vmatpush1.msra.mxu0 0.0
  %706 = vmatprep.subr.mxu0 0.0
  %707 = vmatpush1.msra.mxu0 0.0
  %708 = vmatprep.subr.mxu0 0.0
  %709 = vmatpush1.msra.mxu0 0.0
  %710 = vmatprep.subr.mxu0 0.0
  %711 = vmatpush1.msra.mxu0 0.0
  %712 = vmatprep.subr.mxu0 0.0
  %713 = vmatpush1.msra.mxu0 0.0
  %714 = vmatprep.subr.mxu0 0.0
  %715 = vmatpush1.msra.mxu0 0.0
  %716 = vmatprep.subr.mxu0 0.0
  %717 = vmatpush1.msra.mxu0 0.0
  %718 = vmatprep.subr.mxu0 0.0
  %719 = vmatpush1.msra.mxu0 0.0
  %720 = vmatprep.subr.mxu0 0.0
  %721 = vmatpush1.msra.mxu0 0.0
  %722 = vmatprep.subr.mxu0 0.0
  %723 = vmatpush1.msra.mxu0 0.0
  %724 = vmatprep.subr.mxu0 0.0
  %725 = vmatpush1.msra.mxu0 0.0
  %726 = vmatprep.subr.mxu0 0.0
  %727 = vmatpush1.msra.mxu0 0.0
  %728 = vmatprep.subr.mxu0 0.0
  %729 = vmatpush1.msra.mxu0 0.0
  %730 = vmatprep.subr.mxu0 0.0
  %731 = vmatpush1.msra.mxu0 0.0
  %732 = vmatprep.subr.mxu0 0.0
  %733 = vmatpush1.msra.mxu0 0.0
  %734 = vmatprep.subr.mxu0 0.0
  %735 = vmatpush1.msra.mxu0 0.0
  %736 = vmatprep.subr.mxu0 0.0
  %737 = vmatpush1.msra.mxu0 0.0
  %738 = vmatprep.mubr.f32.mxu0 0.0
  %739 = vmatmul.mubr.f32.gmra.mrb[0].mxu0 %v126
  %v740 = vpop.f32.mrb[0].mxu0
  %v741 = vadd.f32 0.0, %v740
  %v742 = vpop.f32.mrb[0].mxu0
  %v743 = vadd.f32 0.0, %v742
  %744 = vdwg.mxu0
  %v745 = vld [vmem:[%s3] sm:$0xff]
  %747 = vset.pattern.permute.xlu0 0
  %748 = vperm.xlu0 %747, %v745
  %v749 = vpop.permute.xlu0 %748
  %v751 = vmul.f32 %v749, %v244
  %v752 = vmul.f32 %v749, %v246
  %v753 = vmul.f32 %v749, %v315
  %v754 = vmul.f32 %v749, %v317
  %v755 = vmul.f32 %v749, %v386
  %v756 = vmul.f32 %v749, %v388
  %v757 = vmul.f32 %v749, %v457
  %v758 = vmul.f32 %v749, %v459
  %v759 = vmul.f32 %v749, %v528
  %v760 = vmul.f32 %v749, %v530
  %v761 = vmul.f32 %v749, %v599
  %v762 = vmul.f32 %v749, %v601
  %v763 = vmul.f32 %v749, %v670
  %v764 = vmul.f32 %v749, %v672
  %v765 = vmul.f32 %v749, %v741
  %v766 = vmul.f32 %v749, %v743
  %v767 = vld [vmem:[%s4] sm:$0xff]
  %769 = vset.pattern.permute.xlu0 0
  %770 = vperm.xlu0 %769, %v767
  %v771 = vpop.permute.xlu0 %770
  %v773 = vadd.f32 %v751, %v771
  %v774 = vadd.f32 %v752, %v771
  %v775 = vadd.f32 %v753, %v771
  %v776 = vadd.f32 %v754, %v771
  %v777 = vadd.f32 %v755, %v771
  %v778 = vadd.f32 %v756, %v771
  %v779 = vadd.f32 %v757, %v771
  %v780 = vadd.f32 %v758, %v771
  %v781 = vadd.f32 %v759, %v771
  %v782 = vadd.f32 %v760, %v771
  %v783 = vadd.f32 %v761, %v771
  %v784 = vadd.f32 %v762, %v771
  %v785 = vadd.f32 %v763, %v771
  %v786 = vadd.f32 %v764, %v771
  %v787 = vadd.f32 %v765, %v771
  %v788 = vadd.f32 %v766, %v771
  %v789 = vmax.f32 %v773, 0.0
  %v790 = vmax.f32 %v774, 0.0
  %v791 = vmax.f32 %v775, 0.0
  %v792 = vmax.f32 %v776, 0.0
  %v793 = vmax.f32 %v777, 0.0
  %v794 = vmax.f32 %v778, 0.0
  %v795 = vmax.f32 %v779, 0.0
  %v796 = vmax.f32 %v780, 0.0
  %v797 = vmax.f32 %v781, 0.0
  %v798 = vmax.f32 %v782, 0.0
  %v799 = vmax.f32 %v783, 0.0
  %v800 = vmax.f32 %v784, 0.0
  %v801 = vmax.f32 %v785, 0.0
  %v802 = vmax.f32 %v786, 0.0
  %v803 = vmax.f32 %v787, 0.0
  %v804 = vmax.f32 %v788, 0.0
  %v805 = vmul.f32 %v789, %v91
  %v806 = vmul.f32 %v790, %v92
  %v807 = vmul.f32 %v791, %v93
  %v808 = vmul.f32 %v792, %v94
  %v809 = vmul.f32 %v793, %v95
  %v810 = vmul.f32 %v794, %v96
  %v811 = vmul.f32 %v795, %v97
  %v812 = vmul.f32 %v796, %v98
  %v813 = vmul.f32 %v797, %v99
  %v814 = vmul.f32 %v798, %v100
  %v815 = vmul.f32 %v799, %v101
  %v816 = vmul.f32 %v800, %v102
  %v817 = vmul.f32 %v801, %v103
  %v818 = vmul.f32 %v802, %v104
  %v819 = vmul.f32 %v803, %v105
  %v820 = vmul.f32 %v804, %v106
  %v821 = vld [vmem:[%s2] sm:$0xff]
  %v822 = vld [vmem:[%s2 + $0x8] sm:$0xff]
  %vm823 = vcmask 64512
  %v825 = vsel %vm823, %v821, 0
  %v828 = vsel %vm823, %v822, 0
  %830 = vmatprep.subr.mxu0 %v806
  %831 = vmatpush1.msra.mxu0 %v805
  %832 = vmatprep.subr.mxu0 0.0
  %833 = vmatpush1.msra.mxu0 0.0
  %834 = vmatprep.subr.mxu0 0.0
  %835 = vmatpush1.msra.mxu0 0.0
  %836 = vmatprep.subr.mxu0 0.0
  %837 = vmatpush1.msra.mxu0 0.0
  %838 = vmatprep.subr.mxu0 0.0
  %839 = vmatpush1.msra.mxu0 0.0
  %840 = vmatprep.subr.mxu0 0.0
  %841 = vmatpush1.msra.mxu0 0.0
  %842 = vmatprep.subr.mxu0 0.0
  %843 = vmatpush1.msra.mxu0 0.0
  %844 = vmatprep.subr.mxu0 0.0
  %845 = vmatpush1.msra.mxu0 0.0
  %846 = vmatprep.subr.mxu0 0.0
  %847 = vmatpush1.msra.mxu0 0.0
  %848 = vmatprep.subr.mxu0 0.0
  %849 = vmatpush1.msra.mxu0 0.0
  %850 = vmatprep.subr.mxu0 0.0
  %851 = vmatpush1.msra.mxu0 0.0
  %852 = vmatprep.subr.mxu0 0.0
  %853 = vmatpush1.msra.mxu0 0.0
  %854 = vmatprep.subr.mxu0 0.0
  %855 = vmatpush1.msra.mxu0 0.0
  %856 = vmatprep.subr.mxu0 0.0
  %857 = vmatpush1.msra.mxu0 0.0
  %858 = vmatprep.subr.mxu0 0.0
  %859 = vmatpush1.msra.mxu0 0.0
  %860 = vmatprep.subr.mxu0 0.0
  %861 = vmatpush1.msra.mxu0 0.0
  %862 = vmatprep.subr.mxu0 0.0
  %863 = vmatpush1.msra.mxu0 0.0
  %864 = vmatprep.subr.mxu0 0.0
  %865 = vmatpush1.msra.mxu0 0.0
  %866 = vmatprep.subr.mxu0 0.0
  %867 = vmatpush1.msra.mxu0 0.0
  %868 = vmatprep.subr.mxu0 0.0
  %869 = vmatpush1.msra.mxu0 0.0
  %870 = vmatprep.subr.mxu0 0.0
  %871 = vmatpush1.msra.mxu0 0.0
  %872 = vmatprep.subr.mxu0 0.0
  %873 = vmatpush1.msra.mxu0 0.0
  %874 = vmatprep.subr.mxu0 0.0
  %875 = vmatpush1.msra.mxu0 0.0
  %876 = vmatprep.subr.mxu0 0.0
  %877 = vmatpush1.msra.mxu0 0.0
  %878 = vmatprep.subr.mxu0 0.0
  %879 = vmatpush1.msra.mxu0 0.0
  %880 = vmatprep.subr.mxu0 0.0
  %881 = vmatpush1.msra.mxu0 0.0
  %882 = vmatprep.subr.mxu0 0.0
  %883 = vmatpush1.msra.mxu0 0.0
  %884 = vmatprep.subr.mxu0 0.0
  %885 = vmatpush1.msra.mxu0 0.0
  %886 = vmatprep.subr.mxu0 0.0
  %887 = vmatpush1.msra.mxu0 0.0
  %888 = vmatprep.subr.mxu0 0.0
  %889 = vmatpush1.msra.mxu0 0.0
  %890 = vmatprep.subr.mxu0 0.0
  %891 = vmatpush1.msra.mxu0 0.0
  %892 = vmatprep.subr.mxu0 0.0
  %893 = vmatpush1.msra.mxu0 0.0
  %894 = vmatprep.mubr.f32.mxu0 0.0
  %895 = vmatmul.mubr.f32.gmra.mrb[0].mxu0 %v825
  %v896 = vpop.f32.mrb[0].mxu0
  %v897 = vadd.f32 0.0, %v896
  %v898 = vpop.f32.mrb[0].mxu0
  %v899 = vadd.f32 0.0, %v898
  %900 = vmatprep.mubr.f32.mxu0 0.0
  %901 = vmatmul.mubr.f32.gmra.mrb[0].mxu0 %v828
  %v902 = vpop.f32.mrb[0].mxu0
  %v903 = vadd.f32 0.0, %v902
  %v904 = vpop.f32.mrb[0].mxu0
  %v905 = vadd.f32 0.0, %v904
  %906 = vdwg.mxu0
  %907 = vmatprep.subr.mxu0 %v808
  %908 = vmatpush1.msra.mxu0 %v807
  %909 = vmatprep.subr.mxu0 0.0
  %910 = vmatpush1.msra.mxu0 0.0
  %911 = vmatprep.subr.mxu0 0.0
  %912 = vmatpush1.msra.mxu0 0.0
  %913 = vmatprep.subr.mxu0 0.0
  %914 = vmatpush1.msra.mxu0 0.0
  %915 = vmatprep.subr.mxu0 0.0
  %916 = vmatpush1.msra.mxu0 0.0
  %917 = vmatprep.subr.mxu0 0.0
  %918 = vmatpush1.msra.mxu0 0.0
  %919 = vmatprep.subr.mxu0 0.0
  %920 = vmatpush1.msra.mxu0 0.0
  %921 = vmatprep.subr.mxu0 0.0
  %922 = vmatpush1.msra.mxu0 0.0
  %923 = vmatprep.subr.mxu0 0.0
  %924 = vmatpush1.msra.mxu0 0.0
  %925 = vmatprep.subr.mxu0 0.0
  %926 = vmatpush1.msra.mxu0 0.0
  %927 = vmatprep.subr.mxu0 0.0
  %928 = vmatpush1.msra.mxu0 0.0
  %929 = vmatprep.subr.mxu0 0.0
  %930 = vmatpush1.msra.mxu0 0.0
  %931 = vmatprep.subr.mxu0 0.0
  %932 = vmatpush1.msra.mxu0 0.0
  %933 = vmatprep.subr.mxu0 0.0
  %934 = vmatpush1.msra.mxu0 0.0
  %935 = vmatprep.subr.mxu0 0.0
  %936 = vmatpush1.msra.mxu0 0.0
  %937 = vmatprep.subr.mxu0 0.0
  %938 = vmatpush1.msra.mxu0 0.0
  %939 = vmatprep.subr.mxu0 0.0
  %940 = vmatpush1.msra.mxu0 0.0
  %941 = vmatprep.subr.mxu0 0.0
  %942 = vmatpush1.msra.mxu0 0.0
  %943 = vmatprep.subr.mxu0 0.0
  %944 = vmatpush1.msra.mxu0 0.0
  %945 = vmatprep.subr.mxu0 0.0
  %946 = vmatpush1.msra.mxu0 0.0
  %947 = vmatprep.subr.mxu0 0.0
  %948 = vmatpush1.msra.mxu0 0.0
  %949 = vmatprep.subr.mxu0 0.0
  %950 = vmatpush1.msra.mxu0 0.0
  %951 = vmatprep.subr.mxu0 0.0
  %952 = vmatpush1.msra.mxu0 0.0
  %953 = vmatprep.subr.mxu0 0.0
  %954 = vmatpush1.msra.mxu0 0.0
  %955 = vmatprep.subr.mxu0 0.0
  %956 = vmatpush1.msra.mxu0 0.0
  %957 = vmatprep.subr.mxu0 0.0
  %958 = vmatpush1.msra.mxu0 0.0
  %959 = vmatprep.subr.mxu0 0.0
  %960 = vmatpush1.msra.mxu0 0.0
  %961 = vmatprep.subr.mxu0 0.0
  %962 = vmatpush1.msra.mxu0 0.0
  %963 = vmatprep.subr.mxu0 0.0
  %964 = vmatpush1.msra.mxu0 0.0
  %965 = vmatprep.subr.mxu0 0.0
  %966 = vmatpush1.msra.mxu0 0.0
  %967 = vmatprep.subr.mxu0 0.0
  %968 = vmatpush1.msra.mxu0 0.0
  %969 = vmatprep.subr.mxu0 0.0
  %970 = vmatpush1.msra.mxu0 0.0
  %971 = vmatprep.mubr.f32.mxu0 0.0
  %972 = vmatmul.mubr.f32.gmra.mrb[0].mxu0 %v825
  %v973 = vpop.f32.mrb[0].mxu0
  %v974 = vadd.f32 0.0, %v973
  %v975 = vpop.f32.mrb[0].mxu0
  %v976 = vadd.f32 0.0, %v975
  %977 = vmatprep.mubr.f32.mxu0 0.0
  %978 = vmatmul.mubr.f32.gmra.mrb[0].mxu0 %v828
  %v979 = vpop.f32.mrb[0].mxu0
  %v980 = vadd.f32 0.0, %v979
  %v981 = vpop.f32.mrb[0].mxu0
  %v982 = vadd.f32 0.0, %v981
  %983 = vdwg.mxu0
  %984 = vmatprep.subr.mxu0 %v810
  %985 = vmatpush1.msra.mxu0 %v809
  %986 = vmatprep.subr.mxu0 0.0
  %987 = vmatpush1.msra.mxu0 0.0
  %988 = vmatprep.subr.mxu0 0.0
  %989 = vmatpush1.msra.mxu0 0.0
  %990 = vmatprep.subr.mxu0 0.0
  %991 = vmatpush1.msra.mxu0 0.0
  %992 = vmatprep.subr.mxu0 0.0
  %993 = vmatpush1.msra.mxu0 0.0
  %994 = vmatprep.subr.mxu0 0.0
  %995 = vmatpush1.msra.mxu0 0.0
  %996 = vmatprep.subr.mxu0 0.0
  %997 = vmatpush1.msra.mxu0 0.0
  %998 = vmatprep.subr.mxu0 0.0
  %999 = vmatpush1.msra.mxu0 0.0
  %1000 = vmatprep.subr.mxu0 0.0
  %1001 = vmatpush1.msra.mxu0 0.0
  %1002 = vmatprep.subr.mxu0 0.0
  %1003 = vmatpush1.msra.mxu0 0.0
  %1004 = vmatprep.subr.mxu0 0.0
  %1005 = vmatpush1.msra.mxu0 0.0
  %1006 = vmatprep.subr.mxu0 0.0
  %1007 = vmatpush1.msra.mxu0 0.0
  %1008 = vmatprep.subr.mxu0 0.0
  %1009 = vmatpush1.msra.mxu0 0.0
  %1010 = vmatprep.subr.mxu0 0.0
  %1011 = vmatpush1.msra.mxu0 0.0
  %1012 = vmatprep.subr.mxu0 0.0
  %1013 = vmatpush1.msra.mxu0 0.0
  %1014 = vmatprep.subr.mxu0 0.0
  %1015 = vmatpush1.msra.mxu0 0.0
  %1016 = vmatprep.subr.mxu0 0.0
  %1017 = vmatpush1.msra.mxu0 0.0
  %1018 = vmatprep.subr.mxu0 0.0
  %1019 = vmatpush1.msra.mxu0 0.0
  %1020 = vmatprep.subr.mxu0 0.0
  %1021 = vmatpush1.msra.mxu0 0.0
  %1022 = vmatprep.subr.mxu0 0.0
  %1023 = vmatpush1.msra.mxu0 0.0
  %1024 = vmatprep.subr.mxu0 0.0
  %1025 = vmatpush1.msra.mxu0 0.0
  %1026 = vmatprep.subr.mxu0 0.0
  %1027 = vmatpush1.msra.mxu0 0.0
  %1028 = vmatprep.subr.mxu0 0.0
  %1029 = vmatpush1.msra.mxu0 0.0
  %1030 = vmatprep.subr.mxu0 0.0
  %1031 = vmatpush1.msra.mxu0 0.0
  %1032 = vmatprep.subr.mxu0 0.0
  %1033 = vmatpush1.msra.mxu0 0.0
  %1034 = vmatprep.subr.mxu0 0.0
  %1035 = vmatpush1.msra.mxu0 0.0
  %1036 = vmatprep.subr.mxu0 0.0
  %1037 = vmatpush1.msra.mxu0 0.0
  %1038 = vmatprep.subr.mxu0 0.0
  %1039 = vmatpush1.msra.mxu0 0.0
  %1040 = vmatprep.subr.mxu0 0.0
  %1041 = vmatpush1.msra.mxu0 0.0
  %1042 = vmatprep.subr.mxu0 0.0
  %1043 = vmatpush1.msra.mxu0 0.0
  %1044 = vmatprep.subr.mxu0 0.0
  %1045 = vmatpush1.msra.mxu0 0.0
  %1046 = vmatprep.subr.mxu0 0.0
  %1047 = vmatpush1.msra.mxu0 0.0
  %1048 = vmatprep.mubr.f32.mxu0 0.0
  %1049 = vmatmul.mubr.f32.gmra.mrb[0].mxu0 %v825
  %v1050 = vpop.f32.mrb[0].mxu0
  %v1051 = vadd.f32 0.0, %v1050
  %v1052 = vpop.f32.mrb[0].mxu0
  %v1053 = vadd.f32 0.0, %v1052
  %1054 = vmatprep.mubr.f32.mxu0 0.0
  %1055 = vmatmul.mubr.f32.gmra.mrb[0].mxu0 %v828
  %v1056 = vpop.f32.mrb[0].mxu0
  %v1057 = vadd.f32 0.0, %v1056
  %v1058 = vpop.f32.mrb[0].mxu0
  %v1059 = vadd.f32 0.0, %v1058
  %1060 = vdwg.mxu0
  %1061 = vmatprep.subr.mxu0 %v812
  %1062 = vmatpush1.msra.mxu0 %v811
  %1063 = vmatprep.subr.mxu0 0.0
  %1064 = vmatpush1.msra.mxu0 0.0
  %1065 = vmatprep.subr.mxu0 0.0
  %1066 = vmatpush1.msra.mxu0 0.0
  %1067 = vmatprep.subr.mxu0 0.0
  %1068 = vmatpush1.msra.mxu0 0.0
  %1069 = vmatprep.subr.mxu0 0.0
  %1070 = vmatpush1.msra.mxu0 0.0
  %1071 = vmatprep.subr.mxu0 0.0
  %1072 = vmatpush1.msra.mxu0 0.0
  %1073 = vmatprep.subr.mxu0 0.0
  %1074 = vmatpush1.msra.mxu0 0.0
  %1075 = vmatprep.subr.mxu0 0.0
  %1076 = vmatpush1.msra.mxu0 0.0
  %1077 = vmatprep.subr.mxu0 0.0
  %1078 = vmatpush1.msra.mxu0 0.0
  %1079 = vmatprep.subr.mxu0 0.0
  %1080 = vmatpush1.msra.mxu0 0.0
  %1081 = vmatprep.subr.mxu0 0.0
  %1082 = vmatpush1.msra.mxu0 0.0
  %1083 = vmatprep.subr.mxu0 0.0
  %1084 = vmatpush1.msra.mxu0 0.0
  %1085 = vmatprep.subr.mxu0 0.0
  %1086 = vmatpush1.msra.mxu0 0.0
  %1087 = vmatprep.subr.mxu0 0.0
  %1088 = vmatpush1.msra.mxu0 0.0
  %1089 = vmatprep.subr.mxu0 0.0
  %1090 = vmatpush1.msra.mxu0 0.0
  %1091 = vmatprep.subr.mxu0 0.0
  %1092 = vmatpush1.msra.mxu0 0.0
  %1093 = vmatprep.subr.mxu0 0.0
  %1094 = vmatpush1.msra.mxu0 0.0
  %1095 = vmatprep.subr.mxu0 0.0
  %1096 = vmatpush1.msra.mxu0 0.0
  %1097 = vmatprep.subr.mxu0 0.0
  %1098 = vmatpush1.msra.mxu0 0.0
  %1099 = vmatprep.subr.mxu0 0.0
  %1100 = vmatpush1.msra.mxu0 0.0
  %1101 = vmatprep.subr.mxu0 0.0
  %1102 = vmatpush1.msra.mxu0 0.0
  %1103 = vmatprep.subr.mxu0 0.0
  %1104 = vmatpush1.msra.mxu0 0.0
  %1105 = vmatprep.subr.mxu0 0.0
  %1106 = vmatpush1.msra.mxu0 0.0
  %1107 = vmatprep.subr.mxu0 0.0
  %1108 = vmatpush1.msra.mxu0 0.0
  %1109 = vmatprep.subr.mxu0 0.0
  %1110 = vmatpush1.msra.mxu0 0.0
  %1111 = vmatprep.subr.mxu0 0.0
  %1112 = vmatpush1.msra.mxu0 0.0
  %1113 = vmatprep.subr.mxu0 0.0
  %1114 = vmatpush1.msra.mxu0 0.0
  %1115 = vmatprep.subr.mxu0 0.0
  %1116 = vmatpush1.msra.mxu0 0.0
  %1117 = vmatprep.subr.mxu0 0.0
  %1118 = vmatpush1.msra.mxu0 0.0
  %1119 = vmatprep.subr.mxu0 0.0
  %1120 = vmatpush1.msra.mxu0 0.0
  %1121 = vmatprep.subr.mxu0 0.0
  %1122 = vmatpush1.msra.mxu0 0.0
  %1123 = vmatprep.subr.mxu0 0.0
  %1124 = vmatpush1.msra.mxu0 0.0
  %1125 = vmatprep.mubr.f32.mxu0 0.0
  %1126 = vmatmul.mubr.f32.gmra.mrb[0].mxu0 %v825
  %v1127 = vpop.f32.mrb[0].mxu0
  %v1128 = vadd.f32 0.0, %v1127
  %v1129 = vpop.f32.mrb[0].mxu0
  %v1130 = vadd.f32 0.0, %v1129
  %1131 = vmatprep.mubr.f32.mxu0 0.0
  %1132 = vmatmul.mubr.f32.gmra.mrb[0].mxu0 %v828
  %v1133 = vpop.f32.mrb[0].mxu0
  %v1134 = vadd.f32 0.0, %v1133
  %v1135 = vpop.f32.mrb[0].mxu0
  %v1136 = vadd.f32 0.0, %v1135
  %1137 = vdwg.mxu0
  %1138 = vmatprep.subr.mxu0 %v814
  %1139 = vmatpush1.msra.mxu0 %v813
  %1140 = vmatprep.subr.mxu0 0.0
  %1141 = vmatpush1.msra.mxu0 0.0
  %1142 = vmatprep.subr.mxu0 0.0
  %1143 = vmatpush1.msra.mxu0 0.0
  %1144 = vmatprep.subr.mxu0 0.0
  %1145 = vmatpush1.msra.mxu0 0.0
  %1146 = vmatprep.subr.mxu0 0.0
  %1147 = vmatpush1.msra.mxu0 0.0
  %1148 = vmatprep.subr.mxu0 0.0
  %1149 = vmatpush1.msra.mxu0 0.0
  %1150 = vmatprep.subr.mxu0 0.0
  %1151 = vmatpush1.msra.mxu0 0.0
  %1152 = vmatprep.subr.mxu0 0.0
  %1153 = vmatpush1.msra.mxu0 0.0
  %1154 = vmatprep.subr.mxu0 0.0
  %1155 = vmatpush1.msra.mxu0 0.0
  %1156 = vmatprep.subr.mxu0 0.0
  %1157 = vmatpush1.msra.mxu0 0.0
  %1158 = vmatprep.subr.mxu0 0.0
  %1159 = vmatpush1.msra.mxu0 0.0
  %1160 = vmatprep.subr.mxu0 0.0
  %1161 = vmatpush1.msra.mxu0 0.0
  %1162 = vmatprep.subr.mxu0 0.0
  %1163 = vmatpush1.msra.mxu0 0.0
  %1164 = vmatprep.subr.mxu0 0.0
  %1165 = vmatpush1.msra.mxu0 0.0
  %1166 = vmatprep.subr.mxu0 0.0
  %1167 = vmatpush1.msra.mxu0 0.0
  %1168 = vmatprep.subr.mxu0 0.0
  %1169 = vmatpush1.msra.mxu0 0.0
  %1170 = vmatprep.subr.mxu0 0.0
  %1171 = vmatpush1.msra.mxu0 0.0
  %1172 = vmatprep.subr.mxu0 0.0
  %1173 = vmatpush1.msra.mxu0 0.0
  %1174 = vmatprep.subr.mxu0 0.0
  %1175 = vmatpush1.msra.mxu0 0.0
  %1176 = vmatprep.subr.mxu0 0.0
  %1177 = vmatpush1.msra.mxu0 0.0
  %1178 = vmatprep.subr.mxu0 0.0
  %1179 = vmatpush1.msra.mxu0 0.0
  %1180 = vmatprep.subr.mxu0 0.0
  %1181 = vmatpush1.msra.mxu0 0.0
  %1182 = vmatprep.subr.mxu0 0.0
  %1183 = vmatpush1.msra.mxu0 0.0
  %1184 = vmatprep.subr.mxu0 0.0
  %1185 = vmatpush1.msra.mxu0 0.0
  %1186 = vmatprep.subr.mxu0 0.0
  %1187 = vmatpush1.msra.mxu0 0.0
  %1188 = vmatprep.subr.mxu0 0.0
  %1189 = vmatpush1.msra.mxu0 0.0
  %1190 = vmatprep.subr.mxu0 0.0
  %1191 = vmatpush1.msra.mxu0 0.0
  %1192 = vmatprep.subr.mxu0 0.0
  %1193 = vmatpush1.msra.mxu0 0.0
  %1194 = vmatprep.subr.mxu0 0.0
  %1195 = vmatpush1.msra.mxu0 0.0
  %1196 = vmatprep.subr.mxu0 0.0
  %1197 = vmatpush1.msra.mxu0 0.0
  %1198 = vmatprep.subr.mxu0 0.0
  %1199 = vmatpush1.msra.mxu0 0.0
  %1200 = vmatprep.subr.mxu0 0.0
  %1201 = vmatpush1.msra.mxu0 0.0
  %1202 = vmatprep.mubr.f32.mxu0 0.0
  %1203 = vmatmul.mubr.f32.gmra.mrb[0].mxu0 %v825
  %v1204 = vpop.f32.mrb[0].mxu0
  %v1205 = vadd.f32 0.0, %v1204
  %v1206 = vpop.f32.mrb[0].mxu0
  %v1207 = vadd.f32 0.0, %v1206
  %1208 = vmatprep.mubr.f32.mxu0 0.0
  %1209 = vmatmul.mubr.f32.gmra.mrb[0].mxu0 %v828
  %v1210 = vpop.f32.mrb[0].mxu0
  %v1211 = vadd.f32 0.0, %v1210
  %v1212 = vpop.f32.mrb[0].mxu0
  %v1213 = vadd.f32 0.0, %v1212
  %1214 = vdwg.mxu0
  %1215 = vmatprep.subr.mxu0 %v816
  %1216 = vmatpush1.msra.mxu0 %v815
  %1217 = vmatprep.subr.mxu0 0.0
  %1218 = vmatpush1.msra.mxu0 0.0
  %1219 = vmatprep.subr.mxu0 0.0
  %1220 = vmatpush1.msra.mxu0 0.0
  %1221 = vmatprep.subr.mxu0 0.0
  %1222 = vmatpush1.msra.mxu0 0.0
  %1223 = vmatprep.subr.mxu0 0.0
  %1224 = vmatpush1.msra.mxu0 0.0
  %1225 = vmatprep.subr.mxu0 0.0
  %1226 = vmatpush1.msra.mxu0 0.0
  %1227 = vmatprep.subr.mxu0 0.0
  %1228 = vmatpush1.msra.mxu0 0.0
  %1229 = vmatprep.subr.mxu0 0.0
  %1230 = vmatpush1.msra.mxu0 0.0
  %1231 = vmatprep.subr.mxu0 0.0
  %1232 = vmatpush1.msra.mxu0 0.0
  %1233 = vmatprep.subr.mxu0 0.0
  %1234 = vmatpush1.msra.mxu0 0.0
  %1235 = vmatprep.subr.mxu0 0.0
  %1236 = vmatpush1.msra.mxu0 0.0
  %1237 = vmatprep.subr.mxu0 0.0
  %1238 = vmatpush1.msra.mxu0 0.0
  %1239 = vmatprep.subr.mxu0 0.0
  %1240 = vmatpush1.msra.mxu0 0.0
  %1241 = vmatprep.subr.mxu0 0.0
  %1242 = vmatpush1.msra.mxu0 0.0
  %1243 = vmatprep.subr.mxu0 0.0
  %1244 = vmatpush1.msra.mxu0 0.0
  %1245 = vmatprep.subr.mxu0 0.0
  %1246 = vmatpush1.msra.mxu0 0.0
  %1247 = vmatprep.subr.mxu0 0.0
  %1248 = vmatpush1.msra.mxu0 0.0
  %1249 = vmatprep.subr.mxu0 0.0
  %1250 = vmatpush1.msra.mxu0 0.0
  %1251 = vmatprep.subr.mxu0 0.0
  %1252 = vmatpush1.msra.mxu0 0.0
  %1253 = vmatprep.subr.mxu0 0.0
  %1254 = vmatpush1.msra.mxu0 0.0
  %1255 = vmatprep.subr.mxu0 0.0
  %1256 = vmatpush1.msra.mxu0 0.0
  %1257 = vmatprep.subr.mxu0 0.0
  %1258 = vmatpush1.msra.mxu0 0.0
  %1259 = vmatprep.subr.mxu0 0.0
  %1260 = vmatpush1.msra.mxu0 0.0
  %1261 = vmatprep.subr.mxu0 0.0
  %1262 = vmatpush1.msra.mxu0 0.0
  %1263 = vmatprep.subr.mxu0 0.0
  %1264 = vmatpush1.msra.mxu0 0.0
  %1265 = vmatprep.subr.mxu0 0.0
  %1266 = vmatpush1.msra.mxu0 0.0
  %1267 = vmatprep.subr.mxu0 0.0
  %1268 = vmatpush1.msra.mxu0 0.0
  %1269 = vmatprep.subr.mxu0 0.0
  %1270 = vmatpush1.msra.mxu0 0.0
  %1271 = vmatprep.subr.mxu0 0.0
  %1272 = vmatpush1.msra.mxu0 0.0
  %1273 = vmatprep.subr.mxu0 0.0
  %1274 = vmatpush1.msra.mxu0 0.0
  %1275 = vmatprep.subr.mxu0 0.0
  %1276 = vmatpush1.msra.mxu0 0.0
  %1277 = vmatprep.subr.mxu0 0.0
  %1278 = vmatpush1.msra.mxu0 0.0
  %1279 = vmatprep.mubr.f32.mxu0 0.0
  %1280 = vmatmul.mubr.f32.gmra.mrb[0].mxu0 %v825
  %v1281 = vpop.f32.mrb[0].mxu0
  %v1282 = vadd.f32 0.0, %v1281
  %v1283 = vpop.f32.mrb[0].mxu0
  %v1284 = vadd.f32 0.0, %v1283
  %1285 = vmatprep.mubr.f32.mxu0 0.0
  %1286 = vmatmul.mubr.f32.gmra.mrb[0].mxu0 %v828
  %v1287 = vpop.f32.mrb[0].mxu0
  %v1288 = vadd.f32 0.0, %v1287
  %v1289 = vpop.f32.mrb[0].mxu0
  %v1290 = vadd.f32 0.0, %v1289
  %1291 = vdwg.mxu0
  %1292 = vmatprep.subr.mxu0 %v818
  %1293 = vmatpush1.msra.mxu0 %v817
  %1294 = vmatprep.subr.mxu0 0.0
  %1295 = vmatpush1.msra.mxu0 0.0
  %1296 = vmatprep.subr.mxu0 0.0
  %1297 = vmatpush1.msra.mxu0 0.0
  %1298 = vmatprep.subr.mxu0 0.0
  %1299 = vmatpush1.msra.mxu0 0.0
  %1300 = vmatprep.subr.mxu0 0.0
  %1301 = vmatpush1.msra.mxu0 0.0
  %1302 = vmatprep.subr.mxu0 0.0
  %1303 = vmatpush1.msra.mxu0 0.0
  %1304 = vmatprep.subr.mxu0 0.0
  %1305 = vmatpush1.msra.mxu0 0.0
  %1306 = vmatprep.subr.mxu0 0.0
  %1307 = vmatpush1.msra.mxu0 0.0
  %1308 = vmatprep.subr.mxu0 0.0
  %1309 = vmatpush1.msra.mxu0 0.0
  %1310 = vmatprep.subr.mxu0 0.0
  %1311 = vmatpush1.msra.mxu0 0.0
  %1312 = vmatprep.subr.mxu0 0.0
  %1313 = vmatpush1.msra.mxu0 0.0
  %1314 = vmatprep.subr.mxu0 0.0
  %1315 = vmatpush1.msra.mxu0 0.0
  %1316 = vmatprep.subr.mxu0 0.0
  %1317 = vmatpush1.msra.mxu0 0.0
  %1318 = vmatprep.subr.mxu0 0.0
  %1319 = vmatpush1.msra.mxu0 0.0
  %1320 = vmatprep.subr.mxu0 0.0
  %1321 = vmatpush1.msra.mxu0 0.0
  %1322 = vmatprep.subr.mxu0 0.0
  %1323 = vmatpush1.msra.mxu0 0.0
  %1324 = vmatprep.subr.mxu0 0.0
  %1325 = vmatpush1.msra.mxu0 0.0
  %1326 = vmatprep.subr.mxu0 0.0
  %1327 = vmatpush1.msra.mxu0 0.0
  %1328 = vmatprep.subr.mxu0 0.0
  %1329 = vmatpush1.msra.mxu0 0.0
  %1330 = vmatprep.subr.mxu0 0.0
  %1331 = vmatpush1.msra.mxu0 0.0
  %1332 = vmatprep.subr.mxu0 0.0
  %1333 = vmatpush1.msra.mxu0 0.0
  %1334 = vmatprep.subr.mxu0 0.0
  %1335 = vmatpush1.msra.mxu0 0.0
  %1336 = vmatprep.subr.mxu0 0.0
  %1337 = vmatpush1.msra.mxu0 0.0
  %1338 = vmatprep.subr.mxu0 0.0
  %1339 = vmatpush1.msra.mxu0 0.0
  %1340 = vmatprep.subr.mxu0 0.0
  %1341 = vmatpush1.msra.mxu0 0.0
  %1342 = vmatprep.subr.mxu0 0.0
  %1343 = vmatpush1.msra.mxu0 0.0
  %1344 = vmatprep.subr.mxu0 0.0
  %1345 = vmatpush1.msra.mxu0 0.0
  %1346 = vmatprep.subr.mxu0 0.0
  %1347 = vmatpush1.msra.mxu0 0.0
  %1348 = vmatprep.subr.mxu0 0.0
  %1349 = vmatpush1.msra.mxu0 0.0
  %1350 = vmatprep.subr.mxu0 0.0
  %1351 = vmatpush1.msra.mxu0 0.0
  %1352 = vmatprep.subr.mxu0 0.0
  %1353 = vmatpush1.msra.mxu0 0.0
  %1354 = vmatprep.subr.mxu0 0.0
  %1355 = vmatpush1.msra.mxu0 0.0
  %1356 = vmatprep.mubr.f32.mxu0 0.0
  %1357 = vmatmul.mubr.f32.gmra.mrb[0].mxu0 %v825
  %v1358 = vpop.f32.mrb[0].mxu0
  %v1359 = vadd.f32 0.0, %v1358
  %v1360 = vpop.f32.mrb[0].mxu0
  %v1361 = vadd.f32 0.0, %v1360
  %1362 = vmatprep.mubr.f32.mxu0 0.0
  %1363 = vmatmul.mubr.f32.gmra.mrb[0].mxu0 %v828
  %v1364 = vpop.f32.mrb[0].mxu0
  %v1365 = vadd.f32 0.0, %v1364
  %v1366 = vpop.f32.mrb[0].mxu0
  %v1367 = vadd.f32 0.0, %v1366
  %1368 = vdwg.mxu0
  %1369 = vmatprep.subr.mxu0 %v820
  %1370 = vmatpush1.msra.mxu0 %v819
  %1371 = vmatprep.subr.mxu0 0.0
  %1372 = vmatpush1.msra.mxu0 0.0
  %1373 = vmatprep.subr.mxu0 0.0
  %1374 = vmatpush1.msra.mxu0 0.0
  %1375 = vmatprep.subr.mxu0 0.0
  %1376 = vmatpush1.msra.mxu0 0.0
  %1377 = vmatprep.subr.mxu0 0.0
  %1378 = vmatpush1.msra.mxu0 0.0
  %1379 = vmatprep.subr.mxu0 0.0
  %1380 = vmatpush1.msra.mxu0 0.0
  %1381 = vmatprep.subr.mxu0 0.0
  %1382 = vmatpush1.msra.mxu0 0.0
  %1383 = vmatprep.subr.mxu0 0.0
  %1384 = vmatpush1.msra.mxu0 0.0
  %1385 = vmatprep.subr.mxu0 0.0
  %1386 = vmatpush1.msra.mxu0 0.0
  %1387 = vmatprep.subr.mxu0 0.0
  %1388 = vmatpush1.msra.mxu0 0.0
  %1389 = vmatprep.subr.mxu0 0.0
  %1390 = vmatpush1.msra.mxu0 0.0
  %1391 = vmatprep.subr.mxu0 0.0
  %1392 = vmatpush1.msra.mxu0 0.0
  %1393 = vmatprep.subr.mxu0 0.0
  %1394 = vmatpush1.msra.mxu0 0.0
  %1395 = vmatprep.subr.mxu0 0.0
  %1396 = vmatpush1.msra.mxu0 0.0
  %1397 = vmatprep.subr.mxu0 0.0
  %1398 = vmatpush1.msra.mxu0 0.0
  %1399 = vmatprep.subr.mxu0 0.0
  %1400 = vmatpush1.msra.mxu0 0.0
  %1401 = vmatprep.subr.mxu0 0.0
  %1402 = vmatpush1.msra.mxu0 0.0
  %1403 = vmatprep.subr.mxu0 0.0
  %1404 = vmatpush1.msra.mxu0 0.0
  %1405 = vmatprep.subr.mxu0 0.0
  %1406 = vmatpush1.msra.mxu0 0.0
  %1407 = vmatprep.subr.mxu0 0.0
  %1408 = vmatpush1.msra.mxu0 0.0
  %1409 = vmatprep.subr.mxu0 0.0
  %1410 = vmatpush1.msra.mxu0 0.0
  %1411 = vmatprep.subr.mxu0 0.0
  %1412 = vmatpush1.msra.mxu0 0.0
  %1413 = vmatprep.subr.mxu0 0.0
  %1414 = vmatpush1.msra.mxu0 0.0
  %1415 = vmatprep.subr.mxu0 0.0
  %1416 = vmatpush1.msra.mxu0 0.0
  %1417 = vmatprep.subr.mxu0 0.0
  %1418 = vmatpush1.msra.mxu0 0.0
  %1419 = vmatprep.subr.mxu0 0.0
  %1420 = vmatpush1.msra.mxu0 0.0
  %1421 = vmatprep.subr.mxu0 0.0
  %1422 = vmatpush1.msra.mxu0 0.0
  %1423 = vmatprep.subr.mxu0 0.0
  %1424 = vmatpush1.msra.mxu0 0.0
  %1425 = vmatprep.subr.mxu0 0.0
  %1426 = vmatpush1.msra.mxu0 0.0
  %1427 = vmatprep.subr.mxu0 0.0
  %1428 = vmatpush1.msra.mxu0 0.0
  %1429 = vmatprep.subr.mxu0 0.0
  %1430 = vmatpush1.msra.mxu0 0.0
  %1431 = vmatprep.subr.mxu0 0.0
  %1432 = vmatpush1.msra.mxu0 0.0
  %1433 = vmatprep.mubr.f32.mxu0 0.0
  %1434 = vmatmul.mubr.f32.gmra.mrb[0].mxu0 %v825
  %v1435 = vpop.f32.mrb[0].mxu0
  %v1436 = vadd.f32 0.0, %v1435
  %v1437 = vpop.f32.mrb[0].mxu0
  %v1438 = vadd.f32 0.0, %v1437
  %1439 = vmatprep.mubr.f32.mxu0 0.0
  %1440 = vmatmul.mubr.f32.gmra.mrb[0].mxu0 %v828
  %v1441 = vpop.f32.mrb[0].mxu0
  %v1442 = vadd.f32 0.0, %v1441
  %v1443 = vpop.f32.mrb[0].mxu0
  %v1444 = vadd.f32 0.0, %v1443
  %1445 = vdwg.mxu0
  %v1446 = vadd.f32 %v897, %v899
  %v1447 = vadd.f32 %v1446, %v974
  %v1448 = vadd.f32 %v1447, %v976
  %v1449 = vadd.f32 %v1448, %v1051
  %v1450 = vadd.f32 %v1449, %v1053
  %v1451 = vadd.f32 %v1450, %v1128
  %v1452 = vadd.f32 %v1451, %v1130
  %v1453 = vadd.f32 %v1452, %v1205
  %v1454 = vadd.f32 %v1453, %v1207
  %v1455 = vadd.f32 %v1454, %v1282
  %v1456 = vadd.f32 %v1455, %v1284
  %v1457 = vadd.f32 %v1456, %v1359
  %v1458 = vadd.f32 %v1457, %v1361
  %v1459 = vadd.f32 %v1458, %v1436
  %v1460 = vadd.f32 %v1459, %v1438
  %1461 = vadd.xlane.f32.xlu0 %v1460
  %v1462 = vpop.xlane.xlu0 %1461
  %v1463 = vadd.f32 %v903, %v905
  %v1464 = vadd.f32 %v1463, %v980
  %v1465 = vadd.f32 %v1464, %v982
  %v1466 = vadd.f32 %v1465, %v1057
  %v1467 = vadd.f32 %v1466, %v1059
  %v1468 = vadd.f32 %v1467, %v1134
  %v1469 = vadd.f32 %v1468, %v1136
  %v1470 = vadd.f32 %v1469, %v1211
  %v1471 = vadd.f32 %v1470, %v1213
  %v1472 = vadd.f32 %v1471, %v1288
  %v1473 = vadd.f32 %v1472, %v1290
  %v1474 = vadd.f32 %v1473, %v1365
  %v1475 = vadd.f32 %v1474, %v1367
  %v1476 = vadd.f32 %v1475, %v1442
  %v1477 = vadd.f32 %v1476, %v1444
  %1478 = vadd.xlane.f32.xlu0 %v1477
  %v1479 = vpop.xlane.xlu0 %1478
  %v1480 = vstv %s24
  %v1481 = vrcp.pop %v1480
  %s1482 = vtos %v1481
  %v1483 = vstv %s1482
  %v1484 = vmul.f32 %v1462, %v1483
  %v1485 = vmul.f32 %v1479, %v1483
  %v1486 = vsub.f32 %v897, %v1484
  %v1487 = vsub.f32 %v899, %v1484
  %v1488 = vsub.f32 %v974, %v1484
  %v1489 = vsub.f32 %v976, %v1484
  %v1490 = vsub.f32 %v1051, %v1484
  %v1491 = vsub.f32 %v1053, %v1484
  %v1492 = vsub.f32 %v1128, %v1484
  %v1493 = vsub.f32 %v1130, %v1484
  %v1494 = vsub.f32 %v1205, %v1484
  %v1495 = vsub.f32 %v1207, %v1484
  %v1496 = vsub.f32 %v1282, %v1484
  %v1497 = vsub.f32 %v1284, %v1484
  %v1498 = vsub.f32 %v1359, %v1484
  %v1499 = vsub.f32 %v1361, %v1484
  %v1500 = vsub.f32 %v1436, %v1484
  %v1501 = vsub.f32 %v1438, %v1484
  %v1502 = vsub.f32 %v903, %v1485
  %v1503 = vsub.f32 %v905, %v1485
  %v1504 = vsub.f32 %v980, %v1485
  %v1505 = vsub.f32 %v982, %v1485
  %v1506 = vsub.f32 %v1057, %v1485
  %v1507 = vsub.f32 %v1059, %v1485
  %v1508 = vsub.f32 %v1134, %v1485
  %v1509 = vsub.f32 %v1136, %v1485
  %v1510 = vsub.f32 %v1211, %v1485
  %v1511 = vsub.f32 %v1213, %v1485
  %v1512 = vsub.f32 %v1288, %v1485
  %v1513 = vsub.f32 %v1290, %v1485
  %v1514 = vsub.f32 %v1365, %v1485
  %v1515 = vsub.f32 %v1367, %v1485
  %v1516 = vsub.f32 %v1442, %v1485
  %v1517 = vsub.f32 %v1444, %v1485
  %v1518 = vmul.f32 %v1486, %v91
  %v1519 = vmul.f32 %v1487, %v92
  %v1520 = vmul.f32 %v1488, %v93
  %v1521 = vmul.f32 %v1489, %v94
  %v1522 = vmul.f32 %v1490, %v95
  %v1523 = vmul.f32 %v1491, %v96
  %v1524 = vmul.f32 %v1492, %v97
  %v1525 = vmul.f32 %v1493, %v98
  %v1526 = vmul.f32 %v1494, %v99
  %v1527 = vmul.f32 %v1495, %v100
  %v1528 = vmul.f32 %v1496, %v101
  %v1529 = vmul.f32 %v1497, %v102
  %v1530 = vmul.f32 %v1498, %v103
  %v1531 = vmul.f32 %v1499, %v104
  %v1532 = vmul.f32 %v1500, %v105
  %v1533 = vmul.f32 %v1501, %v106
  %v1534 = vmul.f32 %v1502, %v91
  %v1535 = vmul.f32 %v1503, %v92
  %v1536 = vmul.f32 %v1504, %v93
  %v1537 = vmul.f32 %v1505, %v94
  %v1538 = vmul.f32 %v1506, %v95
  %v1539 = vmul.f32 %v1507, %v96
  %v1540 = vmul.f32 %v1508, %v97
  %v1541 = vmul.f32 %v1509, %v98
  %v1542 = vmul.f32 %v1510, %v99
  %v1543 = vmul.f32 %v1511, %v100
  %v1544 = vmul.f32 %v1512, %v101
  %v1545 = vmul.f32 %v1513, %v102
  %v1546 = vmul.f32 %v1514, %v103
  %v1547 = vmul.f32 %v1515, %v104
  %v1548 = vmul.f32 %v1516, %v105
  %v1549 = vmul.f32 %v1517, %v106
  %v1550 = vmul.f32 %v1518, %v1518
  %v1551 = vmul.f32 %v1519, %v1519
  %v1552 = vmul.f32 %v1520, %v1520
  %v1553 = vmul.f32 %v1521, %v1521
  %v1554 = vmul.f32 %v1522, %v1522
  %v1555 = vmul.f32 %v1523, %v1523
  %v1556 = vmul.f32 %v1524, %v1524
  %v1557 = vmul.f32 %v1525, %v1525
  %v1558 = vmul.f32 %v1526, %v1526
  %v1559 = vmul.f32 %v1527, %v1527
  %v1560 = vmul.f32 %v1528, %v1528
  %v1561 = vmul.f32 %v1529, %v1529
  %v1562 = vmul.f32 %v1530, %v1530
  %v1563 = vmul.f32 %v1531, %v1531
  %v1564 = vmul.f32 %v1532, %v1532
  %v1565 = vmul.f32 %v1533, %v1533
  %v1566 = vmul.f32 %v1534, %v1534
  %v1567 = vmul.f32 %v1535, %v1535
  %v1568 = vmul.f32 %v1536, %v1536
  %v1569 = vmul.f32 %v1537, %v1537
  %v1570 = vmul.f32 %v1538, %v1538
  %v1571 = vmul.f32 %v1539, %v1539
  %v1572 = vmul.f32 %v1540, %v1540
  %v1573 = vmul.f32 %v1541, %v1541
  %v1574 = vmul.f32 %v1542, %v1542
  %v1575 = vmul.f32 %v1543, %v1543
  %v1576 = vmul.f32 %v1544, %v1544
  %v1577 = vmul.f32 %v1545, %v1545
  %v1578 = vmul.f32 %v1546, %v1546
  %v1579 = vmul.f32 %v1547, %v1547
  %v1580 = vmul.f32 %v1548, %v1548
  %v1581 = vmul.f32 %v1549, %v1549
  %v1582 = vadd.f32 %v1550, %v1551
  %v1583 = vadd.f32 %v1582, %v1552
  %v1584 = vadd.f32 %v1583, %v1553
  %v1585 = vadd.f32 %v1584, %v1554
  %v1586 = vadd.f32 %v1585, %v1555
  %v1587 = vadd.f32 %v1586, %v1556
  %v1588 = vadd.f32 %v1587, %v1557
  %v1589 = vadd.f32 %v1588, %v1558
  %v1590 = vadd.f32 %v1589, %v1559
  %v1591 = vadd.f32 %v1590, %v1560
  %v1592 = vadd.f32 %v1591, %v1561
  %v1593 = vadd.f32 %v1592, %v1562
  %v1594 = vadd.f32 %v1593, %v1563
  %v1595 = vadd.f32 %v1594, %v1564
  %v1596 = vadd.f32 %v1595, %v1565
  %1597 = vadd.xlane.f32.xlu0 %v1596
  %v1598 = vpop.xlane.xlu0 %1597
  %v1599 = vadd.f32 %v1566, %v1567
  %v1600 = vadd.f32 %v1599, %v1568
  %v1601 = vadd.f32 %v1600, %v1569
  %v1602 = vadd.f32 %v1601, %v1570
  %v1603 = vadd.f32 %v1602, %v1571
  %v1604 = vadd.f32 %v1603, %v1572
  %v1605 = vadd.f32 %v1604, %v1573
  %v1606 = vadd.f32 %v1605, %v1574
  %v1607 = vadd.f32 %v1606, %v1575
  %v1608 = vadd.f32 %v1607, %v1576
  %v1609 = vadd.f32 %v1608, %v1577
  %v1610 = vadd.f32 %v1609, %v1578
  %v1611 = vadd.f32 %v1610, %v1579
  %v1612 = vadd.f32 %v1611, %v1580
  %v1613 = vadd.f32 %v1612, %v1581
  %1614 = vadd.xlane.f32.xlu0 %v1613
  %v1615 = vpop.xlane.xlu0 %1614
  %vm1616 = vcmp.eq.s32.totalorder %v26, 0
  %v1617 = vsel %vm1616, %v1462, 0.0
  %v1618 = vsel %vm1616, %v1479, 0.0
  %vm1619 = vcmp.eq.s32.totalorder %v26, 1
  %v1620 = vsel %vm1619, %v1598, 0.0
  %v1621 = vsel %vm1619, %v1615, 0.0
  %v1622 = vadd.f32 %v1617, %v1620
  %v1623 = vadd.f32 %v1618, %v1621
  %1624 = vst [vmem:[%s5] sm:$0xff] %v1622
  %1625 = vst [vmem:[%s5 + $0x8] sm:$0xff] %v1623
  // Predicated region
  $region22: #{base_point_tinet.5} parent=0 // pred_check
    _
  $region23: #{base_point_tinet.5} parent=0 // pred_check_branch
    %1627 = sbr.rel (0) target = $region25
  $region24: #{base_point_tinet.5} parent=0 // pred_region
    _
  $region25: #{base_point_tinet.5} parent=0 // pred_fallthru
    _
  // Predicated region
  $region26: #{base_point_tinet.5} parent=0 // pred_check
    _
  $region27: #{base_point_tinet.5} parent=0 // pred_check_branch
    %1629 = sbr.rel (0) target = $region29
  $region28: #{base_point_tinet.5} parent=0 // pred_region
    _
  $region29: #{base_point_tinet.5} parent=0 // pred_fallthru
    _

// kernel: base_point_tinet.6
$region0: #{base_point_tinet.6}
  #allocation0 [shape = 'u32[]', space=smem, size = 0x4, offset = 0x4, fixed_abs, tag = 'smem constant byte address 0x4 - core index']
  #allocation1 [shape = 'u32[144,128]{1,0:T(1,128)}', space=vmem, size = 0x12000, scoped, tag = 'internal scratch']
  %s0 = inlined_call_operand.vmem [shape: f32[5,2048], index: 0, kind: input, shape index: {}]
  %s1 = inlined_call_operand.vmem [shape: f32[8,5], index: 1, kind: input, shape index: {}]
  %s2 = inlined_call_operand.vmem [shape: f32[16,8], index: 2, kind: input, shape index: {}]
  %s3 = inlined_call_operand.vmem [shape: f32[24,16], index: 3, kind: input, shape index: {}]
  %s4 = inlined_call_operand.vmem [shape: f32[8,1], index: 4, kind: input, shape index: {}]
  %s5 = inlined_call_operand.vmem [shape: f32[8,1], index: 5, kind: input, shape index: {}]
  %s6 = inlined_call_operand.vmem [shape: f32[16,1], index: 6, kind: input, shape index: {}]
  %s7 = inlined_call_operand.vmem [shape: f32[16,1], index: 7, kind: input, shape index: {}]
  %s8 = inlined_call_operand.vmem [shape: f32[24,128], index: 8, kind: output, shape index: {}]
  %s9 = sld [smem:[#allocation0]]
  $region42: #{base_point_tinet.6} parent=0
    _
  %s11 = ssub.s32 1, %s9
  %s12 = scalar_select 0, %s11, %s9
  // Predicated region
  $region2: #{base_point_tinet.6} parent=0 // pred_check
    _
  $region3: #{base_point_tinet.6} parent=0 // pred_check_branch
    %14 = sbr.rel (0) target = $region5
  $region4: #{base_point_tinet.6} parent=0 // pred_region
    _
  $region5: #{base_point_tinet.6} parent=0 // pred_fallthru
    _
  // Predicated region
  $region6: #{base_point_tinet.6} parent=0 // pred_check
    _
  $region7: #{base_point_tinet.6} parent=0 // pred_check_branch
    %16 = sbr.rel (0) target = $region9
  $region8: #{base_point_tinet.6} parent=0 // pred_region
    _
  $region9: #{base_point_tinet.6} parent=0 // pred_fallthru
    _
  // Predicated region
  $region10: #{base_point_tinet.6} parent=0 // pred_check
    _
  $region11: #{base_point_tinet.6} parent=0 // pred_check_branch
    %18 = sbr.rel (0) target = $region13
  $region12: #{base_point_tinet.6} parent=0 // pred_region
    _
  $region13: #{base_point_tinet.6} parent=0 // pred_fallthru
    _
  // Predicated region
  $region14: #{base_point_tinet.6} parent=0 // pred_check
    _
  $region15: #{base_point_tinet.6} parent=0 // pred_check_branch
    %20 = sbr.rel (0) target = $region17
  $region16: #{base_point_tinet.6} parent=0 // pred_region
    _
  $region17: #{base_point_tinet.6} parent=0 // pred_fallthru
    _
  // Predicated region
  $region18: #{base_point_tinet.6} parent=0 // pred_check
    _
  $region19: #{base_point_tinet.6} parent=0 // pred_check_branch
    %22 = sbr.rel (0) target = $region21
  $region20: #{base_point_tinet.6} parent=0 // pred_region
    _
  $region21: #{base_point_tinet.6} parent=0 // pred_fallthru
    _
  // Predicated region
  $region22: #{base_point_tinet.6} parent=0 // pred_check
    _
  $region23: #{base_point_tinet.6} parent=0 // pred_check_branch
    %24 = sbr.rel (0) target = $region25
  $region24: #{base_point_tinet.6} parent=0 // pred_region
    _
  $region25: #{base_point_tinet.6} parent=0 // pred_fallthru
    _
  // Predicated region
  $region26: #{base_point_tinet.6} parent=0 // pred_check
    _
  $region27: #{base_point_tinet.6} parent=0 // pred_check_branch
    %26 = sbr.rel (0) target = $region29
  $region28: #{base_point_tinet.6} parent=0 // pred_region
    _
  $region29: #{base_point_tinet.6} parent=0 // pred_fallthru
    _
  // Predicated region
  $region30: #{base_point_tinet.6} parent=0 // pred_check
    _
  $region31: #{base_point_tinet.6} parent=0 // pred_check_branch
    %28 = sbr.rel (0) target = $region33
  $region32: #{base_point_tinet.6} parent=0 // pred_region
    _
  $region33: #{base_point_tinet.6} parent=0 // pred_fallthru
    _
  %s29 = smul.u32 0, 2048
  %s30 = ssub.s32 32, %s29
  %p31 = scmp.lt.s32.totalorder %s30, 2048
  %s32 = scalar_select %p31, %s30, 2048
  %s33 = scvt.s32.f32 %s32
  %v34 = vlaneseq
  %v35 = vand.u32 %v34, 127
  %v36 = vadd.s32 %v35, 128
  %v37 = vadd.s32 %v35, 256
  %v38 = vadd.s32 %v35, 384
  %v39 = vadd.s32 %v35, 512
  %v40 = vadd.s32 %v35, 640
  %v41 = vadd.s32 %v35, 768
  %v42 = vadd.s32 %v35, 896
  %v43 = vadd.s32 %v35, 1024
  %v44 = vadd.s32 %v35, 1152
  %v45 = vadd.s32 %v35, 1280
  %v46 = vadd.s32 %v35, 1408
  %v47 = vadd.s32 %v35, 1536
  %v48 = vadd.s32 %v35, 1664
  %v49 = vadd.s32 %v35, 1792
  %v50 = vadd.s32 %v35, 1920
  %v51 = vstv %s29
  %v52 = vadd.s32 %v35, %v51
  %v53 = vadd.s32 %v36, %v51
  %v54 = vadd.s32 %v37, %v51
  %v55 = vadd.s32 %v38, %v51
  %v56 = vadd.s32 %v39, %v51
  %v57 = vadd.s32 %v40, %v51
  %v58 = vadd.s32 %v41, %v51
  %v59 = vadd.s32 %v42, %v51
  %v60 = vadd.s32 %v43, %v51
  %v61 = vadd.s32 %v44, %v51
  %v62 = vadd.s32 %v45, %v51
  %v63 = vadd.s32 %v46, %v51
  %v64 = vadd.s32 %v47, %v51
  %v65 = vadd.s32 %v48, %v51
  %v66 = vadd.s32 %v49, %v51
  %v67 = vadd.s32 %v50, %v51
  %vm68 = vcmp.lt.s32.totalorder %v52, 32
  %vm69 = vcmp.lt.s32.totalorder %v53, 32
  %vm70 = vcmp.lt.s32.totalorder %v54, 32
  %vm71 = vcmp.lt.s32.totalorder %v55, 32
  %vm72 = vcmp.lt.s32.totalorder %v56, 32
  %vm73 = vcmp.lt.s32.totalorder %v57, 32
  %vm74 = vcmp.lt.s32.totalorder %v58, 32
  %vm75 = vcmp.lt.s32.totalorder %v59, 32
  %vm76 = vcmp.lt.s32.totalorder %v60, 32
  %vm77 = vcmp.lt.s32.totalorder %v61, 32
  %vm78 = vcmp.lt.s32.totalorder %v62, 32
  %vm79 = vcmp.lt.s32.totalorder %v63, 32
  %vm80 = vcmp.lt.s32.totalorder %v64, 32
  %vm81 = vcmp.lt.s32.totalorder %v65, 32
  %vm82 = vcmp.lt.s32.totalorder %v66, 32
  %vm83 = vcmp.lt.s32.totalorder %v67, 32
  %v84 = vsel %vm68, 1, 0
  %v85 = vsel %vm69, 1, 0
  %v86 = vsel %vm70, 1, 0
  %v87 = vsel %vm71, 1, 0
  %v88 = vsel %vm72, 1, 0
  %v89 = vsel %vm73, 1, 0
  %v90 = vsel %vm74, 1, 0
  %v91 = vsel %vm75, 1, 0
  %v92 = vsel %vm76, 1, 0
  %v93 = vsel %vm77, 1, 0
  %v94 = vsel %vm78, 1, 0
  %v95 = vsel %vm79, 1, 0
  %v96 = vsel %vm80, 1, 0
  %v97 = vsel %vm81, 1, 0
  %v98 = vsel %vm82, 1, 0
  %v99 = vsel %vm83, 1, 0
  %v100 = vcvt.s32.f32 %v84
  %v101 = vcvt.s32.f32 %v85
  %v102 = vcvt.s32.f32 %v86
  %v103 = vcvt.s32.f32 %v87
  %v104 = vcvt.s32.f32 %v88
  %v105 = vcvt.s32.f32 %v89
  %v106 = vcvt.s32.f32 %v90
  %v107 = vcvt.s32.f32 %v91
  %v108 = vcvt.s32.f32 %v92
  %v109 = vcvt.s32.f32 %v93
  %v110 = vcvt.s32.f32 %v94
  %v111 = vcvt.s32.f32 %v95
  %v112 = vcvt.s32.f32 %v96
  %v113 = vcvt.s32.f32 %v97
  %v114 = vcvt.s32.f32 %v98
  %v115 = vcvt.s32.f32 %v99
  %v116 = vld [vmem:[%s0] sm:$0x1f]
  %v117 = vld [vmem:[%s0 + $0x8] sm:$0x1f]
  %v118 = vld [vmem:[%s0 + $0x10] sm:$0x1f]
  %v119 = vld [vmem:[%s0 + $0x18] sm:$0x1f]
  %v120 = vld [vmem:[%s0 + $0x20] sm:$0x1f]
  %v121 = vld [vmem:[%s0 + $0x28] sm:$0x1f]
  %v122 = vld [vmem:[%s0 + $0x30] sm:$0x1f]
  %v123 = vld [vmem:[%s0 + $0x38] sm:$0x1f]
  %v124 = vld [vmem:[%s0 + $0x40] sm:$0x1f]
  %v125 = vld [vmem:[%s0 + $0x48] sm:$0x1f]
  %v126 = vld [vmem:[%s0 + $0x50] sm:$0x1f]
  %v127 = vld [vmem:[%s0 + $0x58] sm:$0x1f]
  %v128 = vld [vmem:[%s0 + $0x60] sm:$0x1f]
  %v129 = vld [vmem:[%s0 + $0x68] sm:$0x1f]
  %v130 = vld [vmem:[%s0 + $0x70] sm:$0x1f]
  %v131 = vld [vmem:[%s0 + $0x78] sm:$0x1f]
  %v132 = vld [vmem:[%s1] sm:$0xff]
  %vm133 = vcmask 39936
  %v135 = vsel %vm133, %v132, 0
  %vm137 = vcmask 1044480
  %v139 = vsel %vm137, %v116, 0
  %v142 = vsel %vm137, %v117, 0
  %v145 = vsel %vm137, %v118, 0
  %v148 = vsel %vm137, %v119, 0
  %v151 = vsel %vm137, %v120, 0
  %v154 = vsel %vm137, %v121, 0
  %v157 = vsel %vm137, %v122, 0
  %v160 = vsel %vm137, %v123, 0
  %v163 = vsel %vm137, %v124, 0
  %v166 = vsel %vm137, %v125, 0
  %v169 = vsel %vm137, %v126, 0
  %v172 = vsel %vm137, %v127, 0
  %v175 = vsel %vm137, %v128, 0
  %v178 = vsel %vm137, %v129, 0
  %v181 = vsel %vm137, %v130, 0
  %v184 = vsel %vm137, %v131, 0
  %186 = vmatprep.subr.mxu0 %v142
  %187 = vmatpush1.msra.mxu0 %v139
  %188 = vmatprep.subr.mxu0 0.0
  %189 = vmatpush1.msra.mxu0 0.0
  %190 = vmatprep.subr.mxu0 0.0
  %191 = vmatpush1.msra.mxu0 0.0
  %192 = vmatprep.subr.mxu0 0.0
  %193 = vmatpush1.msra.mxu0 0.0
  %194 = vmatprep.subr.mxu0 0.0
  %195 = vmatpush1.msra.mxu0 0.0
  %196 = vmatprep.subr.mxu0 0.0
  %197 = vmatpush1.msra.mxu0 0.0
  %198 = vmatprep.subr.mxu0 0.0
  %199 = vmatpush1.msra.mxu0 0.0
  %200 = vmatprep.subr.mxu0 0.0
  %201 = vmatpush1.msra.mxu0 0.0
  %202 = vmatprep.subr.mxu0 0.0
  %203 = vmatpush1.msra.mxu0 0.0
  %204 = vmatprep.subr.mxu0 0.0
  %205 = vmatpush1.msra.mxu0 0.0
  %206 = vmatprep.subr.mxu0 0.0
  %207 = vmatpush1.msra.mxu0 0.0
  %208 = vmatprep.subr.mxu0 0.0
  %209 = vmatpush1.msra.mxu0 0.0
  %210 = vmatprep.subr.mxu0 0.0
  %211 = vmatpush1.msra.mxu0 0.0
  %212 = vmatprep.subr.mxu0 0.0
  %213 = vmatpush1.msra.mxu0 0.0
  %214 = vmatprep.subr.mxu0 0.0
  %215 = vmatpush1.msra.mxu0 0.0
  %216 = vmatprep.subr.mxu0 0.0
  %217 = vmatpush1.msra.mxu0 0.0
  %218 = vmatprep.subr.mxu0 0.0
  %219 = vmatpush1.msra.mxu0 0.0
  %220 = vmatprep.subr.mxu0 0.0
  %221 = vmatpush1.msra.mxu0 0.0
  %222 = vmatprep.subr.mxu0 0.0
  %223 = vmatpush1.msra.mxu0 0.0
  %224 = vmatprep.subr.mxu0 0.0
  %225 = vmatpush1.msra.mxu0 0.0
  %226 = vmatprep.subr.mxu0 0.0
  %227 = vmatpush1.msra.mxu0 0.0
  %228 = vmatprep.subr.mxu0 0.0
  %229 = vmatpush1.msra.mxu0 0.0
  %230 = vmatprep.subr.mxu0 0.0
  %231 = vmatpush1.msra.mxu0 0.0
  %232 = vmatprep.subr.mxu0 0.0
  %233 = vmatpush1.msra.mxu0 0.0
  %234 = vmatprep.subr.mxu0 0.0
  %235 = vmatpush1.msra.mxu0 0.0
  %236 = vmatprep.subr.mxu0 0.0
  %237 = vmatpush1.msra.mxu0 0.0
  %238 = vmatprep.subr.mxu0 0.0
  %239 = vmatpush1.msra.mxu0 0.0
  %240 = vmatprep.subr.mxu0 0.0
  %241 = vmatpush1.msra.mxu0 0.0
  %242 = vmatprep.subr.mxu0 0.0
  %243 = vmatpush1.msra.mxu0 0.0
  %244 = vmatprep.subr.mxu0 0.0
  %245 = vmatpush1.msra.mxu0 0.0
  %246 = vmatprep.subr.mxu0 0.0
  %247 = vmatpush1.msra.mxu0 0.0
  %248 = vmatprep.subr.mxu0 0.0
  %249 = vmatpush1.msra.mxu0 0.0
  %250 = vmatprep.mubr.f32.mxu0 0.0
  %251 = vmatmul.mubr.f32.gmra.mrb[0].mxu0 %v135
  %v252 = vpop.f32.mrb[0].mxu0
  %v253 = vadd.f32 0.0, %v252
  %v254 = vpop.f32.mrb[0].mxu0
  %v255 = vadd.f32 0.0, %v254
  %256 = vdwg.mxu0
  %257 = vmatprep.subr.mxu0 %v148
  %258 = vmatpush1.msra.mxu0 %v145
  %259 = vmatprep.subr.mxu0 0.0
  %260 = vmatpush1.msra.mxu0 0.0
  %261 = vmatprep.subr.mxu0 0.0
  %262 = vmatpush1.msra.mxu0 0.0
  %263 = vmatprep.subr.mxu0 0.0
  %264 = vmatpush1.msra.mxu0 0.0
  %265 = vmatprep.subr.mxu0 0.0
  %266 = vmatpush1.msra.mxu0 0.0
  %267 = vmatprep.subr.mxu0 0.0
  %268 = vmatpush1.msra.mxu0 0.0
  %269 = vmatprep.subr.mxu0 0.0
  %270 = vmatpush1.msra.mxu0 0.0
  %271 = vmatprep.subr.mxu0 0.0
  %272 = vmatpush1.msra.mxu0 0.0
  %273 = vmatprep.subr.mxu0 0.0
  %274 = vmatpush1.msra.mxu0 0.0
  %275 = vmatprep.subr.mxu0 0.0
  %276 = vmatpush1.msra.mxu0 0.0
  %277 = vmatprep.subr.mxu0 0.0
  %278 = vmatpush1.msra.mxu0 0.0
  %279 = vmatprep.subr.mxu0 0.0
  %280 = vmatpush1.msra.mxu0 0.0
  %281 = vmatprep.subr.mxu0 0.0
  %282 = vmatpush1.msra.mxu0 0.0
  %283 = vmatprep.subr.mxu0 0.0
  %284 = vmatpush1.msra.mxu0 0.0
  %285 = vmatprep.subr.mxu0 0.0
  %286 = vmatpush1.msra.mxu0 0.0
  %287 = vmatprep.subr.mxu0 0.0
  %288 = vmatpush1.msra.mxu0 0.0
  %289 = vmatprep.subr.mxu0 0.0
  %290 = vmatpush1.msra.mxu0 0.0
  %291 = vmatprep.subr.mxu0 0.0
  %292 = vmatpush1.msra.mxu0 0.0
  %293 = vmatprep.subr.mxu0 0.0
  %294 = vmatpush1.msra.mxu0 0.0
  %295 = vmatprep.subr.mxu0 0.0
  %296 = vmatpush1.msra.mxu0 0.0
  %297 = vmatprep.subr.mxu0 0.0
  %298 = vmatpush1.msra.mxu0 0.0
  %299 = vmatprep.subr.mxu0 0.0
  %300 = vmatpush1.msra.mxu0 0.0
  %301 = vmatprep.subr.mxu0 0.0
  %302 = vmatpush1.msra.mxu0 0.0
  %303 = vmatprep.subr.mxu0 0.0
  %304 = vmatpush1.msra.mxu0 0.0
  %305 = vmatprep.subr.mxu0 0.0
  %306 = vmatpush1.msra.mxu0 0.0
  %307 = vmatprep.subr.mxu0 0.0
  %308 = vmatpush1.msra.mxu0 0.0
  %309 = vmatprep.subr.mxu0 0.0
  %310 = vmatpush1.msra.mxu0 0.0
  %311 = vmatprep.subr.mxu0 0.0
  %312 = vmatpush1.msra.mxu0 0.0
  %313 = vmatprep.subr.mxu0 0.0
  %314 = vmatpush1.msra.mxu0 0.0
  %315 = vmatprep.subr.mxu0 0.0
  %316 = vmatpush1.msra.mxu0 0.0
  %317 = vmatprep.subr.mxu0 0.0
  %318 = vmatpush1.msra.mxu0 0.0
  %319 = vmatprep.subr.mxu0 0.0
  %320 = vmatpush1.msra.mxu0 0.0
  %321 = vmatprep.mubr.f32.mxu0 0.0
  %322 = vmatmul.mubr.f32.gmra.mrb[0].mxu0 %v135
  %v323 = vpop.f32.mrb[0].mxu0
  %v324 = vadd.f32 0.0, %v323
  %v325 = vpop.f32.mrb[0].mxu0
  %v326 = vadd.f32 0.0, %v325
  %327 = vdwg.mxu0
  %328 = vmatprep.subr.mxu0 %v154
  %329 = vmatpush1.msra.mxu0 %v151
  %330 = vmatprep.subr.mxu0 0.0
  %331 = vmatpush1.msra.mxu0 0.0
  %332 = vmatprep.subr.mxu0 0.0
  %333 = vmatpush1.msra.mxu0 0.0
  %334 = vmatprep.subr.mxu0 0.0
  %335 = vmatpush1.msra.mxu0 0.0
  %336 = vmatprep.subr.mxu0 0.0
  %337 = vmatpush1.msra.mxu0 0.0
  %338 = vmatprep.subr.mxu0 0.0
  %339 = vmatpush1.msra.mxu0 0.0
  %340 = vmatprep.subr.mxu0 0.0
  %341 = vmatpush1.msra.mxu0 0.0
  %342 = vmatprep.subr.mxu0 0.0
  %343 = vmatpush1.msra.mxu0 0.0
  %344 = vmatprep.subr.mxu0 0.0
  %345 = vmatpush1.msra.mxu0 0.0
  %346 = vmatprep.subr.mxu0 0.0
  %347 = vmatpush1.msra.mxu0 0.0
  %348 = vmatprep.subr.mxu0 0.0
  %349 = vmatpush1.msra.mxu0 0.0
  %350 = vmatprep.subr.mxu0 0.0
  %351 = vmatpush1.msra.mxu0 0.0
  %352 = vmatprep.subr.mxu0 0.0
  %353 = vmatpush1.msra.mxu0 0.0
  %354 = vmatprep.subr.mxu0 0.0
  %355 = vmatpush1.msra.mxu0 0.0
  %356 = vmatprep.subr.mxu0 0.0
  %357 = vmatpush1.msra.mxu0 0.0
  %358 = vmatprep.subr.mxu0 0.0
  %359 = vmatpush1.msra.mxu0 0.0
  %360 = vmatprep.subr.mxu0 0.0
  %361 = vmatpush1.msra.mxu0 0.0
  %362 = vmatprep.subr.mxu0 0.0
  %363 = vmatpush1.msra.mxu0 0.0
  %364 = vmatprep.subr.mxu0 0.0
  %365 = vmatpush1.msra.mxu0 0.0
  %366 = vmatprep.subr.mxu0 0.0
  %367 = vmatpush1.msra.mxu0 0.0
  %368 = vmatprep.subr.mxu0 0.0
  %369 = vmatpush1.msra.mxu0 0.0
  %370 = vmatprep.subr.mxu0 0.0
  %371 = vmatpush1.msra.mxu0 0.0
  %372 = vmatprep.subr.mxu0 0.0
  %373 = vmatpush1.msra.mxu0 0.0
  %374 = vmatprep.subr.mxu0 0.0
  %375 = vmatpush1.msra.mxu0 0.0
  %376 = vmatprep.subr.mxu0 0.0
  %377 = vmatpush1.msra.mxu0 0.0
  %378 = vmatprep.subr.mxu0 0.0
  %379 = vmatpush1.msra.mxu0 0.0
  %380 = vmatprep.subr.mxu0 0.0
  %381 = vmatpush1.msra.mxu0 0.0
  %382 = vmatprep.subr.mxu0 0.0
  %383 = vmatpush1.msra.mxu0 0.0
  %384 = vmatprep.subr.mxu0 0.0
  %385 = vmatpush1.msra.mxu0 0.0
  %386 = vmatprep.subr.mxu0 0.0
  %387 = vmatpush1.msra.mxu0 0.0
  %388 = vmatprep.subr.mxu0 0.0
  %389 = vmatpush1.msra.mxu0 0.0
  %390 = vmatprep.subr.mxu0 0.0
  %391 = vmatpush1.msra.mxu0 0.0
  %392 = vmatprep.mubr.f32.mxu0 0.0
  %393 = vmatmul.mubr.f32.gmra.mrb[0].mxu0 %v135
  %v394 = vpop.f32.mrb[0].mxu0
  %v395 = vadd.f32 0.0, %v394
  %v396 = vpop.f32.mrb[0].mxu0
  %v397 = vadd.f32 0.0, %v396
  %398 = vdwg.mxu0
  %399 = vmatprep.subr.mxu0 %v160
  %400 = vmatpush1.msra.mxu0 %v157
  %401 = vmatprep.subr.mxu0 0.0
  %402 = vmatpush1.msra.mxu0 0.0
  %403 = vmatprep.subr.mxu0 0.0
  %404 = vmatpush1.msra.mxu0 0.0
  %405 = vmatprep.subr.mxu0 0.0
  %406 = vmatpush1.msra.mxu0 0.0
  %407 = vmatprep.subr.mxu0 0.0
  %408 = vmatpush1.msra.mxu0 0.0
  %409 = vmatprep.subr.mxu0 0.0
  %410 = vmatpush1.msra.mxu0 0.0
  %411 = vmatprep.subr.mxu0 0.0
  %412 = vmatpush1.msra.mxu0 0.0
  %413 = vmatprep.subr.mxu0 0.0
  %414 = vmatpush1.msra.mxu0 0.0
  %415 = vmatprep.subr.mxu0 0.0
  %416 = vmatpush1.msra.mxu0 0.0
  %417 = vmatprep.subr.mxu0 0.0
  %418 = vmatpush1.msra.mxu0 0.0
  %419 = vmatprep.subr.mxu0 0.0
  %420 = vmatpush1.msra.mxu0 0.0
  %421 = vmatprep.subr.mxu0 0.0
  %422 = vmatpush1.msra.mxu0 0.0
  %423 = vmatprep.subr.mxu0 0.0
  %424 = vmatpush1.msra.mxu0 0.0
  %425 = vmatprep.subr.mxu0 0.0
  %426 = vmatpush1.msra.mxu0 0.0
  %427 = vmatprep.subr.mxu0 0.0
  %428 = vmatpush1.msra.mxu0 0.0
  %429 = vmatprep.subr.mxu0 0.0
  %430 = vmatpush1.msra.mxu0 0.0
  %431 = vmatprep.subr.mxu0 0.0
  %432 = vmatpush1.msra.mxu0 0.0
  %433 = vmatprep.subr.mxu0 0.0
  %434 = vmatpush1.msra.mxu0 0.0
  %435 = vmatprep.subr.mxu0 0.0
  %436 = vmatpush1.msra.mxu0 0.0
  %437 = vmatprep.subr.mxu0 0.0
  %438 = vmatpush1.msra.mxu0 0.0
  %439 = vmatprep.subr.mxu0 0.0
  %440 = vmatpush1.msra.mxu0 0.0
  %441 = vmatprep.subr.mxu0 0.0
  %442 = vmatpush1.msra.mxu0 0.0
  %443 = vmatprep.subr.mxu0 0.0
  %444 = vmatpush1.msra.mxu0 0.0
  %445 = vmatprep.subr.mxu0 0.0
  %446 = vmatpush1.msra.mxu0 0.0
  %447 = vmatprep.subr.mxu0 0.0
  %448 = vmatpush1.msra.mxu0 0.0
  %449 = vmatprep.subr.mxu0 0.0
  %450 = vmatpush1.msra.mxu0 0.0
  %451 = vmatprep.subr.mxu0 0.0
  %452 = vmatpush1.msra.mxu0 0.0
  %453 = vmatprep.subr.mxu0 0.0
  %454 = vmatpush1.msra.mxu0 0.0
  %455 = vmatprep.subr.mxu0 0.0
  %456 = vmatpush1.msra.mxu0 0.0
  %457 = vmatprep.subr.mxu0 0.0
  %458 = vmatpush1.msra.mxu0 0.0
  %459 = vmatprep.subr.mxu0 0.0
  %460 = vmatpush1.msra.mxu0 0.0
  %461 = vmatprep.subr.mxu0 0.0
  %462 = vmatpush1.msra.mxu0 0.0
  %463 = vmatprep.mubr.f32.mxu0 0.0
  %464 = vmatmul.mubr.f32.gmra.mrb[0].mxu0 %v135
  %v465 = vpop.f32.mrb[0].mxu0
  %v466 = vadd.f32 0.0, %v465
  %v467 = vpop.f32.mrb[0].mxu0
  %v468 = vadd.f32 0.0, %v467
  %469 = vdwg.mxu0
  %470 = vmatprep.subr.mxu0 %v166
  %471 = vmatpush1.msra.mxu0 %v163
  %472 = vmatprep.subr.mxu0 0.0
  %473 = vmatpush1.msra.mxu0 0.0
  %474 = vmatprep.subr.mxu0 0.0
  %475 = vmatpush1.msra.mxu0 0.0
  %476 = vmatprep.subr.mxu0 0.0
  %477 = vmatpush1.msra.mxu0 0.0
  %478 = vmatprep.subr.mxu0 0.0
  %479 = vmatpush1.msra.mxu0 0.0
  %480 = vmatprep.subr.mxu0 0.0
  %481 = vmatpush1.msra.mxu0 0.0
  %482 = vmatprep.subr.mxu0 0.0
  %483 = vmatpush1.msra.mxu0 0.0
  %484 = vmatprep.subr.mxu0 0.0
  %485 = vmatpush1.msra.mxu0 0.0
  %486 = vmatprep.subr.mxu0 0.0
  %487 = vmatpush1.msra.mxu0 0.0
  %488 = vmatprep.subr.mxu0 0.0
  %489 = vmatpush1.msra.mxu0 0.0
  %490 = vmatprep.subr.mxu0 0.0
  %491 = vmatpush1.msra.mxu0 0.0
  %492 = vmatprep.subr.mxu0 0.0
  %493 = vmatpush1.msra.mxu0 0.0
  %494 = vmatprep.subr.mxu0 0.0
  %495 = vmatpush1.msra.mxu0 0.0
  %496 = vmatprep.subr.mxu0 0.0
  %497 = vmatpush1.msra.mxu0 0.0
  %498 = vmatprep.subr.mxu0 0.0
  %499 = vmatpush1.msra.mxu0 0.0
  %500 = vmatprep.subr.mxu0 0.0
  %501 = vmatpush1.msra.mxu0 0.0
  %502 = vmatprep.subr.mxu0 0.0
  %503 = vmatpush1.msra.mxu0 0.0
  %504 = vmatprep.subr.mxu0 0.0
  %505 = vmatpush1.msra.mxu0 0.0
  %506 = vmatprep.subr.mxu0 0.0
  %507 = vmatpush1.msra.mxu0 0.0
  %508 = vmatprep.subr.mxu0 0.0
  %509 = vmatpush1.msra.mxu0 0.0
  %510 = vmatprep.subr.mxu0 0.0
  %511 = vmatpush1.msra.mxu0 0.0
  %512 = vmatprep.subr.mxu0 0.0
  %513 = vmatpush1.msra.mxu0 0.0
  %514 = vmatprep.subr.mxu0 0.0
  %515 = vmatpush1.msra.mxu0 0.0
  %516 = vmatprep.subr.mxu0 0.0
  %517 = vmatpush1.msra.mxu0 0.0
  %518 = vmatprep.subr.mxu0 0.0
  %519 = vmatpush1.msra.mxu0 0.0
  %520 = vmatprep.subr.mxu0 0.0
  %521 = vmatpush1.msra.mxu0 0.0
  %522 = vmatprep.subr.mxu0 0.0
  %523 = vmatpush1.msra.mxu0 0.0
  %524 = vmatprep.subr.mxu0 0.0
  %525 = vmatpush1.msra.mxu0 0.0
  %526 = vmatprep.subr.mxu0 0.0
  %527 = vmatpush1.msra.mxu0 0.0
  %528 = vmatprep.subr.mxu0 0.0
  %529 = vmatpush1.msra.mxu0 0.0
  %530 = vmatprep.subr.mxu0 0.0
  %531 = vmatpush1.msra.mxu0 0.0
  %532 = vmatprep.subr.mxu0 0.0
  %533 = vmatpush1.msra.mxu0 0.0
  %534 = vmatprep.mubr.f32.mxu0 0.0
  %535 = vmatmul.mubr.f32.gmra.mrb[0].mxu0 %v135
  %v536 = vpop.f32.mrb[0].mxu0
  %v537 = vadd.f32 0.0, %v536
  %v538 = vpop.f32.mrb[0].mxu0
  %v539 = vadd.f32 0.0, %v538
  %540 = vdwg.mxu0
  %541 = vmatprep.subr.mxu0 %v172
  %542 = vmatpush1.msra.mxu0 %v169
  %543 = vmatprep.subr.mxu0 0.0
  %544 = vmatpush1.msra.mxu0 0.0
  %545 = vmatprep.subr.mxu0 0.0
  %546 = vmatpush1.msra.mxu0 0.0
  %547 = vmatprep.subr.mxu0 0.0
  %548 = vmatpush1.msra.mxu0 0.0
  %549 = vmatprep.subr.mxu0 0.0
  %550 = vmatpush1.msra.mxu0 0.0
  %551 = vmatprep.subr.mxu0 0.0
  %552 = vmatpush1.msra.mxu0 0.0
  %553 = vmatprep.subr.mxu0 0.0
  %554 = vmatpush1.msra.mxu0 0.0
  %555 = vmatprep.subr.mxu0 0.0
  %556 = vmatpush1.msra.mxu0 0.0
  %557 = vmatprep.subr.mxu0 0.0
  %558 = vmatpush1.msra.mxu0 0.0
  %559 = vmatprep.subr.mxu0 0.0
  %560 = vmatpush1.msra.mxu0 0.0
  %561 = vmatprep.subr.mxu0 0.0
  %562 = vmatpush1.msra.mxu0 0.0
  %563 = vmatprep.subr.mxu0 0.0
  %564 = vmatpush1.msra.mxu0 0.0
  %565 = vmatprep.subr.mxu0 0.0
  %566 = vmatpush1.msra.mxu0 0.0
  %567 = vmatprep.subr.mxu0 0.0
  %568 = vmatpush1.msra.mxu0 0.0
  %569 = vmatprep.subr.mxu0 0.0
  %570 = vmatpush1.msra.mxu0 0.0
  %571 = vmatprep.subr.mxu0 0.0
  %572 = vmatpush1.msra.mxu0 0.0
  %573 = vmatprep.subr.mxu0 0.0
  %574 = vmatpush1.msra.mxu0 0.0
  %575 = vmatprep.subr.mxu0 0.0
  %576 = vmatpush1.msra.mxu0 0.0
  %577 = vmatprep.subr.mxu0 0.0
  %578 = vmatpush1.msra.mxu0 0.0
  %579 = vmatprep.subr.mxu0 0.0
  %580 = vmatpush1.msra.mxu0 0.0
  %581 = vmatprep.subr.mxu0 0.0
  %582 = vmatpush1.msra.mxu0 0.0
  %583 = vmatprep.subr.mxu0 0.0
  %584 = vmatpush1.msra.mxu0 0.0
  %585 = vmatprep.subr.mxu0 0.0
  %586 = vmatpush1.msra.mxu0 0.0
  %587 = vmatprep.subr.mxu0 0.0
  %588 = vmatpush1.msra.mxu0 0.0
  %589 = vmatprep.subr.mxu0 0.0
  %590 = vmatpush1.msra.mxu0 0.0
  %591 = vmatprep.subr.mxu0 0.0
  %592 = vmatpush1.msra.mxu0 0.0
  %593 = vmatprep.subr.mxu0 0.0
  %594 = vmatpush1.msra.mxu0 0.0
  %595 = vmatprep.subr.mxu0 0.0
  %596 = vmatpush1.msra.mxu0 0.0
  %597 = vmatprep.subr.mxu0 0.0
  %598 = vmatpush1.msra.mxu0 0.0
  %599 = vmatprep.subr.mxu0 0.0
  %600 = vmatpush1.msra.mxu0 0.0
  %601 = vmatprep.subr.mxu0 0.0
  %602 = vmatpush1.msra.mxu0 0.0
  %603 = vmatprep.subr.mxu0 0.0
  %604 = vmatpush1.msra.mxu0 0.0
  %605 = vmatprep.mubr.f32.mxu0 0.0
  %606 = vmatmul.mubr.f32.gmra.mrb[0].mxu0 %v135
  %v607 = vpop.f32.mrb[0].mxu0
  %v608 = vadd.f32 0.0, %v607
  %v609 = vpop.f32.mrb[0].mxu0
  %v610 = vadd.f32 0.0, %v609
  %611 = vdwg.mxu0
  %612 = vmatprep.subr.mxu0 %v178
  %613 = vmatpush1.msra.mxu0 %v175
  %614 = vmatprep.subr.mxu0 0.0
  %615 = vmatpush1.msra.mxu0 0.0
  %616 = vmatprep.subr.mxu0 0.0
  %617 = vmatpush1.msra.mxu0 0.0
  %618 = vmatprep.subr.mxu0 0.0
  %619 = vmatpush1.msra.mxu0 0.0
  %620 = vmatprep.subr.mxu0 0.0
  %621 = vmatpush1.msra.mxu0 0.0
  %622 = vmatprep.subr.mxu0 0.0
  %623 = vmatpush1.msra.mxu0 0.0
  %624 = vmatprep.subr.mxu0 0.0
  %625 = vmatpush1.msra.mxu0 0.0
  %626 = vmatprep.subr.mxu0 0.0
  %627 = vmatpush1.msra.mxu0 0.0
  %628 = vmatprep.subr.mxu0 0.0
  %629 = vmatpush1.msra.mxu0 0.0
  %630 = vmatprep.subr.mxu0 0.0
  %631 = vmatpush1.msra.mxu0 0.0
  %632 = vmatprep.subr.mxu0 0.0
  %633 = vmatpush1.msra.mxu0 0.0
  %634 = vmatprep.subr.mxu0 0.0
  %635 = vmatpush1.msra.mxu0 0.0
  %636 = vmatprep.subr.mxu0 0.0
  %637 = vmatpush1.msra.mxu0 0.0
  %638 = vmatprep.subr.mxu0 0.0
  %639 = vmatpush1.msra.mxu0 0.0
  %640 = vmatprep.subr.mxu0 0.0
  %641 = vmatpush1.msra.mxu0 0.0
  %642 = vmatprep.subr.mxu0 0.0
  %643 = vmatpush1.msra.mxu0 0.0
  %644 = vmatprep.subr.mxu0 0.0
  %645 = vmatpush1.msra.mxu0 0.0
  %646 = vmatprep.subr.mxu0 0.0
  %647 = vmatpush1.msra.mxu0 0.0
  %648 = vmatprep.subr.mxu0 0.0
  %649 = vmatpush1.msra.mxu0 0.0
  %650 = vmatprep.subr.mxu0 0.0
  %651 = vmatpush1.msra.mxu0 0.0
  %652 = vmatprep.subr.mxu0 0.0
  %653 = vmatpush1.msra.mxu0 0.0
  %654 = vmatprep.subr.mxu0 0.0
  %655 = vmatpush1.msra.mxu0 0.0
  %656 = vmatprep.subr.mxu0 0.0
  %657 = vmatpush1.msra.mxu0 0.0
  %658 = vmatprep.subr.mxu0 0.0
  %659 = vmatpush1.msra.mxu0 0.0
  %660 = vmatprep.subr.mxu0 0.0
  %661 = vmatpush1.msra.mxu0 0.0
  %662 = vmatprep.subr.mxu0 0.0
  %663 = vmatpush1.msra.mxu0 0.0
  %664 = vmatprep.subr.mxu0 0.0
  %665 = vmatpush1.msra.mxu0 0.0
  %666 = vmatprep.subr.mxu0 0.0
  %667 = vmatpush1.msra.mxu0 0.0
  %668 = vmatprep.subr.mxu0 0.0
  %669 = vmatpush1.msra.mxu0 0.0
  %670 = vmatprep.subr.mxu0 0.0
  %671 = vmatpush1.msra.mxu0 0.0
  %672 = vmatprep.subr.mxu0 0.0
  %673 = vmatpush1.msra.mxu0 0.0
  %674 = vmatprep.subr.mxu0 0.0
  %675 = vmatpush1.msra.mxu0 0.0
  %676 = vmatprep.mubr.f32.mxu0 0.0
  %677 = vmatmul.mubr.f32.gmra.mrb[0].mxu0 %v135
  %v678 = vpop.f32.mrb[0].mxu0
  %v679 = vadd.f32 0.0, %v678
  %v680 = vpop.f32.mrb[0].mxu0
  %v681 = vadd.f32 0.0, %v680
  %682 = vdwg.mxu0
  %683 = vmatprep.subr.mxu0 %v184
  %684 = vmatpush1.msra.mxu0 %v181
  %685 = vmatprep.subr.mxu0 0.0
  %686 = vmatpush1.msra.mxu0 0.0
  %687 = vmatprep.subr.mxu0 0.0
  %688 = vmatpush1.msra.mxu0 0.0
  %689 = vmatprep.subr.mxu0 0.0
  %690 = vmatpush1.msra.mxu0 0.0
  %691 = vmatprep.subr.mxu0 0.0
  %692 = vmatpush1.msra.mxu0 0.0
  %693 = vmatprep.subr.mxu0 0.0
  %694 = vmatpush1.msra.mxu0 0.0
  %695 = vmatprep.subr.mxu0 0.0
  %696 = vmatpush1.msra.mxu0 0.0
  %697 = vmatprep.subr.mxu0 0.0
  %698 = vmatpush1.msra.mxu0 0.0
  %699 = vmatprep.subr.mxu0 0.0
  %700 = vmatpush1.msra.mxu0 0.0
  %701 = vmatprep.subr.mxu0 0.0
  %702 = vmatpush1.msra.mxu0 0.0
  %703 = vmatprep.subr.mxu0 0.0
  %704 = vmatpush1.msra.mxu0 0.0
  %705 = vmatprep.subr.mxu0 0.0
  %706 = vmatpush1.msra.mxu0 0.0
  %707 = vmatprep.subr.mxu0 0.0
  %708 = vmatpush1.msra.mxu0 0.0
  %709 = vmatprep.subr.mxu0 0.0
  %710 = vmatpush1.msra.mxu0 0.0
  %711 = vmatprep.subr.mxu0 0.0
  %712 = vmatpush1.msra.mxu0 0.0
  %713 = vmatprep.subr.mxu0 0.0
  %714 = vmatpush1.msra.mxu0 0.0
  %715 = vmatprep.subr.mxu0 0.0
  %716 = vmatpush1.msra.mxu0 0.0
  %717 = vmatprep.subr.mxu0 0.0
  %718 = vmatpush1.msra.mxu0 0.0
  %719 = vmatprep.subr.mxu0 0.0
  %720 = vmatpush1.msra.mxu0 0.0
  %721 = vmatprep.subr.mxu0 0.0
  %722 = vmatpush1.msra.mxu0 0.0
  %723 = vmatprep.subr.mxu0 0.0
  %724 = vmatpush1.msra.mxu0 0.0
  %725 = vmatprep.subr.mxu0 0.0
  %726 = vmatpush1.msra.mxu0 0.0
  %727 = vmatprep.subr.mxu0 0.0
  %728 = vmatpush1.msra.mxu0 0.0
  %729 = vmatprep.subr.mxu0 0.0
  %730 = vmatpush1.msra.mxu0 0.0
  %731 = vmatprep.subr.mxu0 0.0
  %732 = vmatpush1.msra.mxu0 0.0
  %733 = vmatprep.subr.mxu0 0.0
  %734 = vmatpush1.msra.mxu0 0.0
  %735 = vmatprep.subr.mxu0 0.0
  %736 = vmatpush1.msra.mxu0 0.0
  %737 = vmatprep.subr.mxu0 0.0
  %738 = vmatpush1.msra.mxu0 0.0
  %739 = vmatprep.subr.mxu0 0.0
  %740 = vmatpush1.msra.mxu0 0.0
  %741 = vmatprep.subr.mxu0 0.0
  %742 = vmatpush1.msra.mxu0 0.0
  %743 = vmatprep.subr.mxu0 0.0
  %744 = vmatpush1.msra.mxu0 0.0
  %745 = vmatprep.subr.mxu0 0.0
  %746 = vmatpush1.msra.mxu0 0.0
  %747 = vmatprep.mubr.f32.mxu0 0.0
  %748 = vmatmul.mubr.f32.gmra.mrb[0].mxu0 %v135
  %v749 = vpop.f32.mrb[0].mxu0
  %v750 = vadd.f32 0.0, %v749
  %v751 = vpop.f32.mrb[0].mxu0
  %v752 = vadd.f32 0.0, %v751
  %753 = vdwg.mxu0
  %v754 = vld [vmem:[%s4] sm:$0xff]
  %756 = vset.pattern.permute.xlu0 0
  %757 = vperm.xlu0 %756, %v754
  %v758 = vpop.permute.xlu0 %757
  %v760 = vmul.f32 %v758, %v253
  %v761 = vmul.f32 %v758, %v255
  %v762 = vmul.f32 %v758, %v324
  %v763 = vmul.f32 %v758, %v326
  %v764 = vmul.f32 %v758, %v395
  %v765 = vmul.f32 %v758, %v397
  %v766 = vmul.f32 %v758, %v466
  %v767 = vmul.f32 %v758, %v468
  %v768 = vmul.f32 %v758, %v537
  %v769 = vmul.f32 %v758, %v539
  %v770 = vmul.f32 %v758, %v608
  %v771 = vmul.f32 %v758, %v610
  %v772 = vmul.f32 %v758, %v679
  %v773 = vmul.f32 %v758, %v681
  %v774 = vmul.f32 %v758, %v750
  %v775 = vmul.f32 %v758, %v752
  %v776 = vld [vmem:[%s5] sm:$0xff]
  %778 = vset.pattern.permute.xlu0 0
  %779 = vperm.xlu0 %778, %v776
  %v780 = vpop.permute.xlu0 %779
  %v782 = vadd.f32 %v760, %v780
  %v783 = vadd.f32 %v761, %v780
  %v784 = vadd.f32 %v762, %v780
  %v785 = vadd.f32 %v763, %v780
  %v786 = vadd.f32 %v764, %v780
  %v787 = vadd.f32 %v765, %v780
  %v788 = vadd.f32 %v766, %v780
  %v789 = vadd.f32 %v767, %v780
  %v790 = vadd.f32 %v768, %v780
  %v791 = vadd.f32 %v769, %v780
  %v792 = vadd.f32 %v770, %v780
  %v793 = vadd.f32 %v771, %v780
  %v794 = vadd.f32 %v772, %v780
  %v795 = vadd.f32 %v773, %v780
  %v796 = vadd.f32 %v774, %v780
  %v797 = vadd.f32 %v775, %v780
  %v798 = vmax.f32 %v782, 0.0
  %v799 = vmax.f32 %v783, 0.0
  %v800 = vmax.f32 %v784, 0.0
  %v801 = vmax.f32 %v785, 0.0
  %v802 = vmax.f32 %v786, 0.0
  %v803 = vmax.f32 %v787, 0.0
  %v804 = vmax.f32 %v788, 0.0
  %v805 = vmax.f32 %v789, 0.0
  %v806 = vmax.f32 %v790, 0.0
  %v807 = vmax.f32 %v791, 0.0
  %v808 = vmax.f32 %v792, 0.0
  %v809 = vmax.f32 %v793, 0.0
  %v810 = vmax.f32 %v794, 0.0
  %v811 = vmax.f32 %v795, 0.0
  %v812 = vmax.f32 %v796, 0.0
  %v813 = vmax.f32 %v797, 0.0
  %v814 = vmul.f32 %v798, %v100
  %v815 = vmul.f32 %v799, %v101
  %v816 = vmul.f32 %v800, %v102
  %v817 = vmul.f32 %v801, %v103
  %v818 = vmul.f32 %v802, %v104
  %v819 = vmul.f32 %v803, %v105
  %v820 = vmul.f32 %v804, %v106
  %v821 = vmul.f32 %v805, %v107
  %v822 = vmul.f32 %v806, %v108
  %v823 = vmul.f32 %v807, %v109
  %v824 = vmul.f32 %v808, %v110
  %v825 = vmul.f32 %v809, %v111
  %v826 = vmul.f32 %v810, %v112
  %v827 = vmul.f32 %v811, %v113
  %v828 = vmul.f32 %v812, %v114
  %v829 = vmul.f32 %v813, %v115
  %v830 = vld [vmem:[%s2] sm:$0xff]
  %v831 = vld [vmem:[%s2 + $0x8] sm:$0xff]
  %vm832 = vcmask 64512
  %v834 = vsel %vm832, %v830, 0
  %v837 = vsel %vm832, %v831, 0
  %839 = vmatprep.subr.mxu0 %v815
  %840 = vmatpush1.msra.mxu0 %v814
  %841 = vmatprep.subr.mxu0 0.0
  %842 = vmatpush1.msra.mxu0 0.0
  %843 = vmatprep.subr.mxu0 0.0
  %844 = vmatpush1.msra.mxu0 0.0
  %845 = vmatprep.subr.mxu0 0.0
  %846 = vmatpush1.msra.mxu0 0.0
  %847 = vmatprep.subr.mxu0 0.0
  %848 = vmatpush1.msra.mxu0 0.0
  %849 = vmatprep.subr.mxu0 0.0
  %850 = vmatpush1.msra.mxu0 0.0
  %851 = vmatprep.subr.mxu0 0.0
  %852 = vmatpush1.msra.mxu0 0.0
  %853 = vmatprep.subr.mxu0 0.0
  %854 = vmatpush1.msra.mxu0 0.0
  %855 = vmatprep.subr.mxu0 0.0
  %856 = vmatpush1.msra.mxu0 0.0
  %857 = vmatprep.subr.mxu0 0.0
  %858 = vmatpush1.msra.mxu0 0.0
  %859 = vmatprep.subr.mxu0 0.0
  %860 = vmatpush1.msra.mxu0 0.0
  %861 = vmatprep.subr.mxu0 0.0
  %862 = vmatpush1.msra.mxu0 0.0
  %863 = vmatprep.subr.mxu0 0.0
  %864 = vmatpush1.msra.mxu0 0.0
  %865 = vmatprep.subr.mxu0 0.0
  %866 = vmatpush1.msra.mxu0 0.0
  %867 = vmatprep.subr.mxu0 0.0
  %868 = vmatpush1.msra.mxu0 0.0
  %869 = vmatprep.subr.mxu0 0.0
  %870 = vmatpush1.msra.mxu0 0.0
  %871 = vmatprep.subr.mxu0 0.0
  %872 = vmatpush1.msra.mxu0 0.0
  %873 = vmatprep.subr.mxu0 0.0
  %874 = vmatpush1.msra.mxu0 0.0
  %875 = vmatprep.subr.mxu0 0.0
  %876 = vmatpush1.msra.mxu0 0.0
  %877 = vmatprep.subr.mxu0 0.0
  %878 = vmatpush1.msra.mxu0 0.0
  %879 = vmatprep.subr.mxu0 0.0
  %880 = vmatpush1.msra.mxu0 0.0
  %881 = vmatprep.subr.mxu0 0.0
  %882 = vmatpush1.msra.mxu0 0.0
  %883 = vmatprep.subr.mxu0 0.0
  %884 = vmatpush1.msra.mxu0 0.0
  %885 = vmatprep.subr.mxu0 0.0
  %886 = vmatpush1.msra.mxu0 0.0
  %887 = vmatprep.subr.mxu0 0.0
  %888 = vmatpush1.msra.mxu0 0.0
  %889 = vmatprep.subr.mxu0 0.0
  %890 = vmatpush1.msra.mxu0 0.0
  %891 = vmatprep.subr.mxu0 0.0
  %892 = vmatpush1.msra.mxu0 0.0
  %893 = vmatprep.subr.mxu0 0.0
  %894 = vmatpush1.msra.mxu0 0.0
  %895 = vmatprep.subr.mxu0 0.0
  %896 = vmatpush1.msra.mxu0 0.0
  %897 = vmatprep.subr.mxu0 0.0
  %898 = vmatpush1.msra.mxu0 0.0
  %899 = vmatprep.subr.mxu0 0.0
  %900 = vmatpush1.msra.mxu0 0.0
  %901 = vmatprep.subr.mxu0 0.0
  %902 = vmatpush1.msra.mxu0 0.0
  %903 = vmatprep.mubr.f32.mxu0 0.0
  %904 = vmatmul.mubr.f32.gmra.mrb[0].mxu0 %v834
  %v905 = vpop.f32.mrb[0].mxu0
  %v906 = vadd.f32 0.0, %v905
  %v907 = vpop.f32.mrb[0].mxu0
  %v908 = vadd.f32 0.0, %v907
  %909 = vmatprep.mubr.f32.mxu0 0.0
  %910 = vmatmul.mubr.f32.gmra.mrb[0].mxu0 %v837
  %v911 = vpop.f32.mrb[0].mxu0
  %v912 = vadd.f32 0.0, %v911
  %v913 = vpop.f32.mrb[0].mxu0
  %v914 = vadd.f32 0.0, %v913
  %915 = vdwg.mxu0
  %916 = vmatprep.subr.mxu0 %v817
  %917 = vmatpush1.msra.mxu0 %v816
  %918 = vmatprep.subr.mxu0 0.0
  %919 = vmatpush1.msra.mxu0 0.0
  %920 = vmatprep.subr.mxu0 0.0
  %921 = vmatpush1.msra.mxu0 0.0
  %922 = vmatprep.subr.mxu0 0.0
  %923 = vmatpush1.msra.mxu0 0.0
  %924 = vmatprep.subr.mxu0 0.0
  %925 = vmatpush1.msra.mxu0 0.0
  %926 = vmatprep.subr.mxu0 0.0
  %927 = vmatpush1.msra.mxu0 0.0
  %928 = vmatprep.subr.mxu0 0.0
  %929 = vmatpush1.msra.mxu0 0.0
  %930 = vmatprep.subr.mxu0 0.0
  %931 = vmatpush1.msra.mxu0 0.0
  %932 = vmatprep.subr.mxu0 0.0
  %933 = vmatpush1.msra.mxu0 0.0
  %934 = vmatprep.subr.mxu0 0.0
  %935 = vmatpush1.msra.mxu0 0.0
  %936 = vmatprep.subr.mxu0 0.0
  %937 = vmatpush1.msra.mxu0 0.0
  %938 = vmatprep.subr.mxu0 0.0
  %939 = vmatpush1.msra.mxu0 0.0
  %940 = vmatprep.subr.mxu0 0.0
  %941 = vmatpush1.msra.mxu0 0.0
  %942 = vmatprep.subr.mxu0 0.0
  %943 = vmatpush1.msra.mxu0 0.0
  %944 = vmatprep.subr.mxu0 0.0
  %945 = vmatpush1.msra.mxu0 0.0
  %946 = vmatprep.subr.mxu0 0.0
  %947 = vmatpush1.msra.mxu0 0.0
  %948 = vmatprep.subr.mxu0 0.0
  %949 = vmatpush1.msra.mxu0 0.0
  %950 = vmatprep.subr.mxu0 0.0
  %951 = vmatpush1.msra.mxu0 0.0
  %952 = vmatprep.subr.mxu0 0.0
  %953 = vmatpush1.msra.mxu0 0.0
  %954 = vmatprep.subr.mxu0 0.0
  %955 = vmatpush1.msra.mxu0 0.0
  %956 = vmatprep.subr.mxu0 0.0
  %957 = vmatpush1.msra.mxu0 0.0
  %958 = vmatprep.subr.mxu0 0.0
  %959 = vmatpush1.msra.mxu0 0.0
  %960 = vmatprep.subr.mxu0 0.0
  %961 = vmatpush1.msra.mxu0 0.0
  %962 = vmatprep.subr.mxu0 0.0
  %963 = vmatpush1.msra.mxu0 0.0
  %964 = vmatprep.subr.mxu0 0.0
  %965 = vmatpush1.msra.mxu0 0.0
  %966 = vmatprep.subr.mxu0 0.0
  %967 = vmatpush1.msra.mxu0 0.0
  %968 = vmatprep.subr.mxu0 0.0
  %969 = vmatpush1.msra.mxu0 0.0
  %970 = vmatprep.subr.mxu0 0.0
  %971 = vmatpush1.msra.mxu0 0.0
  %972 = vmatprep.subr.mxu0 0.0
  %973 = vmatpush1.msra.mxu0 0.0
  %974 = vmatprep.subr.mxu0 0.0
  %975 = vmatpush1.msra.mxu0 0.0
  %976 = vmatprep.subr.mxu0 0.0
  %977 = vmatpush1.msra.mxu0 0.0
  %978 = vmatprep.subr.mxu0 0.0
  %979 = vmatpush1.msra.mxu0 0.0
  %980 = vmatprep.mubr.f32.mxu0 0.0
  %981 = vmatmul.mubr.f32.gmra.mrb[0].mxu0 %v834
  %v982 = vpop.f32.mrb[0].mxu0
  %v983 = vadd.f32 0.0, %v982
  %v984 = vpop.f32.mrb[0].mxu0
  %v985 = vadd.f32 0.0, %v984
  %986 = vmatprep.mubr.f32.mxu0 0.0
  %987 = vmatmul.mubr.f32.gmra.mrb[0].mxu0 %v837
  %v988 = vpop.f32.mrb[0].mxu0
  %v989 = vadd.f32 0.0, %v988
  %v990 = vpop.f32.mrb[0].mxu0
  %v991 = vadd.f32 0.0, %v990
  %992 = vdwg.mxu0
  %993 = vmatprep.subr.mxu0 %v819
  %994 = vmatpush1.msra.mxu0 %v818
  %995 = vmatprep.subr.mxu0 0.0
  %996 = vmatpush1.msra.mxu0 0.0
  %997 = vmatprep.subr.mxu0 0.0
  %998 = vmatpush1.msra.mxu0 0.0
  %999 = vmatprep.subr.mxu0 0.0
  %1000 = vmatpush1.msra.mxu0 0.0
  %1001 = vmatprep.subr.mxu0 0.0
  %1002 = vmatpush1.msra.mxu0 0.0
  %1003 = vmatprep.subr.mxu0 0.0
  %1004 = vmatpush1.msra.mxu0 0.0
  %1005 = vmatprep.subr.mxu0 0.0
  %1006 = vmatpush1.msra.mxu0 0.0
  %1007 = vmatprep.subr.mxu0 0.0
  %1008 = vmatpush1.msra.mxu0 0.0
  %1009 = vmatprep.subr.mxu0 0.0
  %1010 = vmatpush1.msra.mxu0 0.0
  %1011 = vmatprep.subr.mxu0 0.0
  %1012 = vmatpush1.msra.mxu0 0.0
  %1013 = vmatprep.subr.mxu0 0.0
  %1014 = vmatpush1.msra.mxu0 0.0
  %1015 = vmatprep.subr.mxu0 0.0
  %1016 = vmatpush1.msra.mxu0 0.0
  %1017 = vmatprep.subr.mxu0 0.0
  %1018 = vmatpush1.msra.mxu0 0.0
  %1019 = vmatprep.subr.mxu0 0.0
  %1020 = vmatpush1.msra.mxu0 0.0
  %1021 = vmatprep.subr.mxu0 0.0
  %1022 = vmatpush1.msra.mxu0 0.0
  %1023 = vmatprep.subr.mxu0 0.0
  %1024 = vmatpush1.msra.mxu0 0.0
  %1025 = vmatprep.subr.mxu0 0.0
  %1026 = vmatpush1.msra.mxu0 0.0
  %1027 = vmatprep.subr.mxu0 0.0
  %1028 = vmatpush1.msra.mxu0 0.0
  %1029 = vmatprep.subr.mxu0 0.0
  %1030 = vmatpush1.msra.mxu0 0.0
  %1031 = vmatprep.subr.mxu0 0.0
  %1032 = vmatpush1.msra.mxu0 0.0
  %1033 = vmatprep.subr.mxu0 0.0
  %1034 = vmatpush1.msra.mxu0 0.0
  %1035 = vmatprep.subr.mxu0 0.0
  %1036 = vmatpush1.msra.mxu0 0.0
  %1037 = vmatprep.subr.mxu0 0.0
  %1038 = vmatpush1.msra.mxu0 0.0
  %1039 = vmatprep.subr.mxu0 0.0
  %1040 = vmatpush1.msra.mxu0 0.0
  %1041 = vmatprep.subr.mxu0 0.0
  %1042 = vmatpush1.msra.mxu0 0.0
  %1043 = vmatprep.subr.mxu0 0.0
  %1044 = vmatpush1.msra.mxu0 0.0
  %1045 = vmatprep.subr.mxu0 0.0
  %1046 = vmatpush1.msra.mxu0 0.0
  %1047 = vmatprep.subr.mxu0 0.0
  %1048 = vmatpush1.msra.mxu0 0.0
  %1049 = vmatprep.subr.mxu0 0.0
  %1050 = vmatpush1.msra.mxu0 0.0
  %1051 = vmatprep.subr.mxu0 0.0
  %1052 = vmatpush1.msra.mxu0 0.0
  %1053 = vmatprep.subr.mxu0 0.0
  %1054 = vmatpush1.msra.mxu0 0.0
  %1055 = vmatprep.subr.mxu0 0.0
  %1056 = vmatpush1.msra.mxu0 0.0
  %1057 = vmatprep.mubr.f32.mxu0 0.0
  %1058 = vmatmul.mubr.f32.gmra.mrb[0].mxu0 %v834
  %v1059 = vpop.f32.mrb[0].mxu0
  %v1060 = vadd.f32 0.0, %v1059
  %v1061 = vpop.f32.mrb[0].mxu0
  %v1062 = vadd.f32 0.0, %v1061
  %1063 = vmatprep.mubr.f32.mxu0 0.0
  %1064 = vmatmul.mubr.f32.gmra.mrb[0].mxu0 %v837
  %v1065 = vpop.f32.mrb[0].mxu0
  %v1066 = vadd.f32 0.0, %v1065
  %v1067 = vpop.f32.mrb[0].mxu0
  %v1068 = vadd.f32 0.0, %v1067
  %1069 = vdwg.mxu0
  %1070 = vmatprep.subr.mxu0 %v821
  %1071 = vmatpush1.msra.mxu0 %v820
  %1072 = vmatprep.subr.mxu0 0.0
  %1073 = vmatpush1.msra.mxu0 0.0
  %1074 = vmatprep.subr.mxu0 0.0
  %1075 = vmatpush1.msra.mxu0 0.0
  %1076 = vmatprep.subr.mxu0 0.0
  %1077 = vmatpush1.msra.mxu0 0.0
  %1078 = vmatprep.subr.mxu0 0.0
  %1079 = vmatpush1.msra.mxu0 0.0
  %1080 = vmatprep.subr.mxu0 0.0
  %1081 = vmatpush1.msra.mxu0 0.0
  %1082 = vmatprep.subr.mxu0 0.0
  %1083 = vmatpush1.msra.mxu0 0.0
  %1084 = vmatprep.subr.mxu0 0.0
  %1085 = vmatpush1.msra.mxu0 0.0
  %1086 = vmatprep.subr.mxu0 0.0
  %1087 = vmatpush1.msra.mxu0 0.0
  %1088 = vmatprep.subr.mxu0 0.0
  %1089 = vmatpush1.msra.mxu0 0.0
  %1090 = vmatprep.subr.mxu0 0.0
  %1091 = vmatpush1.msra.mxu0 0.0
  %1092 = vmatprep.subr.mxu0 0.0
  %1093 = vmatpush1.msra.mxu0 0.0
  %1094 = vmatprep.subr.mxu0 0.0
  %1095 = vmatpush1.msra.mxu0 0.0
  %1096 = vmatprep.subr.mxu0 0.0
  %1097 = vmatpush1.msra.mxu0 0.0
  %1098 = vmatprep.subr.mxu0 0.0
  %1099 = vmatpush1.msra.mxu0 0.0
  %1100 = vmatprep.subr.mxu0 0.0
  %1101 = vmatpush1.msra.mxu0 0.0
  %1102 = vmatprep.subr.mxu0 0.0
  %1103 = vmatpush1.msra.mxu0 0.0
  %1104 = vmatprep.subr.mxu0 0.0
  %1105 = vmatpush1.msra.mxu0 0.0
  %1106 = vmatprep.subr.mxu0 0.0
  %1107 = vmatpush1.msra.mxu0 0.0
  %1108 = vmatprep.subr.mxu0 0.0
  %1109 = vmatpush1.msra.mxu0 0.0
  %1110 = vmatprep.subr.mxu0 0.0
  %1111 = vmatpush1.msra.mxu0 0.0
  %1112 = vmatprep.subr.mxu0 0.0
  %1113 = vmatpush1.msra.mxu0 0.0
  %1114 = vmatprep.subr.mxu0 0.0
  %1115 = vmatpush1.msra.mxu0 0.0
  %1116 = vmatprep.subr.mxu0 0.0
  %1117 = vmatpush1.msra.mxu0 0.0
  %1118 = vmatprep.subr.mxu0 0.0
  %1119 = vmatpush1.msra.mxu0 0.0
  %1120 = vmatprep.subr.mxu0 0.0
  %1121 = vmatpush1.msra.mxu0 0.0
  %1122 = vmatprep.subr.mxu0 0.0
  %1123 = vmatpush1.msra.mxu0 0.0
  %1124 = vmatprep.subr.mxu0 0.0
  %1125 = vmatpush1.msra.mxu0 0.0
  %1126 = vmatprep.subr.mxu0 0.0
  %1127 = vmatpush1.msra.mxu0 0.0
  %1128 = vmatprep.subr.mxu0 0.0
  %1129 = vmatpush1.msra.mxu0 0.0
  %1130 = vmatprep.subr.mxu0 0.0
  %1131 = vmatpush1.msra.mxu0 0.0
  %1132 = vmatprep.subr.mxu0 0.0
  %1133 = vmatpush1.msra.mxu0 0.0
  %1134 = vmatprep.mubr.f32.mxu0 0.0
  %1135 = vmatmul.mubr.f32.gmra.mrb[0].mxu0 %v834
  %v1136 = vpop.f32.mrb[0].mxu0
  %v1137 = vadd.f32 0.0, %v1136
  %v1138 = vpop.f32.mrb[0].mxu0
  %v1139 = vadd.f32 0.0, %v1138
  %1140 = vmatprep.mubr.f32.mxu0 0.0
  %1141 = vmatmul.mubr.f32.gmra.mrb[0].mxu0 %v837
  %v1142 = vpop.f32.mrb[0].mxu0
  %v1143 = vadd.f32 0.0, %v1142
  %v1144 = vpop.f32.mrb[0].mxu0
  %v1145 = vadd.f32 0.0, %v1144
  %1146 = vdwg.mxu0
  %1147 = vmatprep.subr.mxu0 %v823
  %1148 = vmatpush1.msra.mxu0 %v822
  %1149 = vmatprep.subr.mxu0 0.0
  %1150 = vmatpush1.msra.mxu0 0.0
  %1151 = vmatprep.subr.mxu0 0.0
  %1152 = vmatpush1.msra.mxu0 0.0
  %1153 = vmatprep.subr.mxu0 0.0
  %1154 = vmatpush1.msra.mxu0 0.0
  %1155 = vmatprep.subr.mxu0 0.0
  %1156 = vmatpush1.msra.mxu0 0.0
  %1157 = vmatprep.subr.mxu0 0.0
  %1158 = vmatpush1.msra.mxu0 0.0
  %1159 = vmatprep.subr.mxu0 0.0
  %1160 = vmatpush1.msra.mxu0 0.0
  %1161 = vmatprep.subr.mxu0 0.0
  %1162 = vmatpush1.msra.mxu0 0.0
  %1163 = vmatprep.subr.mxu0 0.0
  %1164 = vmatpush1.msra.mxu0 0.0
  %1165 = vmatprep.subr.mxu0 0.0
  %1166 = vmatpush1.msra.mxu0 0.0
  %1167 = vmatprep.subr.mxu0 0.0
  %1168 = vmatpush1.msra.mxu0 0.0
  %1169 = vmatprep.subr.mxu0 0.0
  %1170 = vmatpush1.msra.mxu0 0.0
  %1171 = vmatprep.subr.mxu0 0.0
  %1172 = vmatpush1.msra.mxu0 0.0
  %1173 = vmatprep.subr.mxu0 0.0
  %1174 = vmatpush1.msra.mxu0 0.0
  %1175 = vmatprep.subr.mxu0 0.0
  %1176 = vmatpush1.msra.mxu0 0.0
  %1177 = vmatprep.subr.mxu0 0.0
  %1178 = vmatpush1.msra.mxu0 0.0
  %1179 = vmatprep.subr.mxu0 0.0
  %1180 = vmatpush1.msra.mxu0 0.0
  %1181 = vmatprep.subr.mxu0 0.0
  %1182 = vmatpush1.msra.mxu0 0.0
  %1183 = vmatprep.subr.mxu0 0.0
  %1184 = vmatpush1.msra.mxu0 0.0
  %1185 = vmatprep.subr.mxu0 0.0
  %1186 = vmatpush1.msra.mxu0 0.0
  %1187 = vmatprep.subr.mxu0 0.0
  %1188 = vmatpush1.msra.mxu0 0.0
  %1189 = vmatprep.subr.mxu0 0.0
  %1190 = vmatpush1.msra.mxu0 0.0
  %1191 = vmatprep.subr.mxu0 0.0
  %1192 = vmatpush1.msra.mxu0 0.0
  %1193 = vmatprep.subr.mxu0 0.0
  %1194 = vmatpush1.msra.mxu0 0.0
  %1195 = vmatprep.subr.mxu0 0.0
  %1196 = vmatpush1.msra.mxu0 0.0
  %1197 = vmatprep.subr.mxu0 0.0
  %1198 = vmatpush1.msra.mxu0 0.0
  %1199 = vmatprep.subr.mxu0 0.0
  %1200 = vmatpush1.msra.mxu0 0.0
  %1201 = vmatprep.subr.mxu0 0.0
  %1202 = vmatpush1.msra.mxu0 0.0
  %1203 = vmatprep.subr.mxu0 0.0
  %1204 = vmatpush1.msra.mxu0 0.0
  %1205 = vmatprep.subr.mxu0 0.0
  %1206 = vmatpush1.msra.mxu0 0.0
  %1207 = vmatprep.subr.mxu0 0.0
  %1208 = vmatpush1.msra.mxu0 0.0
  %1209 = vmatprep.subr.mxu0 0.0
  %1210 = vmatpush1.msra.mxu0 0.0
  %1211 = vmatprep.mubr.f32.mxu0 0.0
  %1212 = vmatmul.mubr.f32.gmra.mrb[0].mxu0 %v834
  %v1213 = vpop.f32.mrb[0].mxu0
  %v1214 = vadd.f32 0.0, %v1213
  %v1215 = vpop.f32.mrb[0].mxu0
  %v1216 = vadd.f32 0.0, %v1215
  %1217 = vmatprep.mubr.f32.mxu0 0.0
  %1218 = vmatmul.mubr.f32.gmra.mrb[0].mxu0 %v837
  %v1219 = vpop.f32.mrb[0].mxu0
  %v1220 = vadd.f32 0.0, %v1219
  %v1221 = vpop.f32.mrb[0].mxu0
  %v1222 = vadd.f32 0.0, %v1221
  %1223 = vdwg.mxu0
  %1224 = vmatprep.subr.mxu0 %v825
  %1225 = vmatpush1.msra.mxu0 %v824
  %1226 = vmatprep.subr.mxu0 0.0
  %1227 = vmatpush1.msra.mxu0 0.0
  %1228 = vmatprep.subr.mxu0 0.0
  %1229 = vmatpush1.msra.mxu0 0.0
  %1230 = vmatprep.subr.mxu0 0.0
  %1231 = vmatpush1.msra.mxu0 0.0
  %1232 = vmatprep.subr.mxu0 0.0
  %1233 = vmatpush1.msra.mxu0 0.0
  %1234 = vmatprep.subr.mxu0 0.0
  %1235 = vmatpush1.msra.mxu0 0.0
  %1236 = vmatprep.subr.mxu0 0.0
  %1237 = vmatpush1.msra.mxu0 0.0
  %1238 = vmatprep.subr.mxu0 0.0
  %1239 = vmatpush1.msra.mxu0 0.0
  %1240 = vmatprep.subr.mxu0 0.0
  %1241 = vmatpush1.msra.mxu0 0.0
  %1242 = vmatprep.subr.mxu0 0.0
  %1243 = vmatpush1.msra.mxu0 0.0
  %1244 = vmatprep.subr.mxu0 0.0
  %1245 = vmatpush1.msra.mxu0 0.0
  %1246 = vmatprep.subr.mxu0 0.0
  %1247 = vmatpush1.msra.mxu0 0.0
  %1248 = vmatprep.subr.mxu0 0.0
  %1249 = vmatpush1.msra.mxu0 0.0
  %1250 = vmatprep.subr.mxu0 0.0
  %1251 = vmatpush1.msra.mxu0 0.0
  %1252 = vmatprep.subr.mxu0 0.0
  %1253 = vmatpush1.msra.mxu0 0.0
  %1254 = vmatprep.subr.mxu0 0.0
  %1255 = vmatpush1.msra.mxu0 0.0
  %1256 = vmatprep.subr.mxu0 0.0
  %1257 = vmatpush1.msra.mxu0 0.0
  %1258 = vmatprep.subr.mxu0 0.0
  %1259 = vmatpush1.msra.mxu0 0.0
  %1260 = vmatprep.subr.mxu0 0.0
  %1261 = vmatpush1.msra.mxu0 0.0
  %1262 = vmatprep.subr.mxu0 0.0
  %1263 = vmatpush1.msra.mxu0 0.0
  %1264 = vmatprep.subr.mxu0 0.0
  %1265 = vmatpush1.msra.mxu0 0.0
  %1266 = vmatprep.subr.mxu0 0.0
  %1267 = vmatpush1.msra.mxu0 0.0
  %1268 = vmatprep.subr.mxu0 0.0
  %1269 = vmatpush1.msra.mxu0 0.0
  %1270 = vmatprep.subr.mxu0 0.0
  %1271 = vmatpush1.msra.mxu0 0.0
  %1272 = vmatprep.subr.mxu0 0.0
  %1273 = vmatpush1.msra.mxu0 0.0
  %1274 = vmatprep.subr.mxu0 0.0
  %1275 = vmatpush1.msra.mxu0 0.0
  %1276 = vmatprep.subr.mxu0 0.0
  %1277 = vmatpush1.msra.mxu0 0.0
  %1278 = vmatprep.subr.mxu0 0.0
  %1279 = vmatpush1.msra.mxu0 0.0
  %1280 = vmatprep.subr.mxu0 0.0
  %1281 = vmatpush1.msra.mxu0 0.0
  %1282 = vmatprep.subr.mxu0 0.0
  %1283 = vmatpush1.msra.mxu0 0.0
  %1284 = vmatprep.subr.mxu0 0.0
  %1285 = vmatpush1.msra.mxu0 0.0
  %1286 = vmatprep.subr.mxu0 0.0
  %1287 = vmatpush1.msra.mxu0 0.0
  %1288 = vmatprep.mubr.f32.mxu0 0.0
  %1289 = vmatmul.mubr.f32.gmra.mrb[0].mxu0 %v834
  %v1290 = vpop.f32.mrb[0].mxu0
  %v1291 = vadd.f32 0.0, %v1290
  %v1292 = vpop.f32.mrb[0].mxu0
  %v1293 = vadd.f32 0.0, %v1292
  %1294 = vmatprep.mubr.f32.mxu0 0.0
  %1295 = vmatmul.mubr.f32.gmra.mrb[0].mxu0 %v837
  %v1296 = vpop.f32.mrb[0].mxu0
  %v1297 = vadd.f32 0.0, %v1296
  %v1298 = vpop.f32.mrb[0].mxu0
  %v1299 = vadd.f32 0.0, %v1298
  %1300 = vdwg.mxu0
  %1301 = vmatprep.subr.mxu0 %v827
  %1302 = vmatpush1.msra.mxu0 %v826
  %1303 = vmatprep.subr.mxu0 0.0
  %1304 = vmatpush1.msra.mxu0 0.0
  %1305 = vmatprep.subr.mxu0 0.0
  %1306 = vmatpush1.msra.mxu0 0.0
  %1307 = vmatprep.subr.mxu0 0.0
  %1308 = vmatpush1.msra.mxu0 0.0
  %1309 = vmatprep.subr.mxu0 0.0
  %1310 = vmatpush1.msra.mxu0 0.0
  %1311 = vmatprep.subr.mxu0 0.0
  %1312 = vmatpush1.msra.mxu0 0.0
  %1313 = vmatprep.subr.mxu0 0.0
  %1314 = vmatpush1.msra.mxu0 0.0
  %1315 = vmatprep.subr.mxu0 0.0
  %1316 = vmatpush1.msra.mxu0 0.0
  %1317 = vmatprep.subr.mxu0 0.0
  %1318 = vmatpush1.msra.mxu0 0.0
  %1319 = vmatprep.subr.mxu0 0.0
  %1320 = vmatpush1.msra.mxu0 0.0
  %1321 = vmatprep.subr.mxu0 0.0
  %1322 = vmatpush1.msra.mxu0 0.0
  %1323 = vmatprep.subr.mxu0 0.0
  %1324 = vmatpush1.msra.mxu0 0.0
  %1325 = vmatprep.subr.mxu0 0.0
  %1326 = vmatpush1.msra.mxu0 0.0
  %1327 = vmatprep.subr.mxu0 0.0
  %1328 = vmatpush1.msra.mxu0 0.0
  %1329 = vmatprep.subr.mxu0 0.0
  %1330 = vmatpush1.msra.mxu0 0.0
  %1331 = vmatprep.subr.mxu0 0.0
  %1332 = vmatpush1.msra.mxu0 0.0
  %1333 = vmatprep.subr.mxu0 0.0
  %1334 = vmatpush1.msra.mxu0 0.0
  %1335 = vmatprep.subr.mxu0 0.0
  %1336 = vmatpush1.msra.mxu0 0.0
  %1337 = vmatprep.subr.mxu0 0.0
  %1338 = vmatpush1.msra.mxu0 0.0
  %1339 = vmatprep.subr.mxu0 0.0
  %1340 = vmatpush1.msra.mxu0 0.0
  %1341 = vmatprep.subr.mxu0 0.0
  %1342 = vmatpush1.msra.mxu0 0.0
  %1343 = vmatprep.subr.mxu0 0.0
  %1344 = vmatpush1.msra.mxu0 0.0
  %1345 = vmatprep.subr.mxu0 0.0
  %1346 = vmatpush1.msra.mxu0 0.0
  %1347 = vmatprep.subr.mxu0 0.0
  %1348 = vmatpush1.msra.mxu0 0.0
  %1349 = vmatprep.subr.mxu0 0.0
  %1350 = vmatpush1.msra.mxu0 0.0
  %1351 = vmatprep.subr.mxu0 0.0
  %1352 = vmatpush1.msra.mxu0 0.0
  %1353 = vmatprep.subr.mxu0 0.0
  %1354 = vmatpush1.msra.mxu0 0.0
  %1355 = vmatprep.subr.mxu0 0.0
  %1356 = vmatpush1.msra.mxu0 0.0
  %1357 = vmatprep.subr.mxu0 0.0
  %1358 = vmatpush1.msra.mxu0 0.0
  %1359 = vmatprep.subr.mxu0 0.0
  %1360 = vmatpush1.msra.mxu0 0.0
  %1361 = vmatprep.subr.mxu0 0.0
  %1362 = vmatpush1.msra.mxu0 0.0
  %1363 = vmatprep.subr.mxu0 0.0
  %1364 = vmatpush1.msra.mxu0 0.0
  %1365 = vmatprep.mubr.f32.mxu0 0.0
  %1366 = vmatmul.mubr.f32.gmra.mrb[0].mxu0 %v834
  %v1367 = vpop.f32.mrb[0].mxu0
  %v1368 = vadd.f32 0.0, %v1367
  %v1369 = vpop.f32.mrb[0].mxu0
  %v1370 = vadd.f32 0.0, %v1369
  %1371 = vmatprep.mubr.f32.mxu0 0.0
  %1372 = vmatmul.mubr.f32.gmra.mrb[0].mxu0 %v837
  %v1373 = vpop.f32.mrb[0].mxu0
  %v1374 = vadd.f32 0.0, %v1373
  %v1375 = vpop.f32.mrb[0].mxu0
  %v1376 = vadd.f32 0.0, %v1375
  %1377 = vdwg.mxu0
  %1378 = vmatprep.subr.mxu0 %v829
  %1379 = vmatpush1.msra.mxu0 %v828
  %1380 = vmatprep.subr.mxu0 0.0
  %1381 = vmatpush1.msra.mxu0 0.0
  %1382 = vmatprep.subr.mxu0 0.0
  %1383 = vmatpush1.msra.mxu0 0.0
  %1384 = vmatprep.subr.mxu0 0.0
  %1385 = vmatpush1.msra.mxu0 0.0
  %1386 = vmatprep.subr.mxu0 0.0
  %1387 = vmatpush1.msra.mxu0 0.0
  %1388 = vmatprep.subr.mxu0 0.0
  %1389 = vmatpush1.msra.mxu0 0.0
  %1390 = vmatprep.subr.mxu0 0.0
  %1391 = vmatpush1.msra.mxu0 0.0
  %1392 = vmatprep.subr.mxu0 0.0
  %1393 = vmatpush1.msra.mxu0 0.0
  %1394 = vmatprep.subr.mxu0 0.0
  %1395 = vmatpush1.msra.mxu0 0.0
  %1396 = vmatprep.subr.mxu0 0.0
  %1397 = vmatpush1.msra.mxu0 0.0
  %1398 = vmatprep.subr.mxu0 0.0
  %1399 = vmatpush1.msra.mxu0 0.0
  %1400 = vmatprep.subr.mxu0 0.0
  %1401 = vmatpush1.msra.mxu0 0.0
  %1402 = vmatprep.subr.mxu0 0.0
  %1403 = vmatpush1.msra.mxu0 0.0
  %1404 = vmatprep.subr.mxu0 0.0
  %1405 = vmatpush1.msra.mxu0 0.0
  %1406 = vmatprep.subr.mxu0 0.0
  %1407 = vmatpush1.msra.mxu0 0.0
  %1408 = vmatprep.subr.mxu0 0.0
  %1409 = vmatpush1.msra.mxu0 0.0
  %1410 = vmatprep.subr.mxu0 0.0
  %1411 = vmatpush1.msra.mxu0 0.0
  %1412 = vmatprep.subr.mxu0 0.0
  %1413 = vmatpush1.msra.mxu0 0.0
  %1414 = vmatprep.subr.mxu0 0.0
  %1415 = vmatpush1.msra.mxu0 0.0
  %1416 = vmatprep.subr.mxu0 0.0
  %1417 = vmatpush1.msra.mxu0 0.0
  %1418 = vmatprep.subr.mxu0 0.0
  %1419 = vmatpush1.msra.mxu0 0.0
  %1420 = vmatprep.subr.mxu0 0.0
  %1421 = vmatpush1.msra.mxu0 0.0
  %1422 = vmatprep.subr.mxu0 0.0
  %1423 = vmatpush1.msra.mxu0 0.0
  %1424 = vmatprep.subr.mxu0 0.0
  %1425 = vmatpush1.msra.mxu0 0.0
  %1426 = vmatprep.subr.mxu0 0.0
  %1427 = vmatpush1.msra.mxu0 0.0
  %1428 = vmatprep.subr.mxu0 0.0
  %1429 = vmatpush1.msra.mxu0 0.0
  %1430 = vmatprep.subr.mxu0 0.0
  %1431 = vmatpush1.msra.mxu0 0.0
  %1432 = vmatprep.subr.mxu0 0.0
  %1433 = vmatpush1.msra.mxu0 0.0
  %1434 = vmatprep.subr.mxu0 0.0
  %1435 = vmatpush1.msra.mxu0 0.0
  %1436 = vmatprep.subr.mxu0 0.0
  %1437 = vmatpush1.msra.mxu0 0.0
  %1438 = vmatprep.subr.mxu0 0.0
  %1439 = vmatpush1.msra.mxu0 0.0
  %1440 = vmatprep.subr.mxu0 0.0
  %1441 = vmatpush1.msra.mxu0 0.0
  %1442 = vmatprep.mubr.f32.mxu0 0.0
  %1443 = vmatmul.mubr.f32.gmra.mrb[0].mxu0 %v834
  %v1444 = vpop.f32.mrb[0].mxu0
  %v1445 = vadd.f32 0.0, %v1444
  %v1446 = vpop.f32.mrb[0].mxu0
  %v1447 = vadd.f32 0.0, %v1446
  %1448 = vmatprep.mubr.f32.mxu0 0.0
  %1449 = vmatmul.mubr.f32.gmra.mrb[0].mxu0 %v837
  %v1450 = vpop.f32.mrb[0].mxu0
  %v1451 = vadd.f32 0.0, %v1450
  %v1452 = vpop.f32.mrb[0].mxu0
  %v1453 = vadd.f32 0.0, %v1452
  %1454 = vdwg.mxu0
  %v1455 = vld [vmem:[%s6] sm:$0xff]
  %v1456 = vld [vmem:[%s6 + $0x8] sm:$0xff]
  %1458 = vset.pattern.permute.xlu0 0
  %1459 = vperm.xlu0 %1458, %v1455
  %v1460 = vpop.permute.xlu0 %1459
  %1463 = vset.pattern.permute.xlu0 0
  %1464 = vperm.xlu0 %1463, %v1456
  %v1465 = vpop.permute.xlu0 %1464
  %v1467 = vmul.f32 %v1460, %v906
  %v1468 = vmul.f32 %v1460, %v908
  %v1469 = vmul.f32 %v1460, %v983
  %v1470 = vmul.f32 %v1460, %v985
  %v1471 = vmul.f32 %v1460, %v1060
  %v1472 = vmul.f32 %v1460, %v1062
  %v1473 = vmul.f32 %v1460, %v1137
  %v1474 = vmul.f32 %v1460, %v1139
  %v1475 = vmul.f32 %v1460, %v1214
  %v1476 = vmul.f32 %v1460, %v1216
  %v1477 = vmul.f32 %v1460, %v1291
  %v1478 = vmul.f32 %v1460, %v1293
  %v1479 = vmul.f32 %v1460, %v1368
  %v1480 = vmul.f32 %v1460, %v1370
  %v1481 = vmul.f32 %v1460, %v1445
  %v1482 = vmul.f32 %v1460, %v1447
  %v1483 = vmul.f32 %v1465, %v912
  %v1484 = vmul.f32 %v1465, %v914
  %v1485 = vmul.f32 %v1465, %v989
  %v1486 = vmul.f32 %v1465, %v991
  %v1487 = vmul.f32 %v1465, %v1066
  %v1488 = vmul.f32 %v1465, %v1068
  %v1489 = vmul.f32 %v1465, %v1143
  %v1490 = vmul.f32 %v1465, %v1145
  %v1491 = vmul.f32 %v1465, %v1220
  %v1492 = vmul.f32 %v1465, %v1222
  %v1493 = vmul.f32 %v1465, %v1297
  %v1494 = vmul.f32 %v1465, %v1299
  %v1495 = vmul.f32 %v1465, %v1374
  %v1496 = vmul.f32 %v1465, %v1376
  %v1497 = vmul.f32 %v1465, %v1451
  %v1498 = vmul.f32 %v1465, %v1453
  %v1499 = vld [vmem:[%s7] sm:$0xff]
  %v1500 = vld [vmem:[%s7 + $0x8] sm:$0xff]
  %1502 = vset.pattern.permute.xlu0 0
  %1503 = vperm.xlu0 %1502, %v1499
  %v1504 = vpop.permute.xlu0 %1503
  %1507 = vset.pattern.permute.xlu0 0
  %1508 = vperm.xlu0 %1507, %v1500
  %v1509 = vpop.permute.xlu0 %1508
  %v1511 = vadd.f32 %v1467, %v1504
  %v1512 = vadd.f32 %v1468, %v1504
  %v1513 = vadd.f32 %v1469, %v1504
  %v1514 = vadd.f32 %v1470, %v1504
  %v1515 = vadd.f32 %v1471, %v1504
  %v1516 = vadd.f32 %v1472, %v1504
  %v1517 = vadd.f32 %v1473, %v1504
  %v1518 = vadd.f32 %v1474, %v1504
  %v1519 = vadd.f32 %v1475, %v1504
  %v1520 = vadd.f32 %v1476, %v1504
  %v1521 = vadd.f32 %v1477, %v1504
  %v1522 = vadd.f32 %v1478, %v1504
  %v1523 = vadd.f32 %v1479, %v1504
  %v1524 = vadd.f32 %v1480, %v1504
  %v1525 = vadd.f32 %v1481, %v1504
  %v1526 = vadd.f32 %v1482, %v1504
  %v1527 = vadd.f32 %v1483, %v1509
  %v1528 = vadd.f32 %v1484, %v1509
  %v1529 = vadd.f32 %v1485, %v1509
  %v1530 = vadd.f32 %v1486, %v1509
  %v1531 = vadd.f32 %v1487, %v1509
  %v1532 = vadd.f32 %v1488, %v1509
  %v1533 = vadd.f32 %v1489, %v1509
  %v1534 = vadd.f32 %v1490, %v1509
  %v1535 = vadd.f32 %v1491, %v1509
  %v1536 = vadd.f32 %v1492, %v1509
  %v1537 = vadd.f32 %v1493, %v1509
  %v1538 = vadd.f32 %v1494, %v1509
  %v1539 = vadd.f32 %v1495, %v1509
  %v1540 = vadd.f32 %v1496, %v1509
  %v1541 = vadd.f32 %v1497, %v1509
  %v1542 = vadd.f32 %v1498, %v1509
  %v1543 = vmax.f32 %v1511, 0.0
  %v1544 = vmax.f32 %v1512, 0.0
  %v1545 = vmax.f32 %v1513, 0.0
  %v1546 = vmax.f32 %v1514, 0.0
  %v1547 = vmax.f32 %v1515, 0.0
  %v1548 = vmax.f32 %v1516, 0.0
  %v1549 = vmax.f32 %v1517, 0.0
  %v1550 = vmax.f32 %v1518, 0.0
  %v1551 = vmax.f32 %v1519, 0.0
  %v1552 = vmax.f32 %v1520, 0.0
  %v1553 = vmax.f32 %v1521, 0.0
  %v1554 = vmax.f32 %v1522, 0.0
  %v1555 = vmax.f32 %v1523, 0.0
  %v1556 = vmax.f32 %v1524, 0.0
  %v1557 = vmax.f32 %v1525, 0.0
  %v1558 = vmax.f32 %v1526, 0.0
  %v1559 = vmax.f32 %v1527, 0.0
  %v1560 = vmax.f32 %v1528, 0.0
  %v1561 = vmax.f32 %v1529, 0.0
  %v1562 = vmax.f32 %v1530, 0.0
  %v1563 = vmax.f32 %v1531, 0.0
  %v1564 = vmax.f32 %v1532, 0.0
  %v1565 = vmax.f32 %v1533, 0.0
  %v1566 = vmax.f32 %v1534, 0.0
  %v1567 = vmax.f32 %v1535, 0.0
  %v1568 = vmax.f32 %v1536, 0.0
  %v1569 = vmax.f32 %v1537, 0.0
  %v1570 = vmax.f32 %v1538, 0.0
  %v1571 = vmax.f32 %v1539, 0.0
  %v1572 = vmax.f32 %v1540, 0.0
  %v1573 = vmax.f32 %v1541, 0.0
  %v1574 = vmax.f32 %v1542, 0.0
  %v1575 = vmul.f32 %v1543, %v100
  %v1576 = vmul.f32 %v1544, %v101
  %v1577 = vmul.f32 %v1545, %v102
  %v1578 = vmul.f32 %v1546, %v103
  %v1579 = vmul.f32 %v1547, %v104
  %v1580 = vmul.f32 %v1548, %v105
  %v1581 = vmul.f32 %v1549, %v106
  %v1582 = vmul.f32 %v1550, %v107
  %v1583 = vmul.f32 %v1551, %v108
  %v1584 = vmul.f32 %v1552, %v109
  %v1585 = vmul.f32 %v1553, %v110
  %v1586 = vmul.f32 %v1554, %v111
  %v1587 = vmul.f32 %v1555, %v112
  %v1588 = vmul.f32 %v1556, %v113
  %v1589 = vmul.f32 %v1557, %v114
  %v1590 = vmul.f32 %v1558, %v115
  %v1591 = vmul.f32 %v1559, %v100
  %v1592 = vmul.f32 %v1560, %v101
  %v1593 = vmul.f32 %v1561, %v102
  %v1594 = vmul.f32 %v1562, %v103
  %v1595 = vmul.f32 %v1563, %v104
  %v1596 = vmul.f32 %v1564, %v105
  %v1597 = vmul.f32 %v1565, %v106
  %v1598 = vmul.f32 %v1566, %v107
  %v1599 = vmul.f32 %v1567, %v108
  %v1600 = vmul.f32 %v1568, %v109
  %v1601 = vmul.f32 %v1569, %v110
  %v1602 = vmul.f32 %v1570, %v111
  %v1603 = vmul.f32 %v1571, %v112
  %v1604 = vmul.f32 %v1572, %v113
  %v1605 = vmul.f32 %v1573, %v114
  %v1606 = vmul.f32 %v1574, %v115
  %v1607 = vld [vmem:[%s3] sm:$0xff]
  %v1608 = vld [vmem:[%s3 + $0x8] sm:$0xff]
  %v1609 = vld [vmem:[%s3 + $0x10] sm:$0xff]
  %vm1610 = vcmask 130048
  %v1612 = vsel %vm1610, %v1607, 0
  %v1615 = vsel %vm1610, %v1608, 0
  %v1618 = vsel %vm1610, %v1609, 0
  %1620 = vmatprep.subr.mxu0 %v1576
  %1621 = vmatpush1.msra.mxu0 %v1575
  %1622 = vmatprep.subr.mxu0 %v1592
  %1623 = vmatpush1.msra.mxu0 %v1591
  %1624 = vmatprep.subr.mxu0 0.0
  %1625 = vmatpush1.msra.mxu0 0.0
  %1626 = vmatprep.subr.mxu0 0.0
  %1627 = vmatpush1.msra.mxu0 0.0
  %1628 = vmatprep.subr.mxu0 0.0
  %1629 = vmatpush1.msra.mxu0 0.0
  %1630 = vmatprep.subr.mxu0 0.0
  %1631 = vmatpush1.msra.mxu0 0.0
  %1632 = vmatprep.subr.mxu0 0.0
  %1633 = vmatpush1.msra.mxu0 0.0
  %1634 = vmatprep.subr.mxu0 0.0
  %1635 = vmatpush1.msra.mxu0 0.0
  %1636 = vmatprep.subr.mxu0 0.0
  %1637 = vmatpush1.msra.mxu0 0.0
  %1638 = vmatprep.subr.mxu0 0.0
  %1639 = vmatpush1.msra.mxu0 0.0
  %1640 = vmatprep.subr.mxu0 0.0
  %1641 = vmatpush1.msra.mxu0 0.0
  %1642 = vmatprep.subr.mxu0 0.0
  %1643 = vmatpush1.msra.mxu0 0.0
  %1644 = vmatprep.subr.mxu0 0.0
  %1645 = vmatpush1.msra.mxu0 0.0
  %1646 = vmatprep.subr.mxu0 0.0
  %1647 = vmatpush1.msra.mxu0 0.0
  %1648 = vmatprep.subr.mxu0 0.0
  %1649 = vmatpush1.msra.mxu0 0.0
  %1650 = vmatprep.subr.mxu0 0.0
  %1651 = vmatpush1.msra.mxu0 0.0
  %1652 = vmatprep.subr.mxu0 0.0
  %1653 = vmatpush1.msra.mxu0 0.0
  %1654 = vmatprep.subr.mxu0 0.0
  %1655 = vmatpush1.msra.mxu0 0.0
  %1656 = vmatprep.subr.mxu0 0.0
  %1657 = vmatpush1.msra.mxu0 0.0
  %1658 = vmatprep.subr.mxu0 0.0
  %1659 = vmatpush1.msra.mxu0 0.0
  %1660 = vmatprep.subr.mxu0 0.0
  %1661 = vmatpush1.msra.mxu0 0.0
  %1662 = vmatprep.subr.mxu0 0.0
  %1663 = vmatpush1.msra.mxu0 0.0
  %1664 = vmatprep.subr.mxu0 0.0
  %1665 = vmatpush1.msra.mxu0 0.0
  %1666 = vmatprep.subr.mxu0 0.0
  %1667 = vmatpush1.msra.mxu0 0.0
  %1668 = vmatprep.subr.mxu0 0.0
  %1669 = vmatpush1.msra.mxu0 0.0
  %1670 = vmatprep.subr.mxu0 0.0
  %1671 = vmatpush1.msra.mxu0 0.0
  %1672 = vmatprep.subr.mxu0 0.0
  %1673 = vmatpush1.msra.mxu0 0.0
  %1674 = vmatprep.subr.mxu0 0.0
  %1675 = vmatpush1.msra.mxu0 0.0
  %1676 = vmatprep.subr.mxu0 0.0
  %1677 = vmatpush1.msra.mxu0 0.0
  %1678 = vmatprep.subr.mxu0 0.0
  %1679 = vmatpush1.msra.mxu0 0.0
  %1680 = vmatprep.subr.mxu0 0.0
  %1681 = vmatpush1.msra.mxu0 0.0
  %1682 = vmatprep.subr.mxu0 0.0
  %1683 = vmatpush1.msra.mxu0 0.0
  %1684 = vmatprep.mubr.f32.mxu0 0.0
  %1685 = vmatmul.mubr.f32.gmra.mrb[0].mxu0 %v1612
  %v1686 = vpop.f32.mrb[0].mxu0
  %v1687 = vadd.f32 0.0, %v1686
  %v1688 = vpop.f32.mrb[0].mxu0
  %v1689 = vadd.f32 0.0, %v1688
  %1690 = vmatprep.mubr.f32.mxu0 0.0
  %1691 = vmatmul.mubr.f32.gmra.mrb[0].mxu0 %v1615
  %v1692 = vpop.f32.mrb[0].mxu0
  %v1693 = vadd.f32 0.0, %v1692
  %v1694 = vpop.f32.mrb[0].mxu0
  %v1695 = vadd.f32 0.0, %v1694
  %1696 = vmatprep.mubr.f32.mxu0 0.0
  %1697 = vmatmul.mubr.f32.gmra.mrb[0].mxu0 %v1618
  %v1698 = vpop.f32.mrb[0].mxu0
  %v1699 = vadd.f32 0.0, %v1698
  %v1700 = vpop.f32.mrb[0].mxu0
  %v1701 = vadd.f32 0.0, %v1700
  %1702 = vdwg.mxu0
  %1703 = vmatprep.subr.mxu0 %v1578
  %1704 = vmatpush1.msra.mxu0 %v1577
  %1705 = vmatprep.subr.mxu0 %v1594
  %1706 = vmatpush1.msra.mxu0 %v1593
  %1707 = vmatprep.subr.mxu0 0.0
  %1708 = vmatpush1.msra.mxu0 0.0
  %1709 = vmatprep.subr.mxu0 0.0
  %1710 = vmatpush1.msra.mxu0 0.0
  %1711 = vmatprep.subr.mxu0 0.0
  %1712 = vmatpush1.msra.mxu0 0.0
  %1713 = vmatprep.subr.mxu0 0.0
  %1714 = vmatpush1.msra.mxu0 0.0
  %1715 = vmatprep.subr.mxu0 0.0
  %1716 = vmatpush1.msra.mxu0 0.0
  %1717 = vmatprep.subr.mxu0 0.0
  %1718 = vmatpush1.msra.mxu0 0.0
  %1719 = vmatprep.subr.mxu0 0.0
  %1720 = vmatpush1.msra.mxu0 0.0
  %1721 = vmatprep.subr.mxu0 0.0
  %1722 = vmatpush1.msra.mxu0 0.0
  %1723 = vmatprep.subr.mxu0 0.0
  %1724 = vmatpush1.msra.mxu0 0.0
  %1725 = vmatprep.subr.mxu0 0.0
  %1726 = vmatpush1.msra.mxu0 0.0
  %1727 = vmatprep.subr.mxu0 0.0
  %1728 = vmatpush1.msra.mxu0 0.0
  %1729 = vmatprep.subr.mxu0 0.0
  %1730 = vmatpush1.msra.mxu0 0.0
  %1731 = vmatprep.subr.mxu0 0.0
  %1732 = vmatpush1.msra.mxu0 0.0
  %1733 = vmatprep.subr.mxu0 0.0
  %1734 = vmatpush1.msra.mxu0 0.0
  %1735 = vmatprep.subr.mxu0 0.0
  %1736 = vmatpush1.msra.mxu0 0.0
  %1737 = vmatprep.subr.mxu0 0.0
  %1738 = vmatpush1.msra.mxu0 0.0
  %1739 = vmatprep.subr.mxu0 0.0
  %1740 = vmatpush1.msra.mxu0 0.0
  %1741 = vmatprep.subr.mxu0 0.0
  %1742 = vmatpush1.msra.mxu0 0.0
  %1743 = vmatprep.subr.mxu0 0.0
  %1744 = vmatpush1.msra.mxu0 0.0
  %1745 = vmatprep.subr.mxu0 0.0
  %1746 = vmatpush1.msra.mxu0 0.0
  %1747 = vmatprep.subr.mxu0 0.0
  %1748 = vmatpush1.msra.mxu0 0.0
  %1749 = vmatprep.subr.mxu0 0.0
  %1750 = vmatpush1.msra.mxu0 0.0
  %1751 = vmatprep.subr.mxu0 0.0
  %1752 = vmatpush1.msra.mxu0 0.0
  %1753 = vmatprep.subr.mxu0 0.0
  %1754 = vmatpush1.msra.mxu0 0.0
  %1755 = vmatprep.subr.mxu0 0.0
  %1756 = vmatpush1.msra.mxu0 0.0
  %1757 = vmatprep.subr.mxu0 0.0
  %1758 = vmatpush1.msra.mxu0 0.0
  %1759 = vmatprep.subr.mxu0 0.0
  %1760 = vmatpush1.msra.mxu0 0.0
  %1761 = vmatprep.subr.mxu0 0.0
  %1762 = vmatpush1.msra.mxu0 0.0
  %1763 = vmatprep.subr.mxu0 0.0
  %1764 = vmatpush1.msra.mxu0 0.0
  %1765 = vmatprep.subr.mxu0 0.0
  %1766 = vmatpush1.msra.mxu0 0.0
  %1767 = vmatprep.mubr.f32.mxu0 0.0
  %1768 = vmatmul.mubr.f32.gmra.mrb[0].mxu0 %v1612
  %v1769 = vpop.f32.mrb[0].mxu0
  %v1770 = vadd.f32 0.0, %v1769
  %v1771 = vpop.f32.mrb[0].mxu0
  %v1772 = vadd.f32 0.0, %v1771
  %1773 = vmatprep.mubr.f32.mxu0 0.0
  %1774 = vmatmul.mubr.f32.gmra.mrb[0].mxu0 %v1615
  %v1775 = vpop.f32.mrb[0].mxu0
  %v1776 = vadd.f32 0.0, %v1775
  %v1777 = vpop.f32.mrb[0].mxu0
  %v1778 = vadd.f32 0.0, %v1777
  %1779 = vmatprep.mubr.f32.mxu0 0.0
  %1780 = vmatmul.mubr.f32.gmra.mrb[0].mxu0 %v1618
  %v1781 = vpop.f32.mrb[0].mxu0
  %v1782 = vadd.f32 0.0, %v1781
  %v1783 = vpop.f32.mrb[0].mxu0
  %v1784 = vadd.f32 0.0, %v1783
  %1785 = vdwg.mxu0
  %1786 = vmatprep.subr.mxu0 %v1580
  %1787 = vmatpush1.msra.mxu0 %v1579
  %1788 = vmatprep.subr.mxu0 %v1596
  %1789 = vmatpush1.msra.mxu0 %v1595
  %1790 = vmatprep.subr.mxu0 0.0
  %1791 = vmatpush1.msra.mxu0 0.0
  %1792 = vmatprep.subr.mxu0 0.0
  %1793 = vmatpush1.msra.mxu0 0.0
  %1794 = vmatprep.subr.mxu0 0.0
  %1795 = vmatpush1.msra.mxu0 0.0
  %1796 = vmatprep.subr.mxu0 0.0
  %1797 = vmatpush1.msra.mxu0 0.0
  %1798 = vmatprep.subr.mxu0 0.0
  %1799 = vmatpush1.msra.mxu0 0.0
  %1800 = vmatprep.subr.mxu0 0.0
  %1801 = vmatpush1.msra.mxu0 0.0
  %1802 = vmatprep.subr.mxu0 0.0
  %1803 = vmatpush1.msra.mxu0 0.0
  %1804 = vmatprep.subr.mxu0 0.0
  %1805 = vmatpush1.msra.mxu0 0.0
  %1806 = vmatprep.subr.mxu0 0.0
  %1807 = vmatpush1.msra.mxu0 0.0
  %1808 = vmatprep.subr.mxu0 0.0
  %1809 = vmatpush1.msra.mxu0 0.0
  %1810 = vmatprep.subr.mxu0 0.0
  %1811 = vmatpush1.msra.mxu0 0.0
  %1812 = vmatprep.subr.mxu0 0.0
  %1813 = vmatpush1.msra.mxu0 0.0
  %1814 = vmatprep.subr.mxu0 0.0
  %1815 = vmatpush1.msra.mxu0 0.0
  %1816 = vmatprep.subr.mxu0 0.0
  %1817 = vmatpush1.msra.mxu0 0.0
  %1818 = vmatprep.subr.mxu0 0.0
  %1819 = vmatpush1.msra.mxu0 0.0
  %1820 = vmatprep.subr.mxu0 0.0
  %1821 = vmatpush1.msra.mxu0 0.0
  %1822 = vmatprep.subr.mxu0 0.0
  %1823 = vmatpush1.msra.mxu0 0.0
  %1824 = vmatprep.subr.mxu0 0.0
  %1825 = vmatpush1.msra.mxu0 0.0
  %1826 = vmatprep.subr.mxu0 0.0
  %1827 = vmatpush1.msra.mxu0 0.0
  %1828 = vmatprep.subr.mxu0 0.0
  %1829 = vmatpush1.msra.mxu0 0.0
  %1830 = vmatprep.subr.mxu0 0.0
  %1831 = vmatpush1.msra.mxu0 0.0
  %1832 = vmatprep.subr.mxu0 0.0
  %1833 = vmatpush1.msra.mxu0 0.0
  %1834 = vmatprep.subr.mxu0 0.0
  %1835 = vmatpush1.msra.mxu0 0.0
  %1836 = vmatprep.subr.mxu0 0.0
  %1837 = vmatpush1.msra.mxu0 0.0
  %1838 = vmatprep.subr.mxu0 0.0
  %1839 = vmatpush1.msra.mxu0 0.0
  %1840 = vmatprep.subr.mxu0 0.0
  %1841 = vmatpush1.msra.mxu0 0.0
  %1842 = vmatprep.subr.mxu0 0.0
  %1843 = vmatpush1.msra.mxu0 0.0
  %1844 = vmatprep.subr.mxu0 0.0
  %1845 = vmatpush1.msra.mxu0 0.0
  %1846 = vmatprep.subr.mxu0 0.0
  %1847 = vmatpush1.msra.mxu0 0.0
  %1848 = vmatprep.subr.mxu0 0.0
  %1849 = vmatpush1.msra.mxu0 0.0
  %1850 = vmatprep.mubr.f32.mxu0 0.0
  %1851 = vmatmul.mubr.f32.gmra.mrb[0].mxu0 %v1612
  %v1852 = vpop.f32.mrb[0].mxu0
  %v1853 = vadd.f32 0.0, %v1852
  %v1854 = vpop.f32.mrb[0].mxu0
  %v1855 = vadd.f32 0.0, %v1854
  %1856 = vmatprep.mubr.f32.mxu0 0.0
  %1857 = vmatmul.mubr.f32.gmra.mrb[0].mxu0 %v1615
  %v1858 = vpop.f32.mrb[0].mxu0
  %v1859 = vadd.f32 0.0, %v1858
  %v1860 = vpop.f32.mrb[0].mxu0
  %v1861 = vadd.f32 0.0, %v1860
  %1862 = vmatprep.mubr.f32.mxu0 0.0
  %1863 = vmatmul.mubr.f32.gmra.mrb[0].mxu0 %v1618
  %v1864 = vpop.f32.mrb[0].mxu0
  %v1865 = vadd.f32 0.0, %v1864
  %v1866 = vpop.f32.mrb[0].mxu0
  %v1867 = vadd.f32 0.0, %v1866
  %1868 = vdwg.mxu0
  %1869 = vmatprep.subr.mxu0 %v1582
  %1870 = vmatpush1.msra.mxu0 %v1581
  %1871 = vmatprep.subr.mxu0 %v1598
  %1872 = vmatpush1.msra.mxu0 %v1597
  %1873 = vmatprep.subr.mxu0 0.0
  %1874 = vmatpush1.msra.mxu0 0.0
  %1875 = vmatprep.subr.mxu0 0.0
  %1876 = vmatpush1.msra.mxu0 0.0
  %1877 = vmatprep.subr.mxu0 0.0
  %1878 = vmatpush1.msra.mxu0 0.0
  %1879 = vmatprep.subr.mxu0 0.0
  %1880 = vmatpush1.msra.mxu0 0.0
  %1881 = vmatprep.subr.mxu0 0.0
  %1882 = vmatpush1.msra.mxu0 0.0
  %1883 = vmatprep.subr.mxu0 0.0
  %1884 = vmatpush1.msra.mxu0 0.0
  %1885 = vmatprep.subr.mxu0 0.0
  %1886 = vmatpush1.msra.mxu0 0.0
  %1887 = vmatprep.subr.mxu0 0.0
  %1888 = vmatpush1.msra.mxu0 0.0
  %1889 = vmatprep.subr.mxu0 0.0
  %1890 = vmatpush1.msra.mxu0 0.0
  %1891 = vmatprep.subr.mxu0 0.0
  %1892 = vmatpush1.msra.mxu0 0.0
  %1893 = vmatprep.subr.mxu0 0.0
  %1894 = vmatpush1.msra.mxu0 0.0
  %1895 = vmatprep.subr.mxu0 0.0
  %1896 = vmatpush1.msra.mxu0 0.0
  %1897 = vmatprep.subr.mxu0 0.0
  %1898 = vmatpush1.msra.mxu0 0.0
  %1899 = vmatprep.subr.mxu0 0.0
  %1900 = vmatpush1.msra.mxu0 0.0
  %1901 = vmatprep.subr.mxu0 0.0
  %1902 = vmatpush1.msra.mxu0 0.0
  %1903 = vmatprep.subr.mxu0 0.0
  %1904 = vmatpush1.msra.mxu0 0.0
  %1905 = vmatprep.subr.mxu0 0.0
  %1906 = vmatpush1.msra.mxu0 0.0
  %1907 = vmatprep.subr.mxu0 0.0
  %1908 = vmatpush1.msra.mxu0 0.0
  %1909 = vmatprep.subr.mxu0 0.0
  %1910 = vmatpush1.msra.mxu0 0.0
  %1911 = vmatprep.subr.mxu0 0.0
  %1912 = vmatpush1.msra.mxu0 0.0
  %1913 = vmatprep.subr.mxu0 0.0
  %1914 = vmatpush1.msra.mxu0 0.0
  %1915 = vmatprep.subr.mxu0 0.0
  %1916 = vmatpush1.msra.mxu0 0.0
  %1917 = vmatprep.subr.mxu0 0.0
  %1918 = vmatpush1.msra.mxu0 0.0
  %1919 = vmatprep.subr.mxu0 0.0
  %1920 = vmatpush1.msra.mxu0 0.0
  %1921 = vmatprep.subr.mxu0 0.0
  %1922 = vmatpush1.msra.mxu0 0.0
  %1923 = vmatprep.subr.mxu0 0.0
  %1924 = vmatpush1.msra.mxu0 0.0
  %1925 = vmatprep.subr.mxu0 0.0
  %1926 = vmatpush1.msra.mxu0 0.0
  %1927 = vmatprep.subr.mxu0 0.0
  %1928 = vmatpush1.msra.mxu0 0.0
  %1929 = vmatprep.subr.mxu0 0.0
  %1930 = vmatpush1.msra.mxu0 0.0
  %1931 = vmatprep.subr.mxu0 0.0
  %1932 = vmatpush1.msra.mxu0 0.0
  %1933 = vmatprep.mubr.f32.mxu0 0.0
  %1934 = vmatmul.mubr.f32.gmra.mrb[0].mxu0 %v1612
  %v1935 = vpop.f32.mrb[0].mxu0
  %v1936 = vadd.f32 0.0, %v1935
  %v1937 = vpop.f32.mrb[0].mxu0
  %v1938 = vadd.f32 0.0, %v1937
  %1939 = vmatprep.mubr.f32.mxu0 0.0
  %1940 = vmatmul.mubr.f32.gmra.mrb[0].mxu0 %v1615
  %v1941 = vpop.f32.mrb[0].mxu0
  %v1942 = vadd.f32 0.0, %v1941
  %v1943 = vpop.f32.mrb[0].mxu0
  %v1944 = vadd.f32 0.0, %v1943
  %1945 = vmatprep.mubr.f32.mxu0 0.0
  %1946 = vmatmul.mubr.f32.gmra.mrb[0].mxu0 %v1618
  %v1947 = vpop.f32.mrb[0].mxu0
  %v1948 = vadd.f32 0.0, %v1947
  %v1949 = vpop.f32.mrb[0].mxu0
  %v1950 = vadd.f32 0.0, %v1949
  %1951 = vdwg.mxu0
  %1952 = vmatprep.subr.mxu0 %v1584
  %1953 = vmatpush1.msra.mxu0 %v1583
  %1954 = vmatprep.subr.mxu0 %v1600
  %1955 = vmatpush1.msra.mxu0 %v1599
  %1956 = vmatprep.subr.mxu0 0.0
  %1957 = vmatpush1.msra.mxu0 0.0
  %1958 = vmatprep.subr.mxu0 0.0
  %1959 = vmatpush1.msra.mxu0 0.0
  %1960 = vmatprep.subr.mxu0 0.0
  %1961 = vmatpush1.msra.mxu0 0.0
  %1962 = vmatprep.subr.mxu0 0.0
  %1963 = vmatpush1.msra.mxu0 0.0
  %1964 = vmatprep.subr.mxu0 0.0
  %1965 = vmatpush1.msra.mxu0 0.0
  %1966 = vmatprep.subr.mxu0 0.0
  %1967 = vmatpush1.msra.mxu0 0.0
  %1968 = vmatprep.subr.mxu0 0.0
  %1969 = vmatpush1.msra.mxu0 0.0
  %1970 = vmatprep.subr.mxu0 0.0
  %1971 = vmatpush1.msra.mxu0 0.0
  %1972 = vmatprep.subr.mxu0 0.0
  %1973 = vmatpush1.msra.mxu0 0.0
  %1974 = vmatprep.subr.mxu0 0.0
  %1975 = vmatpush1.msra.mxu0 0.0
  %1976 = vmatprep.subr.mxu0 0.0
  %1977 = vmatpush1.msra.mxu0 0.0
  %1978 = vmatprep.subr.mxu0 0.0
  %1979 = vmatpush1.msra.mxu0 0.0
  %1980 = vmatprep.subr.mxu0 0.0
  %1981 = vmatpush1.msra.mxu0 0.0
  %1982 = vmatprep.subr.mxu0 0.0
  %1983 = vmatpush1.msra.mxu0 0.0
  %1984 = vmatprep.subr.mxu0 0.0
  %1985 = vmatpush1.msra.mxu0 0.0
  %1986 = vmatprep.subr.mxu0 0.0
  %1987 = vmatpush1.msra.mxu0 0.0
  %1988 = vmatprep.subr.mxu0 0.0
  %1989 = vmatpush1.msra.mxu0 0.0
  %1990 = vmatprep.subr.mxu0 0.0
  %1991 = vmatpush1.msra.mxu0 0.0
  %1992 = vmatprep.subr.mxu0 0.0
  %1993 = vmatpush1.msra.mxu0 0.0
  %1994 = vmatprep.subr.mxu0 0.0
  %1995 = vmatpush1.msra.mxu0 0.0
  %1996 = vmatprep.subr.mxu0 0.0
  %1997 = vmatpush1.msra.mxu0 0.0
  %1998 = vmatprep.subr.mxu0 0.0
  %1999 = vmatpush1.msra.mxu0 0.0
  %2000 = vmatprep.subr.mxu0 0.0
  %2001 = vmatpush1.msra.mxu0 0.0
  %2002 = vmatprep.subr.mxu0 0.0
  %2003 = vmatpush1.msra.mxu0 0.0
  %2004 = vmatprep.subr.mxu0 0.0
  %2005 = vmatpush1.msra.mxu0 0.0
  %2006 = vmatprep.subr.mxu0 0.0
  %2007 = vmatpush1.msra.mxu0 0.0
  %2008 = vmatprep.subr.mxu0 0.0
  %2009 = vmatpush1.msra.mxu0 0.0
  %2010 = vmatprep.subr.mxu0 0.0
  %2011 = vmatpush1.msra.mxu0 0.0
  %2012 = vmatprep.subr.mxu0 0.0
  %2013 = vmatpush1.msra.mxu0 0.0
  %2014 = vmatprep.subr.mxu0 0.0
  %2015 = vmatpush1.msra.mxu0 0.0
  %2016 = vmatprep.mubr.f32.mxu0 0.0
  %2017 = vmatmul.mubr.f32.gmra.mrb[0].mxu0 %v1612
  %v2018 = vpop.f32.mrb[0].mxu0
  %v2019 = vadd.f32 0.0, %v2018
  %v2020 = vpop.f32.mrb[0].mxu0
  %v2021 = vadd.f32 0.0, %v2020
  %2022 = vmatprep.mubr.f32.mxu0 0.0
  %2023 = vmatmul.mubr.f32.gmra.mrb[0].mxu0 %v1615
  %v2024 = vpop.f32.mrb[0].mxu0
  %v2025 = vadd.f32 0.0, %v2024
  %v2026 = vpop.f32.mrb[0].mxu0
  %v2027 = vadd.f32 0.0, %v2026
  %2028 = vmatprep.mubr.f32.mxu0 0.0
  %2029 = vmatmul.mubr.f32.gmra.mrb[0].mxu0 %v1618
  %v2030 = vpop.f32.mrb[0].mxu0
  %v2031 = vadd.f32 0.0, %v2030
  %v2032 = vpop.f32.mrb[0].mxu0
  %v2033 = vadd.f32 0.0, %v2032
  %2034 = vdwg.mxu0
  %2035 = vmatprep.subr.mxu0 %v1586
  %2036 = vmatpush1.msra.mxu0 %v1585
  %2037 = vmatprep.subr.mxu0 %v1602
  %2038 = vmatpush1.msra.mxu0 %v1601
  %2039 = vmatprep.subr.mxu0 0.0
  %2040 = vmatpush1.msra.mxu0 0.0
  %2041 = vmatprep.subr.mxu0 0.0
  %2042 = vmatpush1.msra.mxu0 0.0
  %2043 = vmatprep.subr.mxu0 0.0
  %2044 = vmatpush1.msra.mxu0 0.0
  %2045 = vmatprep.subr.mxu0 0.0
  %2046 = vmatpush1.msra.mxu0 0.0
  %2047 = vmatprep.subr.mxu0 0.0
  %2048 = vmatpush1.msra.mxu0 0.0
  %2049 = vmatprep.subr.mxu0 0.0
  %2050 = vmatpush1.msra.mxu0 0.0
  %2051 = vmatprep.subr.mxu0 0.0
  %2052 = vmatpush1.msra.mxu0 0.0
  %2053 = vmatprep.subr.mxu0 0.0
  %2054 = vmatpush1.msra.mxu0 0.0
  %2055 = vmatprep.subr.mxu0 0.0
  %2056 = vmatpush1.msra.mxu0 0.0
  %2057 = vmatprep.subr.mxu0 0.0
  %2058 = vmatpush1.msra.mxu0 0.0
  %2059 = vmatprep.subr.mxu0 0.0
  %2060 = vmatpush1.msra.mxu0 0.0
  %2061 = vmatprep.subr.mxu0 0.0
  %2062 = vmatpush1.msra.mxu0 0.0
  %2063 = vmatprep.subr.mxu0 0.0
  %2064 = vmatpush1.msra.mxu0 0.0
  %2065 = vmatprep.subr.mxu0 0.0
  %2066 = vmatpush1.msra.mxu0 0.0
  %2067 = vmatprep.subr.mxu0 0.0
  %2068 = vmatpush1.msra.mxu0 0.0
  %2069 = vmatprep.subr.mxu0 0.0
  %2070 = vmatpush1.msra.mxu0 0.0
  %2071 = vmatprep.subr.mxu0 0.0
  %2072 = vmatpush1.msra.mxu0 0.0
  %2073 = vmatprep.subr.mxu0 0.0
  %2074 = vmatpush1.msra.mxu0 0.0
  %2075 = vmatprep.subr.mxu0 0.0
  %2076 = vmatpush1.msra.mxu0 0.0
  %2077 = vmatprep.subr.mxu0 0.0
  %2078 = vmatpush1.msra.mxu0 0.0
  %2079 = vmatprep.subr.mxu0 0.0
  %2080 = vmatpush1.msra.mxu0 0.0
  %2081 = vmatprep.subr.mxu0 0.0
  %2082 = vmatpush1.msra.mxu0 0.0
  %2083 = vmatprep.subr.mxu0 0.0
  %2084 = vmatpush1.msra.mxu0 0.0
  %2085 = vmatprep.subr.mxu0 0.0
  %2086 = vmatpush1.msra.mxu0 0.0
  %2087 = vmatprep.subr.mxu0 0.0
  %2088 = vmatpush1.msra.mxu0 0.0
  %2089 = vmatprep.subr.mxu0 0.0
  %2090 = vmatpush1.msra.mxu0 0.0
  %2091 = vmatprep.subr.mxu0 0.0
  %2092 = vmatpush1.msra.mxu0 0.0
  %2093 = vmatprep.subr.mxu0 0.0
  %2094 = vmatpush1.msra.mxu0 0.0
  %2095 = vmatprep.subr.mxu0 0.0
  %2096 = vmatpush1.msra.mxu0 0.0
  %2097 = vmatprep.subr.mxu0 0.0
  %2098 = vmatpush1.msra.mxu0 0.0
  %2099 = vmatprep.mubr.f32.mxu0 0.0
  %2100 = vmatmul.mubr.f32.gmra.mrb[0].mxu0 %v1612
  %v2101 = vpop.f32.mrb[0].mxu0
  %v2102 = vadd.f32 0.0, %v2101
  %v2103 = vpop.f32.mrb[0].mxu0
  %v2104 = vadd.f32 0.0, %v2103
  %2105 = vmatprep.mubr.f32.mxu0 0.0
  %2106 = vmatmul.mubr.f32.gmra.mrb[0].mxu0 %v1615
  %v2107 = vpop.f32.mrb[0].mxu0
  %v2108 = vadd.f32 0.0, %v2107
  %v2109 = vpop.f32.mrb[0].mxu0
  %v2110 = vadd.f32 0.0, %v2109
  %2111 = vmatprep.mubr.f32.mxu0 0.0
  %2112 = vmatmul.mubr.f32.gmra.mrb[0].mxu0 %v1618
  %v2113 = vpop.f32.mrb[0].mxu0
  %v2114 = vadd.f32 0.0, %v2113
  %v2115 = vpop.f32.mrb[0].mxu0
  %v2116 = vadd.f32 0.0, %v2115
  %2117 = vdwg.mxu0
  %2118 = vmatprep.subr.mxu0 %v1588
  %2119 = vmatpush1.msra.mxu0 %v1587
  %2120 = vmatprep.subr.mxu0 %v1604
  %2121 = vmatpush1.msra.mxu0 %v1603
  %2122 = vmatprep.subr.mxu0 0.0
  %2123 = vmatpush1.msra.mxu0 0.0
  %2124 = vmatprep.subr.mxu0 0.0
  %2125 = vmatpush1.msra.mxu0 0.0
  %2126 = vmatprep.subr.mxu0 0.0
  %2127 = vmatpush1.msra.mxu0 0.0
  %2128 = vmatprep.subr.mxu0 0.0
  %2129 = vmatpush1.msra.mxu0 0.0
  %2130 = vmatprep.subr.mxu0 0.0
  %2131 = vmatpush1.msra.mxu0 0.0
  %2132 = vmatprep.subr.mxu0 0.0
  %2133 = vmatpush1.msra.mxu0 0.0
  %2134 = vmatprep.subr.mxu0 0.0
  %2135 = vmatpush1.msra.mxu0 0.0
  %2136 = vmatprep.subr.mxu0 0.0
  %2137 = vmatpush1.msra.mxu0 0.0
  %2138 = vmatprep.subr.mxu0 0.0
  %2139 = vmatpush1.msra.mxu0 0.0
  %2140 = vmatprep.subr.mxu0 0.0
  %2141 = vmatpush1.msra.mxu0 0.0
  %2142 = vmatprep.subr.mxu0 0.0
  %2143 = vmatpush1.msra.mxu0 0.0
  %2144 = vmatprep.subr.mxu0 0.0
  %2145 = vmatpush1.msra.mxu0 0.0
  %2146 = vmatprep.subr.mxu0 0.0
  %2147 = vmatpush1.msra.mxu0 0.0
  %2148 = vmatprep.subr.mxu0 0.0
  %2149 = vmatpush1.msra.mxu0 0.0
  %2150 = vmatprep.subr.mxu0 0.0
  %2151 = vmatpush1.msra.mxu0 0.0
  %2152 = vmatprep.subr.mxu0 0.0
  %2153 = vmatpush1.msra.mxu0 0.0
  %2154 = vmatprep.subr.mxu0 0.0
  %2155 = vmatpush1.msra.mxu0 0.0
  %2156 = vmatprep.subr.mxu0 0.0
  %2157 = vmatpush1.msra.mxu0 0.0
  %2158 = vmatprep.subr.mxu0 0.0
  %2159 = vmatpush1.msra.mxu0 0.0
  %2160 = vmatprep.subr.mxu0 0.0
  %2161 = vmatpush1.msra.mxu0 0.0
  %2162 = vmatprep.subr.mxu0 0.0
  %2163 = vmatpush1.msra.mxu0 0.0
  %2164 = vmatprep.subr.mxu0 0.0
  %2165 = vmatpush1.msra.mxu0 0.0
  %2166 = vmatprep.subr.mxu0 0.0
  %2167 = vmatpush1.msra.mxu0 0.0
  %2168 = vmatprep.subr.mxu0 0.0
  %2169 = vmatpush1.msra.mxu0 0.0
  %2170 = vmatprep.subr.mxu0 0.0
  %2171 = vmatpush1.msra.mxu0 0.0
  %2172 = vmatprep.subr.mxu0 0.0
  %2173 = vmatpush1.msra.mxu0 0.0
  %2174 = vmatprep.subr.mxu0 0.0
  %2175 = vmatpush1.msra.mxu0 0.0
  %2176 = vmatprep.subr.mxu0 0.0
  %2177 = vmatpush1.msra.mxu0 0.0
  %2178 = vmatprep.subr.mxu0 0.0
  %2179 = vmatpush1.msra.mxu0 0.0
  %2180 = vmatprep.subr.mxu0 0.0
  %2181 = vmatpush1.msra.mxu0 0.0
  %2182 = vmatprep.mubr.f32.mxu0 0.0
  %2183 = vmatmul.mubr.f32.gmra.mrb[0].mxu0 %v1612
  %v2184 = vpop.f32.mrb[0].mxu0
  %v2185 = vadd.f32 0.0, %v2184
  %v2186 = vpop.f32.mrb[0].mxu0
  %v2187 = vadd.f32 0.0, %v2186
  %2188 = vmatprep.mubr.f32.mxu0 0.0
  %2189 = vmatmul.mubr.f32.gmra.mrb[0].mxu0 %v1615
  %v2190 = vpop.f32.mrb[0].mxu0
  %v2191 = vadd.f32 0.0, %v2190
  %v2192 = vpop.f32.mrb[0].mxu0
  %v2193 = vadd.f32 0.0, %v2192
  %2194 = vmatprep.mubr.f32.mxu0 0.0
  %2195 = vmatmul.mubr.f32.gmra.mrb[0].mxu0 %v1618
  %v2196 = vpop.f32.mrb[0].mxu0
  %v2197 = vadd.f32 0.0, %v2196
  %v2198 = vpop.f32.mrb[0].mxu0
  %v2199 = vadd.f32 0.0, %v2198
  %2200 = vdwg.mxu0
  %2201 = vmatprep.subr.mxu0 %v1590
  %2202 = vmatpush1.msra.mxu0 %v1589
  %2203 = vmatprep.subr.mxu0 %v1606
  %2204 = vmatpush1.msra.mxu0 %v1605
  %2205 = vmatprep.subr.mxu0 0.0
  %2206 = vmatpush1.msra.mxu0 0.0
  %2207 = vmatprep.subr.mxu0 0.0
  %2208 = vmatpush1.msra.mxu0 0.0
  %2209 = vmatprep.subr.mxu0 0.0
  %2210 = vmatpush1.msra.mxu0 0.0
  %2211 = vmatprep.subr.mxu0 0.0
  %2212 = vmatpush1.msra.mxu0 0.0
  %2213 = vmatprep.subr.mxu0 0.0
  %2214 = vmatpush1.msra.mxu0 0.0
  %2215 = vmatprep.subr.mxu0 0.0
  %2216 = vmatpush1.msra.mxu0 0.0
  %2217 = vmatprep.subr.mxu0 0.0
  %2218 = vmatpush1.msra.mxu0 0.0
  %2219 = vmatprep.subr.mxu0 0.0
  %2220 = vmatpush1.msra.mxu0 0.0
  %2221 = vmatprep.subr.mxu0 0.0
  %2222 = vmatpush1.msra.mxu0 0.0
  %2223 = vmatprep.subr.mxu0 0.0
  %2224 = vmatpush1.msra.mxu0 0.0
  %2225 = vmatprep.subr.mxu0 0.0
  %2226 = vmatpush1.msra.mxu0 0.0
  %2227 = vmatprep.subr.mxu0 0.0
  %2228 = vmatpush1.msra.mxu0 0.0
  %2229 = vmatprep.subr.mxu0 0.0
  %2230 = vmatpush1.msra.mxu0 0.0
  %2231 = vmatprep.subr.mxu0 0.0
  %2232 = vmatpush1.msra.mxu0 0.0
  %2233 = vmatprep.subr.mxu0 0.0
  %2234 = vmatpush1.msra.mxu0 0.0
  %2235 = vmatprep.subr.mxu0 0.0
  %2236 = vmatpush1.msra.mxu0 0.0
  %2237 = vmatprep.subr.mxu0 0.0
  %2238 = vmatpush1.msra.mxu0 0.0
  %2239 = vmatprep.subr.mxu0 0.0
  %2240 = vmatpush1.msra.mxu0 0.0
  %2241 = vmatprep.subr.mxu0 0.0
  %2242 = vmatpush1.msra.mxu0 0.0
  %2243 = vmatprep.subr.mxu0 0.0
  %2244 = vmatpush1.msra.mxu0 0.0
  %2245 = vmatprep.subr.mxu0 0.0
  %2246 = vmatpush1.msra.mxu0 0.0
  %2247 = vmatprep.subr.mxu0 0.0
  %2248 = vmatpush1.msra.mxu0 0.0
  %2249 = vmatprep.subr.mxu0 0.0
  %2250 = vmatpush1.msra.mxu0 0.0
  %2251 = vmatprep.subr.mxu0 0.0
  %2252 = vmatpush1.msra.mxu0 0.0
  %2253 = vmatprep.subr.mxu0 0.0
  %2254 = vmatpush1.msra.mxu0 0.0
  %2255 = vmatprep.subr.mxu0 0.0
  %2256 = vmatpush1.msra.mxu0 0.0
  %2257 = vmatprep.subr.mxu0 0.0
  %2258 = vmatpush1.msra.mxu0 0.0
  %2259 = vmatprep.subr.mxu0 0.0
  %2260 = vmatpush1.msra.mxu0 0.0
  %2261 = vmatprep.subr.mxu0 0.0
  %2262 = vmatpush1.msra.mxu0 0.0
  %2263 = vmatprep.subr.mxu0 0.0
  %2264 = vmatpush1.msra.mxu0 0.0
  %2265 = vmatprep.mubr.f32.mxu0 0.0
  %2266 = vmatmul.mubr.f32.gmra.mrb[0].mxu0 %v1612
  %v2267 = vpop.f32.mrb[0].mxu0
  %v2268 = vadd.f32 0.0, %v2267
  %v2269 = vpop.f32.mrb[0].mxu0
  %v2270 = vadd.f32 0.0, %v2269
  %2271 = vmatprep.mubr.f32.mxu0 0.0
  %2272 = vmatmul.mubr.f32.gmra.mrb[0].mxu0 %v1615
  %v2273 = vpop.f32.mrb[0].mxu0
  %v2274 = vadd.f32 0.0, %v2273
  %v2275 = vpop.f32.mrb[0].mxu0
  %v2276 = vadd.f32 0.0, %v2275
  %2277 = vmatprep.mubr.f32.mxu0 0.0
  %2278 = vmatmul.mubr.f32.gmra.mrb[0].mxu0 %v1618
  %v2279 = vpop.f32.mrb[0].mxu0
  %v2280 = vadd.f32 0.0, %v2279
  %v2281 = vpop.f32.mrb[0].mxu0
  %v2282 = vadd.f32 0.0, %v2281
  %2283 = vdwg.mxu0
  %v2284 = vadd.f32 %v1687, %v1689
  %v2285 = vadd.f32 %v2284, %v1770
  %v2286 = vadd.f32 %v2285, %v1772
  %v2287 = vadd.f32 %v2286, %v1853
  %v2288 = vadd.f32 %v2287, %v1855
  %v2289 = vadd.f32 %v2288, %v1936
  %v2290 = vadd.f32 %v2289, %v1938
  %v2291 = vadd.f32 %v2290, %v2019
  %v2292 = vadd.f32 %v2291, %v2021
  %v2293 = vadd.f32 %v2292, %v2102
  %v2294 = vadd.f32 %v2293, %v2104
  %v2295 = vadd.f32 %v2294, %v2185
  %v2296 = vadd.f32 %v2295, %v2187
  %v2297 = vadd.f32 %v2296, %v2268
  %v2298 = vadd.f32 %v2297, %v2270
  %2299 = vadd.xlane.f32.xlu0 %v2298
  %v2300 = vpop.xlane.xlu0 %2299
  %v2301 = vadd.f32 %v1693, %v1695
  %v2302 = vadd.f32 %v2301, %v1776
  %v2303 = vadd.f32 %v2302, %v1778
  %v2304 = vadd.f32 %v2303, %v1859
  %v2305 = vadd.f32 %v2304, %v1861
  %v2306 = vadd.f32 %v2305, %v1942
  %v2307 = vadd.f32 %v2306, %v1944
  %v2308 = vadd.f32 %v2307, %v2025
  %v2309 = vadd.f32 %v2308, %v2027
  %v2310 = vadd.f32 %v2309, %v2108
  %v2311 = vadd.f32 %v2310, %v2110
  %v2312 = vadd.f32 %v2311, %v2191
  %v2313 = vadd.f32 %v2312, %v2193
  %v2314 = vadd.f32 %v2313, %v2274
  %v2315 = vadd.f32 %v2314, %v2276
  %2316 = vadd.xlane.f32.xlu0 %v2315
  %v2317 = vpop.xlane.xlu0 %2316
  %v2318 = vadd.f32 %v1699, %v1701
  %v2319 = vadd.f32 %v2318, %v1782
  %v2320 = vadd.f32 %v2319, %v1784
  %v2321 = vadd.f32 %v2320, %v1865
  %v2322 = vadd.f32 %v2321, %v1867
  %v2323 = vadd.f32 %v2322, %v1948
  %v2324 = vadd.f32 %v2323, %v1950
  %v2325 = vadd.f32 %v2324, %v2031
  %v2326 = vadd.f32 %v2325, %v2033
  %v2327 = vadd.f32 %v2326, %v2114
  %v2328 = vadd.f32 %v2327, %v2116
  %v2329 = vadd.f32 %v2328, %v2197
  %v2330 = vadd.f32 %v2329, %v2199
  %v2331 = vadd.f32 %v2330, %v2280
  %v2332 = vadd.f32 %v2331, %v2282
  %2333 = vadd.xlane.f32.xlu0 %v2332
  %v2334 = vpop.xlane.xlu0 %2333
  %v2335 = vstv %s33
  %v2336 = vrcp.pop %v2335
  %s2337 = vtos %v2336
  %v2338 = vstv %s2337
  %v2339 = vmul.f32 %v2300, %v2338
  %v2340 = vmul.f32 %v2317, %v2338
  %v2341 = vmul.f32 %v2334, %v2338
  %v2342 = vsub.f32 %v1687, %v2339
  %v2343 = vsub.f32 %v1689, %v2339
  %v2344 = vsub.f32 %v1770, %v2339
  %v2345 = vsub.f32 %v1772, %v2339
  %v2346 = vsub.f32 %v1853, %v2339
  %v2347 = vsub.f32 %v1855, %v2339
  %v2348 = vsub.f32 %v1936, %v2339
  %v2349 = vsub.f32 %v1938, %v2339
  %v2350 = vsub.f32 %v2019, %v2339
  %v2351 = vsub.f32 %v2021, %v2339
  %v2352 = vsub.f32 %v2102, %v2339
  %v2353 = vsub.f32 %v2104, %v2339
  %v2354 = vsub.f32 %v2185, %v2339
  %v2355 = vsub.f32 %v2187, %v2339
  %v2356 = vsub.f32 %v2268, %v2339
  %v2357 = vsub.f32 %v2270, %v2339
  %v2358 = vsub.f32 %v1693, %v2340
  %v2359 = vsub.f32 %v1695, %v2340
  %v2360 = vsub.f32 %v1776, %v2340
  %v2361 = vsub.f32 %v1778, %v2340
  %v2362 = vsub.f32 %v1859, %v2340
  %v2363 = vsub.f32 %v1861, %v2340
  %v2364 = vsub.f32 %v1942, %v2340
  %v2365 = vsub.f32 %v1944, %v2340
  %v2366 = vsub.f32 %v2025, %v2340
  %v2367 = vsub.f32 %v2027, %v2340
  %v2368 = vsub.f32 %v2108, %v2340
  %v2369 = vsub.f32 %v2110, %v2340
  %v2370 = vsub.f32 %v2191, %v2340
  %v2371 = vsub.f32 %v2193, %v2340
  %v2372 = vsub.f32 %v2274, %v2340
  %v2373 = vsub.f32 %v2276, %v2340
  %v2374 = vsub.f32 %v1699, %v2341
  %v2375 = vsub.f32 %v1701, %v2341
  %v2376 = vsub.f32 %v1782, %v2341
  %v2377 = vsub.f32 %v1784, %v2341
  %v2378 = vsub.f32 %v1865, %v2341
  %v2379 = vsub.f32 %v1867, %v2341
  %v2380 = vsub.f32 %v1948, %v2341
  %v2381 = vsub.f32 %v1950, %v2341
  %v2382 = vsub.f32 %v2031, %v2341
  %v2383 = vsub.f32 %v2033, %v2341
  %v2384 = vsub.f32 %v2114, %v2341
  %v2385 = vsub.f32 %v2116, %v2341
  %v2386 = vsub.f32 %v2197, %v2341
  %v2387 = vsub.f32 %v2199, %v2341
  %v2388 = vsub.f32 %v2280, %v2341
  %v2389 = vsub.f32 %v2282, %v2341
  %v2390 = vmul.f32 %v2342, %v100
  %v2391 = vmul.f32 %v2343, %v101
  %v2392 = vmul.f32 %v2344, %v102
  %v2393 = vmul.f32 %v2345, %v103
  %v2394 = vmul.f32 %v2346, %v104
  %v2395 = vmul.f32 %v2347, %v105
  %v2396 = vmul.f32 %v2348, %v106
  %v2397 = vmul.f32 %v2349, %v107
  %v2398 = vmul.f32 %v2350, %v108
  %v2399 = vmul.f32 %v2351, %v109
  %v2400 = vmul.f32 %v2352, %v110
  %v2401 = vmul.f32 %v2353, %v111
  %v2402 = vmul.f32 %v2354, %v112
  %v2403 = vmul.f32 %v2355, %v113
  %v2404 = vmul.f32 %v2356, %v114
  %v2405 = vmul.f32 %v2357, %v115
  %v2406 = vmul.f32 %v2358, %v100
  %v2407 = vmul.f32 %v2359, %v101
  %v2408 = vmul.f32 %v2360, %v102
  %v2409 = vmul.f32 %v2361, %v103
  %v2410 = vmul.f32 %v2362, %v104
  %v2411 = vmul.f32 %v2363, %v105
  %v2412 = vmul.f32 %v2364, %v106
  %v2413 = vmul.f32 %v2365, %v107
  %v2414 = vmul.f32 %v2366, %v108
  %v2415 = vmul.f32 %v2367, %v109
  %v2416 = vmul.f32 %v2368, %v110
  %v2417 = vmul.f32 %v2369, %v111
  %v2418 = vmul.f32 %v2370, %v112
  %v2419 = vmul.f32 %v2371, %v113
  %v2420 = vmul.f32 %v2372, %v114
  %v2421 = vmul.f32 %v2373, %v115
  %v2422 = vmul.f32 %v2374, %v100
  %v2423 = vmul.f32 %v2375, %v101
  %v2424 = vmul.f32 %v2376, %v102
  %v2425 = vmul.f32 %v2377, %v103
  %v2426 = vmul.f32 %v2378, %v104
  %v2427 = vmul.f32 %v2379, %v105
  %v2428 = vmul.f32 %v2380, %v106
  %v2429 = vmul.f32 %v2381, %v107
  %v2430 = vmul.f32 %v2382, %v108
  %v2431 = vmul.f32 %v2383, %v109
  %v2432 = vmul.f32 %v2384, %v110
  %v2433 = vmul.f32 %v2385, %v111
  %v2434 = vmul.f32 %v2386, %v112
  %v2435 = vmul.f32 %v2387, %v113
  %v2436 = vmul.f32 %v2388, %v114
  %v2437 = vmul.f32 %v2389, %v115
  %v2438 = vmul.f32 %v2390, %v2390
  %v2439 = vmul.f32 %v2391, %v2391
  %v2440 = vmul.f32 %v2392, %v2392
  %v2441 = vmul.f32 %v2393, %v2393
  %v2442 = vmul.f32 %v2394, %v2394
  %v2443 = vmul.f32 %v2395, %v2395
  %v2444 = vmul.f32 %v2396, %v2396
  %v2445 = vmul.f32 %v2397, %v2397
  %v2446 = vmul.f32 %v2398, %v2398
  %v2447 = vmul.f32 %v2399, %v2399
  %v2448 = vmul.f32 %v2400, %v2400
  %v2449 = vmul.f32 %v2401, %v2401
  %v2450 = vmul.f32 %v2402, %v2402
  %v2451 = vmul.f32 %v2403, %v2403
  %v2452 = vmul.f32 %v2404, %v2404
  %v2453 = vmul.f32 %v2405, %v2405
  %v2454 = vmul.f32 %v2406, %v2406
  %v2455 = vmul.f32 %v2407, %v2407
  %v2456 = vmul.f32 %v2408, %v2408
  %v2457 = vmul.f32 %v2409, %v2409
  %v2458 = vmul.f32 %v2410, %v2410
  %v2459 = vmul.f32 %v2411, %v2411
  %v2460 = vmul.f32 %v2412, %v2412
  %v2461 = vmul.f32 %v2413, %v2413
  %v2462 = vmul.f32 %v2414, %v2414
  %v2463 = vmul.f32 %v2415, %v2415
  %v2464 = vmul.f32 %v2416, %v2416
  %v2465 = vmul.f32 %v2417, %v2417
  %v2466 = vmul.f32 %v2418, %v2418
  %v2467 = vmul.f32 %v2419, %v2419
  %v2468 = vmul.f32 %v2420, %v2420
  %v2469 = vmul.f32 %v2421, %v2421
  %v2470 = vmul.f32 %v2422, %v2422
  %v2471 = vmul.f32 %v2423, %v2423
  %v2472 = vmul.f32 %v2424, %v2424
  %v2473 = vmul.f32 %v2425, %v2425
  %v2474 = vmul.f32 %v2426, %v2426
  %v2475 = vmul.f32 %v2427, %v2427
  %v2476 = vmul.f32 %v2428, %v2428
  %v2477 = vmul.f32 %v2429, %v2429
  %v2478 = vmul.f32 %v2430, %v2430
  %v2479 = vmul.f32 %v2431, %v2431
  %v2480 = vmul.f32 %v2432, %v2432
  %v2481 = vmul.f32 %v2433, %v2433
  %v2482 = vmul.f32 %v2434, %v2434
  %v2483 = vmul.f32 %v2435, %v2435
  %v2484 = vmul.f32 %v2436, %v2436
  %v2485 = vmul.f32 %v2437, %v2437
  %v2486 = vadd.f32 %v2438, %v2439
  %v2487 = vadd.f32 %v2486, %v2440
  %v2488 = vadd.f32 %v2487, %v2441
  %v2489 = vadd.f32 %v2488, %v2442
  %v2490 = vadd.f32 %v2489, %v2443
  %v2491 = vadd.f32 %v2490, %v2444
  %v2492 = vadd.f32 %v2491, %v2445
  %v2493 = vadd.f32 %v2492, %v2446
  %v2494 = vadd.f32 %v2493, %v2447
  %v2495 = vadd.f32 %v2494, %v2448
  %v2496 = vadd.f32 %v2495, %v2449
  %v2497 = vadd.f32 %v2496, %v2450
  %v2498 = vadd.f32 %v2497, %v2451
  %v2499 = vadd.f32 %v2498, %v2452
  %v2500 = vadd.f32 %v2499, %v2453
  %2501 = vadd.xlane.f32.xlu0 %v2500
  %v2502 = vpop.xlane.xlu0 %2501
  %v2503 = vadd.f32 %v2454, %v2455
  %v2504 = vadd.f32 %v2503, %v2456
  %v2505 = vadd.f32 %v2504, %v2457
  %v2506 = vadd.f32 %v2505, %v2458
  %v2507 = vadd.f32 %v2506, %v2459
  %v2508 = vadd.f32 %v2507, %v2460
  %v2509 = vadd.f32 %v2508, %v2461
  %v2510 = vadd.f32 %v2509, %v2462
  %v2511 = vadd.f32 %v2510, %v2463
  %v2512 = vadd.f32 %v2511, %v2464
  %v2513 = vadd.f32 %v2512, %v2465
  %v2514 = vadd.f32 %v2513, %v2466
  %v2515 = vadd.f32 %v2514, %v2467
  %v2516 = vadd.f32 %v2515, %v2468
  %v2517 = vadd.f32 %v2516, %v2469
  %2518 = vadd.xlane.f32.xlu0 %v2517
  %v2519 = vpop.xlane.xlu0 %2518
  %v2520 = vadd.f32 %v2470, %v2471
  %v2521 = vadd.f32 %v2520, %v2472
  %v2522 = vadd.f32 %v2521, %v2473
  %v2523 = vadd.f32 %v2522, %v2474
  %v2524 = vadd.f32 %v2523, %v2475
  %v2525 = vadd.f32 %v2524, %v2476
  %v2526 = vadd.f32 %v2525, %v2477
  %v2527 = vadd.f32 %v2526, %v2478
  %v2528 = vadd.f32 %v2527, %v2479
  %v2529 = vadd.f32 %v2528, %v2480
  %v2530 = vadd.f32 %v2529, %v2481
  %v2531 = vadd.f32 %v2530, %v2482
  %v2532 = vadd.f32 %v2531, %v2483
  %v2533 = vadd.f32 %v2532, %v2484
  %v2534 = vadd.f32 %v2533, %v2485
  %2535 = vadd.xlane.f32.xlu0 %v2534
  %v2536 = vpop.xlane.xlu0 %2535
  %vm2537 = vcmp.eq.s32.totalorder %v35, 0
  %v2538 = vsel %vm2537, %v2300, 0.0
  %v2539 = vsel %vm2537, %v2317, 0.0
  %v2540 = vsel %vm2537, %v2334, 0.0
  %vm2541 = vcmp.eq.s32.totalorder %v35, 1
  %v2542 = vsel %vm2541, %v2502, 0.0
  %v2543 = vsel %vm2541, %v2519, 0.0
  %v2544 = vsel %vm2541, %v2536, 0.0
  %v2545 = vadd.f32 %v2538, %v2542
  %v2546 = vadd.f32 %v2539, %v2543
  %v2547 = vadd.f32 %v2540, %v2544
  %2548 = vst [vmem:[%s8] sm:$0xff] %v2545
  %2549 = vst [vmem:[%s8 + $0x8] sm:$0xff] %v2546
  %2550 = vst [vmem:[%s8 + $0x10] sm:$0xff] %v2547
  // Predicated region
  $region34: #{base_point_tinet.6} parent=0 // pred_check
    _
  $region35: #{base_point_tinet.6} parent=0 // pred_check_branch
    %2552 = sbr.rel (0) target = $region37
  $region36: #{base_point_tinet.6} parent=0 // pred_region
    _
  $region37: #{base_point_tinet.6} parent=0 // pred_fallthru
    _
  // Predicated region
  $region38: #{base_point_tinet.6} parent=0 // pred_check
    _
  $region39: #{base_point_tinet.6} parent=0 // pred_check_branch
    %2554 = sbr.rel (0) target = $region41
  $region40: #{base_point_tinet.6} parent=0 // pred_region
    _
  $region41: #{base_point_tinet.6} parent=0 // pred_fallthru
    _

// kernel: base_point_tinet.7
$region0: #{base_point_tinet.7}
  #allocation0 [shape = 'u32[]', space=smem, size = 0x4, offset = 0x4, fixed_abs, tag = 'smem constant byte address 0x4 - core index']
  #allocation1 [shape = 'u32[144,128]{1,0:T(1,128)}', space=vmem, size = 0x12000, scoped, tag = 'internal scratch']
  %s0 = inlined_call_operand.vmem [shape: f32[2048,5], index: 0, kind: input, shape index: {}]
  %s1 = inlined_call_operand.vmem [shape: f32[8,5], index: 1, kind: input, shape index: {}]
  %s2 = inlined_call_operand.vmem [shape: f32[16,8], index: 2, kind: input, shape index: {}]
  %s3 = inlined_call_operand.vmem [shape: f32[24,16], index: 3, kind: input, shape index: {}]
  %s4 = inlined_call_operand.vmem [shape: f32[8,1], index: 4, kind: input, shape index: {}]
  %s5 = inlined_call_operand.vmem [shape: f32[8,1], index: 5, kind: input, shape index: {}]
  %s6 = inlined_call_operand.vmem [shape: f32[16,1], index: 6, kind: input, shape index: {}]
  %s7 = inlined_call_operand.vmem [shape: f32[16,1], index: 7, kind: input, shape index: {}]
  %s8 = inlined_call_operand.vmem [shape: f32[24,1], index: 8, kind: input, shape index: {}]
  %s9 = inlined_call_operand.vmem [shape: f32[24,1], index: 9, kind: input, shape index: {}]
  %s10 = inlined_call_operand.vmem [shape: f32[2048,29], index: 10, kind: output, shape index: {}]
  %s11 = sld [smem:[#allocation0]]
  $region50: #{base_point_tinet.7} parent=0
    _
  %s13 = ssub.s32 1, %s11
  %s14 = scalar_select 0, %s13, %s11
  // Predicated region
  $region2: #{base_point_tinet.7} parent=0 // pred_check
    _
  $region3: #{base_point_tinet.7} parent=0 // pred_check_branch
    %16 = sbr.rel (0) target = $region5
  $region4: #{base_point_tinet.7} parent=0 // pred_region
    _
  $region5: #{base_point_tinet.7} parent=0 // pred_fallthru
    _
  // Predicated region
  $region6: #{base_point_tinet.7} parent=0 // pred_check
    _
  $region7: #{base_point_tinet.7} parent=0 // pred_check_branch
    %18 = sbr.rel (0) target = $region9
  $region8: #{base_point_tinet.7} parent=0 // pred_region
    _
  $region9: #{base_point_tinet.7} parent=0 // pred_fallthru
    _
  // Predicated region
  $region10: #{base_point_tinet.7} parent=0 // pred_check
    _
  $region11: #{base_point_tinet.7} parent=0 // pred_check_branch
    %20 = sbr.rel (0) target = $region13
  $region12: #{base_point_tinet.7} parent=0 // pred_region
    _
  $region13: #{base_point_tinet.7} parent=0 // pred_fallthru
    _
  // Predicated region
  $region14: #{base_point_tinet.7} parent=0 // pred_check
    _
  $region15: #{base_point_tinet.7} parent=0 // pred_check_branch
    %22 = sbr.rel (0) target = $region17
  $region16: #{base_point_tinet.7} parent=0 // pred_region
    _
  $region17: #{base_point_tinet.7} parent=0 // pred_fallthru
    _
  // Predicated region
  $region18: #{base_point_tinet.7} parent=0 // pred_check
    _
  $region19: #{base_point_tinet.7} parent=0 // pred_check_branch
    %24 = sbr.rel (0) target = $region21
  $region20: #{base_point_tinet.7} parent=0 // pred_region
    _
  $region21: #{base_point_tinet.7} parent=0 // pred_fallthru
    _
  // Predicated region
  $region22: #{base_point_tinet.7} parent=0 // pred_check
    _
  $region23: #{base_point_tinet.7} parent=0 // pred_check_branch
    %26 = sbr.rel (0) target = $region25
  $region24: #{base_point_tinet.7} parent=0 // pred_region
    _
  $region25: #{base_point_tinet.7} parent=0 // pred_fallthru
    _
  // Predicated region
  $region26: #{base_point_tinet.7} parent=0 // pred_check
    _
  $region27: #{base_point_tinet.7} parent=0 // pred_check_branch
    %28 = sbr.rel (0) target = $region29
  $region28: #{base_point_tinet.7} parent=0 // pred_region
    _
  $region29: #{base_point_tinet.7} parent=0 // pred_fallthru
    _
  // Predicated region
  $region30: #{base_point_tinet.7} parent=0 // pred_check
    _
  $region31: #{base_point_tinet.7} parent=0 // pred_check_branch
    %30 = sbr.rel (0) target = $region33
  $region32: #{base_point_tinet.7} parent=0 // pred_region
    _
  $region33: #{base_point_tinet.7} parent=0 // pred_fallthru
    _
  // Predicated region
  $region34: #{base_point_tinet.7} parent=0 // pred_check
    _
  $region35: #{base_point_tinet.7} parent=0 // pred_check_branch
    %32 = sbr.rel (0) target = $region37
  $region36: #{base_point_tinet.7} parent=0 // pred_region
    _
  $region37: #{base_point_tinet.7} parent=0 // pred_fallthru
    _
  // Predicated region
  $region38: #{base_point_tinet.7} parent=0 // pred_check
    _
  $region39: #{base_point_tinet.7} parent=0 // pred_check_branch
    %34 = sbr.rel (0) target = $region41
  $region40: #{base_point_tinet.7} parent=0 // pred_region
    _
  $region41: #{base_point_tinet.7} parent=0 // pred_fallthru
    _
  %v35 = vld [vmem:[%s0] sm:$0xff]
  %v36 = vld [vmem:[%s0 + $0x8] sm:$0xff]
  %v37 = vld [vmem:[%s0 + $0x10] sm:$0xff]
  %v38 = vld [vmem:[%s0 + $0x18] sm:$0xff]
  %v39 = vld [vmem:[%s0 + $0x20] sm:$0xff]
  %v40 = vld [vmem:[%s0 + $0x28] sm:$0xff]
  %v41 = vld [vmem:[%s0 + $0x30] sm:$0xff]
  %v42 = vld [vmem:[%s0 + $0x38] sm:$0xff]
  %v43 = vld [vmem:[%s0 + $0x40] sm:$0xff]
  %v44 = vld [vmem:[%s0 + $0x48] sm:$0xff]
  %v45 = vld [vmem:[%s0 + $0x50] sm:$0xff]
  %v46 = vld [vmem:[%s0 + $0x58] sm:$0xff]
  %v47 = vld [vmem:[%s0 + $0x60] sm:$0xff]
  %v48 = vld [vmem:[%s0 + $0x68] sm:$0xff]
  %v49 = vld [vmem:[%s0 + $0x70] sm:$0xff]
  %v50 = vld [vmem:[%s0 + $0x78] sm:$0xff]
  %v51 = vld [vmem:[%s0 + $0x80] sm:$0xff]
  %v52 = vld [vmem:[%s0 + $0x88] sm:$0xff]
  %v53 = vld [vmem:[%s0 + $0x90] sm:$0xff]
  %v54 = vld [vmem:[%s0 + $0x98] sm:$0xff]
  %v55 = vld [vmem:[%s0 + $0xa0] sm:$0xff]
  %v56 = vld [vmem:[%s0 + $0xa8] sm:$0xff]
  %v57 = vld [vmem:[%s0 + $0xb0] sm:$0xff]
  %v58 = vld [vmem:[%s0 + $0xb8] sm:$0xff]
  %v59 = vld [vmem:[%s0 + $0xc0] sm:$0xff]
  %v60 = vld [vmem:[%s0 + $0xc8] sm:$0xff]
  %v61 = vld [vmem:[%s0 + $0xd0] sm:$0xff]
  %v62 = vld [vmem:[%s0 + $0xd8] sm:$0xff]
  %v63 = vld [vmem:[%s0 + $0xe0] sm:$0xff]
  %v64 = vld [vmem:[%s0 + $0xe8] sm:$0xff]
  %v65 = vld [vmem:[%s0 + $0xf0] sm:$0xff]
  %v66 = vld [vmem:[%s0 + $0xf8] sm:$0xff]
  %v67 = vld [vmem:[%s0 + $0x100] sm:$0xff]
  %v68 = vld [vmem:[%s0 + $0x108] sm:$0xff]
  %v69 = vld [vmem:[%s0 + $0x110] sm:$0xff]
  %v70 = vld [vmem:[%s0 + $0x118] sm:$0xff]
  %v71 = vld [vmem:[%s0 + $0x120] sm:$0xff]
  %v72 = vld [vmem:[%s0 + $0x128] sm:$0xff]
  %v73 = vld [vmem:[%s0 + $0x130] sm:$0xff]
  %v74 = vld [vmem:[%s0 + $0x138] sm:$0xff]
  %v75 = vld [vmem:[%s0 + $0x140] sm:$0xff]
  %v76 = vld [vmem:[%s0 + $0x148] sm:$0xff]
  %v77 = vld [vmem:[%s0 + $0x150] sm:$0xff]
  %v78 = vld [vmem:[%s0 + $0x158] sm:$0xff]
  %v79 = vld [vmem:[%s0 + $0x160] sm:$0xff]
  %v80 = vld [vmem:[%s0 + $0x168] sm:$0xff]
  %v81 = vld [vmem:[%s0 + $0x170] sm:$0xff]
  %v82 = vld [vmem:[%s0 + $0x178] sm:$0xff]
  %v83 = vld [vmem:[%s0 + $0x180] sm:$0xff]
  %v84 = vld [vmem:[%s0 + $0x188] sm:$0xff]
  %v85 = vld [vmem:[%s0 + $0x190] sm:$0xff]
  %v86 = vld [vmem:[%s0 + $0x198] sm:$0xff]
  %v87 = vld [vmem:[%s0 + $0x1a0] sm:$0xff]
  %v88 = vld [vmem:[%s0 + $0x1a8] sm:$0xff]
  %v89 = vld [vmem:[%s0 + $0x1b0] sm:$0xff]
  %v90 = vld [vmem:[%s0 + $0x1b8] sm:$0xff]
  %v91 = vld [vmem:[%s0 + $0x1c0] sm:$0xff]
  %v92 = vld [vmem:[%s0 + $0x1c8] sm:$0xff]
  %v93 = vld [vmem:[%s0 + $0x1d0] sm:$0xff]
  %v94 = vld [vmem:[%s0 + $0x1d8] sm:$0xff]
  %v95 = vld [vmem:[%s0 + $0x1e0] sm:$0xff]
  %v96 = vld [vmem:[%s0 + $0x1e8] sm:$0xff]
  %v97 = vld [vmem:[%s0 + $0x1f0] sm:$0xff]
  %v98 = vld [vmem:[%s0 + $0x1f8] sm:$0xff]
  %v99 = vld [vmem:[%s0 + $0x200] sm:$0xff]
  %v100 = vld [vmem:[%s0 + $0x208] sm:$0xff]
  %v101 = vld [vmem:[%s0 + $0x210] sm:$0xff]
  %v102 = vld [vmem:[%s0 + $0x218] sm:$0xff]
  %v103 = vld [vmem:[%s0 + $0x220] sm:$0xff]
  %v104 = vld [vmem:[%s0 + $0x228] sm:$0xff]
  %v105 = vld [vmem:[%s0 + $0x230] sm:$0xff]
  %v106 = vld [vmem:[%s0 + $0x238] sm:$0xff]
  %v107 = vld [vmem:[%s0 + $0x240] sm:$0xff]
  %v108 = vld [vmem:[%s0 + $0x248] sm:$0xff]
  %v109 = vld [vmem:[%s0 + $0x250] sm:$0xff]
  %v110 = vld [vmem:[%s0 + $0x258] sm:$0xff]
  %v111 = vld [vmem:[%s0 + $0x260] sm:$0xff]
  %v112 = vld [vmem:[%s0 + $0x268] sm:$0xff]
  %v113 = vld [vmem:[%s0 + $0x270] sm:$0xff]
  %v114 = vld [vmem:[%s0 + $0x278] sm:$0xff]
  %v115 = vld [vmem:[%s0 + $0x280] sm:$0xff]
  %v116 = vld [vmem:[%s0 + $0x288] sm:$0xff]
  %v117 = vld [vmem:[%s0 + $0x290] sm:$0xff]
  %v118 = vld [vmem:[%s0 + $0x298] sm:$0xff]
  %v119 = vld [vmem:[%s0 + $0x2a0] sm:$0xff]
  %v120 = vld [vmem:[%s0 + $0x2a8] sm:$0xff]
  %v121 = vld [vmem:[%s0 + $0x2b0] sm:$0xff]
  %v122 = vld [vmem:[%s0 + $0x2b8] sm:$0xff]
  %v123 = vld [vmem:[%s0 + $0x2c0] sm:$0xff]
  %v124 = vld [vmem:[%s0 + $0x2c8] sm:$0xff]
  %v125 = vld [vmem:[%s0 + $0x2d0] sm:$0xff]
  %v126 = vld [vmem:[%s0 + $0x2d8] sm:$0xff]
  %v127 = vld [vmem:[%s0 + $0x2e0] sm:$0xff]
  %v128 = vld [vmem:[%s0 + $0x2e8] sm:$0xff]
  %v129 = vld [vmem:[%s0 + $0x2f0] sm:$0xff]
  %v130 = vld [vmem:[%s0 + $0x2f8] sm:$0xff]
  %v131 = vld [vmem:[%s0 + $0x300] sm:$0xff]
  %v132 = vld [vmem:[%s0 + $0x308] sm:$0xff]
  %v133 = vld [vmem:[%s0 + $0x310] sm:$0xff]
  %v134 = vld [vmem:[%s0 + $0x318] sm:$0xff]
  %v135 = vld [vmem:[%s0 + $0x320] sm:$0xff]
  %v136 = vld [vmem:[%s0 + $0x328] sm:$0xff]
  %v137 = vld [vmem:[%s0 + $0x330] sm:$0xff]
  %v138 = vld [vmem:[%s0 + $0x338] sm:$0xff]
  %v139 = vld [vmem:[%s0 + $0x340] sm:$0xff]
  %v140 = vld [vmem:[%s0 + $0x348] sm:$0xff]
  %v141 = vld [vmem:[%s0 + $0x350] sm:$0xff]
  %v142 = vld [vmem:[%s0 + $0x358] sm:$0xff]
  %v143 = vld [vmem:[%s0 + $0x360] sm:$0xff]
  %v144 = vld [vmem:[%s0 + $0x368] sm:$0xff]
  %v145 = vld [vmem:[%s0 + $0x370] sm:$0xff]
  %v146 = vld [vmem:[%s0 + $0x378] sm:$0xff]
  %v147 = vld [vmem:[%s0 + $0x380] sm:$0xff]
  %v148 = vld [vmem:[%s0 + $0x388] sm:$0xff]
  %v149 = vld [vmem:[%s0 + $0x390] sm:$0xff]
  %v150 = vld [vmem:[%s0 + $0x398] sm:$0xff]
  %v151 = vld [vmem:[%s0 + $0x3a0] sm:$0xff]
  %v152 = vld [vmem:[%s0 + $0x3a8] sm:$0xff]
  %v153 = vld [vmem:[%s0 + $0x3b0] sm:$0xff]
  %v154 = vld [vmem:[%s0 + $0x3b8] sm:$0xff]
  %v155 = vld [vmem:[%s0 + $0x3c0] sm:$0xff]
  %v156 = vld [vmem:[%s0 + $0x3c8] sm:$0xff]
  %v157 = vld [vmem:[%s0 + $0x3d0] sm:$0xff]
  %v158 = vld [vmem:[%s0 + $0x3d8] sm:$0xff]
  %v159 = vld [vmem:[%s0 + $0x3e0] sm:$0xff]
  %v160 = vld [vmem:[%s0 + $0x3e8] sm:$0xff]
  %v161 = vld [vmem:[%s0 + $0x3f0] sm:$0xff]
  %v162 = vld [vmem:[%s0 + $0x3f8] sm:$0xff]
  %v163 = vld [vmem:[%s0 + $0x400] sm:$0xff]
  %v164 = vld [vmem:[%s0 + $0x408] sm:$0xff]
  %v165 = vld [vmem:[%s0 + $0x410] sm:$0xff]
  %v166 = vld [vmem:[%s0 + $0x418] sm:$0xff]
  %v167 = vld [vmem:[%s0 + $0x420] sm:$0xff]
  %v168 = vld [vmem:[%s0 + $0x428] sm:$0xff]
  %v169 = vld [vmem:[%s0 + $0x430] sm:$0xff]
  %v170 = vld [vmem:[%s0 + $0x438] sm:$0xff]
  %v171 = vld [vmem:[%s0 + $0x440] sm:$0xff]
  %v172 = vld [vmem:[%s0 + $0x448] sm:$0xff]
  %v173 = vld [vmem:[%s0 + $0x450] sm:$0xff]
  %v174 = vld [vmem:[%s0 + $0x458] sm:$0xff]
  %v175 = vld [vmem:[%s0 + $0x460] sm:$0xff]
  %v176 = vld [vmem:[%s0 + $0x468] sm:$0xff]
  %v177 = vld [vmem:[%s0 + $0x470] sm:$0xff]
  %v178 = vld [vmem:[%s0 + $0x478] sm:$0xff]
  %v179 = vld [vmem:[%s0 + $0x480] sm:$0xff]
  %v180 = vld [vmem:[%s0 + $0x488] sm:$0xff]
  %v181 = vld [vmem:[%s0 + $0x490] sm:$0xff]
  %v182 = vld [vmem:[%s0 + $0x498] sm:$0xff]
  %v183 = vld [vmem:[%s0 + $0x4a0] sm:$0xff]
  %v184 = vld [vmem:[%s0 + $0x4a8] sm:$0xff]
  %v185 = vld [vmem:[%s0 + $0x4b0] sm:$0xff]
  %v186 = vld [vmem:[%s0 + $0x4b8] sm:$0xff]
  %v187 = vld [vmem:[%s0 + $0x4c0] sm:$0xff]
  %v188 = vld [vmem:[%s0 + $0x4c8] sm:$0xff]
  %v189 = vld [vmem:[%s0 + $0x4d0] sm:$0xff]
  %v190 = vld [vmem:[%s0 + $0x4d8] sm:$0xff]
  %v191 = vld [vmem:[%s0 + $0x4e0] sm:$0xff]
  %v192 = vld [vmem:[%s0 + $0x4e8] sm:$0xff]
  %v193 = vld [vmem:[%s0 + $0x4f0] sm:$0xff]
  %v194 = vld [vmem:[%s0 + $0x4f8] sm:$0xff]
  %v195 = vld [vmem:[%s0 + $0x500] sm:$0xff]
  %v196 = vld [vmem:[%s0 + $0x508] sm:$0xff]
  %v197 = vld [vmem:[%s0 + $0x510] sm:$0xff]
  %v198 = vld [vmem:[%s0 + $0x518] sm:$0xff]
  %v199 = vld [vmem:[%s0 + $0x520] sm:$0xff]
  %v200 = vld [vmem:[%s0 + $0x528] sm:$0xff]
  %v201 = vld [vmem:[%s0 + $0x530] sm:$0xff]
  %v202 = vld [vmem:[%s0 + $0x538] sm:$0xff]
  %v203 = vld [vmem:[%s0 + $0x540] sm:$0xff]
  %v204 = vld [vmem:[%s0 + $0x548] sm:$0xff]
  %v205 = vld [vmem:[%s0 + $0x550] sm:$0xff]
  %v206 = vld [vmem:[%s0 + $0x558] sm:$0xff]
  %v207 = vld [vmem:[%s0 + $0x560] sm:$0xff]
  %v208 = vld [vmem:[%s0 + $0x568] sm:$0xff]
  %v209 = vld [vmem:[%s0 + $0x570] sm:$0xff]
  %v210 = vld [vmem:[%s0 + $0x578] sm:$0xff]
  %v211 = vld [vmem:[%s0 + $0x580] sm:$0xff]
  %v212 = vld [vmem:[%s0 + $0x588] sm:$0xff]
  %v213 = vld [vmem:[%s0 + $0x590] sm:$0xff]
  %v214 = vld [vmem:[%s0 + $0x598] sm:$0xff]
  %v215 = vld [vmem:[%s0 + $0x5a0] sm:$0xff]
  %v216 = vld [vmem:[%s0 + $0x5a8] sm:$0xff]
  %v217 = vld [vmem:[%s0 + $0x5b0] sm:$0xff]
  %v218 = vld [vmem:[%s0 + $0x5b8] sm:$0xff]
  %v219 = vld [vmem:[%s0 + $0x5c0] sm:$0xff]
  %v220 = vld [vmem:[%s0 + $0x5c8] sm:$0xff]
  %v221 = vld [vmem:[%s0 + $0x5d0] sm:$0xff]
  %v222 = vld [vmem:[%s0 + $0x5d8] sm:$0xff]
  %v223 = vld [vmem:[%s0 + $0x5e0] sm:$0xff]
  %v224 = vld [vmem:[%s0 + $0x5e8] sm:$0xff]
  %v225 = vld [vmem:[%s0 + $0x5f0] sm:$0xff]
  %v226 = vld [vmem:[%s0 + $0x5f8] sm:$0xff]
  %v227 = vld [vmem:[%s0 + $0x600] sm:$0xff]
  %v228 = vld [vmem:[%s0 + $0x608] sm:$0xff]
  %v229 = vld [vmem:[%s0 + $0x610] sm:$0xff]
  %v230 = vld [vmem:[%s0 + $0x618] sm:$0xff]
  %v231 = vld [vmem:[%s0 + $0x620] sm:$0xff]
  %v232 = vld [vmem:[%s0 + $0x628] sm:$0xff]
  %v233 = vld [vmem:[%s0 + $0x630] sm:$0xff]
  %v234 = vld [vmem:[%s0 + $0x638] sm:$0xff]
  %v235 = vld [vmem:[%s0 + $0x640] sm:$0xff]
  %v236 = vld [vmem:[%s0 + $0x648] sm:$0xff]
  %v237 = vld [vmem:[%s0 + $0x650] sm:$0xff]
  %v238 = vld [vmem:[%s0 + $0x658] sm:$0xff]
  %v239 = vld [vmem:[%s0 + $0x660] sm:$0xff]
  %v240 = vld [vmem:[%s0 + $0x668] sm:$0xff]
  %v241 = vld [vmem:[%s0 + $0x670] sm:$0xff]
  %v242 = vld [vmem:[%s0 + $0x678] sm:$0xff]
  %v243 = vld [vmem:[%s0 + $0x680] sm:$0xff]
  %v244 = vld [vmem:[%s0 + $0x688] sm:$0xff]
  %v245 = vld [vmem:[%s0 + $0x690] sm:$0xff]
  %v246 = vld [vmem:[%s0 + $0x698] sm:$0xff]
  %v247 = vld [vmem:[%s0 + $0x6a0] sm:$0xff]
  %v248 = vld [vmem:[%s0 + $0x6a8] sm:$0xff]
  %v249 = vld [vmem:[%s0 + $0x6b0] sm:$0xff]
  %v250 = vld [vmem:[%s0 + $0x6b8] sm:$0xff]
  %v251 = vld [vmem:[%s0 + $0x6c0] sm:$0xff]
  %v252 = vld [vmem:[%s0 + $0x6c8] sm:$0xff]
  %v253 = vld [vmem:[%s0 + $0x6d0] sm:$0xff]
  %v254 = vld [vmem:[%s0 + $0x6d8] sm:$0xff]
  %v255 = vld [vmem:[%s0 + $0x6e0] sm:$0xff]
  %v256 = vld [vmem:[%s0 + $0x6e8] sm:$0xff]
  %v257 = vld [vmem:[%s0 + $0x6f0] sm:$0xff]
  %v258 = vld [vmem:[%s0 + $0x6f8] sm:$0xff]
  %v259 = vld [vmem:[%s0 + $0x700] sm:$0xff]
  %v260 = vld [vmem:[%s0 + $0x708] sm:$0xff]
  %v261 = vld [vmem:[%s0 + $0x710] sm:$0xff]
  %v262 = vld [vmem:[%s0 + $0x718] sm:$0xff]
  %v263 = vld [vmem:[%s0 + $0x720] sm:$0xff]
  %v264 = vld [vmem:[%s0 + $0x728] sm:$0xff]
  %v265 = vld [vmem:[%s0 + $0x730] sm:$0xff]
  %v266 = vld [vmem:[%s0 + $0x738] sm:$0xff]
  %v267 = vld [vmem:[%s0 + $0x740] sm:$0xff]
  %v268 = vld [vmem:[%s0 + $0x748] sm:$0xff]
  %v269 = vld [vmem:[%s0 + $0x750] sm:$0xff]
  %v270 = vld [vmem:[%s0 + $0x758] sm:$0xff]
  %v271 = vld [vmem:[%s0 + $0x760] sm:$0xff]
  %v272 = vld [vmem:[%s0 + $0x768] sm:$0xff]
  %v273 = vld [vmem:[%s0 + $0x770] sm:$0xff]
  %v274 = vld [vmem:[%s0 + $0x778] sm:$0xff]
  %v275 = vld [vmem:[%s0 + $0x780] sm:$0xff]
  %v276 = vld [vmem:[%s0 + $0x788] sm:$0xff]
  %v277 = vld [vmem:[%s0 + $0x790] sm:$0xff]
  %v278 = vld [vmem:[%s0 + $0x798] sm:$0xff]
  %v279 = vld [vmem:[%s0 + $0x7a0] sm:$0xff]
  %v280 = vld [vmem:[%s0 + $0x7a8] sm:$0xff]
  %v281 = vld [vmem:[%s0 + $0x7b0] sm:$0xff]
  %v282 = vld [vmem:[%s0 + $0x7b8] sm:$0xff]
  %v283 = vld [vmem:[%s0 + $0x7c0] sm:$0xff]
  %v284 = vld [vmem:[%s0 + $0x7c8] sm:$0xff]
  %v285 = vld [vmem:[%s0 + $0x7d0] sm:$0xff]
  %v286 = vld [vmem:[%s0 + $0x7d8] sm:$0xff]
  %v287 = vld [vmem:[%s0 + $0x7e0] sm:$0xff]
  %v288 = vld [vmem:[%s0 + $0x7e8] sm:$0xff]
  %v289 = vld [vmem:[%s0 + $0x7f0] sm:$0xff]
  %v290 = vld [vmem:[%s0 + $0x7f8] sm:$0xff]
  %v291 = vld [vmem:[%s1] sm:$0xff]
  %vm292 = vcmask 39936
  %v294 = vsel %vm292, %v291, 0
  %v297 = vsel %vm292, %v35, 0
  %v300 = vsel %vm292, %v36, 0
  %v303 = vsel %vm292, %v37, 0
  %v306 = vsel %vm292, %v38, 0
  %v309 = vsel %vm292, %v39, 0
  %v312 = vsel %vm292, %v40, 0
  %v315 = vsel %vm292, %v41, 0
  %v318 = vsel %vm292, %v42, 0
  %v321 = vsel %vm292, %v43, 0
  %v324 = vsel %vm292, %v44, 0
  %v327 = vsel %vm292, %v45, 0
  %v330 = vsel %vm292, %v46, 0
  %v333 = vsel %vm292, %v47, 0
  %v336 = vsel %vm292, %v48, 0
  %v339 = vsel %vm292, %v49, 0
  %v342 = vsel %vm292, %v50, 0
  %v345 = vsel %vm292, %v51, 0
  %v348 = vsel %vm292, %v52, 0
  %v351 = vsel %vm292, %v53, 0
  %v354 = vsel %vm292, %v54, 0
  %v357 = vsel %vm292, %v55, 0
  %v360 = vsel %vm292, %v56, 0
  %v363 = vsel %vm292, %v57, 0
  %v366 = vsel %vm292, %v58, 0
  %v369 = vsel %vm292, %v59, 0
  %v372 = vsel %vm292, %v60, 0
  %v375 = vsel %vm292, %v61, 0
  %v378 = vsel %vm292, %v62, 0
  %v381 = vsel %vm292, %v63, 0
  %v384 = vsel %vm292, %v64, 0
  %v387 = vsel %vm292, %v65, 0
  %v390 = vsel %vm292, %v66, 0
  %v393 = vsel %vm292, %v67, 0
  %v396 = vsel %vm292, %v68, 0
  %v399 = vsel %vm292, %v69, 0
  %v402 = vsel %vm292, %v70, 0
  %v405 = vsel %vm292, %v71, 0
  %v408 = vsel %vm292, %v72, 0
  %v411 = vsel %vm292, %v73, 0
  %v414 = vsel %vm292, %v74, 0
  %v417 = vsel %vm292, %v75, 0
  %v420 = vsel %vm292, %v76, 0
  %v423 = vsel %vm292, %v77, 0
  %v426 = vsel %vm292, %v78, 0
  %v429 = vsel %vm292, %v79, 0
  %v432 = vsel %vm292, %v80, 0
  %v435 = vsel %vm292, %v81, 0
  %v438 = vsel %vm292, %v82, 0
  %v441 = vsel %vm292, %v83, 0
  %v444 = vsel %vm292, %v84, 0
  %v447 = vsel %vm292, %v85, 0
  %v450 = vsel %vm292, %v86, 0
  %v453 = vsel %vm292, %v87, 0
  %v456 = vsel %vm292, %v88, 0
  %v459 = vsel %vm292, %v89, 0
  %v462 = vsel %vm292, %v90, 0
  %v465 = vsel %vm292, %v91, 0
  %v468 = vsel %vm292, %v92, 0
  %v471 = vsel %vm292, %v93, 0
  %v474 = vsel %vm292, %v94, 0
  %v477 = vsel %vm292, %v95, 0
  %v480 = vsel %vm292, %v96, 0
  %v483 = vsel %vm292, %v97, 0
  %v486 = vsel %vm292, %v98, 0
  %v489 = vsel %vm292, %v99, 0
  %v492 = vsel %vm292, %v100, 0
  %v495 = vsel %vm292, %v101, 0
  %v498 = vsel %vm292, %v102, 0
  %v501 = vsel %vm292, %v103, 0
  %v504 = vsel %vm292, %v104, 0
  %v507 = vsel %vm292, %v105, 0
  %v510 = vsel %vm292, %v106, 0
  %v513 = vsel %vm292, %v107, 0
  %v516 = vsel %vm292, %v108, 0
  %v519 = vsel %vm292, %v109, 0
  %v522 = vsel %vm292, %v110, 0
  %v525 = vsel %vm292, %v111, 0
  %v528 = vsel %vm292, %v112, 0
  %v531 = vsel %vm292, %v113, 0
  %v534 = vsel %vm292, %v114, 0
  %v537 = vsel %vm292, %v115, 0
  %v540 = vsel %vm292, %v116, 0
  %v543 = vsel %vm292, %v117, 0
  %v546 = vsel %vm292, %v118, 0
  %v549 = vsel %vm292, %v119, 0
  %v552 = vsel %vm292, %v120, 0
  %v555 = vsel %vm292, %v121, 0
  %v558 = vsel %vm292, %v122, 0
  %v561 = vsel %vm292, %v123, 0
  %v564 = vsel %vm292, %v124, 0
  %v567 = vsel %vm292, %v125, 0
  %v570 = vsel %vm292, %v126, 0
  %v573 = vsel %vm292, %v127, 0
  %v576 = vsel %vm292, %v128, 0
  %v579 = vsel %vm292, %v129, 0
  %v582 = vsel %vm292, %v130, 0
  %v585 = vsel %vm292, %v131, 0
  %v588 = vsel %vm292, %v132, 0
  %v591 = vsel %vm292, %v133, 0
  %v594 = vsel %vm292, %v134, 0
  %v597 = vsel %vm292, %v135, 0
  %v600 = vsel %vm292, %v136, 0
  %v603 = vsel %vm292, %v137, 0
  %v606 = vsel %vm292, %v138, 0
  %v609 = vsel %vm292, %v139, 0
  %v612 = vsel %vm292, %v140, 0
  %v615 = vsel %vm292, %v141, 0
  %v618 = vsel %vm292, %v142, 0
  %v621 = vsel %vm292, %v143, 0
  %v624 = vsel %vm292, %v144, 0
  %v627 = vsel %vm292, %v145, 0
  %v630 = vsel %vm292, %v146, 0
  %v633 = vsel %vm292, %v147, 0
  %v636 = vsel %vm292, %v148, 0
  %v639 = vsel %vm292, %v149, 0
  %v642 = vsel %vm292, %v150, 0
  %v645 = vsel %vm292, %v151, 0
  %v648 = vsel %vm292, %v152, 0
  %v651 = vsel %vm292, %v153, 0
  %v654 = vsel %vm292, %v154, 0
  %v657 = vsel %vm292, %v155, 0
  %v660 = vsel %vm292, %v156, 0
  %v663 = vsel %vm292, %v157, 0
  %v666 = vsel %vm292, %v158, 0
  %v669 = vsel %vm292, %v159, 0
  %v672 = vsel %vm292, %v160, 0
  %v675 = vsel %vm292, %v161, 0
  %v678 = vsel %vm292, %v162, 0
  %v681 = vsel %vm292, %v163, 0
  %v684 = vsel %vm292, %v164, 0
  %v687 = vsel %vm292, %v165, 0
  %v690 = vsel %vm292, %v166, 0
  %v693 = vsel %vm292, %v167, 0
  %v696 = vsel %vm292, %v168, 0
  %v699 = vsel %vm292, %v169, 0
  %v702 = vsel %vm292, %v170, 0
  %v705 = vsel %vm292, %v171, 0
  %v708 = vsel %vm292, %v172, 0
  %v711 = vsel %vm292, %v173, 0
  %v714 = vsel %vm292, %v174, 0
  %v717 = vsel %vm292, %v175, 0
  %v720 = vsel %vm292, %v176, 0
  %v723 = vsel %vm292, %v177, 0
  %v726 = vsel %vm292, %v178, 0
  %v729 = vsel %vm292, %v179, 0
  %v732 = vsel %vm292, %v180, 0
  %v735 = vsel %vm292, %v181, 0
  %v738 = vsel %vm292, %v182, 0
  %v741 = vsel %vm292, %v183, 0
  %v744 = vsel %vm292, %v184, 0
  %v747 = vsel %vm292, %v185, 0
  %v750 = vsel %vm292, %v186, 0
  %v753 = vsel %vm292, %v187, 0
  %v756 = vsel %vm292, %v188, 0
  %v759 = vsel %vm292, %v189, 0
  %v762 = vsel %vm292, %v190, 0
  %v765 = vsel %vm292, %v191, 0
  %v768 = vsel %vm292, %v192, 0
  %v771 = vsel %vm292, %v193, 0
  %v774 = vsel %vm292, %v194, 0
  %v777 = vsel %vm292, %v195, 0
  %v780 = vsel %vm292, %v196, 0
  %v783 = vsel %vm292, %v197, 0
  %v786 = vsel %vm292, %v198, 0
  %v789 = vsel %vm292, %v199, 0
  %v792 = vsel %vm292, %v200, 0
  %v795 = vsel %vm292, %v201, 0
  %v798 = vsel %vm292, %v202, 0
  %v801 = vsel %vm292, %v203, 0
  %v804 = vsel %vm292, %v204, 0
  %v807 = vsel %vm292, %v205, 0
  %v810 = vsel %vm292, %v206, 0
  %v813 = vsel %vm292, %v207, 0
  %v816 = vsel %vm292, %v208, 0
  %v819 = vsel %vm292, %v209, 0
  %v822 = vsel %vm292, %v210, 0
  %v825 = vsel %vm292, %v211, 0
  %v828 = vsel %vm292, %v212, 0
  %v831 = vsel %vm292, %v213, 0
  %v834 = vsel %vm292, %v214, 0
  %v837 = vsel %vm292, %v215, 0
  %v840 = vsel %vm292, %v216, 0
  %v843 = vsel %vm292, %v217, 0
  %v846 = vsel %vm292, %v218, 0
  %v849 = vsel %vm292, %v219, 0
  %v852 = vsel %vm292, %v220, 0
  %v855 = vsel %vm292, %v221, 0
  %v858 = vsel %vm292, %v222, 0
  %v861 = vsel %vm292, %v223, 0
  %v864 = vsel %vm292, %v224, 0
  %v867 = vsel %vm292, %v225, 0
  %v870 = vsel %vm292, %v226, 0
  %v873 = vsel %vm292, %v227, 0
  %v876 = vsel %vm292, %v228, 0
  %v879 = vsel %vm292, %v229, 0
  %v882 = vsel %vm292, %v230, 0
  %v885 = vsel %vm292, %v231, 0
  %v888 = vsel %vm292, %v232, 0
  %v891 = vsel %vm292, %v233, 0
  %v894 = vsel %vm292, %v234, 0
  %v897 = vsel %vm292, %v235, 0
  %v900 = vsel %vm292, %v236, 0
  %v903 = vsel %vm292, %v237, 0
  %v906 = vsel %vm292, %v238, 0
  %v909 = vsel %vm292, %v239, 0
  %v912 = vsel %vm292, %v240, 0
  %v915 = vsel %vm292, %v241, 0
  %v918 = vsel %vm292, %v242, 0
  %v921 = vsel %vm292, %v243, 0
  %v924 = vsel %vm292, %v244, 0
  %v927 = vsel %vm292, %v245, 0
  %v930 = vsel %vm292, %v246, 0
  %v933 = vsel %vm292, %v247, 0
  %v936 = vsel %vm292, %v248, 0
  %v939 = vsel %vm292, %v249, 0
  %v942 = vsel %vm292, %v250, 0
  %v945 = vsel %vm292, %v251, 0
  %v948 = vsel %vm292, %v252, 0
  %v951 = vsel %vm292, %v253, 0
  %v954 = vsel %vm292, %v254, 0
  %v957 = vsel %vm292, %v255, 0
  %v960 = vsel %vm292, %v256, 0
  %v963 = vsel %vm292, %v257, 0
  %v966 = vsel %vm292, %v258, 0
  %v969 = vsel %vm292, %v259, 0
  %v972 = vsel %vm292, %v260, 0
  %v975 = vsel %vm292, %v261, 0
  %v978 = vsel %vm292, %v262, 0
  %v981 = vsel %vm292, %v263, 0
  %v984 = vsel %vm292, %v264, 0
  %v987 = vsel %vm292, %v265, 0
  %v990 = vsel %vm292, %v266, 0
  %v993 = vsel %vm292, %v267, 0
  %v996 = vsel %vm292, %v268, 0
  %v999 = vsel %vm292, %v269, 0
  %v1002 = vsel %vm292, %v270, 0
  %v1005 = vsel %vm292, %v271, 0
  %v1008 = vsel %vm292, %v272, 0
  %v1011 = vsel %vm292, %v273, 0
  %v1014 = vsel %vm292, %v274, 0
  %v1017 = vsel %vm292, %v275, 0
  %v1020 = vsel %vm292, %v276, 0
  %v1023 = vsel %vm292, %v277, 0
  %v1026 = vsel %vm292, %v278, 0
  %v1029 = vsel %vm292, %v279, 0
  %v1032 = vsel %vm292, %v280, 0
  %v1035 = vsel %vm292, %v281, 0
  %v1038 = vsel %vm292, %v282, 0
  %v1041 = vsel %vm292, %v283, 0
  %v1044 = vsel %vm292, %v284, 0
  %v1047 = vsel %vm292, %v285, 0
  %v1050 = vsel %vm292, %v286, 0
  %v1053 = vsel %vm292, %v287, 0
  %v1056 = vsel %vm292, %v288, 0
  %v1059 = vsel %vm292, %v289, 0
  %v1062 = vsel %vm292, %v290, 0
  %1064 = vmatprep.subr.mxu0 0.0
  %1065 = vmatpush1.xpose.msra.mxu0 %v297
  %1066 = vmatprep.subr.mxu0 0.0
  %1067 = vmatpush1.xpose.msra.mxu0 %v300
  %1068 = vmatprep.subr.mxu0 0.0
  %1069 = vmatpush1.xpose.msra.mxu0 %v303
  %1070 = vmatprep.subr.mxu0 0.0
  %1071 = vmatpush1.xpose.msra.mxu0 %v306
  %1072 = vmatprep.subr.mxu0 0.0
  %1073 = vmatpush1.xpose.msra.mxu0 %v309
  %1074 = vmatprep.subr.mxu0 0.0
  %1075 = vmatpush1.xpose.msra.mxu0 %v312
  %1076 = vmatprep.subr.mxu0 0.0
  %1077 = vmatpush1.xpose.msra.mxu0 %v315
  %1078 = vmatprep.subr.mxu0 0.0
  %1079 = vmatpush1.xpose.msra.mxu0 %v318
  %1080 = vmatprep.subr.mxu0 0.0
  %1081 = vmatpush1.xpose.msra.mxu0 %v321
  %1082 = vmatprep.subr.mxu0 0.0
  %1083 = vmatpush1.xpose.msra.mxu0 %v324
  %1084 = vmatprep.subr.mxu0 0.0
  %1085 = vmatpush1.xpose.msra.mxu0 %v327
  %1086 = vmatprep.subr.mxu0 0.0
  %1087 = vmatpush1.xpose.msra.mxu0 %v330
  %1088 = vmatprep.subr.mxu0 0.0
  %1089 = vmatpush1.xpose.msra.mxu0 %v333
  %1090 = vmatprep.subr.mxu0 0.0
  %1091 = vmatpush1.xpose.msra.mxu0 %v336
  %1092 = vmatprep.subr.mxu0 0.0
  %1093 = vmatpush1.xpose.msra.mxu0 %v339
  %1094 = vmatprep.subr.mxu0 0.0
  %1095 = vmatpush1.xpose.msra.mxu0 %v342
  %1096 = vmatprep.subr.mxu0 0.0
  %1097 = vmatpush1.xpose.msra.mxu0 %v345
  %1098 = vmatprep.subr.mxu0 0.0
  %1099 = vmatpush1.xpose.msra.mxu0 %v348
  %1100 = vmatprep.subr.mxu0 0.0
  %1101 = vmatpush1.xpose.msra.mxu0 %v351
  %1102 = vmatprep.subr.mxu0 0.0
  %1103 = vmatpush1.xpose.msra.mxu0 %v354
  %1104 = vmatprep.subr.mxu0 0.0
  %1105 = vmatpush1.xpose.msra.mxu0 %v357
  %1106 = vmatprep.subr.mxu0 0.0
  %1107 = vmatpush1.xpose.msra.mxu0 %v360
  %1108 = vmatprep.subr.mxu0 0.0
  %1109 = vmatpush1.xpose.msra.mxu0 %v363
  %1110 = vmatprep.subr.mxu0 0.0
  %1111 = vmatpush1.xpose.msra.mxu0 %v366
  %1112 = vmatprep.subr.mxu0 0.0
  %1113 = vmatpush1.xpose.msra.mxu0 %v369
  %1114 = vmatprep.subr.mxu0 0.0
  %1115 = vmatpush1.xpose.msra.mxu0 %v372
  %1116 = vmatprep.subr.mxu0 0.0
  %1117 = vmatpush1.xpose.msra.mxu0 %v375
  %1118 = vmatprep.subr.mxu0 0.0
  %1119 = vmatpush1.xpose.msra.mxu0 %v378
  %1120 = vmatprep.subr.mxu0 0.0
  %1121 = vmatpush1.xpose.msra.mxu0 %v381
  %1122 = vmatprep.subr.mxu0 0.0
  %1123 = vmatpush1.xpose.msra.mxu0 %v384
  %1124 = vmatprep.subr.mxu0 0.0
  %1125 = vmatpush1.xpose.msra.mxu0 %v387
  %1126 = vmatprep.subr.mxu0 0.0
  %1127 = vmatpush1.xpose.msra.mxu0 %v390
  %1128 = vmatprep.mubr.f32.mxu0 0.0
  %1129 = vmatmul.mubr.f32.gmra.mrb[0].mxu0 %v294
  %v1130 = vpop.f32.mrb[0].mxu0
  %v1131 = vadd.f32 0.0, %v1130
  %v1132 = vpop.f32.mrb[0].mxu0
  %v1133 = vadd.f32 0.0, %v1132
  %1134 = vdwg.mxu0
  %1135 = vmatprep.subr.mxu0 0.0
  %1136 = vmatpush1.xpose.msra.mxu0 %v393
  %1137 = vmatprep.subr.mxu0 0.0
  %1138 = vmatpush1.xpose.msra.mxu0 %v396
  %1139 = vmatprep.subr.mxu0 0.0
  %1140 = vmatpush1.xpose.msra.mxu0 %v399
  %1141 = vmatprep.subr.mxu0 0.0
  %1142 = vmatpush1.xpose.msra.mxu0 %v402
  %1143 = vmatprep.subr.mxu0 0.0
  %1144 = vmatpush1.xpose.msra.mxu0 %v405
  %1145 = vmatprep.subr.mxu0 0.0
  %1146 = vmatpush1.xpose.msra.mxu0 %v408
  %1147 = vmatprep.subr.mxu0 0.0
  %1148 = vmatpush1.xpose.msra.mxu0 %v411
  %1149 = vmatprep.subr.mxu0 0.0
  %1150 = vmatpush1.xpose.msra.mxu0 %v414
  %1151 = vmatprep.subr.mxu0 0.0
  %1152 = vmatpush1.xpose.msra.mxu0 %v417
  %1153 = vmatprep.subr.mxu0 0.0
  %1154 = vmatpush1.xpose.msra.mxu0 %v420
  %1155 = vmatprep.subr.mxu0 0.0
  %1156 = vmatpush1.xpose.msra.mxu0 %v423
  %1157 = vmatprep.subr.mxu0 0.0
  %1158 = vmatpush1.xpose.msra.mxu0 %v426
  %1159 = vmatprep.subr.mxu0 0.0
  %1160 = vmatpush1.xpose.msra.mxu0 %v429
  %1161 = vmatprep.subr.mxu0 0.0
  %1162 = vmatpush1.xpose.msra.mxu0 %v432
  %1163 = vmatprep.subr.mxu0 0.0
  %1164 = vmatpush1.xpose.msra.mxu0 %v435
  %1165 = vmatprep.subr.mxu0 0.0
  %1166 = vmatpush1.xpose.msra.mxu0 %v438
  %1167 = vmatprep.subr.mxu0 0.0
  %1168 = vmatpush1.xpose.msra.mxu0 %v441
  %1169 = vmatprep.subr.mxu0 0.0
  %1170 = vmatpush1.xpose.msra.mxu0 %v444
  %1171 = vmatprep.subr.mxu0 0.0
  %1172 = vmatpush1.xpose.msra.mxu0 %v447
  %1173 = vmatprep.subr.mxu0 0.0
  %1174 = vmatpush1.xpose.msra.mxu0 %v450
  %1175 = vmatprep.subr.mxu0 0.0
  %1176 = vmatpush1.xpose.msra.mxu0 %v453
  %1177 = vmatprep.subr.mxu0 0.0
  %1178 = vmatpush1.xpose.msra.mxu0 %v456
  %1179 = vmatprep.subr.mxu0 0.0
  %1180 = vmatpush1.xpose.msra.mxu0 %v459
  %1181 = vmatprep.subr.mxu0 0.0
  %1182 = vmatpush1.xpose.msra.mxu0 %v462
  %1183 = vmatprep.subr.mxu0 0.0
  %1184 = vmatpush1.xpose.msra.mxu0 %v465
  %1185 = vmatprep.subr.mxu0 0.0
  %1186 = vmatpush1.xpose.msra.mxu0 %v468
  %1187 = vmatprep.subr.mxu0 0.0
  %1188 = vmatpush1.xpose.msra.mxu0 %v471
  %1189 = vmatprep.subr.mxu0 0.0
  %1190 = vmatpush1.xpose.msra.mxu0 %v474
  %1191 = vmatprep.subr.mxu0 0.0
  %1192 = vmatpush1.xpose.msra.mxu0 %v477
  %1193 = vmatprep.subr.mxu0 0.0
  %1194 = vmatpush1.xpose.msra.mxu0 %v480
  %1195 = vmatprep.subr.mxu0 0.0
  %1196 = vmatpush1.xpose.msra.mxu0 %v483
  %1197 = vmatprep.subr.mxu0 0.0
  %1198 = vmatpush1.xpose.msra.mxu0 %v486
  %1199 = vmatprep.mubr.f32.mxu0 0.0
  %1200 = vmatmul.mubr.f32.gmra.mrb[0].mxu0 %v294
  %v1201 = vpop.f32.mrb[0].mxu0
  %v1202 = vadd.f32 0.0, %v1201
  %v1203 = vpop.f32.mrb[0].mxu0
  %v1204 = vadd.f32 0.0, %v1203
  %1205 = vdwg.mxu0
  %1206 = vmatprep.subr.mxu0 0.0
  %1207 = vmatpush1.xpose.msra.mxu0 %v489
  %1208 = vmatprep.subr.mxu0 0.0
  %1209 = vmatpush1.xpose.msra.mxu0 %v492
  %1210 = vmatprep.subr.mxu0 0.0
  %1211 = vmatpush1.xpose.msra.mxu0 %v495
  %1212 = vmatprep.subr.mxu0 0.0
  %1213 = vmatpush1.xpose.msra.mxu0 %v498
  %1214 = vmatprep.subr.mxu0 0.0
  %1215 = vmatpush1.xpose.msra.mxu0 %v501
  %1216 = vmatprep.subr.mxu0 0.0
  %1217 = vmatpush1.xpose.msra.mxu0 %v504
  %1218 = vmatprep.subr.mxu0 0.0
  %1219 = vmatpush1.xpose.msra.mxu0 %v507
  %1220 = vmatprep.subr.mxu0 0.0
  %1221 = vmatpush1.xpose.msra.mxu0 %v510
  %1222 = vmatprep.subr.mxu0 0.0
  %1223 = vmatpush1.xpose.msra.mxu0 %v513
  %1224 = vmatprep.subr.mxu0 0.0
  %1225 = vmatpush1.xpose.msra.mxu0 %v516
  %1226 = vmatprep.subr.mxu0 0.0
  %1227 = vmatpush1.xpose.msra.mxu0 %v519
  %1228 = vmatprep.subr.mxu0 0.0
  %1229 = vmatpush1.xpose.msra.mxu0 %v522
  %1230 = vmatprep.subr.mxu0 0.0
  %1231 = vmatpush1.xpose.msra.mxu0 %v525
  %1232 = vmatprep.subr.mxu0 0.0
  %1233 = vmatpush1.xpose.msra.mxu0 %v528
  %1234 = vmatprep.subr.mxu0 0.0
  %1235 = vmatpush1.xpose.msra.mxu0 %v531
  %1236 = vmatprep.subr.mxu0 0.0
  %1237 = vmatpush1.xpose.msra.mxu0 %v534
  %1238 = vmatprep.subr.mxu0 0.0
  %1239 = vmatpush1.xpose.msra.mxu0 %v537
  %1240 = vmatprep.subr.mxu0 0.0
  %1241 = vmatpush1.xpose.msra.mxu0 %v540
  %1242 = vmatprep.subr.mxu0 0.0
  %1243 = vmatpush1.xpose.msra.mxu0 %v543
  %1244 = vmatprep.subr.mxu0 0.0
  %1245 = vmatpush1.xpose.msra.mxu0 %v546
  %1246 = vmatprep.subr.mxu0 0.0
  %1247 = vmatpush1.xpose.msra.mxu0 %v549
  %1248 = vmatprep.subr.mxu0 0.0
  %1249 = vmatpush1.xpose.msra.mxu0 %v552
  %1250 = vmatprep.subr.mxu0 0.0
  %1251 = vmatpush1.xpose.msra.mxu0 %v555
  %1252 = vmatprep.subr.mxu0 0.0
  %1253 = vmatpush1.xpose.msra.mxu0 %v558
  %1254 = vmatprep.subr.mxu0 0.0
  %1255 = vmatpush1.xpose.msra.mxu0 %v561
  %1256 = vmatprep.subr.mxu0 0.0
  %1257 = vmatpush1.xpose.msra.mxu0 %v564
  %1258 = vmatprep.subr.mxu0 0.0
  %1259 = vmatpush1.xpose.msra.mxu0 %v567
  %1260 = vmatprep.subr.mxu0 0.0
  %1261 = vmatpush1.xpose.msra.mxu0 %v570
  %1262 = vmatprep.subr.mxu0 0.0
  %1263 = vmatpush1.xpose.msra.mxu0 %v573
  %1264 = vmatprep.subr.mxu0 0.0
  %1265 = vmatpush1.xpose.msra.mxu0 %v576
  %1266 = vmatprep.subr.mxu0 0.0
  %1267 = vmatpush1.xpose.msra.mxu0 %v579
  %1268 = vmatprep.subr.mxu0 0.0
  %1269 = vmatpush1.xpose.msra.mxu0 %v582
  %1270 = vmatprep.mubr.f32.mxu0 0.0
  %1271 = vmatmul.mubr.f32.gmra.mrb[0].mxu0 %v294
  %v1272 = vpop.f32.mrb[0].mxu0
  %v1273 = vadd.f32 0.0, %v1272
  %v1274 = vpop.f32.mrb[0].mxu0
  %v1275 = vadd.f32 0.0, %v1274
  %1276 = vdwg.mxu0
  %1277 = vmatprep.subr.mxu0 0.0
  %1278 = vmatpush1.xpose.msra.mxu0 %v585
  %1279 = vmatprep.subr.mxu0 0.0
  %1280 = vmatpush1.xpose.msra.mxu0 %v588
  %1281 = vmatprep.subr.mxu0 0.0
  %1282 = vmatpush1.xpose.msra.mxu0 %v591
  %1283 = vmatprep.subr.mxu0 0.0
  %1284 = vmatpush1.xpose.msra.mxu0 %v594
  %1285 = vmatprep.subr.mxu0 0.0
  %1286 = vmatpush1.xpose.msra.mxu0 %v597
  %1287 = vmatprep.subr.mxu0 0.0
  %1288 = vmatpush1.xpose.msra.mxu0 %v600
  %1289 = vmatprep.subr.mxu0 0.0
  %1290 = vmatpush1.xpose.msra.mxu0 %v603
  %1291 = vmatprep.subr.mxu0 0.0
  %1292 = vmatpush1.xpose.msra.mxu0 %v606
  %1293 = vmatprep.subr.mxu0 0.0
  %1294 = vmatpush1.xpose.msra.mxu0 %v609
  %1295 = vmatprep.subr.mxu0 0.0
  %1296 = vmatpush1.xpose.msra.mxu0 %v612
  %1297 = vmatprep.subr.mxu0 0.0
  %1298 = vmatpush1.xpose.msra.mxu0 %v615
  %1299 = vmatprep.subr.mxu0 0.0
  %1300 = vmatpush1.xpose.msra.mxu0 %v618
  %1301 = vmatprep.subr.mxu0 0.0
  %1302 = vmatpush1.xpose.msra.mxu0 %v621
  %1303 = vmatprep.subr.mxu0 0.0
  %1304 = vmatpush1.xpose.msra.mxu0 %v624
  %1305 = vmatprep.subr.mxu0 0.0
  %1306 = vmatpush1.xpose.msra.mxu0 %v627
  %1307 = vmatprep.subr.mxu0 0.0
  %1308 = vmatpush1.xpose.msra.mxu0 %v630
  %1309 = vmatprep.subr.mxu0 0.0
  %1310 = vmatpush1.xpose.msra.mxu0 %v633
  %1311 = vmatprep.subr.mxu0 0.0
  %1312 = vmatpush1.xpose.msra.mxu0 %v636
  %1313 = vmatprep.subr.mxu0 0.0
  %1314 = vmatpush1.xpose.msra.mxu0 %v639
  %1315 = vmatprep.subr.mxu0 0.0
  %1316 = vmatpush1.xpose.msra.mxu0 %v642
  %1317 = vmatprep.subr.mxu0 0.0
  %1318 = vmatpush1.xpose.msra.mxu0 %v645
  %1319 = vmatprep.subr.mxu0 0.0
  %1320 = vmatpush1.xpose.msra.mxu0 %v648
  %1321 = vmatprep.subr.mxu0 0.0
  %1322 = vmatpush1.xpose.msra.mxu0 %v651
  %1323 = vmatprep.subr.mxu0 0.0
  %1324 = vmatpush1.xpose.msra.mxu0 %v654
  %1325 = vmatprep.subr.mxu0 0.0
  %1326 = vmatpush1.xpose.msra.mxu0 %v657
  %1327 = vmatprep.subr.mxu0 0.0
  %1328 = vmatpush1.xpose.msra.mxu0 %v660
  %1329 = vmatprep.subr.mxu0 0.0
  %1330 = vmatpush1.xpose.msra.mxu0 %v663
  %1331 = vmatprep.subr.mxu0 0.0
  %1332 = vmatpush1.xpose.msra.mxu0 %v666
  %1333 = vmatprep.subr.mxu0 0.0
  %1334 = vmatpush1.xpose.msra.mxu0 %v669
  %1335 = vmatprep.subr.mxu0 0.0
  %1336 = vmatpush1.xpose.msra.mxu0 %v672
  %1337 = vmatprep.subr.mxu0 0.0
  %1338 = vmatpush1.xpose.msra.mxu0 %v675
  %1339 = vmatprep.subr.mxu0 0.0
  %1340 = vmatpush1.xpose.msra.mxu0 %v678
  %1341 = vmatprep.mubr.f32.mxu0 0.0
  %1342 = vmatmul.mubr.f32.gmra.mrb[0].mxu0 %v294
  %v1343 = vpop.f32.mrb[0].mxu0
  %v1344 = vadd.f32 0.0, %v1343
  %v1345 = vpop.f32.mrb[0].mxu0
  %v1346 = vadd.f32 0.0, %v1345
  %1347 = vdwg.mxu0
  %1348 = vmatprep.subr.mxu0 0.0
  %1349 = vmatpush1.xpose.msra.mxu0 %v681
  %1350 = vmatprep.subr.mxu0 0.0
  %1351 = vmatpush1.xpose.msra.mxu0 %v684
  %1352 = vmatprep.subr.mxu0 0.0
  %1353 = vmatpush1.xpose.msra.mxu0 %v687
  %1354 = vmatprep.subr.mxu0 0.0
  %1355 = vmatpush1.xpose.msra.mxu0 %v690
  %1356 = vmatprep.subr.mxu0 0.0
  %1357 = vmatpush1.xpose.msra.mxu0 %v693
  %1358 = vmatprep.subr.mxu0 0.0
  %1359 = vmatpush1.xpose.msra.mxu0 %v696
  %1360 = vmatprep.subr.mxu0 0.0
  %1361 = vmatpush1.xpose.msra.mxu0 %v699
  %1362 = vmatprep.subr.mxu0 0.0
  %1363 = vmatpush1.xpose.msra.mxu0 %v702
  %1364 = vmatprep.subr.mxu0 0.0
  %1365 = vmatpush1.xpose.msra.mxu0 %v705
  %1366 = vmatprep.subr.mxu0 0.0
  %1367 = vmatpush1.xpose.msra.mxu0 %v708
  %1368 = vmatprep.subr.mxu0 0.0
  %1369 = vmatpush1.xpose.msra.mxu0 %v711
  %1370 = vmatprep.subr.mxu0 0.0
  %1371 = vmatpush1.xpose.msra.mxu0 %v714
  %1372 = vmatprep.subr.mxu0 0.0
  %1373 = vmatpush1.xpose.msra.mxu0 %v717
  %1374 = vmatprep.subr.mxu0 0.0
  %1375 = vmatpush1.xpose.msra.mxu0 %v720
  %1376 = vmatprep.subr.mxu0 0.0
  %1377 = vmatpush1.xpose.msra.mxu0 %v723
  %1378 = vmatprep.subr.mxu0 0.0
  %1379 = vmatpush1.xpose.msra.mxu0 %v726
  %1380 = vmatprep.subr.mxu0 0.0
  %1381 = vmatpush1.xpose.msra.mxu0 %v729
  %1382 = vmatprep.subr.mxu0 0.0
  %1383 = vmatpush1.xpose.msra.mxu0 %v732
  %1384 = vmatprep.subr.mxu0 0.0
  %1385 = vmatpush1.xpose.msra.mxu0 %v735
  %1386 = vmatprep.subr.mxu0 0.0
  %1387 = vmatpush1.xpose.msra.mxu0 %v738
  %1388 = vmatprep.subr.mxu0 0.0
  %1389 = vmatpush1.xpose.msra.mxu0 %v741
  %1390 = vmatprep.subr.mxu0 0.0
  %1391 = vmatpush1.xpose.msra.mxu0 %v744
  %1392 = vmatprep.subr.mxu0 0.0
  %1393 = vmatpush1.xpose.msra.mxu0 %v747
  %1394 = vmatprep.subr.mxu0 0.0
  %1395 = vmatpush1.xpose.msra.mxu0 %v750
  %1396 = vmatprep.subr.mxu0 0.0
  %1397 = vmatpush1.xpose.msra.mxu0 %v753
  %1398 = vmatprep.subr.mxu0 0.0
  %1399 = vmatpush1.xpose.msra.mxu0 %v756
  %1400 = vmatprep.subr.mxu0 0.0
  %1401 = vmatpush1.xpose.msra.mxu0 %v759
  %1402 = vmatprep.subr.mxu0 0.0
  %1403 = vmatpush1.xpose.msra.mxu0 %v762
  %1404 = vmatprep.subr.mxu0 0.0
  %1405 = vmatpush1.xpose.msra.mxu0 %v765
  %1406 = vmatprep.subr.mxu0 0.0
  %1407 = vmatpush1.xpose.msra.mxu0 %v768
  %1408 = vmatprep.subr.mxu0 0.0
  %1409 = vmatpush1.xpose.msra.mxu0 %v771
  %1410 = vmatprep.subr.mxu0 0.0
  %1411 = vmatpush1.xpose.msra.mxu0 %v774
  %1412 = vmatprep.mubr.f32.mxu0 0.0
  %1413 = vmatmul.mubr.f32.gmra.mrb[0].mxu0 %v294
  %v1414 = vpop.f32.mrb[0].mxu0
  %v1415 = vadd.f32 0.0, %v1414
  %v1416 = vpop.f32.mrb[0].mxu0
  %v1417 = vadd.f32 0.0, %v1416
  %1418 = vdwg.mxu0
  %1419 = vmatprep.subr.mxu0 0.0
  %1420 = vmatpush1.xpose.msra.mxu0 %v777
  %1421 = vmatprep.subr.mxu0 0.0
  %1422 = vmatpush1.xpose.msra.mxu0 %v780
  %1423 = vmatprep.subr.mxu0 0.0
  %1424 = vmatpush1.xpose.msra.mxu0 %v783
  %1425 = vmatprep.subr.mxu0 0.0
  %1426 = vmatpush1.xpose.msra.mxu0 %v786
  %1427 = vmatprep.subr.mxu0 0.0
  %1428 = vmatpush1.xpose.msra.mxu0 %v789
  %1429 = vmatprep.subr.mxu0 0.0
  %1430 = vmatpush1.xpose.msra.mxu0 %v792
  %1431 = vmatprep.subr.mxu0 0.0
  %1432 = vmatpush1.xpose.msra.mxu0 %v795
  %1433 = vmatprep.subr.mxu0 0.0
  %1434 = vmatpush1.xpose.msra.mxu0 %v798
  %1435 = vmatprep.subr.mxu0 0.0
  %1436 = vmatpush1.xpose.msra.mxu0 %v801
  %1437 = vmatprep.subr.mxu0 0.0
  %1438 = vmatpush1.xpose.msra.mxu0 %v804
  %1439 = vmatprep.subr.mxu0 0.0
  %1440 = vmatpush1.xpose.msra.mxu0 %v807
  %1441 = vmatprep.subr.mxu0 0.0
  %1442 = vmatpush1.xpose.msra.mxu0 %v810
  %1443 = vmatprep.subr.mxu0 0.0
  %1444 = vmatpush1.xpose.msra.mxu0 %v813
  %1445 = vmatprep.subr.mxu0 0.0
  %1446 = vmatpush1.xpose.msra.mxu0 %v816
  %1447 = vmatprep.subr.mxu0 0.0
  %1448 = vmatpush1.xpose.msra.mxu0 %v819
  %1449 = vmatprep.subr.mxu0 0.0
  %1450 = vmatpush1.xpose.msra.mxu0 %v822
  %1451 = vmatprep.subr.mxu0 0.0
  %1452 = vmatpush1.xpose.msra.mxu0 %v825
  %1453 = vmatprep.subr.mxu0 0.0
  %1454 = vmatpush1.xpose.msra.mxu0 %v828
  %1455 = vmatprep.subr.mxu0 0.0
  %1456 = vmatpush1.xpose.msra.mxu0 %v831
  %1457 = vmatprep.subr.mxu0 0.0
  %1458 = vmatpush1.xpose.msra.mxu0 %v834
  %1459 = vmatprep.subr.mxu0 0.0
  %1460 = vmatpush1.xpose.msra.mxu0 %v837
  %1461 = vmatprep.subr.mxu0 0.0
  %1462 = vmatpush1.xpose.msra.mxu0 %v840
  %1463 = vmatprep.subr.mxu0 0.0
  %1464 = vmatpush1.xpose.msra.mxu0 %v843
  %1465 = vmatprep.subr.mxu0 0.0
  %1466 = vmatpush1.xpose.msra.mxu0 %v846
  %1467 = vmatprep.subr.mxu0 0.0
  %1468 = vmatpush1.xpose.msra.mxu0 %v849
  %1469 = vmatprep.subr.mxu0 0.0
  %1470 = vmatpush1.xpose.msra.mxu0 %v852
  %1471 = vmatprep.subr.mxu0 0.0
  %1472 = vmatpush1.xpose.msra.mxu0 %v855
  %1473 = vmatprep.subr.mxu0 0.0
  %1474 = vmatpush1.xpose.msra.mxu0 %v858
  %1475 = vmatprep.subr.mxu0 0.0
  %1476 = vmatpush1.xpose.msra.mxu0 %v861
  %1477 = vmatprep.subr.mxu0 0.0
  %1478 = vmatpush1.xpose.msra.mxu0 %v864
  %1479 = vmatprep.subr.mxu0 0.0
  %1480 = vmatpush1.xpose.msra.mxu0 %v867
  %1481 = vmatprep.subr.mxu0 0.0
  %1482 = vmatpush1.xpose.msra.mxu0 %v870
  %1483 = vmatprep.mubr.f32.mxu0 0.0
  %1484 = vmatmul.mubr.f32.gmra.mrb[0].mxu0 %v294
  %v1485 = vpop.f32.mrb[0].mxu0
  %v1486 = vadd.f32 0.0, %v1485
  %v1487 = vpop.f32.mrb[0].mxu0
  %v1488 = vadd.f32 0.0, %v1487
  %1489 = vdwg.mxu0
  %1490 = vmatprep.subr.mxu0 0.0
  %1491 = vmatpush1.xpose.msra.mxu0 %v873
  %1492 = vmatprep.subr.mxu0 0.0
  %1493 = vmatpush1.xpose.msra.mxu0 %v876
  %1494 = vmatprep.subr.mxu0 0.0
  %1495 = vmatpush1.xpose.msra.mxu0 %v879
  %1496 = vmatprep.subr.mxu0 0.0
  %1497 = vmatpush1.xpose.msra.mxu0 %v882
  %1498 = vmatprep.subr.mxu0 0.0
  %1499 = vmatpush1.xpose.msra.mxu0 %v885
  %1500 = vmatprep.subr.mxu0 0.0
  %1501 = vmatpush1.xpose.msra.mxu0 %v888
  %1502 = vmatprep.subr.mxu0 0.0
  %1503 = vmatpush1.xpose.msra.mxu0 %v891
  %1504 = vmatprep.subr.mxu0 0.0
  %1505 = vmatpush1.xpose.msra.mxu0 %v894
  %1506 = vmatprep.subr.mxu0 0.0
  %1507 = vmatpush1.xpose.msra.mxu0 %v897
  %1508 = vmatprep.subr.mxu0 0.0
  %1509 = vmatpush1.xpose.msra.mxu0 %v900
  %1510 = vmatprep.subr.mxu0 0.0
  %1511 = vmatpush1.xpose.msra.mxu0 %v903
  %1512 = vmatprep.subr.mxu0 0.0
  %1513 = vmatpush1.xpose.msra.mxu0 %v906
  %1514 = vmatprep.subr.mxu0 0.0
  %1515 = vmatpush1.xpose.msra.mxu0 %v909
  %1516 = vmatprep.subr.mxu0 0.0
  %1517 = vmatpush1.xpose.msra.mxu0 %v912
  %1518 = vmatprep.subr.mxu0 0.0
  %1519 = vmatpush1.xpose.msra.mxu0 %v915
  %1520 = vmatprep.subr.mxu0 0.0
  %1521 = vmatpush1.xpose.msra.mxu0 %v918
  %1522 = vmatprep.subr.mxu0 0.0
  %1523 = vmatpush1.xpose.msra.mxu0 %v921
  %1524 = vmatprep.subr.mxu0 0.0
  %1525 = vmatpush1.xpose.msra.mxu0 %v924
  %1526 = vmatprep.subr.mxu0 0.0
  %1527 = vmatpush1.xpose.msra.mxu0 %v927
  %1528 = vmatprep.subr.mxu0 0.0
  %1529 = vmatpush1.xpose.msra.mxu0 %v930
  %1530 = vmatprep.subr.mxu0 0.0
  %1531 = vmatpush1.xpose.msra.mxu0 %v933
  %1532 = vmatprep.subr.mxu0 0.0
  %1533 = vmatpush1.xpose.msra.mxu0 %v936
  %1534 = vmatprep.subr.mxu0 0.0
  %1535 = vmatpush1.xpose.msra.mxu0 %v939
  %1536 = vmatprep.subr.mxu0 0.0
  %1537 = vmatpush1.xpose.msra.mxu0 %v942
  %1538 = vmatprep.subr.mxu0 0.0
  %1539 = vmatpush1.xpose.msra.mxu0 %v945
  %1540 = vmatprep.subr.mxu0 0.0
  %1541 = vmatpush1.xpose.msra.mxu0 %v948
  %1542 = vmatprep.subr.mxu0 0.0
  %1543 = vmatpush1.xpose.msra.mxu0 %v951
  %1544 = vmatprep.subr.mxu0 0.0
  %1545 = vmatpush1.xpose.msra.mxu0 %v954
  %1546 = vmatprep.subr.mxu0 0.0
  %1547 = vmatpush1.xpose.msra.mxu0 %v957
  %1548 = vmatprep.subr.mxu0 0.0
  %1549 = vmatpush1.xpose.msra.mxu0 %v960
  %1550 = vmatprep.subr.mxu0 0.0
  %1551 = vmatpush1.xpose.msra.mxu0 %v963
  %1552 = vmatprep.subr.mxu0 0.0
  %1553 = vmatpush1.xpose.msra.mxu0 %v966
  %1554 = vmatprep.mubr.f32.mxu0 0.0
  %1555 = vmatmul.mubr.f32.gmra.mrb[0].mxu0 %v294
  %v1556 = vpop.f32.mrb[0].mxu0
  %v1557 = vadd.f32 0.0, %v1556
  %v1558 = vpop.f32.mrb[0].mxu0
  %v1559 = vadd.f32 0.0, %v1558
  %1560 = vdwg.mxu0
  %1561 = vmatprep.subr.mxu0 0.0
  %1562 = vmatpush1.xpose.msra.mxu0 %v969
  %1563 = vmatprep.subr.mxu0 0.0
  %1564 = vmatpush1.xpose.msra.mxu0 %v972
  %1565 = vmatprep.subr.mxu0 0.0
  %1566 = vmatpush1.xpose.msra.mxu0 %v975
  %1567 = vmatprep.subr.mxu0 0.0
  %1568 = vmatpush1.xpose.msra.mxu0 %v978
  %1569 = vmatprep.subr.mxu0 0.0
  %1570 = vmatpush1.xpose.msra.mxu0 %v981
  %1571 = vmatprep.subr.mxu0 0.0
  %1572 = vmatpush1.xpose.msra.mxu0 %v984
  %1573 = vmatprep.subr.mxu0 0.0
  %1574 = vmatpush1.xpose.msra.mxu0 %v987
  %1575 = vmatprep.subr.mxu0 0.0
  %1576 = vmatpush1.xpose.msra.mxu0 %v990
  %1577 = vmatprep.subr.mxu0 0.0
  %1578 = vmatpush1.xpose.msra.mxu0 %v993
  %1579 = vmatprep.subr.mxu0 0.0
  %1580 = vmatpush1.xpose.msra.mxu0 %v996
  %1581 = vmatprep.subr.mxu0 0.0
  %1582 = vmatpush1.xpose.msra.mxu0 %v999
  %1583 = vmatprep.subr.mxu0 0.0
  %1584 = vmatpush1.xpose.msra.mxu0 %v1002
  %1585 = vmatprep.subr.mxu0 0.0
  %1586 = vmatpush1.xpose.msra.mxu0 %v1005
  %1587 = vmatprep.subr.mxu0 0.0
  %1588 = vmatpush1.xpose.msra.mxu0 %v1008
  %1589 = vmatprep.subr.mxu0 0.0
  %1590 = vmatpush1.xpose.msra.mxu0 %v1011
  %1591 = vmatprep.subr.mxu0 0.0
  %1592 = vmatpush1.xpose.msra.mxu0 %v1014
  %1593 = vmatprep.subr.mxu0 0.0
  %1594 = vmatpush1.xpose.msra.mxu0 %v1017
  %1595 = vmatprep.subr.mxu0 0.0
  %1596 = vmatpush1.xpose.msra.mxu0 %v1020
  %1597 = vmatprep.subr.mxu0 0.0
  %1598 = vmatpush1.xpose.msra.mxu0 %v1023
  %1599 = vmatprep.subr.mxu0 0.0
  %1600 = vmatpush1.xpose.msra.mxu0 %v1026
  %1601 = vmatprep.subr.mxu0 0.0
  %1602 = vmatpush1.xpose.msra.mxu0 %v1029
  %1603 = vmatprep.subr.mxu0 0.0
  %1604 = vmatpush1.xpose.msra.mxu0 %v1032
  %1605 = vmatprep.subr.mxu0 0.0
  %1606 = vmatpush1.xpose.msra.mxu0 %v1035
  %1607 = vmatprep.subr.mxu0 0.0
  %1608 = vmatpush1.xpose.msra.mxu0 %v1038
  %1609 = vmatprep.subr.mxu0 0.0
  %1610 = vmatpush1.xpose.msra.mxu0 %v1041
  %1611 = vmatprep.subr.mxu0 0.0
  %1612 = vmatpush1.xpose.msra.mxu0 %v1044
  %1613 = vmatprep.subr.mxu0 0.0
  %1614 = vmatpush1.xpose.msra.mxu0 %v1047
  %1615 = vmatprep.subr.mxu0 0.0
  %1616 = vmatpush1.xpose.msra.mxu0 %v1050
  %1617 = vmatprep.subr.mxu0 0.0
  %1618 = vmatpush1.xpose.msra.mxu0 %v1053
  %1619 = vmatprep.subr.mxu0 0.0
  %1620 = vmatpush1.xpose.msra.mxu0 %v1056
  %1621 = vmatprep.subr.mxu0 0.0
  %1622 = vmatpush1.xpose.msra.mxu0 %v1059
  %1623 = vmatprep.subr.mxu0 0.0
  %1624 = vmatpush1.xpose.msra.mxu0 %v1062
  %1625 = vmatprep.mubr.f32.mxu0 0.0
  %1626 = vmatmul.mubr.f32.gmra.mrb[0].mxu0 %v294
  %v1627 = vpop.f32.mrb[0].mxu0
  %v1628 = vadd.f32 0.0, %v1627
  %v1629 = vpop.f32.mrb[0].mxu0
  %v1630 = vadd.f32 0.0, %v1629
  %1631 = vdwg.mxu0
  %v1632 = vld [vmem:[%s4] sm:$0xff]
  %1634 = vset.pattern.permute.xlu0 0
  %1635 = vperm.xlu0 %1634, %v1632
  %v1636 = vpop.permute.xlu0 %1635
  %v1638 = vmul.f32 %v1636, %v1131
  %v1639 = vmul.f32 %v1636, %v1133
  %v1640 = vmul.f32 %v1636, %v1202
  %v1641 = vmul.f32 %v1636, %v1204
  %v1642 = vmul.f32 %v1636, %v1273
  %v1643 = vmul.f32 %v1636, %v1275
  %v1644 = vmul.f32 %v1636, %v1344
  %v1645 = vmul.f32 %v1636, %v1346
  %v1646 = vmul.f32 %v1636, %v1415
  %v1647 = vmul.f32 %v1636, %v1417
  %v1648 = vmul.f32 %v1636, %v1486
  %v1649 = vmul.f32 %v1636, %v1488
  %v1650 = vmul.f32 %v1636, %v1557
  %v1651 = vmul.f32 %v1636, %v1559
  %v1652 = vmul.f32 %v1636, %v1628
  %v1653 = vmul.f32 %v1636, %v1630
  %v1654 = vld [vmem:[%s5] sm:$0xff]
  %1656 = vset.pattern.permute.xlu0 0
  %1657 = vperm.xlu0 %1656, %v1654
  %v1658 = vpop.permute.xlu0 %1657
  %v1660 = vadd.f32 %v1638, %v1658
  %v1661 = vadd.f32 %v1639, %v1658
  %v1662 = vadd.f32 %v1640, %v1658
  %v1663 = vadd.f32 %v1641, %v1658
  %v1664 = vadd.f32 %v1642, %v1658
  %v1665 = vadd.f32 %v1643, %v1658
  %v1666 = vadd.f32 %v1644, %v1658
  %v1667 = vadd.f32 %v1645, %v1658
  %v1668 = vadd.f32 %v1646, %v1658
  %v1669 = vadd.f32 %v1647, %v1658
  %v1670 = vadd.f32 %v1648, %v1658
  %v1671 = vadd.f32 %v1649, %v1658
  %v1672 = vadd.f32 %v1650, %v1658
  %v1673 = vadd.f32 %v1651, %v1658
  %v1674 = vadd.f32 %v1652, %v1658
  %v1675 = vadd.f32 %v1653, %v1658
  %v1676 = vmax.f32 %v1660, 0.0
  %v1677 = vmax.f32 %v1661, 0.0
  %v1678 = vmax.f32 %v1662, 0.0
  %v1679 = vmax.f32 %v1663, 0.0
  %v1680 = vmax.f32 %v1664, 0.0
  %v1681 = vmax.f32 %v1665, 0.0
  %v1682 = vmax.f32 %v1666, 0.0
  %v1683 = vmax.f32 %v1667, 0.0
  %v1684 = vmax.f32 %v1668, 0.0
  %v1685 = vmax.f32 %v1669, 0.0
  %v1686 = vmax.f32 %v1670, 0.0
  %v1687 = vmax.f32 %v1671, 0.0
  %v1688 = vmax.f32 %v1672, 0.0
  %v1689 = vmax.f32 %v1673, 0.0
  %v1690 = vmax.f32 %v1674, 0.0
  %v1691 = vmax.f32 %v1675, 0.0
  %v1692 = vld [vmem:[%s2] sm:$0xff]
  %v1693 = vld [vmem:[%s2 + $0x8] sm:$0xff]
  %vm1694 = vcmask 64512
  %v1696 = vsel %vm1694, %v1692, 0
  %v1699 = vsel %vm1694, %v1693, 0
  %1701 = vmatprep.subr.mxu0 %v1677
  %1702 = vmatpush1.msra.mxu0 %v1676
  %1703 = vmatprep.subr.mxu0 0.0
  %1704 = vmatpush1.msra.mxu0 0.0
  %1705 = vmatprep.subr.mxu0 0.0
  %1706 = vmatpush1.msra.mxu0 0.0
  %1707 = vmatprep.subr.mxu0 0.0
  %1708 = vmatpush1.msra.mxu0 0.0
  %1709 = vmatprep.subr.mxu0 0.0
  %1710 = vmatpush1.msra.mxu0 0.0
  %1711 = vmatprep.subr.mxu0 0.0
  %1712 = vmatpush1.msra.mxu0 0.0
  %1713 = vmatprep.subr.mxu0 0.0
  %1714 = vmatpush1.msra.mxu0 0.0
  %1715 = vmatprep.subr.mxu0 0.0
  %1716 = vmatpush1.msra.mxu0 0.0
  %1717 = vmatprep.subr.mxu0 0.0
  %1718 = vmatpush1.msra.mxu0 0.0
  %1719 = vmatprep.subr.mxu0 0.0
  %1720 = vmatpush1.msra.mxu0 0.0
  %1721 = vmatprep.subr.mxu0 0.0
  %1722 = vmatpush1.msra.mxu0 0.0
  %1723 = vmatprep.subr.mxu0 0.0
  %1724 = vmatpush1.msra.mxu0 0.0
  %1725 = vmatprep.subr.mxu0 0.0
  %1726 = vmatpush1.msra.mxu0 0.0
  %1727 = vmatprep.subr.mxu0 0.0
  %1728 = vmatpush1.msra.mxu0 0.0
  %1729 = vmatprep.subr.mxu0 0.0
  %1730 = vmatpush1.msra.mxu0 0.0
  %1731 = vmatprep.subr.mxu0 0.0
  %1732 = vmatpush1.msra.mxu0 0.0
  %1733 = vmatprep.subr.mxu0 0.0
  %1734 = vmatpush1.msra.mxu0 0.0
  %1735 = vmatprep.subr.mxu0 0.0
  %1736 = vmatpush1.msra.mxu0 0.0
  %1737 = vmatprep.subr.mxu0 0.0
  %1738 = vmatpush1.msra.mxu0 0.0
  %1739 = vmatprep.subr.mxu0 0.0
  %1740 = vmatpush1.msra.mxu0 0.0
  %1741 = vmatprep.subr.mxu0 0.0
  %1742 = vmatpush1.msra.mxu0 0.0
  %1743 = vmatprep.subr.mxu0 0.0
  %1744 = vmatpush1.msra.mxu0 0.0
  %1745 = vmatprep.subr.mxu0 0.0
  %1746 = vmatpush1.msra.mxu0 0.0
  %1747 = vmatprep.subr.mxu0 0.0
  %1748 = vmatpush1.msra.mxu0 0.0
  %1749 = vmatprep.subr.mxu0 0.0
  %1750 = vmatpush1.msra.mxu0 0.0
  %1751 = vmatprep.subr.mxu0 0.0
  %1752 = vmatpush1.msra.mxu0 0.0
  %1753 = vmatprep.subr.mxu0 0.0
  %1754 = vmatpush1.msra.mxu0 0.0
  %1755 = vmatprep.subr.mxu0 0.0
  %1756 = vmatpush1.msra.mxu0 0.0
  %1757 = vmatprep.subr.mxu0 0.0
  %1758 = vmatpush1.msra.mxu0 0.0
  %1759 = vmatprep.subr.mxu0 0.0
  %1760 = vmatpush1.msra.mxu0 0.0
  %1761 = vmatprep.subr.mxu0 0.0
  %1762 = vmatpush1.msra.mxu0 0.0
  %1763 = vmatprep.subr.mxu0 0.0
  %1764 = vmatpush1.msra.mxu0 0.0
  %1765 = vmatprep.mubr.f32.mxu0 0.0
  %1766 = vmatmul.mubr.f32.gmra.mrb[0].mxu0 %v1696
  %v1767 = vpop.f32.mrb[0].mxu0
  %v1768 = vadd.f32 0.0, %v1767
  %v1769 = vpop.f32.mrb[0].mxu0
  %v1770 = vadd.f32 0.0, %v1769
  %1771 = vmatprep.mubr.f32.mxu0 0.0
  %1772 = vmatmul.mubr.f32.gmra.mrb[0].mxu0 %v1699
  %v1773 = vpop.f32.mrb[0].mxu0
  %v1774 = vadd.f32 0.0, %v1773
  %v1775 = vpop.f32.mrb[0].mxu0
  %v1776 = vadd.f32 0.0, %v1775
  %1777 = vdwg.mxu0
  %1778 = vmatprep.subr.mxu0 %v1679
  %1779 = vmatpush1.msra.mxu0 %v1678
  %1780 = vmatprep.subr.mxu0 0.0
  %1781 = vmatpush1.msra.mxu0 0.0
  %1782 = vmatprep.subr.mxu0 0.0
  %1783 = vmatpush1.msra.mxu0 0.0
  %1784 = vmatprep.subr.mxu0 0.0
  %1785 = vmatpush1.msra.mxu0 0.0
  %1786 = vmatprep.subr.mxu0 0.0
  %1787 = vmatpush1.msra.mxu0 0.0
  %1788 = vmatprep.subr.mxu0 0.0
  %1789 = vmatpush1.msra.mxu0 0.0
  %1790 = vmatprep.subr.mxu0 0.0
  %1791 = vmatpush1.msra.mxu0 0.0
  %1792 = vmatprep.subr.mxu0 0.0
  %1793 = vmatpush1.msra.mxu0 0.0
  %1794 = vmatprep.subr.mxu0 0.0
  %1795 = vmatpush1.msra.mxu0 0.0
  %1796 = vmatprep.subr.mxu0 0.0
  %1797 = vmatpush1.msra.mxu0 0.0
  %1798 = vmatprep.subr.mxu0 0.0
  %1799 = vmatpush1.msra.mxu0 0.0
  %1800 = vmatprep.subr.mxu0 0.0
  %1801 = vmatpush1.msra.mxu0 0.0
  %1802 = vmatprep.subr.mxu0 0.0
  %1803 = vmatpush1.msra.mxu0 0.0
  %1804 = vmatprep.subr.mxu0 0.0
  %1805 = vmatpush1.msra.mxu0 0.0
  %1806 = vmatprep.subr.mxu0 0.0
  %1807 = vmatpush1.msra.mxu0 0.0
  %1808 = vmatprep.subr.mxu0 0.0
  %1809 = vmatpush1.msra.mxu0 0.0
  %1810 = vmatprep.subr.mxu0 0.0
  %1811 = vmatpush1.msra.mxu0 0.0
  %1812 = vmatprep.subr.mxu0 0.0
  %1813 = vmatpush1.msra.mxu0 0.0
  %1814 = vmatprep.subr.mxu0 0.0
  %1815 = vmatpush1.msra.mxu0 0.0
  %1816 = vmatprep.subr.mxu0 0.0
  %1817 = vmatpush1.msra.mxu0 0.0
  %1818 = vmatprep.subr.mxu0 0.0
  %1819 = vmatpush1.msra.mxu0 0.0
  %1820 = vmatprep.subr.mxu0 0.0
  %1821 = vmatpush1.msra.mxu0 0.0
  %1822 = vmatprep.subr.mxu0 0.0
  %1823 = vmatpush1.msra.mxu0 0.0
  %1824 = vmatprep.subr.mxu0 0.0
  %1825 = vmatpush1.msra.mxu0 0.0
  %1826 = vmatprep.subr.mxu0 0.0
  %1827 = vmatpush1.msra.mxu0 0.0
  %1828 = vmatprep.subr.mxu0 0.0
  %1829 = vmatpush1.msra.mxu0 0.0
  %1830 = vmatprep.subr.mxu0 0.0
  %1831 = vmatpush1.msra.mxu0 0.0
  %1832 = vmatprep.subr.mxu0 0.0
  %1833 = vmatpush1.msra.mxu0 0.0
  %1834 = vmatprep.subr.mxu0 0.0
  %1835 = vmatpush1.msra.mxu0 0.0
  %1836 = vmatprep.subr.mxu0 0.0
  %1837 = vmatpush1.msra.mxu0 0.0
  %1838 = vmatprep.subr.mxu0 0.0
  %1839 = vmatpush1.msra.mxu0 0.0
  %1840 = vmatprep.subr.mxu0 0.0
  %1841 = vmatpush1.msra.mxu0 0.0
  %1842 = vmatprep.mubr.f32.mxu0 0.0
  %1843 = vmatmul.mubr.f32.gmra.mrb[0].mxu0 %v1696
  %v1844 = vpop.f32.mrb[0].mxu0
  %v1845 = vadd.f32 0.0, %v1844
  %v1846 = vpop.f32.mrb[0].mxu0
  %v1847 = vadd.f32 0.0, %v1846
  %1848 = vmatprep.mubr.f32.mxu0 0.0
  %1849 = vmatmul.mubr.f32.gmra.mrb[0].mxu0 %v1699
  %v1850 = vpop.f32.mrb[0].mxu0
  %v1851 = vadd.f32 0.0, %v1850
  %v1852 = vpop.f32.mrb[0].mxu0
  %v1853 = vadd.f32 0.0, %v1852
  %1854 = vdwg.mxu0
  %1855 = vmatprep.subr.mxu0 %v1681
  %1856 = vmatpush1.msra.mxu0 %v1680
  %1857 = vmatprep.subr.mxu0 0.0
  %1858 = vmatpush1.msra.mxu0 0.0
  %1859 = vmatprep.subr.mxu0 0.0
  %1860 = vmatpush1.msra.mxu0 0.0
  %1861 = vmatprep.subr.mxu0 0.0
  %1862 = vmatpush1.msra.mxu0 0.0
  %1863 = vmatprep.subr.mxu0 0.0
  %1864 = vmatpush1.msra.mxu0 0.0
  %1865 = vmatprep.subr.mxu0 0.0
  %1866 = vmatpush1.msra.mxu0 0.0
  %1867 = vmatprep.subr.mxu0 0.0
  %1868 = vmatpush1.msra.mxu0 0.0
  %1869 = vmatprep.subr.mxu0 0.0
  %1870 = vmatpush1.msra.mxu0 0.0
  %1871 = vmatprep.subr.mxu0 0.0
  %1872 = vmatpush1.msra.mxu0 0.0
  %1873 = vmatprep.subr.mxu0 0.0
  %1874 = vmatpush1.msra.mxu0 0.0
  %1875 = vmatprep.subr.mxu0 0.0
  %1876 = vmatpush1.msra.mxu0 0.0
  %1877 = vmatprep.subr.mxu0 0.0
  %1878 = vmatpush1.msra.mxu0 0.0
  %1879 = vmatprep.subr.mxu0 0.0
  %1880 = vmatpush1.msra.mxu0 0.0
  %1881 = vmatprep.subr.mxu0 0.0
  %1882 = vmatpush1.msra.mxu0 0.0
  %1883 = vmatprep.subr.mxu0 0.0
  %1884 = vmatpush1.msra.mxu0 0.0
  %1885 = vmatprep.subr.mxu0 0.0
  %1886 = vmatpush1.msra.mxu0 0.0
  %1887 = vmatprep.subr.mxu0 0.0
  %1888 = vmatpush1.msra.mxu0 0.0
  %1889 = vmatprep.subr.mxu0 0.0
  %1890 = vmatpush1.msra.mxu0 0.0
  %1891 = vmatprep.subr.mxu0 0.0
  %1892 = vmatpush1.msra.mxu0 0.0
  %1893 = vmatprep.subr.mxu0 0.0
  %1894 = vmatpush1.msra.mxu0 0.0
  %1895 = vmatprep.subr.mxu0 0.0
  %1896 = vmatpush1.msra.mxu0 0.0
  %1897 = vmatprep.subr.mxu0 0.0
  %1898 = vmatpush1.msra.mxu0 0.0
  %1899 = vmatprep.subr.mxu0 0.0
  %1900 = vmatpush1.msra.mxu0 0.0
  %1901 = vmatprep.subr.mxu0 0.0
  %1902 = vmatpush1.msra.mxu0 0.0
  %1903 = vmatprep.subr.mxu0 0.0
  %1904 = vmatpush1.msra.mxu0 0.0
  %1905 = vmatprep.subr.mxu0 0.0
  %1906 = vmatpush1.msra.mxu0 0.0
  %1907 = vmatprep.subr.mxu0 0.0
  %1908 = vmatpush1.msra.mxu0 0.0
  %1909 = vmatprep.subr.mxu0 0.0
  %1910 = vmatpush1.msra.mxu0 0.0
  %1911 = vmatprep.subr.mxu0 0.0
  %1912 = vmatpush1.msra.mxu0 0.0
  %1913 = vmatprep.subr.mxu0 0.0
  %1914 = vmatpush1.msra.mxu0 0.0
  %1915 = vmatprep.subr.mxu0 0.0
  %1916 = vmatpush1.msra.mxu0 0.0
  %1917 = vmatprep.subr.mxu0 0.0
  %1918 = vmatpush1.msra.mxu0 0.0
  %1919 = vmatprep.mubr.f32.mxu0 0.0
  %1920 = vmatmul.mubr.f32.gmra.mrb[0].mxu0 %v1696
  %v1921 = vpop.f32.mrb[0].mxu0
  %v1922 = vadd.f32 0.0, %v1921
  %v1923 = vpop.f32.mrb[0].mxu0
  %v1924 = vadd.f32 0.0, %v1923
  %1925 = vmatprep.mubr.f32.mxu0 0.0
  %1926 = vmatmul.mubr.f32.gmra.mrb[0].mxu0 %v1699
  %v1927 = vpop.f32.mrb[0].mxu0
  %v1928 = vadd.f32 0.0, %v1927
  %v1929 = vpop.f32.mrb[0].mxu0
  %v1930 = vadd.f32 0.0, %v1929
  %1931 = vdwg.mxu0
  %1932 = vmatprep.subr.mxu0 %v1683
  %1933 = vmatpush1.msra.mxu0 %v1682
  %1934 = vmatprep.subr.mxu0 0.0
  %1935 = vmatpush1.msra.mxu0 0.0
  %1936 = vmatprep.subr.mxu0 0.0
  %1937 = vmatpush1.msra.mxu0 0.0
  %1938 = vmatprep.subr.mxu0 0.0
  %1939 = vmatpush1.msra.mxu0 0.0
  %1940 = vmatprep.subr.mxu0 0.0
  %1941 = vmatpush1.msra.mxu0 0.0
  %1942 = vmatprep.subr.mxu0 0.0
  %1943 = vmatpush1.msra.mxu0 0.0
  %1944 = vmatprep.subr.mxu0 0.0
  %1945 = vmatpush1.msra.mxu0 0.0
  %1946 = vmatprep.subr.mxu0 0.0
  %1947 = vmatpush1.msra.mxu0 0.0
  %1948 = vmatprep.subr.mxu0 0.0
  %1949 = vmatpush1.msra.mxu0 0.0
  %1950 = vmatprep.subr.mxu0 0.0
  %1951 = vmatpush1.msra.mxu0 0.0
  %1952 = vmatprep.subr.mxu0 0.0
  %1953 = vmatpush1.msra.mxu0 0.0
  %1954 = vmatprep.subr.mxu0 0.0
  %1955 = vmatpush1.msra.mxu0 0.0
  %1956 = vmatprep.subr.mxu0 0.0
  %1957 = vmatpush1.msra.mxu0 0.0
  %1958 = vmatprep.subr.mxu0 0.0
  %1959 = vmatpush1.msra.mxu0 0.0
  %1960 = vmatprep.subr.mxu0 0.0
  %1961 = vmatpush1.msra.mxu0 0.0
  %1962 = vmatprep.subr.mxu0 0.0
  %1963 = vmatpush1.msra.mxu0 0.0
  %1964 = vmatprep.subr.mxu0 0.0
  %1965 = vmatpush1.msra.mxu0 0.0
  %1966 = vmatprep.subr.mxu0 0.0
  %1967 = vmatpush1.msra.mxu0 0.0
  %1968 = vmatprep.subr.mxu0 0.0
  %1969 = vmatpush1.msra.mxu0 0.0
  %1970 = vmatprep.subr.mxu0 0.0
  %1971 = vmatpush1.msra.mxu0 0.0
  %1972 = vmatprep.subr.mxu0 0.0
  %1973 = vmatpush1.msra.mxu0 0.0
  %1974 = vmatprep.subr.mxu0 0.0
  %1975 = vmatpush1.msra.mxu0 0.0
  %1976 = vmatprep.subr.mxu0 0.0
  %1977 = vmatpush1.msra.mxu0 0.0
  %1978 = vmatprep.subr.mxu0 0.0
  %1979 = vmatpush1.msra.mxu0 0.0
  %1980 = vmatprep.subr.mxu0 0.0
  %1981 = vmatpush1.msra.mxu0 0.0
  %1982 = vmatprep.subr.mxu0 0.0
  %1983 = vmatpush1.msra.mxu0 0.0
  %1984 = vmatprep.subr.mxu0 0.0
  %1985 = vmatpush1.msra.mxu0 0.0
  %1986 = vmatprep.subr.mxu0 0.0
  %1987 = vmatpush1.msra.mxu0 0.0
  %1988 = vmatprep.subr.mxu0 0.0
  %1989 = vmatpush1.msra.mxu0 0.0
  %1990 = vmatprep.subr.mxu0 0.0
  %1991 = vmatpush1.msra.mxu0 0.0
  %1992 = vmatprep.subr.mxu0 0.0
  %1993 = vmatpush1.msra.mxu0 0.0
  %1994 = vmatprep.subr.mxu0 0.0
  %1995 = vmatpush1.msra.mxu0 0.0
  %1996 = vmatprep.mubr.f32.mxu0 0.0
  %1997 = vmatmul.mubr.f32.gmra.mrb[0].mxu0 %v1696
  %v1998 = vpop.f32.mrb[0].mxu0
  %v1999 = vadd.f32 0.0, %v1998
  %v2000 = vpop.f32.mrb[0].mxu0
  %v2001 = vadd.f32 0.0, %v2000
  %2002 = vmatprep.mubr.f32.mxu0 0.0
  %2003 = vmatmul.mubr.f32.gmra.mrb[0].mxu0 %v1699
  %v2004 = vpop.f32.mrb[0].mxu0
  %v2005 = vadd.f32 0.0, %v2004
  %v2006 = vpop.f32.mrb[0].mxu0
  %v2007 = vadd.f32 0.0, %v2006
  %2008 = vdwg.mxu0
  %2009 = vmatprep.subr.mxu0 %v1685
  %2010 = vmatpush1.msra.mxu0 %v1684
  %2011 = vmatprep.subr.mxu0 0.0
  %2012 = vmatpush1.msra.mxu0 0.0
  %2013 = vmatprep.subr.mxu0 0.0
  %2014 = vmatpush1.msra.mxu0 0.0
  %2015 = vmatprep.subr.mxu0 0.0
  %2016 = vmatpush1.msra.mxu0 0.0
  %2017 = vmatprep.subr.mxu0 0.0
  %2018 = vmatpush1.msra.mxu0 0.0
  %2019 = vmatprep.subr.mxu0 0.0
  %2020 = vmatpush1.msra.mxu0 0.0
  %2021 = vmatprep.subr.mxu0 0.0
  %2022 = vmatpush1.msra.mxu0 0.0
  %2023 = vmatprep.subr.mxu0 0.0
  %2024 = vmatpush1.msra.mxu0 0.0
  %2025 = vmatprep.subr.mxu0 0.0
  %2026 = vmatpush1.msra.mxu0 0.0
  %2027 = vmatprep.subr.mxu0 0.0
  %2028 = vmatpush1.msra.mxu0 0.0
  %2029 = vmatprep.subr.mxu0 0.0
  %2030 = vmatpush1.msra.mxu0 0.0
  %2031 = vmatprep.subr.mxu0 0.0
  %2032 = vmatpush1.msra.mxu0 0.0
  %2033 = vmatprep.subr.mxu0 0.0
  %2034 = vmatpush1.msra.mxu0 0.0
  %2035 = vmatprep.subr.mxu0 0.0
  %2036 = vmatpush1.msra.mxu0 0.0
  %2037 = vmatprep.subr.mxu0 0.0
  %2038 = vmatpush1.msra.mxu0 0.0
  %2039 = vmatprep.subr.mxu0 0.0
  %2040 = vmatpush1.msra.mxu0 0.0
  %2041 = vmatprep.subr.mxu0 0.0
  %2042 = vmatpush1.msra.mxu0 0.0
  %2043 = vmatprep.subr.mxu0 0.0
  %2044 = vmatpush1.msra.mxu0 0.0
  %2045 = vmatprep.subr.mxu0 0.0
  %2046 = vmatpush1.msra.mxu0 0.0
  %2047 = vmatprep.subr.mxu0 0.0
  %2048 = vmatpush1.msra.mxu0 0.0
  %2049 = vmatprep.subr.mxu0 0.0
  %2050 = vmatpush1.msra.mxu0 0.0
  %2051 = vmatprep.subr.mxu0 0.0
  %2052 = vmatpush1.msra.mxu0 0.0
  %2053 = vmatprep.subr.mxu0 0.0
  %2054 = vmatpush1.msra.mxu0 0.0
  %2055 = vmatprep.subr.mxu0 0.0
  %2056 = vmatpush1.msra.mxu0 0.0
  %2057 = vmatprep.subr.mxu0 0.0
  %2058 = vmatpush1.msra.mxu0 0.0
  %2059 = vmatprep.subr.mxu0 0.0
  %2060 = vmatpush1.msra.mxu0 0.0
  %2061 = vmatprep.subr.mxu0 0.0
  %2062 = vmatpush1.msra.mxu0 0.0
  %2063 = vmatprep.subr.mxu0 0.0
  %2064 = vmatpush1.msra.mxu0 0.0
  %2065 = vmatprep.subr.mxu0 0.0
  %2066 = vmatpush1.msra.mxu0 0.0
  %2067 = vmatprep.subr.mxu0 0.0
  %2068 = vmatpush1.msra.mxu0 0.0
  %2069 = vmatprep.subr.mxu0 0.0
  %2070 = vmatpush1.msra.mxu0 0.0
  %2071 = vmatprep.subr.mxu0 0.0
  %2072 = vmatpush1.msra.mxu0 0.0
  %2073 = vmatprep.mubr.f32.mxu0 0.0
  %2074 = vmatmul.mubr.f32.gmra.mrb[0].mxu0 %v1696
  %v2075 = vpop.f32.mrb[0].mxu0
  %v2076 = vadd.f32 0.0, %v2075
  %v2077 = vpop.f32.mrb[0].mxu0
  %v2078 = vadd.f32 0.0, %v2077
  %2079 = vmatprep.mubr.f32.mxu0 0.0
  %2080 = vmatmul.mubr.f32.gmra.mrb[0].mxu0 %v1699
  %v2081 = vpop.f32.mrb[0].mxu0
  %v2082 = vadd.f32 0.0, %v2081
  %v2083 = vpop.f32.mrb[0].mxu0
  %v2084 = vadd.f32 0.0, %v2083
  %2085 = vdwg.mxu0
  %2086 = vmatprep.subr.mxu0 %v1687
  %2087 = vmatpush1.msra.mxu0 %v1686
  %2088 = vmatprep.subr.mxu0 0.0
  %2089 = vmatpush1.msra.mxu0 0.0
  %2090 = vmatprep.subr.mxu0 0.0
  %2091 = vmatpush1.msra.mxu0 0.0
  %2092 = vmatprep.subr.mxu0 0.0
  %2093 = vmatpush1.msra.mxu0 0.0
  %2094 = vmatprep.subr.mxu0 0.0
  %2095 = vmatpush1.msra.mxu0 0.0
  %2096 = vmatprep.subr.mxu0 0.0
  %2097 = vmatpush1.msra.mxu0 0.0
  %2098 = vmatprep.subr.mxu0 0.0
  %2099 = vmatpush1.msra.mxu0 0.0
  %2100 = vmatprep.subr.mxu0 0.0
  %2101 = vmatpush1.msra.mxu0 0.0
  %2102 = vmatprep.subr.mxu0 0.0
  %2103 = vmatpush1.msra.mxu0 0.0
  %2104 = vmatprep.subr.mxu0 0.0
  %2105 = vmatpush1.msra.mxu0 0.0
  %2106 = vmatprep.subr.mxu0 0.0
  %2107 = vmatpush1.msra.mxu0 0.0
  %2108 = vmatprep.subr.mxu0 0.0
  %2109 = vmatpush1.msra.mxu0 0.0
  %2110 = vmatprep.subr.mxu0 0.0
  %2111 = vmatpush1.msra.mxu0 0.0
  %2112 = vmatprep.subr.mxu0 0.0
  %2113 = vmatpush1.msra.mxu0 0.0
  %2114 = vmatprep.subr.mxu0 0.0
  %2115 = vmatpush1.msra.mxu0 0.0
  %2116 = vmatprep.subr.mxu0 0.0
  %2117 = vmatpush1.msra.mxu0 0.0
  %2118 = vmatprep.subr.mxu0 0.0
  %2119 = vmatpush1.msra.mxu0 0.0
  %2120 = vmatprep.subr.mxu0 0.0
  %2121 = vmatpush1.msra.mxu0 0.0
  %2122 = vmatprep.subr.mxu0 0.0
  %2123 = vmatpush1.msra.mxu0 0.0
  %2124 = vmatprep.subr.mxu0 0.0
  %2125 = vmatpush1.msra.mxu0 0.0
  %2126 = vmatprep.subr.mxu0 0.0
  %2127 = vmatpush1.msra.mxu0 0.0
  %2128 = vmatprep.subr.mxu0 0.0
  %2129 = vmatpush1.msra.mxu0 0.0
  %2130 = vmatprep.subr.mxu0 0.0
  %2131 = vmatpush1.msra.mxu0 0.0
  %2132 = vmatprep.subr.mxu0 0.0
  %2133 = vmatpush1.msra.mxu0 0.0
  %2134 = vmatprep.subr.mxu0 0.0
  %2135 = vmatpush1.msra.mxu0 0.0
  %2136 = vmatprep.subr.mxu0 0.0
  %2137 = vmatpush1.msra.mxu0 0.0
  %2138 = vmatprep.subr.mxu0 0.0
  %2139 = vmatpush1.msra.mxu0 0.0
  %2140 = vmatprep.subr.mxu0 0.0
  %2141 = vmatpush1.msra.mxu0 0.0
  %2142 = vmatprep.subr.mxu0 0.0
  %2143 = vmatpush1.msra.mxu0 0.0
  %2144 = vmatprep.subr.mxu0 0.0
  %2145 = vmatpush1.msra.mxu0 0.0
  %2146 = vmatprep.subr.mxu0 0.0
  %2147 = vmatpush1.msra.mxu0 0.0
  %2148 = vmatprep.subr.mxu0 0.0
  %2149 = vmatpush1.msra.mxu0 0.0
  %2150 = vmatprep.mubr.f32.mxu0 0.0
  %2151 = vmatmul.mubr.f32.gmra.mrb[0].mxu0 %v1696
  %v2152 = vpop.f32.mrb[0].mxu0
  %v2153 = vadd.f32 0.0, %v2152
  %v2154 = vpop.f32.mrb[0].mxu0
  %v2155 = vadd.f32 0.0, %v2154
  %2156 = vmatprep.mubr.f32.mxu0 0.0
  %2157 = vmatmul.mubr.f32.gmra.mrb[0].mxu0 %v1699
  %v2158 = vpop.f32.mrb[0].mxu0
  %v2159 = vadd.f32 0.0, %v2158
  %v2160 = vpop.f32.mrb[0].mxu0
  %v2161 = vadd.f32 0.0, %v2160
  %2162 = vdwg.mxu0
  %2163 = vmatprep.subr.mxu0 %v1689
  %2164 = vmatpush1.msra.mxu0 %v1688
  %2165 = vmatprep.subr.mxu0 0.0
  %2166 = vmatpush1.msra.mxu0 0.0
  %2167 = vmatprep.subr.mxu0 0.0
  %2168 = vmatpush1.msra.mxu0 0.0
  %2169 = vmatprep.subr.mxu0 0.0
  %2170 = vmatpush1.msra.mxu0 0.0
  %2171 = vmatprep.subr.mxu0 0.0
  %2172 = vmatpush1.msra.mxu0 0.0
  %2173 = vmatprep.subr.mxu0 0.0
  %2174 = vmatpush1.msra.mxu0 0.0
  %2175 = vmatprep.subr.mxu0 0.0
  %2176 = vmatpush1.msra.mxu0 0.0
  %2177 = vmatprep.subr.mxu0 0.0
  %2178 = vmatpush1.msra.mxu0 0.0
  %2179 = vmatprep.subr.mxu0 0.0
  %2180 = vmatpush1.msra.mxu0 0.0
  %2181 = vmatprep.subr.mxu0 0.0
  %2182 = vmatpush1.msra.mxu0 0.0
  %2183 = vmatprep.subr.mxu0 0.0
  %2184 = vmatpush1.msra.mxu0 0.0
  %2185 = vmatprep.subr.mxu0 0.0
  %2186 = vmatpush1.msra.mxu0 0.0
  %2187 = vmatprep.subr.mxu0 0.0
  %2188 = vmatpush1.msra.mxu0 0.0
  %2189 = vmatprep.subr.mxu0 0.0
  %2190 = vmatpush1.msra.mxu0 0.0
  %2191 = vmatprep.subr.mxu0 0.0
  %2192 = vmatpush1.msra.mxu0 0.0
  %2193 = vmatprep.subr.mxu0 0.0
  %2194 = vmatpush1.msra.mxu0 0.0
  %2195 = vmatprep.subr.mxu0 0.0
  %2196 = vmatpush1.msra.mxu0 0.0
  %2197 = vmatprep.subr.mxu0 0.0
  %2198 = vmatpush1.msra.mxu0 0.0
  %2199 = vmatprep.subr.mxu0 0.0
  %2200 = vmatpush1.msra.mxu0 0.0
  %2201 = vmatprep.subr.mxu0 0.0
  %2202 = vmatpush1.msra.mxu0 0.0
  %2203 = vmatprep.subr.mxu0 0.0
  %2204 = vmatpush1.msra.mxu0 0.0
  %2205 = vmatprep.subr.mxu0 0.0
  %2206 = vmatpush1.msra.mxu0 0.0
  %2207 = vmatprep.subr.mxu0 0.0
  %2208 = vmatpush1.msra.mxu0 0.0
  %2209 = vmatprep.subr.mxu0 0.0
  %2210 = vmatpush1.msra.mxu0 0.0
  %2211 = vmatprep.subr.mxu0 0.0
  %2212 = vmatpush1.msra.mxu0 0.0
  %2213 = vmatprep.subr.mxu0 0.0
  %2214 = vmatpush1.msra.mxu0 0.0
  %2215 = vmatprep.subr.mxu0 0.0
  %2216 = vmatpush1.msra.mxu0 0.0
  %2217 = vmatprep.subr.mxu0 0.0
  %2218 = vmatpush1.msra.mxu0 0.0
  %2219 = vmatprep.subr.mxu0 0.0
  %2220 = vmatpush1.msra.mxu0 0.0
  %2221 = vmatprep.subr.mxu0 0.0
  %2222 = vmatpush1.msra.mxu0 0.0
  %2223 = vmatprep.subr.mxu0 0.0
  %2224 = vmatpush1.msra.mxu0 0.0
  %2225 = vmatprep.subr.mxu0 0.0
  %2226 = vmatpush1.msra.mxu0 0.0
  %2227 = vmatprep.mubr.f32.mxu0 0.0
  %2228 = vmatmul.mubr.f32.gmra.mrb[0].mxu0 %v1696
  %v2229 = vpop.f32.mrb[0].mxu0
  %v2230 = vadd.f32 0.0, %v2229
  %v2231 = vpop.f32.mrb[0].mxu0
  %v2232 = vadd.f32 0.0, %v2231
  %2233 = vmatprep.mubr.f32.mxu0 0.0
  %2234 = vmatmul.mubr.f32.gmra.mrb[0].mxu0 %v1699
  %v2235 = vpop.f32.mrb[0].mxu0
  %v2236 = vadd.f32 0.0, %v2235
  %v2237 = vpop.f32.mrb[0].mxu0
  %v2238 = vadd.f32 0.0, %v2237
  %2239 = vdwg.mxu0
  %2240 = vmatprep.subr.mxu0 %v1691
  %2241 = vmatpush1.msra.mxu0 %v1690
  %2242 = vmatprep.subr.mxu0 0.0
  %2243 = vmatpush1.msra.mxu0 0.0
  %2244 = vmatprep.subr.mxu0 0.0
  %2245 = vmatpush1.msra.mxu0 0.0
  %2246 = vmatprep.subr.mxu0 0.0
  %2247 = vmatpush1.msra.mxu0 0.0
  %2248 = vmatprep.subr.mxu0 0.0
  %2249 = vmatpush1.msra.mxu0 0.0
  %2250 = vmatprep.subr.mxu0 0.0
  %2251 = vmatpush1.msra.mxu0 0.0
  %2252 = vmatprep.subr.mxu0 0.0
  %2253 = vmatpush1.msra.mxu0 0.0
  %2254 = vmatprep.subr.mxu0 0.0
  %2255 = vmatpush1.msra.mxu0 0.0
  %2256 = vmatprep.subr.mxu0 0.0
  %2257 = vmatpush1.msra.mxu0 0.0
  %2258 = vmatprep.subr.mxu0 0.0
  %2259 = vmatpush1.msra.mxu0 0.0
  %2260 = vmatprep.subr.mxu0 0.0
  %2261 = vmatpush1.msra.mxu0 0.0
  %2262 = vmatprep.subr.mxu0 0.0
  %2263 = vmatpush1.msra.mxu0 0.0
  %2264 = vmatprep.subr.mxu0 0.0
  %2265 = vmatpush1.msra.mxu0 0.0
  %2266 = vmatprep.subr.mxu0 0.0
  %2267 = vmatpush1.msra.mxu0 0.0
  %2268 = vmatprep.subr.mxu0 0.0
  %2269 = vmatpush1.msra.mxu0 0.0
  %2270 = vmatprep.subr.mxu0 0.0
  %2271 = vmatpush1.msra.mxu0 0.0
  %2272 = vmatprep.subr.mxu0 0.0
  %2273 = vmatpush1.msra.mxu0 0.0
  %2274 = vmatprep.subr.mxu0 0.0
  %2275 = vmatpush1.msra.mxu0 0.0
  %2276 = vmatprep.subr.mxu0 0.0
  %2277 = vmatpush1.msra.mxu0 0.0
  %2278 = vmatprep.subr.mxu0 0.0
  %2279 = vmatpush1.msra.mxu0 0.0
  %2280 = vmatprep.subr.mxu0 0.0
  %2281 = vmatpush1.msra.mxu0 0.0
  %2282 = vmatprep.subr.mxu0 0.0
  %2283 = vmatpush1.msra.mxu0 0.0
  %2284 = vmatprep.subr.mxu0 0.0
  %2285 = vmatpush1.msra.mxu0 0.0
  %2286 = vmatprep.subr.mxu0 0.0
  %2287 = vmatpush1.msra.mxu0 0.0
  %2288 = vmatprep.subr.mxu0 0.0
  %2289 = vmatpush1.msra.mxu0 0.0
  %2290 = vmatprep.subr.mxu0 0.0
  %2291 = vmatpush1.msra.mxu0 0.0
  %2292 = vmatprep.subr.mxu0 0.0
  %2293 = vmatpush1.msra.mxu0 0.0
  %2294 = vmatprep.subr.mxu0 0.0
  %2295 = vmatpush1.msra.mxu0 0.0
  %2296 = vmatprep.subr.mxu0 0.0
  %2297 = vmatpush1.msra.mxu0 0.0
  %2298 = vmatprep.subr.mxu0 0.0
  %2299 = vmatpush1.msra.mxu0 0.0
  %2300 = vmatprep.subr.mxu0 0.0
  %2301 = vmatpush1.msra.mxu0 0.0
  %2302 = vmatprep.subr.mxu0 0.0
  %2303 = vmatpush1.msra.mxu0 0.0
  %2304 = vmatprep.mubr.f32.mxu0 0.0
  %2305 = vmatmul.mubr.f32.gmra.mrb[0].mxu0 %v1696
  %v2306 = vpop.f32.mrb[0].mxu0
  %v2307 = vadd.f32 0.0, %v2306
  %v2308 = vpop.f32.mrb[0].mxu0
  %v2309 = vadd.f32 0.0, %v2308
  %2310 = vmatprep.mubr.f32.mxu0 0.0
  %2311 = vmatmul.mubr.f32.gmra.mrb[0].mxu0 %v1699
  %v2312 = vpop.f32.mrb[0].mxu0
  %v2313 = vadd.f32 0.0, %v2312
  %v2314 = vpop.f32.mrb[0].mxu0
  %v2315 = vadd.f32 0.0, %v2314
  %2316 = vdwg.mxu0
  %v2317 = vld [vmem:[%s6] sm:$0xff]
  %v2318 = vld [vmem:[%s6 + $0x8] sm:$0xff]
  %2320 = vset.pattern.permute.xlu0 0
  %2321 = vperm.xlu0 %2320, %v2317
  %v2322 = vpop.permute.xlu0 %2321
  %2325 = vset.pattern.permute.xlu0 0
  %2326 = vperm.xlu0 %2325, %v2318
  %v2327 = vpop.permute.xlu0 %2326
  %v2329 = vmul.f32 %v2322, %v1768
  %v2330 = vmul.f32 %v2322, %v1770
  %v2331 = vmul.f32 %v2322, %v1845
  %v2332 = vmul.f32 %v2322, %v1847
  %v2333 = vmul.f32 %v2322, %v1922
  %v2334 = vmul.f32 %v2322, %v1924
  %v2335 = vmul.f32 %v2322, %v1999
  %v2336 = vmul.f32 %v2322, %v2001
  %v2337 = vmul.f32 %v2322, %v2076
  %v2338 = vmul.f32 %v2322, %v2078
  %v2339 = vmul.f32 %v2322, %v2153
  %v2340 = vmul.f32 %v2322, %v2155
  %v2341 = vmul.f32 %v2322, %v2230
  %v2342 = vmul.f32 %v2322, %v2232
  %v2343 = vmul.f32 %v2322, %v2307
  %v2344 = vmul.f32 %v2322, %v2309
  %v2345 = vmul.f32 %v2327, %v1774
  %v2346 = vmul.f32 %v2327, %v1776
  %v2347 = vmul.f32 %v2327, %v1851
  %v2348 = vmul.f32 %v2327, %v1853
  %v2349 = vmul.f32 %v2327, %v1928
  %v2350 = vmul.f32 %v2327, %v1930
  %v2351 = vmul.f32 %v2327, %v2005
  %v2352 = vmul.f32 %v2327, %v2007
  %v2353 = vmul.f32 %v2327, %v2082
  %v2354 = vmul.f32 %v2327, %v2084
  %v2355 = vmul.f32 %v2327, %v2159
  %v2356 = vmul.f32 %v2327, %v2161
  %v2357 = vmul.f32 %v2327, %v2236
  %v2358 = vmul.f32 %v2327, %v2238
  %v2359 = vmul.f32 %v2327, %v2313
  %v2360 = vmul.f32 %v2327, %v2315
  %v2361 = vld [vmem:[%s7] sm:$0xff]
  %v2362 = vld [vmem:[%s7 + $0x8] sm:$0xff]
  %2364 = vset.pattern.permute.xlu0 0
  %2365 = vperm.xlu0 %2364, %v2361
  %v2366 = vpop.permute.xlu0 %2365
  %2369 = vset.pattern.permute.xlu0 0
  %2370 = vperm.xlu0 %2369, %v2362
  %v2371 = vpop.permute.xlu0 %2370
  %v2373 = vadd.f32 %v2329, %v2366
  %v2374 = vadd.f32 %v2330, %v2366
  %v2375 = vadd.f32 %v2331, %v2366
  %v2376 = vadd.f32 %v2332, %v2366
  %v2377 = vadd.f32 %v2333, %v2366
  %v2378 = vadd.f32 %v2334, %v2366
  %v2379 = vadd.f32 %v2335, %v2366
  %v2380 = vadd.f32 %v2336, %v2366
  %v2381 = vadd.f32 %v2337, %v2366
  %v2382 = vadd.f32 %v2338, %v2366
  %v2383 = vadd.f32 %v2339, %v2366
  %v2384 = vadd.f32 %v2340, %v2366
  %v2385 = vadd.f32 %v2341, %v2366
  %v2386 = vadd.f32 %v2342, %v2366
  %v2387 = vadd.f32 %v2343, %v2366
  %v2388 = vadd.f32 %v2344, %v2366
  %v2389 = vadd.f32 %v2345, %v2371
  %v2390 = vadd.f32 %v2346, %v2371
  %v2391 = vadd.f32 %v2347, %v2371
  %v2392 = vadd.f32 %v2348, %v2371
  %v2393 = vadd.f32 %v2349, %v2371
  %v2394 = vadd.f32 %v2350, %v2371
  %v2395 = vadd.f32 %v2351, %v2371
  %v2396 = vadd.f32 %v2352, %v2371
  %v2397 = vadd.f32 %v2353, %v2371
  %v2398 = vadd.f32 %v2354, %v2371
  %v2399 = vadd.f32 %v2355, %v2371
  %v2400 = vadd.f32 %v2356, %v2371
  %v2401 = vadd.f32 %v2357, %v2371
  %v2402 = vadd.f32 %v2358, %v2371
  %v2403 = vadd.f32 %v2359, %v2371
  %v2404 = vadd.f32 %v2360, %v2371
  %v2405 = vmax.f32 %v2373, 0.0
  %v2406 = vmax.f32 %v2374, 0.0
  %v2407 = vmax.f32 %v2375, 0.0
  %v2408 = vmax.f32 %v2376, 0.0
  %v2409 = vmax.f32 %v2377, 0.0
  %v2410 = vmax.f32 %v2378, 0.0
  %v2411 = vmax.f32 %v2379, 0.0
  %v2412 = vmax.f32 %v2380, 0.0
  %v2413 = vmax.f32 %v2381, 0.0
  %v2414 = vmax.f32 %v2382, 0.0
  %v2415 = vmax.f32 %v2383, 0.0
  %v2416 = vmax.f32 %v2384, 0.0
  %v2417 = vmax.f32 %v2385, 0.0
  %v2418 = vmax.f32 %v2386, 0.0
  %v2419 = vmax.f32 %v2387, 0.0
  %v2420 = vmax.f32 %v2388, 0.0
  %v2421 = vmax.f32 %v2389, 0.0
  %v2422 = vmax.f32 %v2390, 0.0
  %v2423 = vmax.f32 %v2391, 0.0
  %v2424 = vmax.f32 %v2392, 0.0
  %v2425 = vmax.f32 %v2393, 0.0
  %v2426 = vmax.f32 %v2394, 0.0
  %v2427 = vmax.f32 %v2395, 0.0
  %v2428 = vmax.f32 %v2396, 0.0
  %v2429 = vmax.f32 %v2397, 0.0
  %v2430 = vmax.f32 %v2398, 0.0
  %v2431 = vmax.f32 %v2399, 0.0
  %v2432 = vmax.f32 %v2400, 0.0
  %v2433 = vmax.f32 %v2401, 0.0
  %v2434 = vmax.f32 %v2402, 0.0
  %v2435 = vmax.f32 %v2403, 0.0
  %v2436 = vmax.f32 %v2404, 0.0
  %v2437 = vld [vmem:[%s3] sm:$0xff]
  %v2438 = vld [vmem:[%s3 + $0x8] sm:$0xff]
  %v2439 = vld [vmem:[%s3 + $0x10] sm:$0xff]
  %vm2440 = vcmask 130048
  %v2442 = vsel %vm2440, %v2437, 0
  %v2445 = vsel %vm2440, %v2438, 0
  %v2448 = vsel %vm2440, %v2439, 0
  %2450 = vmatprep.subr.mxu0 %v2406
  %2451 = vmatpush1.msra.mxu0 %v2405
  %2452 = vmatprep.subr.mxu0 %v2422
  %2453 = vmatpush1.msra.mxu0 %v2421
  %2454 = vmatprep.subr.mxu0 0.0
  %2455 = vmatpush1.msra.mxu0 0.0
  %2456 = vmatprep.subr.mxu0 0.0
  %2457 = vmatpush1.msra.mxu0 0.0
  %2458 = vmatprep.subr.mxu0 0.0
  %2459 = vmatpush1.msra.mxu0 0.0
  %2460 = vmatprep.subr.mxu0 0.0
  %2461 = vmatpush1.msra.mxu0 0.0
  %2462 = vmatprep.subr.mxu0 0.0
  %2463 = vmatpush1.msra.mxu0 0.0
  %2464 = vmatprep.subr.mxu0 0.0
  %2465 = vmatpush1.msra.mxu0 0.0
  %2466 = vmatprep.subr.mxu0 0.0
  %2467 = vmatpush1.msra.mxu0 0.0
  %2468 = vmatprep.subr.mxu0 0.0
  %2469 = vmatpush1.msra.mxu0 0.0
  %2470 = vmatprep.subr.mxu0 0.0
  %2471 = vmatpush1.msra.mxu0 0.0
  %2472 = vmatprep.subr.mxu0 0.0
  %2473 = vmatpush1.msra.mxu0 0.0
  %2474 = vmatprep.subr.mxu0 0.0
  %2475 = vmatpush1.msra.mxu0 0.0
  %2476 = vmatprep.subr.mxu0 0.0
  %2477 = vmatpush1.msra.mxu0 0.0
  %2478 = vmatprep.subr.mxu0 0.0
  %2479 = vmatpush1.msra.mxu0 0.0
  %2480 = vmatprep.subr.mxu0 0.0
  %2481 = vmatpush1.msra.mxu0 0.0
  %2482 = vmatprep.subr.mxu0 0.0
  %2483 = vmatpush1.msra.mxu0 0.0
  %2484 = vmatprep.subr.mxu0 0.0
  %2485 = vmatpush1.msra.mxu0 0.0
  %2486 = vmatprep.subr.mxu0 0.0
  %2487 = vmatpush1.msra.mxu0 0.0
  %2488 = vmatprep.subr.mxu0 0.0
  %2489 = vmatpush1.msra.mxu0 0.0
  %2490 = vmatprep.subr.mxu0 0.0
  %2491 = vmatpush1.msra.mxu0 0.0
  %2492 = vmatprep.subr.mxu0 0.0
  %2493 = vmatpush1.msra.mxu0 0.0
  %2494 = vmatprep.subr.mxu0 0.0
  %2495 = vmatpush1.msra.mxu0 0.0
  %2496 = vmatprep.subr.mxu0 0.0
  %2497 = vmatpush1.msra.mxu0 0.0
  %2498 = vmatprep.subr.mxu0 0.0
  %2499 = vmatpush1.msra.mxu0 0.0
  %2500 = vmatprep.subr.mxu0 0.0
  %2501 = vmatpush1.msra.mxu0 0.0
  %2502 = vmatprep.subr.mxu0 0.0
  %2503 = vmatpush1.msra.mxu0 0.0
  %2504 = vmatprep.subr.mxu0 0.0
  %2505 = vmatpush1.msra.mxu0 0.0
  %2506 = vmatprep.subr.mxu0 0.0
  %2507 = vmatpush1.msra.mxu0 0.0
  %2508 = vmatprep.subr.mxu0 0.0
  %2509 = vmatpush1.msra.mxu0 0.0
  %2510 = vmatprep.subr.mxu0 0.0
  %2511 = vmatpush1.msra.mxu0 0.0
  %2512 = vmatprep.subr.mxu0 0.0
  %2513 = vmatpush1.msra.mxu0 0.0
  %2514 = vmatprep.mubr.f32.mxu0 0.0
  %2515 = vmatmul.mubr.f32.gmra.mrb[0].mxu0 %v2442
  %v2516 = vpop.f32.mrb[0].mxu0
  %v2517 = vadd.f32 0.0, %v2516
  %v2518 = vpop.f32.mrb[0].mxu0
  %v2519 = vadd.f32 0.0, %v2518
  %2520 = vmatprep.mubr.f32.mxu0 0.0
  %2521 = vmatmul.mubr.f32.gmra.mrb[0].mxu0 %v2445
  %v2522 = vpop.f32.mrb[0].mxu0
  %v2523 = vadd.f32 0.0, %v2522
  %v2524 = vpop.f32.mrb[0].mxu0
  %v2525 = vadd.f32 0.0, %v2524
  %2526 = vmatprep.mubr.f32.mxu0 0.0
  %2527 = vmatmul.mubr.f32.gmra.mrb[0].mxu0 %v2448
  %v2528 = vpop.f32.mrb[0].mxu0
  %v2529 = vadd.f32 0.0, %v2528
  %v2530 = vpop.f32.mrb[0].mxu0
  %v2531 = vadd.f32 0.0, %v2530
  %2532 = vdwg.mxu0
  %2533 = vmatprep.subr.mxu0 %v2408
  %2534 = vmatpush1.msra.mxu0 %v2407
  %2535 = vmatprep.subr.mxu0 %v2424
  %2536 = vmatpush1.msra.mxu0 %v2423
  %2537 = vmatprep.subr.mxu0 0.0
  %2538 = vmatpush1.msra.mxu0 0.0
  %2539 = vmatprep.subr.mxu0 0.0
  %2540 = vmatpush1.msra.mxu0 0.0
  %2541 = vmatprep.subr.mxu0 0.0
  %2542 = vmatpush1.msra.mxu0 0.0
  %2543 = vmatprep.subr.mxu0 0.0
  %2544 = vmatpush1.msra.mxu0 0.0
  %2545 = vmatprep.subr.mxu0 0.0
  %2546 = vmatpush1.msra.mxu0 0.0
  %2547 = vmatprep.subr.mxu0 0.0
  %2548 = vmatpush1.msra.mxu0 0.0
  %2549 = vmatprep.subr.mxu0 0.0
  %2550 = vmatpush1.msra.mxu0 0.0
  %2551 = vmatprep.subr.mxu0 0.0
  %2552 = vmatpush1.msra.mxu0 0.0
  %2553 = vmatprep.subr.mxu0 0.0
  %2554 = vmatpush1.msra.mxu0 0.0
  %2555 = vmatprep.subr.mxu0 0.0
  %2556 = vmatpush1.msra.mxu0 0.0
  %2557 = vmatprep.subr.mxu0 0.0
  %2558 = vmatpush1.msra.mxu0 0.0
  %2559 = vmatprep.subr.mxu0 0.0
  %2560 = vmatpush1.msra.mxu0 0.0
  %2561 = vmatprep.subr.mxu0 0.0
  %2562 = vmatpush1.msra.mxu0 0.0
  %2563 = vmatprep.subr.mxu0 0.0
  %2564 = vmatpush1.msra.mxu0 0.0
  %2565 = vmatprep.subr.mxu0 0.0
  %2566 = vmatpush1.msra.mxu0 0.0
  %2567 = vmatprep.subr.mxu0 0.0
  %2568 = vmatpush1.msra.mxu0 0.0
  %2569 = vmatprep.subr.mxu0 0.0
  %2570 = vmatpush1.msra.mxu0 0.0
  %2571 = vmatprep.subr.mxu0 0.0
  %2572 = vmatpush1.msra.mxu0 0.0
  %2573 = vmatprep.subr.mxu0 0.0
  %2574 = vmatpush1.msra.mxu0 0.0
  %2575 = vmatprep.subr.mxu0 0.0
  %2576 = vmatpush1.msra.mxu0 0.0
  %2577 = vmatprep.subr.mxu0 0.0
  %2578 = vmatpush1.msra.mxu0 0.0
  %2579 = vmatprep.subr.mxu0 0.0
  %2580 = vmatpush1.msra.mxu0 0.0
  %2581 = vmatprep.subr.mxu0 0.0
  %2582 = vmatpush1.msra.mxu0 0.0
  %2583 = vmatprep.subr.mxu0 0.0
  %2584 = vmatpush1.msra.mxu0 0.0
  %2585 = vmatprep.subr.mxu0 0.0
  %2586 = vmatpush1.msra.mxu0 0.0
  %2587 = vmatprep.subr.mxu0 0.0
  %2588 = vmatpush1.msra.mxu0 0.0
  %2589 = vmatprep.subr.mxu0 0.0
  %2590 = vmatpush1.msra.mxu0 0.0
  %2591 = vmatprep.subr.mxu0 0.0
  %2592 = vmatpush1.msra.mxu0 0.0
  %2593 = vmatprep.subr.mxu0 0.0
  %2594 = vmatpush1.msra.mxu0 0.0
  %2595 = vmatprep.subr.mxu0 0.0
  %2596 = vmatpush1.msra.mxu0 0.0
  %2597 = vmatprep.mubr.f32.mxu0 0.0
  %2598 = vmatmul.mubr.f32.gmra.mrb[0].mxu0 %v2442
  %v2599 = vpop.f32.mrb[0].mxu0
  %v2600 = vadd.f32 0.0, %v2599
  %v2601 = vpop.f32.mrb[0].mxu0
  %v2602 = vadd.f32 0.0, %v2601
  %2603 = vmatprep.mubr.f32.mxu0 0.0
  %2604 = vmatmul.mubr.f32.gmra.mrb[0].mxu0 %v2445
  %v2605 = vpop.f32.mrb[0].mxu0
  %v2606 = vadd.f32 0.0, %v2605
  %v2607 = vpop.f32.mrb[0].mxu0
  %v2608 = vadd.f32 0.0, %v2607
  %2609 = vmatprep.mubr.f32.mxu0 0.0
  %2610 = vmatmul.mubr.f32.gmra.mrb[0].mxu0 %v2448
  %v2611 = vpop.f32.mrb[0].mxu0
  %v2612 = vadd.f32 0.0, %v2611
  %v2613 = vpop.f32.mrb[0].mxu0
  %v2614 = vadd.f32 0.0, %v2613
  %2615 = vdwg.mxu0
  %2616 = vmatprep.subr.mxu0 %v2410
  %2617 = vmatpush1.msra.mxu0 %v2409
  %2618 = vmatprep.subr.mxu0 %v2426
  %2619 = vmatpush1.msra.mxu0 %v2425
  %2620 = vmatprep.subr.mxu0 0.0
  %2621 = vmatpush1.msra.mxu0 0.0
  %2622 = vmatprep.subr.mxu0 0.0
  %2623 = vmatpush1.msra.mxu0 0.0
  %2624 = vmatprep.subr.mxu0 0.0
  %2625 = vmatpush1.msra.mxu0 0.0
  %2626 = vmatprep.subr.mxu0 0.0
  %2627 = vmatpush1.msra.mxu0 0.0
  %2628 = vmatprep.subr.mxu0 0.0
  %2629 = vmatpush1.msra.mxu0 0.0
  %2630 = vmatprep.subr.mxu0 0.0
  %2631 = vmatpush1.msra.mxu0 0.0
  %2632 = vmatprep.subr.mxu0 0.0
  %2633 = vmatpush1.msra.mxu0 0.0
  %2634 = vmatprep.subr.mxu0 0.0
  %2635 = vmatpush1.msra.mxu0 0.0
  %2636 = vmatprep.subr.mxu0 0.0
  %2637 = vmatpush1.msra.mxu0 0.0
  %2638 = vmatprep.subr.mxu0 0.0
  %2639 = vmatpush1.msra.mxu0 0.0
  %2640 = vmatprep.subr.mxu0 0.0
  %2641 = vmatpush1.msra.mxu0 0.0
  %2642 = vmatprep.subr.mxu0 0.0
  %2643 = vmatpush1.msra.mxu0 0.0
  %2644 = vmatprep.subr.mxu0 0.0
  %2645 = vmatpush1.msra.mxu0 0.0
  %2646 = vmatprep.subr.mxu0 0.0
  %2647 = vmatpush1.msra.mxu0 0.0
  %2648 = vmatprep.subr.mxu0 0.0
  %2649 = vmatpush1.msra.mxu0 0.0
  %2650 = vmatprep.subr.mxu0 0.0
  %2651 = vmatpush1.msra.mxu0 0.0
  %2652 = vmatprep.subr.mxu0 0.0
  %2653 = vmatpush1.msra.mxu0 0.0
  %2654 = vmatprep.subr.mxu0 0.0
  %2655 = vmatpush1.msra.mxu0 0.0
  %2656 = vmatprep.subr.mxu0 0.0
  %2657 = vmatpush1.msra.mxu0 0.0
  %2658 = vmatprep.subr.mxu0 0.0
  %2659 = vmatpush1.msra.mxu0 0.0
  %2660 = vmatprep.subr.mxu0 0.0
  %2661 = vmatpush1.msra.mxu0 0.0
  %2662 = vmatprep.subr.mxu0 0.0
  %2663 = vmatpush1.msra.mxu0 0.0
  %2664 = vmatprep.subr.mxu0 0.0
  %2665 = vmatpush1.msra.mxu0 0.0
  %2666 = vmatprep.subr.mxu0 0.0
  %2667 = vmatpush1.msra.mxu0 0.0
  %2668 = vmatprep.subr.mxu0 0.0
  %2669 = vmatpush1.msra.mxu0 0.0
  %2670 = vmatprep.subr.mxu0 0.0
  %2671 = vmatpush1.msra.mxu0 0.0
  %2672 = vmatprep.subr.mxu0 0.0
  %2673 = vmatpush1.msra.mxu0 0.0
  %2674 = vmatprep.subr.mxu0 0.0
  %2675 = vmatpush1.msra.mxu0 0.0
  %2676 = vmatprep.subr.mxu0 0.0
  %2677 = vmatpush1.msra.mxu0 0.0
  %2678 = vmatprep.subr.mxu0 0.0
  %2679 = vmatpush1.msra.mxu0 0.0
  %2680 = vmatprep.mubr.f32.mxu0 0.0
  %2681 = vmatmul.mubr.f32.gmra.mrb[0].mxu0 %v2442
  %v2682 = vpop.f32.mrb[0].mxu0
  %v2683 = vadd.f32 0.0, %v2682
  %v2684 = vpop.f32.mrb[0].mxu0
  %v2685 = vadd.f32 0.0, %v2684
  %2686 = vmatprep.mubr.f32.mxu0 0.0
  %2687 = vmatmul.mubr.f32.gmra.mrb[0].mxu0 %v2445
  %v2688 = vpop.f32.mrb[0].mxu0
  %v2689 = vadd.f32 0.0, %v2688
  %v2690 = vpop.f32.mrb[0].mxu0
  %v2691 = vadd.f32 0.0, %v2690
  %2692 = vmatprep.mubr.f32.mxu0 0.0
  %2693 = vmatmul.mubr.f32.gmra.mrb[0].mxu0 %v2448
  %v2694 = vpop.f32.mrb[0].mxu0
  %v2695 = vadd.f32 0.0, %v2694
  %v2696 = vpop.f32.mrb[0].mxu0
  %v2697 = vadd.f32 0.0, %v2696
  %2698 = vdwg.mxu0
  %2699 = vmatprep.subr.mxu0 %v2412
  %2700 = vmatpush1.msra.mxu0 %v2411
  %2701 = vmatprep.subr.mxu0 %v2428
  %2702 = vmatpush1.msra.mxu0 %v2427
  %2703 = vmatprep.subr.mxu0 0.0
  %2704 = vmatpush1.msra.mxu0 0.0
  %2705 = vmatprep.subr.mxu0 0.0
  %2706 = vmatpush1.msra.mxu0 0.0
  %2707 = vmatprep.subr.mxu0 0.0
  %2708 = vmatpush1.msra.mxu0 0.0
  %2709 = vmatprep.subr.mxu0 0.0
  %2710 = vmatpush1.msra.mxu0 0.0
  %2711 = vmatprep.subr.mxu0 0.0
  %2712 = vmatpush1.msra.mxu0 0.0
  %2713 = vmatprep.subr.mxu0 0.0
  %2714 = vmatpush1.msra.mxu0 0.0
  %2715 = vmatprep.subr.mxu0 0.0
  %2716 = vmatpush1.msra.mxu0 0.0
  %2717 = vmatprep.subr.mxu0 0.0
  %2718 = vmatpush1.msra.mxu0 0.0
  %2719 = vmatprep.subr.mxu0 0.0
  %2720 = vmatpush1.msra.mxu0 0.0
  %2721 = vmatprep.subr.mxu0 0.0
  %2722 = vmatpush1.msra.mxu0 0.0
  %2723 = vmatprep.subr.mxu0 0.0
  %2724 = vmatpush1.msra.mxu0 0.0
  %2725 = vmatprep.subr.mxu0 0.0
  %2726 = vmatpush1.msra.mxu0 0.0
  %2727 = vmatprep.subr.mxu0 0.0
  %2728 = vmatpush1.msra.mxu0 0.0
  %2729 = vmatprep.subr.mxu0 0.0
  %2730 = vmatpush1.msra.mxu0 0.0
  %2731 = vmatprep.subr.mxu0 0.0
  %2732 = vmatpush1.msra.mxu0 0.0
  %2733 = vmatprep.subr.mxu0 0.0
  %2734 = vmatpush1.msra.mxu0 0.0
  %2735 = vmatprep.subr.mxu0 0.0
  %2736 = vmatpush1.msra.mxu0 0.0
  %2737 = vmatprep.subr.mxu0 0.0
  %2738 = vmatpush1.msra.mxu0 0.0
  %2739 = vmatprep.subr.mxu0 0.0
  %2740 = vmatpush1.msra.mxu0 0.0
  %2741 = vmatprep.subr.mxu0 0.0
  %2742 = vmatpush1.msra.mxu0 0.0
  %2743 = vmatprep.subr.mxu0 0.0
  %2744 = vmatpush1.msra.mxu0 0.0
  %2745 = vmatprep.subr.mxu0 0.0
  %2746 = vmatpush1.msra.mxu0 0.0
  %2747 = vmatprep.subr.mxu0 0.0
  %2748 = vmatpush1.msra.mxu0 0.0
  %2749 = vmatprep.subr.mxu0 0.0
  %2750 = vmatpush1.msra.mxu0 0.0
  %2751 = vmatprep.subr.mxu0 0.0
  %2752 = vmatpush1.msra.mxu0 0.0
  %2753 = vmatprep.subr.mxu0 0.0
  %2754 = vmatpush1.msra.mxu0 0.0
  %2755 = vmatprep.subr.mxu0 0.0
  %2756 = vmatpush1.msra.mxu0 0.0
  %2757 = vmatprep.subr.mxu0 0.0
  %2758 = vmatpush1.msra.mxu0 0.0
  %2759 = vmatprep.subr.mxu0 0.0
  %2760 = vmatpush1.msra.mxu0 0.0
  %2761 = vmatprep.subr.mxu0 0.0
  %2762 = vmatpush1.msra.mxu0 0.0
  %2763 = vmatprep.mubr.f32.mxu0 0.0
  %2764 = vmatmul.mubr.f32.gmra.mrb[0].mxu0 %v2442
  %v2765 = vpop.f32.mrb[0].mxu0
  %v2766 = vadd.f32 0.0, %v2765
  %v2767 = vpop.f32.mrb[0].mxu0
  %v2768 = vadd.f32 0.0, %v2767
  %2769 = vmatprep.mubr.f32.mxu0 0.0
  %2770 = vmatmul.mubr.f32.gmra.mrb[0].mxu0 %v2445
  %v2771 = vpop.f32.mrb[0].mxu0
  %v2772 = vadd.f32 0.0, %v2771
  %v2773 = vpop.f32.mrb[0].mxu0
  %v2774 = vadd.f32 0.0, %v2773
  %2775 = vmatprep.mubr.f32.mxu0 0.0
  %2776 = vmatmul.mubr.f32.gmra.mrb[0].mxu0 %v2448
  %v2777 = vpop.f32.mrb[0].mxu0
  %v2778 = vadd.f32 0.0, %v2777
  %v2779 = vpop.f32.mrb[0].mxu0
  %v2780 = vadd.f32 0.0, %v2779
  %2781 = vdwg.mxu0
  %2782 = vmatprep.subr.mxu0 %v2414
  %2783 = vmatpush1.msra.mxu0 %v2413
  %2784 = vmatprep.subr.mxu0 %v2430
  %2785 = vmatpush1.msra.mxu0 %v2429
  %2786 = vmatprep.subr.mxu0 0.0
  %2787 = vmatpush1.msra.mxu0 0.0
  %2788 = vmatprep.subr.mxu0 0.0
  %2789 = vmatpush1.msra.mxu0 0.0
  %2790 = vmatprep.subr.mxu0 0.0
  %2791 = vmatpush1.msra.mxu0 0.0
  %2792 = vmatprep.subr.mxu0 0.0
  %2793 = vmatpush1.msra.mxu0 0.0
  %2794 = vmatprep.subr.mxu0 0.0
  %2795 = vmatpush1.msra.mxu0 0.0
  %2796 = vmatprep.subr.mxu0 0.0
  %2797 = vmatpush1.msra.mxu0 0.0
  %2798 = vmatprep.subr.mxu0 0.0
  %2799 = vmatpush1.msra.mxu0 0.0
  %2800 = vmatprep.subr.mxu0 0.0
  %2801 = vmatpush1.msra.mxu0 0.0
  %2802 = vmatprep.subr.mxu0 0.0
  %2803 = vmatpush1.msra.mxu0 0.0
  %2804 = vmatprep.subr.mxu0 0.0
  %2805 = vmatpush1.msra.mxu0 0.0
  %2806 = vmatprep.subr.mxu0 0.0
  %2807 = vmatpush1.msra.mxu0 0.0
  %2808 = vmatprep.subr.mxu0 0.0
  %2809 = vmatpush1.msra.mxu0 0.0
  %2810 = vmatprep.subr.mxu0 0.0
  %2811 = vmatpush1.msra.mxu0 0.0
  %2812 = vmatprep.subr.mxu0 0.0
  %2813 = vmatpush1.msra.mxu0 0.0
  %2814 = vmatprep.subr.mxu0 0.0
  %2815 = vmatpush1.msra.mxu0 0.0
  %2816 = vmatprep.subr.mxu0 0.0
  %2817 = vmatpush1.msra.mxu0 0.0
  %2818 = vmatprep.subr.mxu0 0.0
  %2819 = vmatpush1.msra.mxu0 0.0
  %2820 = vmatprep.subr.mxu0 0.0
  %2821 = vmatpush1.msra.mxu0 0.0
  %2822 = vmatprep.subr.mxu0 0.0
  %2823 = vmatpush1.msra.mxu0 0.0
  %2824 = vmatprep.subr.mxu0 0.0
  %2825 = vmatpush1.msra.mxu0 0.0
  %2826 = vmatprep.subr.mxu0 0.0
  %2827 = vmatpush1.msra.mxu0 0.0
  %2828 = vmatprep.subr.mxu0 0.0
  %2829 = vmatpush1.msra.mxu0 0.0
  %2830 = vmatprep.subr.mxu0 0.0
  %2831 = vmatpush1.msra.mxu0 0.0
  %2832 = vmatprep.subr.mxu0 0.0
  %2833 = vmatpush1.msra.mxu0 0.0
  %2834 = vmatprep.subr.mxu0 0.0
  %2835 = vmatpush1.msra.mxu0 0.0
  %2836 = vmatprep.subr.mxu0 0.0
  %2837 = vmatpush1.msra.mxu0 0.0
  %2838 = vmatprep.subr.mxu0 0.0
  %2839 = vmatpush1.msra.mxu0 0.0
  %2840 = vmatprep.subr.mxu0 0.0
  %2841 = vmatpush1.msra.mxu0 0.0
  %2842 = vmatprep.subr.mxu0 0.0
  %2843 = vmatpush1.msra.mxu0 0.0
  %2844 = vmatprep.subr.mxu0 0.0
  %2845 = vmatpush1.msra.mxu0 0.0
  %2846 = vmatprep.mubr.f32.mxu0 0.0
  %2847 = vmatmul.mubr.f32.gmra.mrb[0].mxu0 %v2442
  %v2848 = vpop.f32.mrb[0].mxu0
  %v2849 = vadd.f32 0.0, %v2848
  %v2850 = vpop.f32.mrb[0].mxu0
  %v2851 = vadd.f32 0.0, %v2850
  %2852 = vmatprep.mubr.f32.mxu0 0.0
  %2853 = vmatmul.mubr.f32.gmra.mrb[0].mxu0 %v2445
  %v2854 = vpop.f32.mrb[0].mxu0
  %v2855 = vadd.f32 0.0, %v2854
  %v2856 = vpop.f32.mrb[0].mxu0
  %v2857 = vadd.f32 0.0, %v2856
  %2858 = vmatprep.mubr.f32.mxu0 0.0
  %2859 = vmatmul.mubr.f32.gmra.mrb[0].mxu0 %v2448
  %v2860 = vpop.f32.mrb[0].mxu0
  %v2861 = vadd.f32 0.0, %v2860
  %v2862 = vpop.f32.mrb[0].mxu0
  %v2863 = vadd.f32 0.0, %v2862
  %2864 = vdwg.mxu0
  %2865 = vmatprep.subr.mxu0 %v2416
  %2866 = vmatpush1.msra.mxu0 %v2415
  %2867 = vmatprep.subr.mxu0 %v2432
  %2868 = vmatpush1.msra.mxu0 %v2431
  %2869 = vmatprep.subr.mxu0 0.0
  %2870 = vmatpush1.msra.mxu0 0.0
  %2871 = vmatprep.subr.mxu0 0.0
  %2872 = vmatpush1.msra.mxu0 0.0
  %2873 = vmatprep.subr.mxu0 0.0
  %2874 = vmatpush1.msra.mxu0 0.0
  %2875 = vmatprep.subr.mxu0 0.0
  %2876 = vmatpush1.msra.mxu0 0.0
  %2877 = vmatprep.subr.mxu0 0.0
  %2878 = vmatpush1.msra.mxu0 0.0
  %2879 = vmatprep.subr.mxu0 0.0
  %2880 = vmatpush1.msra.mxu0 0.0
  %2881 = vmatprep.subr.mxu0 0.0
  %2882 = vmatpush1.msra.mxu0 0.0
  %2883 = vmatprep.subr.mxu0 0.0
  %2884 = vmatpush1.msra.mxu0 0.0
  %2885 = vmatprep.subr.mxu0 0.0
  %2886 = vmatpush1.msra.mxu0 0.0
  %2887 = vmatprep.subr.mxu0 0.0
  %2888 = vmatpush1.msra.mxu0 0.0
  %2889 = vmatprep.subr.mxu0 0.0
  %2890 = vmatpush1.msra.mxu0 0.0
  %2891 = vmatprep.subr.mxu0 0.0
  %2892 = vmatpush1.msra.mxu0 0.0
  %2893 = vmatprep.subr.mxu0 0.0
  %2894 = vmatpush1.msra.mxu0 0.0
  %2895 = vmatprep.subr.mxu0 0.0
  %2896 = vmatpush1.msra.mxu0 0.0
  %2897 = vmatprep.subr.mxu0 0.0
  %2898 = vmatpush1.msra.mxu0 0.0
  %2899 = vmatprep.subr.mxu0 0.0
  %2900 = vmatpush1.msra.mxu0 0.0
  %2901 = vmatprep.subr.mxu0 0.0
  %2902 = vmatpush1.msra.mxu0 0.0
  %2903 = vmatprep.subr.mxu0 0.0
  %2904 = vmatpush1.msra.mxu0 0.0
  %2905 = vmatprep.subr.mxu0 0.0
  %2906 = vmatpush1.msra.mxu0 0.0
  %2907 = vmatprep.subr.mxu0 0.0
  %2908 = vmatpush1.msra.mxu0 0.0
  %2909 = vmatprep.subr.mxu0 0.0
  %2910 = vmatpush1.msra.mxu0 0.0
  %2911 = vmatprep.subr.mxu0 0.0
  %2912 = vmatpush1.msra.mxu0 0.0
  %2913 = vmatprep.subr.mxu0 0.0
  %2914 = vmatpush1.msra.mxu0 0.0
  %2915 = vmatprep.subr.mxu0 0.0
  %2916 = vmatpush1.msra.mxu0 0.0
  %2917 = vmatprep.subr.mxu0 0.0
  %2918 = vmatpush1.msra.mxu0 0.0
  %2919 = vmatprep.subr.mxu0 0.0
  %2920 = vmatpush1.msra.mxu0 0.0
  %2921 = vmatprep.subr.mxu0 0.0
  %2922 = vmatpush1.msra.mxu0 0.0
  %2923 = vmatprep.subr.mxu0 0.0
  %2924 = vmatpush1.msra.mxu0 0.0
  %2925 = vmatprep.subr.mxu0 0.0
  %2926 = vmatpush1.msra.mxu0 0.0
  %2927 = vmatprep.subr.mxu0 0.0
  %2928 = vmatpush1.msra.mxu0 0.0
  %2929 = vmatprep.mubr.f32.mxu0 0.0
  %2930 = vmatmul.mubr.f32.gmra.mrb[0].mxu0 %v2442
  %v2931 = vpop.f32.mrb[0].mxu0
  %v2932 = vadd.f32 0.0, %v2931
  %v2933 = vpop.f32.mrb[0].mxu0
  %v2934 = vadd.f32 0.0, %v2933
  %2935 = vmatprep.mubr.f32.mxu0 0.0
  %2936 = vmatmul.mubr.f32.gmra.mrb[0].mxu0 %v2445
  %v2937 = vpop.f32.mrb[0].mxu0
  %v2938 = vadd.f32 0.0, %v2937
  %v2939 = vpop.f32.mrb[0].mxu0
  %v2940 = vadd.f32 0.0, %v2939
  %2941 = vmatprep.mubr.f32.mxu0 0.0
  %2942 = vmatmul.mubr.f32.gmra.mrb[0].mxu0 %v2448
  %v2943 = vpop.f32.mrb[0].mxu0
  %v2944 = vadd.f32 0.0, %v2943
  %v2945 = vpop.f32.mrb[0].mxu0
  %v2946 = vadd.f32 0.0, %v2945
  %2947 = vdwg.mxu0
  %2948 = vmatprep.subr.mxu0 %v2418
  %2949 = vmatpush1.msra.mxu0 %v2417
  %2950 = vmatprep.subr.mxu0 %v2434
  %2951 = vmatpush1.msra.mxu0 %v2433
  %2952 = vmatprep.subr.mxu0 0.0
  %2953 = vmatpush1.msra.mxu0 0.0
  %2954 = vmatprep.subr.mxu0 0.0
  %2955 = vmatpush1.msra.mxu0 0.0
  %2956 = vmatprep.subr.mxu0 0.0
  %2957 = vmatpush1.msra.mxu0 0.0
  %2958 = vmatprep.subr.mxu0 0.0
  %2959 = vmatpush1.msra.mxu0 0.0
  %2960 = vmatprep.subr.mxu0 0.0
  %2961 = vmatpush1.msra.mxu0 0.0
  %2962 = vmatprep.subr.mxu0 0.0
  %2963 = vmatpush1.msra.mxu0 0.0
  %2964 = vmatprep.subr.mxu0 0.0
  %2965 = vmatpush1.msra.mxu0 0.0
  %2966 = vmatprep.subr.mxu0 0.0
  %2967 = vmatpush1.msra.mxu0 0.0
  %2968 = vmatprep.subr.mxu0 0.0
  %2969 = vmatpush1.msra.mxu0 0.0
  %2970 = vmatprep.subr.mxu0 0.0
  %2971 = vmatpush1.msra.mxu0 0.0
  %2972 = vmatprep.subr.mxu0 0.0
  %2973 = vmatpush1.msra.mxu0 0.0
  %2974 = vmatprep.subr.mxu0 0.0
  %2975 = vmatpush1.msra.mxu0 0.0
  %2976 = vmatprep.subr.mxu0 0.0
  %2977 = vmatpush1.msra.mxu0 0.0
  %2978 = vmatprep.subr.mxu0 0.0
  %2979 = vmatpush1.msra.mxu0 0.0
  %2980 = vmatprep.subr.mxu0 0.0
  %2981 = vmatpush1.msra.mxu0 0.0
  %2982 = vmatprep.subr.mxu0 0.0
  %2983 = vmatpush1.msra.mxu0 0.0
  %2984 = vmatprep.subr.mxu0 0.0
  %2985 = vmatpush1.msra.mxu0 0.0
  %2986 = vmatprep.subr.mxu0 0.0
  %2987 = vmatpush1.msra.mxu0 0.0
  %2988 = vmatprep.subr.mxu0 0.0
  %2989 = vmatpush1.msra.mxu0 0.0
  %2990 = vmatprep.subr.mxu0 0.0
  %2991 = vmatpush1.msra.mxu0 0.0
  %2992 = vmatprep.subr.mxu0 0.0
  %2993 = vmatpush1.msra.mxu0 0.0
  %2994 = vmatprep.subr.mxu0 0.0
  %2995 = vmatpush1.msra.mxu0 0.0
  %2996 = vmatprep.subr.mxu0 0.0
  %2997 = vmatpush1.msra.mxu0 0.0
  %2998 = vmatprep.subr.mxu0 0.0
  %2999 = vmatpush1.msra.mxu0 0.0
  %3000 = vmatprep.subr.mxu0 0.0
  %3001 = vmatpush1.msra.mxu0 0.0
  %3002 = vmatprep.subr.mxu0 0.0
  %3003 = vmatpush1.msra.mxu0 0.0
  %3004 = vmatprep.subr.mxu0 0.0
  %3005 = vmatpush1.msra.mxu0 0.0
  %3006 = vmatprep.subr.mxu0 0.0
  %3007 = vmatpush1.msra.mxu0 0.0
  %3008 = vmatprep.subr.mxu0 0.0
  %3009 = vmatpush1.msra.mxu0 0.0
  %3010 = vmatprep.subr.mxu0 0.0
  %3011 = vmatpush1.msra.mxu0 0.0
  %3012 = vmatprep.mubr.f32.mxu0 0.0
  %3013 = vmatmul.mubr.f32.gmra.mrb[0].mxu0 %v2442
  %v3014 = vpop.f32.mrb[0].mxu0
  %v3015 = vadd.f32 0.0, %v3014
  %v3016 = vpop.f32.mrb[0].mxu0
  %v3017 = vadd.f32 0.0, %v3016
  %3018 = vmatprep.mubr.f32.mxu0 0.0
  %3019 = vmatmul.mubr.f32.gmra.mrb[0].mxu0 %v2445
  %v3020 = vpop.f32.mrb[0].mxu0
  %v3021 = vadd.f32 0.0, %v3020
  %v3022 = vpop.f32.mrb[0].mxu0
  %v3023 = vadd.f32 0.0, %v3022
  %3024 = vmatprep.mubr.f32.mxu0 0.0
  %3025 = vmatmul.mubr.f32.gmra.mrb[0].mxu0 %v2448
  %v3026 = vpop.f32.mrb[0].mxu0
  %v3027 = vadd.f32 0.0, %v3026
  %v3028 = vpop.f32.mrb[0].mxu0
  %v3029 = vadd.f32 0.0, %v3028
  %3030 = vdwg.mxu0
  %3031 = vmatprep.subr.mxu0 %v2420
  %3032 = vmatpush1.msra.mxu0 %v2419
  %3033 = vmatprep.subr.mxu0 %v2436
  %3034 = vmatpush1.msra.mxu0 %v2435
  %3035 = vmatprep.subr.mxu0 0.0
  %3036 = vmatpush1.msra.mxu0 0.0
  %3037 = vmatprep.subr.mxu0 0.0
  %3038 = vmatpush1.msra.mxu0 0.0
  %3039 = vmatprep.subr.mxu0 0.0
  %3040 = vmatpush1.msra.mxu0 0.0
  %3041 = vmatprep.subr.mxu0 0.0
  %3042 = vmatpush1.msra.mxu0 0.0
  %3043 = vmatprep.subr.mxu0 0.0
  %3044 = vmatpush1.msra.mxu0 0.0
  %3045 = vmatprep.subr.mxu0 0.0
  %3046 = vmatpush1.msra.mxu0 0.0
  %3047 = vmatprep.subr.mxu0 0.0
  %3048 = vmatpush1.msra.mxu0 0.0
  %3049 = vmatprep.subr.mxu0 0.0
  %3050 = vmatpush1.msra.mxu0 0.0
  %3051 = vmatprep.subr.mxu0 0.0
  %3052 = vmatpush1.msra.mxu0 0.0
  %3053 = vmatprep.subr.mxu0 0.0
  %3054 = vmatpush1.msra.mxu0 0.0
  %3055 = vmatprep.subr.mxu0 0.0
  %3056 = vmatpush1.msra.mxu0 0.0
  %3057 = vmatprep.subr.mxu0 0.0
  %3058 = vmatpush1.msra.mxu0 0.0
  %3059 = vmatprep.subr.mxu0 0.0
  %3060 = vmatpush1.msra.mxu0 0.0
  %3061 = vmatprep.subr.mxu0 0.0
  %3062 = vmatpush1.msra.mxu0 0.0
  %3063 = vmatprep.subr.mxu0 0.0
  %3064 = vmatpush1.msra.mxu0 0.0
  %3065 = vmatprep.subr.mxu0 0.0
  %3066 = vmatpush1.msra.mxu0 0.0
  %3067 = vmatprep.subr.mxu0 0.0
  %3068 = vmatpush1.msra.mxu0 0.0
  %3069 = vmatprep.subr.mxu0 0.0
  %3070 = vmatpush1.msra.mxu0 0.0
  %3071 = vmatprep.subr.mxu0 0.0
  %3072 = vmatpush1.msra.mxu0 0.0
  %3073 = vmatprep.subr.mxu0 0.0
  %3074 = vmatpush1.msra.mxu0 0.0
  %3075 = vmatprep.subr.mxu0 0.0
  %3076 = vmatpush1.msra.mxu0 0.0
  %3077 = vmatprep.subr.mxu0 0.0
  %3078 = vmatpush1.msra.mxu0 0.0
  %3079 = vmatprep.subr.mxu0 0.0
  %3080 = vmatpush1.msra.mxu0 0.0
  %3081 = vmatprep.subr.mxu0 0.0
  %3082 = vmatpush1.msra.mxu0 0.0
  %3083 = vmatprep.subr.mxu0 0.0
  %3084 = vmatpush1.msra.mxu0 0.0
  %3085 = vmatprep.subr.mxu0 0.0
  %3086 = vmatpush1.msra.mxu0 0.0
  %3087 = vmatprep.subr.mxu0 0.0
  %3088 = vmatpush1.msra.mxu0 0.0
  %3089 = vmatprep.subr.mxu0 0.0
  %3090 = vmatpush1.msra.mxu0 0.0
  %3091 = vmatprep.subr.mxu0 0.0
  %3092 = vmatpush1.msra.mxu0 0.0
  %3093 = vmatprep.subr.mxu0 0.0
  %3094 = vmatpush1.msra.mxu0 0.0
  %3095 = vmatprep.mubr.f32.mxu0 0.0
  %3096 = vmatmul.mubr.f32.gmra.mrb[0].mxu0 %v2442
  %v3097 = vpop.f32.mrb[0].mxu0
  %v3098 = vadd.f32 0.0, %v3097
  %v3099 = vpop.f32.mrb[0].mxu0
  %v3100 = vadd.f32 0.0, %v3099
  %3101 = vmatprep.mubr.f32.mxu0 0.0
  %3102 = vmatmul.mubr.f32.gmra.mrb[0].mxu0 %v2445
  %v3103 = vpop.f32.mrb[0].mxu0
  %v3104 = vadd.f32 0.0, %v3103
  %v3105 = vpop.f32.mrb[0].mxu0
  %v3106 = vadd.f32 0.0, %v3105
  %3107 = vmatprep.mubr.f32.mxu0 0.0
  %3108 = vmatmul.mubr.f32.gmra.mrb[0].mxu0 %v2448
  %v3109 = vpop.f32.mrb[0].mxu0
  %v3110 = vadd.f32 0.0, %v3109
  %v3111 = vpop.f32.mrb[0].mxu0
  %v3112 = vadd.f32 0.0, %v3111
  %3113 = vdwg.mxu0
  %v3114 = vld [vmem:[%s8] sm:$0xff]
  %v3115 = vld [vmem:[%s8 + $0x8] sm:$0xff]
  %v3116 = vld [vmem:[%s8 + $0x10] sm:$0xff]
  %3118 = vset.pattern.permute.xlu0 0
  %3119 = vperm.xlu0 %3118, %v3114
  %v3120 = vpop.permute.xlu0 %3119
  %3123 = vset.pattern.permute.xlu0 0
  %3124 = vperm.xlu0 %3123, %v3115
  %v3125 = vpop.permute.xlu0 %3124
  %3128 = vset.pattern.permute.xlu0 0
  %3129 = vperm.xlu0 %3128, %v3116
  %v3130 = vpop.permute.xlu0 %3129
  %v3132 = vmul.f32 %v3120, %v2517
  %v3133 = vmul.f32 %v3120, %v2519
  %v3134 = vmul.f32 %v3120, %v2600
  %v3135 = vmul.f32 %v3120, %v2602
  %v3136 = vmul.f32 %v3120, %v2683
  %v3137 = vmul.f32 %v3120, %v2685
  %v3138 = vmul.f32 %v3120, %v2766
  %v3139 = vmul.f32 %v3120, %v2768
  %v3140 = vmul.f32 %v3120, %v2849
  %v3141 = vmul.f32 %v3120, %v2851
  %v3142 = vmul.f32 %v3120, %v2932
  %v3143 = vmul.f32 %v3120, %v2934
  %v3144 = vmul.f32 %v3120, %v3015
  %v3145 = vmul.f32 %v3120, %v3017
  %v3146 = vmul.f32 %v3120, %v3098
  %v3147 = vmul.f32 %v3120, %v3100
  %v3148 = vmul.f32 %v3125, %v2523
  %v3149 = vmul.f32 %v3125, %v2525
  %v3150 = vmul.f32 %v3125, %v2606
  %v3151 = vmul.f32 %v3125, %v2608
  %v3152 = vmul.f32 %v3125, %v2689
  %v3153 = vmul.f32 %v3125, %v2691
  %v3154 = vmul.f32 %v3125, %v2772
  %v3155 = vmul.f32 %v3125, %v2774
  %v3156 = vmul.f32 %v3125, %v2855
  %v3157 = vmul.f32 %v3125, %v2857
  %v3158 = vmul.f32 %v3125, %v2938
  %v3159 = vmul.f32 %v3125, %v2940
  %v3160 = vmul.f32 %v3125, %v3021
  %v3161 = vmul.f32 %v3125, %v3023
  %v3162 = vmul.f32 %v3125, %v3104
  %v3163 = vmul.f32 %v3125, %v3106
  %v3164 = vmul.f32 %v3130, %v2529
  %v3165 = vmul.f32 %v3130, %v2531
  %v3166 = vmul.f32 %v3130, %v2612
  %v3167 = vmul.f32 %v3130, %v2614
  %v3168 = vmul.f32 %v3130, %v2695
  %v3169 = vmul.f32 %v3130, %v2697
  %v3170 = vmul.f32 %v3130, %v2778
  %v3171 = vmul.f32 %v3130, %v2780
  %v3172 = vmul.f32 %v3130, %v2861
  %v3173 = vmul.f32 %v3130, %v2863
  %v3174 = vmul.f32 %v3130, %v2944
  %v3175 = vmul.f32 %v3130, %v2946
  %v3176 = vmul.f32 %v3130, %v3027
  %v3177 = vmul.f32 %v3130, %v3029
  %v3178 = vmul.f32 %v3130, %v3110
  %v3179 = vmul.f32 %v3130, %v3112
  %v3180 = vld [vmem:[%s9] sm:$0xff]
  %v3181 = vld [vmem:[%s9 + $0x8] sm:$0xff]
  %v3182 = vld [vmem:[%s9 + $0x10] sm:$0xff]
  %3184 = vset.pattern.permute.xlu0 0
  %3185 = vperm.xlu0 %3184, %v3180
  %v3186 = vpop.permute.xlu0 %3185
  %3189 = vset.pattern.permute.xlu0 0
  %3190 = vperm.xlu0 %3189, %v3181
  %v3191 = vpop.permute.xlu0 %3190
  %3194 = vset.pattern.permute.xlu0 0
  %3195 = vperm.xlu0 %3194, %v3182
  %v3196 = vpop.permute.xlu0 %3195
  %v3198 = vadd.f32 %v3132, %v3186
  %v3199 = vadd.f32 %v3133, %v3186
  %v3200 = vadd.f32 %v3134, %v3186
  %v3201 = vadd.f32 %v3135, %v3186
  %v3202 = vadd.f32 %v3136, %v3186
  %v3203 = vadd.f32 %v3137, %v3186
  %v3204 = vadd.f32 %v3138, %v3186
  %v3205 = vadd.f32 %v3139, %v3186
  %v3206 = vadd.f32 %v3140, %v3186
  %v3207 = vadd.f32 %v3141, %v3186
  %v3208 = vadd.f32 %v3142, %v3186
  %v3209 = vadd.f32 %v3143, %v3186
  %v3210 = vadd.f32 %v3144, %v3186
  %v3211 = vadd.f32 %v3145, %v3186
  %v3212 = vadd.f32 %v3146, %v3186
  %v3213 = vadd.f32 %v3147, %v3186
  %v3214 = vadd.f32 %v3148, %v3191
  %v3215 = vadd.f32 %v3149, %v3191
  %v3216 = vadd.f32 %v3150, %v3191
  %v3217 = vadd.f32 %v3151, %v3191
  %v3218 = vadd.f32 %v3152, %v3191
  %v3219 = vadd.f32 %v3153, %v3191
  %v3220 = vadd.f32 %v3154, %v3191
  %v3221 = vadd.f32 %v3155, %v3191
  %v3222 = vadd.f32 %v3156, %v3191
  %v3223 = vadd.f32 %v3157, %v3191
  %v3224 = vadd.f32 %v3158, %v3191
  %v3225 = vadd.f32 %v3159, %v3191
  %v3226 = vadd.f32 %v3160, %v3191
  %v3227 = vadd.f32 %v3161, %v3191
  %v3228 = vadd.f32 %v3162, %v3191
  %v3229 = vadd.f32 %v3163, %v3191
  %v3230 = vadd.f32 %v3164, %v3196
  %v3231 = vadd.f32 %v3165, %v3196
  %v3232 = vadd.f32 %v3166, %v3196
  %v3233 = vadd.f32 %v3167, %v3196
  %v3234 = vadd.f32 %v3168, %v3196
  %v3235 = vadd.f32 %v3169, %v3196
  %v3236 = vadd.f32 %v3170, %v3196
  %v3237 = vadd.f32 %v3171, %v3196
  %v3238 = vadd.f32 %v3172, %v3196
  %v3239 = vadd.f32 %v3173, %v3196
  %v3240 = vadd.f32 %v3174, %v3196
  %v3241 = vadd.f32 %v3175, %v3196
  %v3242 = vadd.f32 %v3176, %v3196
  %v3243 = vadd.f32 %v3177, %v3196
  %v3244 = vadd.f32 %v3178, %v3196
  %v3245 = vadd.f32 %v3179, %v3196
  %v3246 = vmax.f32 %v3198, 0.0
  %v3247 = vmax.f32 %v3199, 0.0
  %v3248 = vmax.f32 %v3200, 0.0
  %v3249 = vmax.f32 %v3201, 0.0
  %v3250 = vmax.f32 %v3202, 0.0
  %v3251 = vmax.f32 %v3203, 0.0
  %v3252 = vmax.f32 %v3204, 0.0
  %v3253 = vmax.f32 %v3205, 0.0
  %v3254 = vmax.f32 %v3206, 0.0
  %v3255 = vmax.f32 %v3207, 0.0
  %v3256 = vmax.f32 %v3208, 0.0
  %v3257 = vmax.f32 %v3209, 0.0
  %v3258 = vmax.f32 %v3210, 0.0
  %v3259 = vmax.f32 %v3211, 0.0
  %v3260 = vmax.f32 %v3212, 0.0
  %v3261 = vmax.f32 %v3213, 0.0
  %v3262 = vmax.f32 %v3214, 0.0
  %v3263 = vmax.f32 %v3215, 0.0
  %v3264 = vmax.f32 %v3216, 0.0
  %v3265 = vmax.f32 %v3217, 0.0
  %v3266 = vmax.f32 %v3218, 0.0
  %v3267 = vmax.f32 %v3219, 0.0
  %v3268 = vmax.f32 %v3220, 0.0
  %v3269 = vmax.f32 %v3221, 0.0
  %v3270 = vmax.f32 %v3222, 0.0
  %v3271 = vmax.f32 %v3223, 0.0
  %v3272 = vmax.f32 %v3224, 0.0
  %v3273 = vmax.f32 %v3225, 0.0
  %v3274 = vmax.f32 %v3226, 0.0
  %v3275 = vmax.f32 %v3227, 0.0
  %v3276 = vmax.f32 %v3228, 0.0
  %v3277 = vmax.f32 %v3229, 0.0
  %v3278 = vmax.f32 %v3230, 0.0
  %v3279 = vmax.f32 %v3231, 0.0
  %v3280 = vmax.f32 %v3232, 0.0
  %v3281 = vmax.f32 %v3233, 0.0
  %v3282 = vmax.f32 %v3234, 0.0
  %v3283 = vmax.f32 %v3235, 0.0
  %v3284 = vmax.f32 %v3236, 0.0
  %v3285 = vmax.f32 %v3237, 0.0
  %v3286 = vmax.f32 %v3238, 0.0
  %v3287 = vmax.f32 %v3239, 0.0
  %v3288 = vmax.f32 %v3240, 0.0
  %v3289 = vmax.f32 %v3241, 0.0
  %v3290 = vmax.f32 %v3242, 0.0
  %v3291 = vmax.f32 %v3243, 0.0
  %v3292 = vmax.f32 %v3244, 0.0
  %v3293 = vmax.f32 %v3245, 0.0
  %3294 = vxpose.xlu0.b32.start [1/16] %v3246, 128
  %3295 = vxpose.xlu0.b32.cont [2/16] %v3262, 128
  %3296 = vxpose.xlu0.b32.cont [3/16] %v3278, 128
  %3297 = vxpose.xlu0.b32.cont [4/16] 0.0, 128
  %3298 = vxpose.xlu0.b32.cont [5/16] 0.0, 128
  %3299 = vxpose.xlu0.b32.cont [6/16] 0.0, 128
  %3300 = vxpose.xlu0.b32.cont [7/16] 0.0, 128
  %3301 = vxpose.xlu0.b32.cont [8/16] 0.0, 128
  %3302 = vxpose.xlu0.b32.cont [9/16] 0.0, 128
  %3303 = vxpose.xlu0.b32.cont [10/16] 0.0, 128
  %3304 = vxpose.xlu0.b32.cont [11/16] 0.0, 128
  %3305 = vxpose.xlu0.b32.cont [12/16] 0.0, 128
  %3306 = vxpose.xlu0.b32.cont [13/16] 0.0, 128
  %3307 = vxpose.xlu0.b32.cont [14/16] 0.0, 128
  %3308 = vxpose.xlu0.b32.cont [15/16] 0.0, 128
  %3309 = vxpose.xlu0.b32.end [16/16] 0.0, 128
  %v3310 = vpop.trf.xlu0
  %v3311 = vpop.trf.xlu0
  %v3312 = vpop.trf.xlu0
  %v3313 = vpop.trf.xlu0
  %v3314 = vpop.trf.xlu0
  %v3315 = vpop.trf.xlu0
  %v3316 = vpop.trf.xlu0
  %v3317 = vpop.trf.xlu0
  %v3318 = vpop.trf.xlu0
  %v3319 = vpop.trf.xlu0
  %v3320 = vpop.trf.xlu0
  %v3321 = vpop.trf.xlu0
  %v3322 = vpop.trf.xlu0
  %v3323 = vpop.trf.xlu0
  %v3324 = vpop.trf.xlu0
  %v3325 = vpop.trf.xlu0
  %3326 = vxpose.xlu0.b32.start [1/16] %v3247, 128
  %3327 = vxpose.xlu0.b32.cont [2/16] %v3263, 128
  %3328 = vxpose.xlu0.b32.cont [3/16] %v3279, 128
  %3329 = vxpose.xlu0.b32.cont [4/16] 0.0, 128
  %3330 = vxpose.xlu0.b32.cont [5/16] 0.0, 128
  %3331 = vxpose.xlu0.b32.cont [6/16] 0.0, 128
  %3332 = vxpose.xlu0.b32.cont [7/16] 0.0, 128
  %3333 = vxpose.xlu0.b32.cont [8/16] 0.0, 128
  %3334 = vxpose.xlu0.b32.cont [9/16] 0.0, 128
  %3335 = vxpose.xlu0.b32.cont [10/16] 0.0, 128
  %3336 = vxpose.xlu0.b32.cont [11/16] 0.0, 128
  %3337 = vxpose.xlu0.b32.cont [12/16] 0.0, 128
  %3338 = vxpose.xlu0.b32.cont [13/16] 0.0, 128
  %3339 = vxpose.xlu0.b32.cont [14/16] 0.0, 128
  %3340 = vxpose.xlu0.b32.cont [15/16] 0.0, 128
  %3341 = vxpose.xlu0.b32.end [16/16] 0.0, 128
  %v3342 = vpop.trf.xlu0
  %v3343 = vpop.trf.xlu0
  %v3344 = vpop.trf.xlu0
  %v3345 = vpop.trf.xlu0
  %v3346 = vpop.trf.xlu0
  %v3347 = vpop.trf.xlu0
  %v3348 = vpop.trf.xlu0
  %v3349 = vpop.trf.xlu0
  %v3350 = vpop.trf.xlu0
  %v3351 = vpop.trf.xlu0
  %v3352 = vpop.trf.xlu0
  %v3353 = vpop.trf.xlu0
  %v3354 = vpop.trf.xlu0
  %v3355 = vpop.trf.xlu0
  %v3356 = vpop.trf.xlu0
  %v3357 = vpop.trf.xlu0
  %3358 = vxpose.xlu0.b32.start [1/16] %v3248, 128
  %3359 = vxpose.xlu0.b32.cont [2/16] %v3264, 128
  %3360 = vxpose.xlu0.b32.cont [3/16] %v3280, 128
  %3361 = vxpose.xlu0.b32.cont [4/16] 0.0, 128
  %3362 = vxpose.xlu0.b32.cont [5/16] 0.0, 128
  %3363 = vxpose.xlu0.b32.cont [6/16] 0.0, 128
  %3364 = vxpose.xlu0.b32.cont [7/16] 0.0, 128
  %3365 = vxpose.xlu0.b32.cont [8/16] 0.0, 128
  %3366 = vxpose.xlu0.b32.cont [9/16] 0.0, 128
  %3367 = vxpose.xlu0.b32.cont [10/16] 0.0, 128
  %3368 = vxpose.xlu0.b32.cont [11/16] 0.0, 128
  %3369 = vxpose.xlu0.b32.cont [12/16] 0.0, 128
  %3370 = vxpose.xlu0.b32.cont [13/16] 0.0, 128
  %3371 = vxpose.xlu0.b32.cont [14/16] 0.0, 128
  %3372 = vxpose.xlu0.b32.cont [15/16] 0.0, 128
  %3373 = vxpose.xlu0.b32.end [16/16] 0.0, 128
  %v3374 = vpop.trf.xlu0
  %v3375 = vpop.trf.xlu0
  %v3376 = vpop.trf.xlu0
  %v3377 = vpop.trf.xlu0
  %v3378 = vpop.trf.xlu0
  %v3379 = vpop.trf.xlu0
  %v3380 = vpop.trf.xlu0
  %v3381 = vpop.trf.xlu0
  %v3382 = vpop.trf.xlu0
  %v3383 = vpop.trf.xlu0
  %v3384 = vpop.trf.xlu0
  %v3385 = vpop.trf.xlu0
  %v3386 = vpop.trf.xlu0
  %v3387 = vpop.trf.xlu0
  %v3388 = vpop.trf.xlu0
  %v3389 = vpop.trf.xlu0
  %3390 = vxpose.xlu0.b32.start [1/16] %v3249, 128
  %3391 = vxpose.xlu0.b32.cont [2/16] %v3265, 128
  %3392 = vxpose.xlu0.b32.cont [3/16] %v3281, 128
  %3393 = vxpose.xlu0.b32.cont [4/16] 0.0, 128
  %3394 = vxpose.xlu0.b32.cont [5/16] 0.0, 128
  %3395 = vxpose.xlu0.b32.cont [6/16] 0.0, 128
  %3396 = vxpose.xlu0.b32.cont [7/16] 0.0, 128
  %3397 = vxpose.xlu0.b32.cont [8/16] 0.0, 128
  %3398 = vxpose.xlu0.b32.cont [9/16] 0.0, 128
  %3399 = vxpose.xlu0.b32.cont [10/16] 0.0, 128
  %3400 = vxpose.xlu0.b32.cont [11/16] 0.0, 128
  %3401 = vxpose.xlu0.b32.cont [12/16] 0.0, 128
  %3402 = vxpose.xlu0.b32.cont [13/16] 0.0, 128
  %3403 = vxpose.xlu0.b32.cont [14/16] 0.0, 128
  %3404 = vxpose.xlu0.b32.cont [15/16] 0.0, 128
  %3405 = vxpose.xlu0.b32.end [16/16] 0.0, 128
  %v3406 = vpop.trf.xlu0
  %v3407 = vpop.trf.xlu0
  %v3408 = vpop.trf.xlu0
  %v3409 = vpop.trf.xlu0
  %v3410 = vpop.trf.xlu0
  %v3411 = vpop.trf.xlu0
  %v3412 = vpop.trf.xlu0
  %v3413 = vpop.trf.xlu0
  %v3414 = vpop.trf.xlu0
  %v3415 = vpop.trf.xlu0
  %v3416 = vpop.trf.xlu0
  %v3417 = vpop.trf.xlu0
  %v3418 = vpop.trf.xlu0
  %v3419 = vpop.trf.xlu0
  %v3420 = vpop.trf.xlu0
  %v3421 = vpop.trf.xlu0
  %3422 = vxpose.xlu0.b32.start [1/16] %v3250, 128
  %3423 = vxpose.xlu0.b32.cont [2/16] %v3266, 128
  %3424 = vxpose.xlu0.b32.cont [3/16] %v3282, 128
  %3425 = vxpose.xlu0.b32.cont [4/16] 0.0, 128
  %3426 = vxpose.xlu0.b32.cont [5/16] 0.0, 128
  %3427 = vxpose.xlu0.b32.cont [6/16] 0.0, 128
  %3428 = vxpose.xlu0.b32.cont [7/16] 0.0, 128
  %3429 = vxpose.xlu0.b32.cont [8/16] 0.0, 128
  %3430 = vxpose.xlu0.b32.cont [9/16] 0.0, 128
  %3431 = vxpose.xlu0.b32.cont [10/16] 0.0, 128
  %3432 = vxpose.xlu0.b32.cont [11/16] 0.0, 128
  %3433 = vxpose.xlu0.b32.cont [12/16] 0.0, 128
  %3434 = vxpose.xlu0.b32.cont [13/16] 0.0, 128
  %3435 = vxpose.xlu0.b32.cont [14/16] 0.0, 128
  %3436 = vxpose.xlu0.b32.cont [15/16] 0.0, 128
  %3437 = vxpose.xlu0.b32.end [16/16] 0.0, 128
  %v3438 = vpop.trf.xlu0
  %v3439 = vpop.trf.xlu0
  %v3440 = vpop.trf.xlu0
  %v3441 = vpop.trf.xlu0
  %v3442 = vpop.trf.xlu0
  %v3443 = vpop.trf.xlu0
  %v3444 = vpop.trf.xlu0
  %v3445 = vpop.trf.xlu0
  %v3446 = vpop.trf.xlu0
  %v3447 = vpop.trf.xlu0
  %v3448 = vpop.trf.xlu0
  %v3449 = vpop.trf.xlu0
  %v3450 = vpop.trf.xlu0
  %v3451 = vpop.trf.xlu0
  %v3452 = vpop.trf.xlu0
  %v3453 = vpop.trf.xlu0
  %3454 = vxpose.xlu0.b32.start [1/16] %v3251, 128
  %3455 = vxpose.xlu0.b32.cont [2/16] %v3267, 128
  %3456 = vxpose.xlu0.b32.cont [3/16] %v3283, 128
  %3457 = vxpose.xlu0.b32.cont [4/16] 0.0, 128
  %3458 = vxpose.xlu0.b32.cont [5/16] 0.0, 128
  %3459 = vxpose.xlu0.b32.cont [6/16] 0.0, 128
  %3460 = vxpose.xlu0.b32.cont [7/16] 0.0, 128
  %3461 = vxpose.xlu0.b32.cont [8/16] 0.0, 128
  %3462 = vxpose.xlu0.b32.cont [9/16] 0.0, 128
  %3463 = vxpose.xlu0.b32.cont [10/16] 0.0, 128
  %3464 = vxpose.xlu0.b32.cont [11/16] 0.0, 128
  %3465 = vxpose.xlu0.b32.cont [12/16] 0.0, 128
  %3466 = vxpose.xlu0.b32.cont [13/16] 0.0, 128
  %3467 = vxpose.xlu0.b32.cont [14/16] 0.0, 128
  %3468 = vxpose.xlu0.b32.cont [15/16] 0.0, 128
  %3469 = vxpose.xlu0.b32.end [16/16] 0.0, 128
  %v3470 = vpop.trf.xlu0
  %v3471 = vpop.trf.xlu0
  %v3472 = vpop.trf.xlu0
  %v3473 = vpop.trf.xlu0
  %v3474 = vpop.trf.xlu0
  %v3475 = vpop.trf.xlu0
  %v3476 = vpop.trf.xlu0
  %v3477 = vpop.trf.xlu0
  %v3478 = vpop.trf.xlu0
  %v3479 = vpop.trf.xlu0
  %v3480 = vpop.trf.xlu0
  %v3481 = vpop.trf.xlu0
  %v3482 = vpop.trf.xlu0
  %v3483 = vpop.trf.xlu0
  %v3484 = vpop.trf.xlu0
  %v3485 = vpop.trf.xlu0
  %3486 = vxpose.xlu0.b32.start [1/16] %v3252, 128
  %3487 = vxpose.xlu0.b32.cont [2/16] %v3268, 128
  %3488 = vxpose.xlu0.b32.cont [3/16] %v3284, 128
  %3489 = vxpose.xlu0.b32.cont [4/16] 0.0, 128
  %3490 = vxpose.xlu0.b32.cont [5/16] 0.0, 128
  %3491 = vxpose.xlu0.b32.cont [6/16] 0.0, 128
  %3492 = vxpose.xlu0.b32.cont [7/16] 0.0, 128
  %3493 = vxpose.xlu0.b32.cont [8/16] 0.0, 128
  %3494 = vxpose.xlu0.b32.cont [9/16] 0.0, 128
  %3495 = vxpose.xlu0.b32.cont [10/16] 0.0, 128
  %3496 = vxpose.xlu0.b32.cont [11/16] 0.0, 128
  %3497 = vxpose.xlu0.b32.cont [12/16] 0.0, 128
  %3498 = vxpose.xlu0.b32.cont [13/16] 0.0, 128
  %3499 = vxpose.xlu0.b32.cont [14/16] 0.0, 128
  %3500 = vxpose.xlu0.b32.cont [15/16] 0.0, 128
  %3501 = vxpose.xlu0.b32.end [16/16] 0.0, 128
  %v3502 = vpop.trf.xlu0
  %v3503 = vpop.trf.xlu0
  %v3504 = vpop.trf.xlu0
  %v3505 = vpop.trf.xlu0
  %v3506 = vpop.trf.xlu0
  %v3507 = vpop.trf.xlu0
  %v3508 = vpop.trf.xlu0
  %v3509 = vpop.trf.xlu0
  %v3510 = vpop.trf.xlu0
  %v3511 = vpop.trf.xlu0
  %v3512 = vpop.trf.xlu0
  %v3513 = vpop.trf.xlu0
  %v3514 = vpop.trf.xlu0
  %v3515 = vpop.trf.xlu0
  %v3516 = vpop.trf.xlu0
  %v3517 = vpop.trf.xlu0
  %3518 = vxpose.xlu0.b32.start [1/16] %v3253, 128
  %3519 = vxpose.xlu0.b32.cont [2/16] %v3269, 128
  %3520 = vxpose.xlu0.b32.cont [3/16] %v3285, 128
  %3521 = vxpose.xlu0.b32.cont [4/16] 0.0, 128
  %3522 = vxpose.xlu0.b32.cont [5/16] 0.0, 128
  %3523 = vxpose.xlu0.b32.cont [6/16] 0.0, 128
  %3524 = vxpose.xlu0.b32.cont [7/16] 0.0, 128
  %3525 = vxpose.xlu0.b32.cont [8/16] 0.0, 128
  %3526 = vxpose.xlu0.b32.cont [9/16] 0.0, 128
  %3527 = vxpose.xlu0.b32.cont [10/16] 0.0, 128
  %3528 = vxpose.xlu0.b32.cont [11/16] 0.0, 128
  %3529 = vxpose.xlu0.b32.cont [12/16] 0.0, 128
  %3530 = vxpose.xlu0.b32.cont [13/16] 0.0, 128
  %3531 = vxpose.xlu0.b32.cont [14/16] 0.0, 128
  %3532 = vxpose.xlu0.b32.cont [15/16] 0.0, 128
  %3533 = vxpose.xlu0.b32.end [16/16] 0.0, 128
  %v3534 = vpop.trf.xlu0
  %v3535 = vpop.trf.xlu0
  %v3536 = vpop.trf.xlu0
  %v3537 = vpop.trf.xlu0
  %v3538 = vpop.trf.xlu0
  %v3539 = vpop.trf.xlu0
  %v3540 = vpop.trf.xlu0
  %v3541 = vpop.trf.xlu0
  %v3542 = vpop.trf.xlu0
  %v3543 = vpop.trf.xlu0
  %v3544 = vpop.trf.xlu0
  %v3545 = vpop.trf.xlu0
  %v3546 = vpop.trf.xlu0
  %v3547 = vpop.trf.xlu0
  %v3548 = vpop.trf.xlu0
  %v3549 = vpop.trf.xlu0
  %3550 = vxpose.xlu0.b32.start [1/16] %v3254, 128
  %3551 = vxpose.xlu0.b32.cont [2/16] %v3270, 128
  %3552 = vxpose.xlu0.b32.cont [3/16] %v3286, 128
  %3553 = vxpose.xlu0.b32.cont [4/16] 0.0, 128
  %3554 = vxpose.xlu0.b32.cont [5/16] 0.0, 128
  %3555 = vxpose.xlu0.b32.cont [6/16] 0.0, 128
  %3556 = vxpose.xlu0.b32.cont [7/16] 0.0, 128
  %3557 = vxpose.xlu0.b32.cont [8/16] 0.0, 128
  %3558 = vxpose.xlu0.b32.cont [9/16] 0.0, 128
  %3559 = vxpose.xlu0.b32.cont [10/16] 0.0, 128
  %3560 = vxpose.xlu0.b32.cont [11/16] 0.0, 128
  %3561 = vxpose.xlu0.b32.cont [12/16] 0.0, 128
  %3562 = vxpose.xlu0.b32.cont [13/16] 0.0, 128
  %3563 = vxpose.xlu0.b32.cont [14/16] 0.0, 128
  %3564 = vxpose.xlu0.b32.cont [15/16] 0.0, 128
  %3565 = vxpose.xlu0.b32.end [16/16] 0.0, 128
  %v3566 = vpop.trf.xlu0
  %v3567 = vpop.trf.xlu0
  %v3568 = vpop.trf.xlu0
  %v3569 = vpop.trf.xlu0
  %v3570 = vpop.trf.xlu0
  %v3571 = vpop.trf.xlu0
  %v3572 = vpop.trf.xlu0
  %v3573 = vpop.trf.xlu0
  %v3574 = vpop.trf.xlu0
  %v3575 = vpop.trf.xlu0
  %v3576 = vpop.trf.xlu0
  %v3577 = vpop.trf.xlu0
  %v3578 = vpop.trf.xlu0
  %v3579 = vpop.trf.xlu0
  %v3580 = vpop.trf.xlu0
  %v3581 = vpop.trf.xlu0
  %3582 = vxpose.xlu0.b32.start [1/16] %v3255, 128
  %3583 = vxpose.xlu0.b32.cont [2/16] %v3271, 128
  %3584 = vxpose.xlu0.b32.cont [3/16] %v3287, 128
  %3585 = vxpose.xlu0.b32.cont [4/16] 0.0, 128
  %3586 = vxpose.xlu0.b32.cont [5/16] 0.0, 128
  %3587 = vxpose.xlu0.b32.cont [6/16] 0.0, 128
  %3588 = vxpose.xlu0.b32.cont [7/16] 0.0, 128
  %3589 = vxpose.xlu0.b32.cont [8/16] 0.0, 128
  %3590 = vxpose.xlu0.b32.cont [9/16] 0.0, 128
  %3591 = vxpose.xlu0.b32.cont [10/16] 0.0, 128
  %3592 = vxpose.xlu0.b32.cont [11/16] 0.0, 128
  %3593 = vxpose.xlu0.b32.cont [12/16] 0.0, 128
  %3594 = vxpose.xlu0.b32.cont [13/16] 0.0, 128
  %3595 = vxpose.xlu0.b32.cont [14/16] 0.0, 128
  %3596 = vxpose.xlu0.b32.cont [15/16] 0.0, 128
  %3597 = vxpose.xlu0.b32.end [16/16] 0.0, 128
  %v3598 = vpop.trf.xlu0
  %v3599 = vpop.trf.xlu0
  %v3600 = vpop.trf.xlu0
  %v3601 = vpop.trf.xlu0
  %v3602 = vpop.trf.xlu0
  %v3603 = vpop.trf.xlu0
  %v3604 = vpop.trf.xlu0
  %v3605 = vpop.trf.xlu0
  %v3606 = vpop.trf.xlu0
  %v3607 = vpop.trf.xlu0
  %v3608 = vpop.trf.xlu0
  %v3609 = vpop.trf.xlu0
  %v3610 = vpop.trf.xlu0
  %v3611 = vpop.trf.xlu0
  %v3612 = vpop.trf.xlu0
  %v3613 = vpop.trf.xlu0
  %3614 = vxpose.xlu0.b32.start [1/16] %v3256, 128
  %3615 = vxpose.xlu0.b32.cont [2/16] %v3272, 128
  %3616 = vxpose.xlu0.b32.cont [3/16] %v3288, 128
  %3617 = vxpose.xlu0.b32.cont [4/16] 0.0, 128
  %3618 = vxpose.xlu0.b32.cont [5/16] 0.0, 128
  %3619 = vxpose.xlu0.b32.cont [6/16] 0.0, 128
  %3620 = vxpose.xlu0.b32.cont [7/16] 0.0, 128
  %3621 = vxpose.xlu0.b32.cont [8/16] 0.0, 128
  %3622 = vxpose.xlu0.b32.cont [9/16] 0.0, 128
  %3623 = vxpose.xlu0.b32.cont [10/16] 0.0, 128
  %3624 = vxpose.xlu0.b32.cont [11/16] 0.0, 128
  %3625 = vxpose.xlu0.b32.cont [12/16] 0.0, 128
  %3626 = vxpose.xlu0.b32.cont [13/16] 0.0, 128
  %3627 = vxpose.xlu0.b32.cont [14/16] 0.0, 128
  %3628 = vxpose.xlu0.b32.cont [15/16] 0.0, 128
  %3629 = vxpose.xlu0.b32.end [16/16] 0.0, 128
  %v3630 = vpop.trf.xlu0
  %v3631 = vpop.trf.xlu0
  %v3632 = vpop.trf.xlu0
  %v3633 = vpop.trf.xlu0
  %v3634 = vpop.trf.xlu0
  %v3635 = vpop.trf.xlu0
  %v3636 = vpop.trf.xlu0
  %v3637 = vpop.trf.xlu0
  %v3638 = vpop.trf.xlu0
  %v3639 = vpop.trf.xlu0
  %v3640 = vpop.trf.xlu0
  %v3641 = vpop.trf.xlu0
  %v3642 = vpop.trf.xlu0
  %v3643 = vpop.trf.xlu0
  %v3644 = vpop.trf.xlu0
  %v3645 = vpop.trf.xlu0
  %3646 = vxpose.xlu0.b32.start [1/16] %v3257, 128
  %3647 = vxpose.xlu0.b32.cont [2/16] %v3273, 128
  %3648 = vxpose.xlu0.b32.cont [3/16] %v3289, 128
  %3649 = vxpose.xlu0.b32.cont [4/16] 0.0, 128
  %3650 = vxpose.xlu0.b32.cont [5/16] 0.0, 128
  %3651 = vxpose.xlu0.b32.cont [6/16] 0.0, 128
  %3652 = vxpose.xlu0.b32.cont [7/16] 0.0, 128
  %3653 = vxpose.xlu0.b32.cont [8/16] 0.0, 128
  %3654 = vxpose.xlu0.b32.cont [9/16] 0.0, 128
  %3655 = vxpose.xlu0.b32.cont [10/16] 0.0, 128
  %3656 = vxpose.xlu0.b32.cont [11/16] 0.0, 128
  %3657 = vxpose.xlu0.b32.cont [12/16] 0.0, 128
  %3658 = vxpose.xlu0.b32.cont [13/16] 0.0, 128
  %3659 = vxpose.xlu0.b32.cont [14/16] 0.0, 128
  %3660 = vxpose.xlu0.b32.cont [15/16] 0.0, 128
  %3661 = vxpose.xlu0.b32.end [16/16] 0.0, 128
  %v3662 = vpop.trf.xlu0
  %v3663 = vpop.trf.xlu0
  %v3664 = vpop.trf.xlu0
  %v3665 = vpop.trf.xlu0
  %v3666 = vpop.trf.xlu0
  %v3667 = vpop.trf.xlu0
  %v3668 = vpop.trf.xlu0
  %v3669 = vpop.trf.xlu0
  %v3670 = vpop.trf.xlu0
  %v3671 = vpop.trf.xlu0
  %v3672 = vpop.trf.xlu0
  %v3673 = vpop.trf.xlu0
  %v3674 = vpop.trf.xlu0
  %v3675 = vpop.trf.xlu0
  %v3676 = vpop.trf.xlu0
  %v3677 = vpop.trf.xlu0
  %3678 = vxpose.xlu0.b32.start [1/16] %v3258, 128
  %3679 = vxpose.xlu0.b32.cont [2/16] %v3274, 128
  %3680 = vxpose.xlu0.b32.cont [3/16] %v3290, 128
  %3681 = vxpose.xlu0.b32.cont [4/16] 0.0, 128
  %3682 = vxpose.xlu0.b32.cont [5/16] 0.0, 128
  %3683 = vxpose.xlu0.b32.cont [6/16] 0.0, 128
  %3684 = vxpose.xlu0.b32.cont [7/16] 0.0, 128
  %3685 = vxpose.xlu0.b32.cont [8/16] 0.0, 128
  %3686 = vxpose.xlu0.b32.cont [9/16] 0.0, 128
  %3687 = vxpose.xlu0.b32.cont [10/16] 0.0, 128
  %3688 = vxpose.xlu0.b32.cont [11/16] 0.0, 128
  %3689 = vxpose.xlu0.b32.cont [12/16] 0.0, 128
  %3690 = vxpose.xlu0.b32.cont [13/16] 0.0, 128
  %3691 = vxpose.xlu0.b32.cont [14/16] 0.0, 128
  %3692 = vxpose.xlu0.b32.cont [15/16] 0.0, 128
  %3693 = vxpose.xlu0.b32.end [16/16] 0.0, 128
  %v3694 = vpop.trf.xlu0
  %v3695 = vpop.trf.xlu0
  %v3696 = vpop.trf.xlu0
  %v3697 = vpop.trf.xlu0
  %v3698 = vpop.trf.xlu0
  %v3699 = vpop.trf.xlu0
  %v3700 = vpop.trf.xlu0
  %v3701 = vpop.trf.xlu0
  %v3702 = vpop.trf.xlu0
  %v3703 = vpop.trf.xlu0
  %v3704 = vpop.trf.xlu0
  %v3705 = vpop.trf.xlu0
  %v3706 = vpop.trf.xlu0
  %v3707 = vpop.trf.xlu0
  %v3708 = vpop.trf.xlu0
  %v3709 = vpop.trf.xlu0
  %3710 = vxpose.xlu0.b32.start [1/16] %v3259, 128
  %3711 = vxpose.xlu0.b32.cont [2/16] %v3275, 128
  %3712 = vxpose.xlu0.b32.cont [3/16] %v3291, 128
  %3713 = vxpose.xlu0.b32.cont [4/16] 0.0, 128
  %3714 = vxpose.xlu0.b32.cont [5/16] 0.0, 128
  %3715 = vxpose.xlu0.b32.cont [6/16] 0.0, 128
  %3716 = vxpose.xlu0.b32.cont [7/16] 0.0, 128
  %3717 = vxpose.xlu0.b32.cont [8/16] 0.0, 128
  %3718 = vxpose.xlu0.b32.cont [9/16] 0.0, 128
  %3719 = vxpose.xlu0.b32.cont [10/16] 0.0, 128
  %3720 = vxpose.xlu0.b32.cont [11/16] 0.0, 128
  %3721 = vxpose.xlu0.b32.cont [12/16] 0.0, 128
  %3722 = vxpose.xlu0.b32.cont [13/16] 0.0, 128
  %3723 = vxpose.xlu0.b32.cont [14/16] 0.0, 128
  %3724 = vxpose.xlu0.b32.cont [15/16] 0.0, 128
  %3725 = vxpose.xlu0.b32.end [16/16] 0.0, 128
  %v3726 = vpop.trf.xlu0
  %v3727 = vpop.trf.xlu0
  %v3728 = vpop.trf.xlu0
  %v3729 = vpop.trf.xlu0
  %v3730 = vpop.trf.xlu0
  %v3731 = vpop.trf.xlu0
  %v3732 = vpop.trf.xlu0
  %v3733 = vpop.trf.xlu0
  %v3734 = vpop.trf.xlu0
  %v3735 = vpop.trf.xlu0
  %v3736 = vpop.trf.xlu0
  %v3737 = vpop.trf.xlu0
  %v3738 = vpop.trf.xlu0
  %v3739 = vpop.trf.xlu0
  %v3740 = vpop.trf.xlu0
  %v3741 = vpop.trf.xlu0
  %3742 = vxpose.xlu0.b32.start [1/16] %v3260, 128
  %3743 = vxpose.xlu0.b32.cont [2/16] %v3276, 128
  %3744 = vxpose.xlu0.b32.cont [3/16] %v3292, 128
  %3745 = vxpose.xlu0.b32.cont [4/16] 0.0, 128
  %3746 = vxpose.xlu0.b32.cont [5/16] 0.0, 128
  %3747 = vxpose.xlu0.b32.cont [6/16] 0.0, 128
  %3748 = vxpose.xlu0.b32.cont [7/16] 0.0, 128
  %3749 = vxpose.xlu0.b32.cont [8/16] 0.0, 128
  %3750 = vxpose.xlu0.b32.cont [9/16] 0.0, 128
  %3751 = vxpose.xlu0.b32.cont [10/16] 0.0, 128
  %3752 = vxpose.xlu0.b32.cont [11/16] 0.0, 128
  %3753 = vxpose.xlu0.b32.cont [12/16] 0.0, 128
  %3754 = vxpose.xlu0.b32.cont [13/16] 0.0, 128
  %3755 = vxpose.xlu0.b32.cont [14/16] 0.0, 128
  %3756 = vxpose.xlu0.b32.cont [15/16] 0.0, 128
  %3757 = vxpose.xlu0.b32.end [16/16] 0.0, 128
  %v3758 = vpop.trf.xlu0
  %v3759 = vpop.trf.xlu0
  %v3760 = vpop.trf.xlu0
  %v3761 = vpop.trf.xlu0
  %v3762 = vpop.trf.xlu0
  %v3763 = vpop.trf.xlu0
  %v3764 = vpop.trf.xlu0
  %v3765 = vpop.trf.xlu0
  %v3766 = vpop.trf.xlu0
  %v3767 = vpop.trf.xlu0
  %v3768 = vpop.trf.xlu0
  %v3769 = vpop.trf.xlu0
  %v3770 = vpop.trf.xlu0
  %v3771 = vpop.trf.xlu0
  %v3772 = vpop.trf.xlu0
  %v3773 = vpop.trf.xlu0
  %3774 = vxpose.xlu0.b32.start [1/16] %v3261, 128
  %3775 = vxpose.xlu0.b32.cont [2/16] %v3277, 128
  %3776 = vxpose.xlu0.b32.cont [3/16] %v3293, 128
  %3777 = vxpose.xlu0.b32.cont [4/16] 0.0, 128
  %3778 = vxpose.xlu0.b32.cont [5/16] 0.0, 128
  %3779 = vxpose.xlu0.b32.cont [6/16] 0.0, 128
  %3780 = vxpose.xlu0.b32.cont [7/16] 0.0, 128
  %3781 = vxpose.xlu0.b32.cont [8/16] 0.0, 128
  %3782 = vxpose.xlu0.b32.cont [9/16] 0.0, 128
  %3783 = vxpose.xlu0.b32.cont [10/16] 0.0, 128
  %3784 = vxpose.xlu0.b32.cont [11/16] 0.0, 128
  %3785 = vxpose.xlu0.b32.cont [12/16] 0.0, 128
  %3786 = vxpose.xlu0.b32.cont [13/16] 0.0, 128
  %3787 = vxpose.xlu0.b32.cont [14/16] 0.0, 128
  %3788 = vxpose.xlu0.b32.cont [15/16] 0.0, 128
  %3789 = vxpose.xlu0.b32.end [16/16] 0.0, 128
  %v3790 = vpop.trf.xlu0
  %v3791 = vpop.trf.xlu0
  %v3792 = vpop.trf.xlu0
  %v3793 = vpop.trf.xlu0
  %v3794 = vpop.trf.xlu0
  %v3795 = vpop.trf.xlu0
  %v3796 = vpop.trf.xlu0
  %v3797 = vpop.trf.xlu0
  %v3798 = vpop.trf.xlu0
  %v3799 = vpop.trf.xlu0
  %v3800 = vpop.trf.xlu0
  %v3801 = vpop.trf.xlu0
  %v3802 = vpop.trf.xlu0
  %v3803 = vpop.trf.xlu0
  %v3804 = vpop.trf.xlu0
  %v3805 = vpop.trf.xlu0
  %4062 = vrot.lane.b32.xlu0 %v3310, 5
  %v4063 = vpop.permute.xlu0 %4062
  %4064 = vrot.lane.b32.xlu0 %v3311, 5
  %v4065 = vpop.permute.xlu0 %4064
  %4066 = vrot.lane.b32.xlu0 %v3312, 5
  %v4067 = vpop.permute.xlu0 %4066
  %4068 = vrot.lane.b32.xlu0 %v3313, 5
  %v4069 = vpop.permute.xlu0 %4068
  %4070 = vrot.lane.b32.xlu0 %v3314, 5
  %v4071 = vpop.permute.xlu0 %4070
  %4072 = vrot.lane.b32.xlu0 %v3315, 5
  %v4073 = vpop.permute.xlu0 %4072
  %4074 = vrot.lane.b32.xlu0 %v3316, 5
  %v4075 = vpop.permute.xlu0 %4074
  %4076 = vrot.lane.b32.xlu0 %v3317, 5
  %v4077 = vpop.permute.xlu0 %4076
  %4078 = vrot.lane.b32.xlu0 %v3318, 5
  %v4079 = vpop.permute.xlu0 %4078
  %4080 = vrot.lane.b32.xlu0 %v3319, 5
  %v4081 = vpop.permute.xlu0 %4080
  %4082 = vrot.lane.b32.xlu0 %v3320, 5
  %v4083 = vpop.permute.xlu0 %4082
  %4084 = vrot.lane.b32.xlu0 %v3321, 5
  %v4085 = vpop.permute.xlu0 %4084
  %4086 = vrot.lane.b32.xlu0 %v3322, 5
  %v4087 = vpop.permute.xlu0 %4086
  %4088 = vrot.lane.b32.xlu0 %v3323, 5
  %v4089 = vpop.permute.xlu0 %4088
  %4090 = vrot.lane.b32.xlu0 %v3324, 5
  %v4091 = vpop.permute.xlu0 %4090
  %4092 = vrot.lane.b32.xlu0 %v3325, 5
  %v4093 = vpop.permute.xlu0 %4092
  %4094 = vrot.lane.b32.xlu0 %v3342, 5
  %v4095 = vpop.permute.xlu0 %4094
  %4096 = vrot.lane.b32.xlu0 %v3343, 5
  %v4097 = vpop.permute.xlu0 %4096
  %4098 = vrot.lane.b32.xlu0 %v3344, 5
  %v4099 = vpop.permute.xlu0 %4098
  %4100 = vrot.lane.b32.xlu0 %v3345, 5
  %v4101 = vpop.permute.xlu0 %4100
  %4102 = vrot.lane.b32.xlu0 %v3346, 5
  %v4103 = vpop.permute.xlu0 %4102
  %4104 = vrot.lane.b32.xlu0 %v3347, 5
  %v4105 = vpop.permute.xlu0 %4104
  %4106 = vrot.lane.b32.xlu0 %v3348, 5
  %v4107 = vpop.permute.xlu0 %4106
  %4108 = vrot.lane.b32.xlu0 %v3349, 5
  %v4109 = vpop.permute.xlu0 %4108
  %4110 = vrot.lane.b32.xlu0 %v3350, 5
  %v4111 = vpop.permute.xlu0 %4110
  %4112 = vrot.lane.b32.xlu0 %v3351, 5
  %v4113 = vpop.permute.xlu0 %4112
  %4114 = vrot.lane.b32.xlu0 %v3352, 5
  %v4115 = vpop.permute.xlu0 %4114
  %4116 = vrot.lane.b32.xlu0 %v3353, 5
  %v4117 = vpop.permute.xlu0 %4116
  %4118 = vrot.lane.b32.xlu0 %v3354, 5
  %v4119 = vpop.permute.xlu0 %4118
  %4120 = vrot.lane.b32.xlu0 %v3355, 5
  %v4121 = vpop.permute.xlu0 %4120
  %4122 = vrot.lane.b32.xlu0 %v3356, 5
  %v4123 = vpop.permute.xlu0 %4122
  %4124 = vrot.lane.b32.xlu0 %v3357, 5
  %v4125 = vpop.permute.xlu0 %4124
  %4126 = vrot.lane.b32.xlu0 %v3374, 5
  %v4127 = vpop.permute.xlu0 %4126
  %4128 = vrot.lane.b32.xlu0 %v3375, 5
  %v4129 = vpop.permute.xlu0 %4128
  %4130 = vrot.lane.b32.xlu0 %v3376, 5
  %v4131 = vpop.permute.xlu0 %4130
  %4132 = vrot.lane.b32.xlu0 %v3377, 5
  %v4133 = vpop.permute.xlu0 %4132
  %4134 = vrot.lane.b32.xlu0 %v3378, 5
  %v4135 = vpop.permute.xlu0 %4134
  %4136 = vrot.lane.b32.xlu0 %v3379, 5
  %v4137 = vpop.permute.xlu0 %4136
  %4138 = vrot.lane.b32.xlu0 %v3380, 5
  %v4139 = vpop.permute.xlu0 %4138
  %4140 = vrot.lane.b32.xlu0 %v3381, 5
  %v4141 = vpop.permute.xlu0 %4140
  %4142 = vrot.lane.b32.xlu0 %v3382, 5
  %v4143 = vpop.permute.xlu0 %4142
  %4144 = vrot.lane.b32.xlu0 %v3383, 5
  %v4145 = vpop.permute.xlu0 %4144
  %4146 = vrot.lane.b32.xlu0 %v3384, 5
  %v4147 = vpop.permute.xlu0 %4146
  %4148 = vrot.lane.b32.xlu0 %v3385, 5
  %v4149 = vpop.permute.xlu0 %4148
  %4150 = vrot.lane.b32.xlu0 %v3386, 5
  %v4151 = vpop.permute.xlu0 %4150
  %4152 = vrot.lane.b32.xlu0 %v3387, 5
  %v4153 = vpop.permute.xlu0 %4152
  %4154 = vrot.lane.b32.xlu0 %v3388, 5
  %v4155 = vpop.permute.xlu0 %4154
  %4156 = vrot.lane.b32.xlu0 %v3389, 5
  %v4157 = vpop.permute.xlu0 %4156
  %4158 = vrot.lane.b32.xlu0 %v3406, 5
  %v4159 = vpop.permute.xlu0 %4158
  %4160 = vrot.lane.b32.xlu0 %v3407, 5
  %v4161 = vpop.permute.xlu0 %4160
  %4162 = vrot.lane.b32.xlu0 %v3408, 5
  %v4163 = vpop.permute.xlu0 %4162
  %4164 = vrot.lane.b32.xlu0 %v3409, 5
  %v4165 = vpop.permute.xlu0 %4164
  %4166 = vrot.lane.b32.xlu0 %v3410, 5
  %v4167 = vpop.permute.xlu0 %4166
  %4168 = vrot.lane.b32.xlu0 %v3411, 5
  %v4169 = vpop.permute.xlu0 %4168
  %4170 = vrot.lane.b32.xlu0 %v3412, 5
  %v4171 = vpop.permute.xlu0 %4170
  %4172 = vrot.lane.b32.xlu0 %v3413, 5
  %v4173 = vpop.permute.xlu0 %4172
  %4174 = vrot.lane.b32.xlu0 %v3414, 5
  %v4175 = vpop.permute.xlu0 %4174
  %4176 = vrot.lane.b32.xlu0 %v3415, 5
  %v4177 = vpop.permute.xlu0 %4176
  %4178 = vrot.lane.b32.xlu0 %v3416, 5
  %v4179 = vpop.permute.xlu0 %4178
  %4180 = vrot.lane.b32.xlu0 %v3417, 5
  %v4181 = vpop.permute.xlu0 %4180
  %4182 = vrot.lane.b32.xlu0 %v3418, 5
  %v4183 = vpop.permute.xlu0 %4182
  %4184 = vrot.lane.b32.xlu0 %v3419, 5
  %v4185 = vpop.permute.xlu0 %4184
  %4186 = vrot.lane.b32.xlu0 %v3420, 5
  %v4187 = vpop.permute.xlu0 %4186
  %4188 = vrot.lane.b32.xlu0 %v3421, 5
  %v4189 = vpop.permute.xlu0 %4188
  %4190 = vrot.lane.b32.xlu0 %v3438, 5
  %v4191 = vpop.permute.xlu0 %4190
  %4192 = vrot.lane.b32.xlu0 %v3439, 5
  %v4193 = vpop.permute.xlu0 %4192
  %4194 = vrot.lane.b32.xlu0 %v3440, 5
  %v4195 = vpop.permute.xlu0 %4194
  %4196 = vrot.lane.b32.xlu0 %v3441, 5
  %v4197 = vpop.permute.xlu0 %4196
  %4198 = vrot.lane.b32.xlu0 %v3442, 5
  %v4199 = vpop.permute.xlu0 %4198
  %4200 = vrot.lane.b32.xlu0 %v3443, 5
  %v4201 = vpop.permute.xlu0 %4200
  %4202 = vrot.lane.b32.xlu0 %v3444, 5
  %v4203 = vpop.permute.xlu0 %4202
  %4204 = vrot.lane.b32.xlu0 %v3445, 5
  %v4205 = vpop.permute.xlu0 %4204
  %4206 = vrot.lane.b32.xlu0 %v3446, 5
  %v4207 = vpop.permute.xlu0 %4206
  %4208 = vrot.lane.b32.xlu0 %v3447, 5
  %v4209 = vpop.permute.xlu0 %4208
  %4210 = vrot.lane.b32.xlu0 %v3448, 5
  %v4211 = vpop.permute.xlu0 %4210
  %4212 = vrot.lane.b32.xlu0 %v3449, 5
  %v4213 = vpop.permute.xlu0 %4212
  %4214 = vrot.lane.b32.xlu0 %v3450, 5
  %v4215 = vpop.permute.xlu0 %4214
  %4216 = vrot.lane.b32.xlu0 %v3451, 5
  %v4217 = vpop.permute.xlu0 %4216
  %4218 = vrot.lane.b32.xlu0 %v3452, 5
  %v4219 = vpop.permute.xlu0 %4218
  %4220 = vrot.lane.b32.xlu0 %v3453, 5
  %v4221 = vpop.permute.xlu0 %4220
  %4222 = vrot.lane.b32.xlu0 %v3470, 5
  %v4223 = vpop.permute.xlu0 %4222
  %4224 = vrot.lane.b32.xlu0 %v3471, 5
  %v4225 = vpop.permute.xlu0 %4224
  %4226 = vrot.lane.b32.xlu0 %v3472, 5
  %v4227 = vpop.permute.xlu0 %4226
  %4228 = vrot.lane.b32.xlu0 %v3473, 5
  %v4229 = vpop.permute.xlu0 %4228
  %4230 = vrot.lane.b32.xlu0 %v3474, 5
  %v4231 = vpop.permute.xlu0 %4230
  %4232 = vrot.lane.b32.xlu0 %v3475, 5
  %v4233 = vpop.permute.xlu0 %4232
  %4234 = vrot.lane.b32.xlu0 %v3476, 5
  %v4235 = vpop.permute.xlu0 %4234
  %4236 = vrot.lane.b32.xlu0 %v3477, 5
  %v4237 = vpop.permute.xlu0 %4236
  %4238 = vrot.lane.b32.xlu0 %v3478, 5
  %v4239 = vpop.permute.xlu0 %4238
  %4240 = vrot.lane.b32.xlu0 %v3479, 5
  %v4241 = vpop.permute.xlu0 %4240
  %4242 = vrot.lane.b32.xlu0 %v3480, 5
  %v4243 = vpop.permute.xlu0 %4242
  %4244 = vrot.lane.b32.xlu0 %v3481, 5
  %v4245 = vpop.permute.xlu0 %4244
  %4246 = vrot.lane.b32.xlu0 %v3482, 5
  %v4247 = vpop.permute.xlu0 %4246
  %4248 = vrot.lane.b32.xlu0 %v3483, 5
  %v4249 = vpop.permute.xlu0 %4248
  %4250 = vrot.lane.b32.xlu0 %v3484, 5
  %v4251 = vpop.permute.xlu0 %4250
  %4252 = vrot.lane.b32.xlu0 %v3485, 5
  %v4253 = vpop.permute.xlu0 %4252
  %4254 = vrot.lane.b32.xlu0 %v3502, 5
  %v4255 = vpop.permute.xlu0 %4254
  %4256 = vrot.lane.b32.xlu0 %v3503, 5
  %v4257 = vpop.permute.xlu0 %4256
  %4258 = vrot.lane.b32.xlu0 %v3504, 5
  %v4259 = vpop.permute.xlu0 %4258
  %4260 = vrot.lane.b32.xlu0 %v3505, 5
  %v4261 = vpop.permute.xlu0 %4260
  %4262 = vrot.lane.b32.xlu0 %v3506, 5
  %v4263 = vpop.permute.xlu0 %4262
  %4264 = vrot.lane.b32.xlu0 %v3507, 5
  %v4265 = vpop.permute.xlu0 %4264
  %4266 = vrot.lane.b32.xlu0 %v3508, 5
  %v4267 = vpop.permute.xlu0 %4266
  %4268 = vrot.lane.b32.xlu0 %v3509, 5
  %v4269 = vpop.permute.xlu0 %4268
  %4270 = vrot.lane.b32.xlu0 %v3510, 5
  %v4271 = vpop.permute.xlu0 %4270
  %4272 = vrot.lane.b32.xlu0 %v3511, 5
  %v4273 = vpop.permute.xlu0 %4272
  %4274 = vrot.lane.b32.xlu0 %v3512, 5
  %v4275 = vpop.permute.xlu0 %4274
  %4276 = vrot.lane.b32.xlu0 %v3513, 5
  %v4277 = vpop.permute.xlu0 %4276
  %4278 = vrot.lane.b32.xlu0 %v3514, 5
  %v4279 = vpop.permute.xlu0 %4278
  %4280 = vrot.lane.b32.xlu0 %v3515, 5
  %v4281 = vpop.permute.xlu0 %4280
  %4282 = vrot.lane.b32.xlu0 %v3516, 5
  %v4283 = vpop.permute.xlu0 %4282
  %4284 = vrot.lane.b32.xlu0 %v3517, 5
  %v4285 = vpop.permute.xlu0 %4284
  %4286 = vrot.lane.b32.xlu0 %v3534, 5
  %v4287 = vpop.permute.xlu0 %4286
  %4288 = vrot.lane.b32.xlu0 %v3535, 5
  %v4289 = vpop.permute.xlu0 %4288
  %4290 = vrot.lane.b32.xlu0 %v3536, 5
  %v4291 = vpop.permute.xlu0 %4290
  %4292 = vrot.lane.b32.xlu0 %v3537, 5
  %v4293 = vpop.permute.xlu0 %4292
  %4294 = vrot.lane.b32.xlu0 %v3538, 5
  %v4295 = vpop.permute.xlu0 %4294
  %4296 = vrot.lane.b32.xlu0 %v3539, 5
  %v4297 = vpop.permute.xlu0 %4296
  %4298 = vrot.lane.b32.xlu0 %v3540, 5
  %v4299 = vpop.permute.xlu0 %4298
  %4300 = vrot.lane.b32.xlu0 %v3541, 5
  %v4301 = vpop.permute.xlu0 %4300
  %4302 = vrot.lane.b32.xlu0 %v3542, 5
  %v4303 = vpop.permute.xlu0 %4302
  %4304 = vrot.lane.b32.xlu0 %v3543, 5
  %v4305 = vpop.permute.xlu0 %4304
  %4306 = vrot.lane.b32.xlu0 %v3544, 5
  %v4307 = vpop.permute.xlu0 %4306
  %4308 = vrot.lane.b32.xlu0 %v3545, 5
  %v4309 = vpop.permute.xlu0 %4308
  %4310 = vrot.lane.b32.xlu0 %v3546, 5
  %v4311 = vpop.permute.xlu0 %4310
  %4312 = vrot.lane.b32.xlu0 %v3547, 5
  %v4313 = vpop.permute.xlu0 %4312
  %4314 = vrot.lane.b32.xlu0 %v3548, 5
  %v4315 = vpop.permute.xlu0 %4314
  %4316 = vrot.lane.b32.xlu0 %v3549, 5
  %v4317 = vpop.permute.xlu0 %4316
  %4318 = vrot.lane.b32.xlu0 %v3566, 5
  %v4319 = vpop.permute.xlu0 %4318
  %4320 = vrot.lane.b32.xlu0 %v3567, 5
  %v4321 = vpop.permute.xlu0 %4320
  %4322 = vrot.lane.b32.xlu0 %v3568, 5
  %v4323 = vpop.permute.xlu0 %4322
  %4324 = vrot.lane.b32.xlu0 %v3569, 5
  %v4325 = vpop.permute.xlu0 %4324
  %4326 = vrot.lane.b32.xlu0 %v3570, 5
  %v4327 = vpop.permute.xlu0 %4326
  %4328 = vrot.lane.b32.xlu0 %v3571, 5
  %v4329 = vpop.permute.xlu0 %4328
  %4330 = vrot.lane.b32.xlu0 %v3572, 5
  %v4331 = vpop.permute.xlu0 %4330
  %4332 = vrot.lane.b32.xlu0 %v3573, 5
  %v4333 = vpop.permute.xlu0 %4332
  %4334 = vrot.lane.b32.xlu0 %v3574, 5
  %v4335 = vpop.permute.xlu0 %4334
  %4336 = vrot.lane.b32.xlu0 %v3575, 5
  %v4337 = vpop.permute.xlu0 %4336
  %4338 = vrot.lane.b32.xlu0 %v3576, 5
  %v4339 = vpop.permute.xlu0 %4338
  %4340 = vrot.lane.b32.xlu0 %v3577, 5
  %v4341 = vpop.permute.xlu0 %4340
  %4342 = vrot.lane.b32.xlu0 %v3578, 5
  %v4343 = vpop.permute.xlu0 %4342
  %4344 = vrot.lane.b32.xlu0 %v3579, 5
  %v4345 = vpop.permute.xlu0 %4344
  %4346 = vrot.lane.b32.xlu0 %v3580, 5
  %v4347 = vpop.permute.xlu0 %4346
  %4348 = vrot.lane.b32.xlu0 %v3581, 5
  %v4349 = vpop.permute.xlu0 %4348
  %4350 = vrot.lane.b32.xlu0 %v3598, 5
  %v4351 = vpop.permute.xlu0 %4350
  %4352 = vrot.lane.b32.xlu0 %v3599, 5
  %v4353 = vpop.permute.xlu0 %4352
  %4354 = vrot.lane.b32.xlu0 %v3600, 5
  %v4355 = vpop.permute.xlu0 %4354
  %4356 = vrot.lane.b32.xlu0 %v3601, 5
  %v4357 = vpop.permute.xlu0 %4356
  %4358 = vrot.lane.b32.xlu0 %v3602, 5
  %v4359 = vpop.permute.xlu0 %4358
  %4360 = vrot.lane.b32.xlu0 %v3603, 5
  %v4361 = vpop.permute.xlu0 %4360
  %4362 = vrot.lane.b32.xlu0 %v3604, 5
  %v4363 = vpop.permute.xlu0 %4362
  %4364 = vrot.lane.b32.xlu0 %v3605, 5
  %v4365 = vpop.permute.xlu0 %4364
  %4366 = vrot.lane.b32.xlu0 %v3606, 5
  %v4367 = vpop.permute.xlu0 %4366
  %4368 = vrot.lane.b32.xlu0 %v3607, 5
  %v4369 = vpop.permute.xlu0 %4368
  %4370 = vrot.lane.b32.xlu0 %v3608, 5
  %v4371 = vpop.permute.xlu0 %4370
  %4372 = vrot.lane.b32.xlu0 %v3609, 5
  %v4373 = vpop.permute.xlu0 %4372
  %4374 = vrot.lane.b32.xlu0 %v3610, 5
  %v4375 = vpop.permute.xlu0 %4374
  %4376 = vrot.lane.b32.xlu0 %v3611, 5
  %v4377 = vpop.permute.xlu0 %4376
  %4378 = vrot.lane.b32.xlu0 %v3612, 5
  %v4379 = vpop.permute.xlu0 %4378
  %4380 = vrot.lane.b32.xlu0 %v3613, 5
  %v4381 = vpop.permute.xlu0 %4380
  %4382 = vrot.lane.b32.xlu0 %v3630, 5
  %v4383 = vpop.permute.xlu0 %4382
  %4384 = vrot.lane.b32.xlu0 %v3631, 5
  %v4385 = vpop.permute.xlu0 %4384
  %4386 = vrot.lane.b32.xlu0 %v3632, 5
  %v4387 = vpop.permute.xlu0 %4386
  %4388 = vrot.lane.b32.xlu0 %v3633, 5
  %v4389 = vpop.permute.xlu0 %4388
  %4390 = vrot.lane.b32.xlu0 %v3634, 5
  %v4391 = vpop.permute.xlu0 %4390
  %4392 = vrot.lane.b32.xlu0 %v3635, 5
  %v4393 = vpop.permute.xlu0 %4392
  %4394 = vrot.lane.b32.xlu0 %v3636, 5
  %v4395 = vpop.permute.xlu0 %4394
  %4396 = vrot.lane.b32.xlu0 %v3637, 5
  %v4397 = vpop.permute.xlu0 %4396
  %4398 = vrot.lane.b32.xlu0 %v3638, 5
  %v4399 = vpop.permute.xlu0 %4398
  %4400 = vrot.lane.b32.xlu0 %v3639, 5
  %v4401 = vpop.permute.xlu0 %4400
  %4402 = vrot.lane.b32.xlu0 %v3640, 5
  %v4403 = vpop.permute.xlu0 %4402
  %4404 = vrot.lane.b32.xlu0 %v3641, 5
  %v4405 = vpop.permute.xlu0 %4404
  %4406 = vrot.lane.b32.xlu0 %v3642, 5
  %v4407 = vpop.permute.xlu0 %4406
  %4408 = vrot.lane.b32.xlu0 %v3643, 5
  %v4409 = vpop.permute.xlu0 %4408
  %4410 = vrot.lane.b32.xlu0 %v3644, 5
  %v4411 = vpop.permute.xlu0 %4410
  %4412 = vrot.lane.b32.xlu0 %v3645, 5
  %v4413 = vpop.permute.xlu0 %4412
  %4414 = vrot.lane.b32.xlu0 %v3662, 5
  %v4415 = vpop.permute.xlu0 %4414
  %4416 = vrot.lane.b32.xlu0 %v3663, 5
  %v4417 = vpop.permute.xlu0 %4416
  %4418 = vrot.lane.b32.xlu0 %v3664, 5
  %v4419 = vpop.permute.xlu0 %4418
  %4420 = vrot.lane.b32.xlu0 %v3665, 5
  %v4421 = vpop.permute.xlu0 %4420
  %4422 = vrot.lane.b32.xlu0 %v3666, 5
  %v4423 = vpop.permute.xlu0 %4422
  %4424 = vrot.lane.b32.xlu0 %v3667, 5
  %v4425 = vpop.permute.xlu0 %4424
  %4426 = vrot.lane.b32.xlu0 %v3668, 5
  %v4427 = vpop.permute.xlu0 %4426
  %4428 = vrot.lane.b32.xlu0 %v3669, 5
  %v4429 = vpop.permute.xlu0 %4428
  %4430 = vrot.lane.b32.xlu0 %v3670, 5
  %v4431 = vpop.permute.xlu0 %4430
  %4432 = vrot.lane.b32.xlu0 %v3671, 5
  %v4433 = vpop.permute.xlu0 %4432
  %4434 = vrot.lane.b32.xlu0 %v3672, 5
  %v4435 = vpop.permute.xlu0 %4434
  %4436 = vrot.lane.b32.xlu0 %v3673, 5
  %v4437 = vpop.permute.xlu0 %4436
  %4438 = vrot.lane.b32.xlu0 %v3674, 5
  %v4439 = vpop.permute.xlu0 %4438
  %4440 = vrot.lane.b32.xlu0 %v3675, 5
  %v4441 = vpop.permute.xlu0 %4440
  %4442 = vrot.lane.b32.xlu0 %v3676, 5
  %v4443 = vpop.permute.xlu0 %4442
  %4444 = vrot.lane.b32.xlu0 %v3677, 5
  %v4445 = vpop.permute.xlu0 %4444
  %4446 = vrot.lane.b32.xlu0 %v3694, 5
  %v4447 = vpop.permute.xlu0 %4446
  %4448 = vrot.lane.b32.xlu0 %v3695, 5
  %v4449 = vpop.permute.xlu0 %4448
  %4450 = vrot.lane.b32.xlu0 %v3696, 5
  %v4451 = vpop.permute.xlu0 %4450
  %4452 = vrot.lane.b32.xlu0 %v3697, 5
  %v4453 = vpop.permute.xlu0 %4452
  %4454 = vrot.lane.b32.xlu0 %v3698, 5
  %v4455 = vpop.permute.xlu0 %4454
  %4456 = vrot.lane.b32.xlu0 %v3699, 5
  %v4457 = vpop.permute.xlu0 %4456
  %4458 = vrot.lane.b32.xlu0 %v3700, 5
  %v4459 = vpop.permute.xlu0 %4458
  %4460 = vrot.lane.b32.xlu0 %v3701, 5
  %v4461 = vpop.permute.xlu0 %4460
  %4462 = vrot.lane.b32.xlu0 %v3702, 5
  %v4463 = vpop.permute.xlu0 %4462
  %4464 = vrot.lane.b32.xlu0 %v3703, 5
  %v4465 = vpop.permute.xlu0 %4464
  %4466 = vrot.lane.b32.xlu0 %v3704, 5
  %v4467 = vpop.permute.xlu0 %4466
  %4468 = vrot.lane.b32.xlu0 %v3705, 5
  %v4469 = vpop.permute.xlu0 %4468
  %4470 = vrot.lane.b32.xlu0 %v3706, 5
  %v4471 = vpop.permute.xlu0 %4470
  %4472 = vrot.lane.b32.xlu0 %v3707, 5
  %v4473 = vpop.permute.xlu0 %4472
  %4474 = vrot.lane.b32.xlu0 %v3708, 5
  %v4475 = vpop.permute.xlu0 %4474
  %4476 = vrot.lane.b32.xlu0 %v3709, 5
  %v4477 = vpop.permute.xlu0 %4476
  %4478 = vrot.lane.b32.xlu0 %v3726, 5
  %v4479 = vpop.permute.xlu0 %4478
  %4480 = vrot.lane.b32.xlu0 %v3727, 5
  %v4481 = vpop.permute.xlu0 %4480
  %4482 = vrot.lane.b32.xlu0 %v3728, 5
  %v4483 = vpop.permute.xlu0 %4482
  %4484 = vrot.lane.b32.xlu0 %v3729, 5
  %v4485 = vpop.permute.xlu0 %4484
  %4486 = vrot.lane.b32.xlu0 %v3730, 5
  %v4487 = vpop.permute.xlu0 %4486
  %4488 = vrot.lane.b32.xlu0 %v3731, 5
  %v4489 = vpop.permute.xlu0 %4488
  %4490 = vrot.lane.b32.xlu0 %v3732, 5
  %v4491 = vpop.permute.xlu0 %4490
  %4492 = vrot.lane.b32.xlu0 %v3733, 5
  %v4493 = vpop.permute.xlu0 %4492
  %4494 = vrot.lane.b32.xlu0 %v3734, 5
  %v4495 = vpop.permute.xlu0 %4494
  %4496 = vrot.lane.b32.xlu0 %v3735, 5
  %v4497 = vpop.permute.xlu0 %4496
  %4498 = vrot.lane.b32.xlu0 %v3736, 5
  %v4499 = vpop.permute.xlu0 %4498
  %4500 = vrot.lane.b32.xlu0 %v3737, 5
  %v4501 = vpop.permute.xlu0 %4500
  %4502 = vrot.lane.b32.xlu0 %v3738, 5
  %v4503 = vpop.permute.xlu0 %4502
  %4504 = vrot.lane.b32.xlu0 %v3739, 5
  %v4505 = vpop.permute.xlu0 %4504
  %4506 = vrot.lane.b32.xlu0 %v3740, 5
  %v4507 = vpop.permute.xlu0 %4506
  %4508 = vrot.lane.b32.xlu0 %v3741, 5
  %v4509 = vpop.permute.xlu0 %4508
  %4510 = vrot.lane.b32.xlu0 %v3758, 5
  %v4511 = vpop.permute.xlu0 %4510
  %4512 = vrot.lane.b32.xlu0 %v3759, 5
  %v4513 = vpop.permute.xlu0 %4512
  %4514 = vrot.lane.b32.xlu0 %v3760, 5
  %v4515 = vpop.permute.xlu0 %4514
  %4516 = vrot.lane.b32.xlu0 %v3761, 5
  %v4517 = vpop.permute.xlu0 %4516
  %4518 = vrot.lane.b32.xlu0 %v3762, 5
  %v4519 = vpop.permute.xlu0 %4518
  %4520 = vrot.lane.b32.xlu0 %v3763, 5
  %v4521 = vpop.permute.xlu0 %4520
  %4522 = vrot.lane.b32.xlu0 %v3764, 5
  %v4523 = vpop.permute.xlu0 %4522
  %4524 = vrot.lane.b32.xlu0 %v3765, 5
  %v4525 = vpop.permute.xlu0 %4524
  %4526 = vrot.lane.b32.xlu0 %v3766, 5
  %v4527 = vpop.permute.xlu0 %4526
  %4528 = vrot.lane.b32.xlu0 %v3767, 5
  %v4529 = vpop.permute.xlu0 %4528
  %4530 = vrot.lane.b32.xlu0 %v3768, 5
  %v4531 = vpop.permute.xlu0 %4530
  %4532 = vrot.lane.b32.xlu0 %v3769, 5
  %v4533 = vpop.permute.xlu0 %4532
  %4534 = vrot.lane.b32.xlu0 %v3770, 5
  %v4535 = vpop.permute.xlu0 %4534
  %4536 = vrot.lane.b32.xlu0 %v3771, 5
  %v4537 = vpop.permute.xlu0 %4536
  %4538 = vrot.lane.b32.xlu0 %v3772, 5
  %v4539 = vpop.permute.xlu0 %4538
  %4540 = vrot.lane.b32.xlu0 %v3773, 5
  %v4541 = vpop.permute.xlu0 %4540
  %4542 = vrot.lane.b32.xlu0 %v3790, 5
  %v4543 = vpop.permute.xlu0 %4542
  %4544 = vrot.lane.b32.xlu0 %v3791, 5
  %v4545 = vpop.permute.xlu0 %4544
  %4546 = vrot.lane.b32.xlu0 %v3792, 5
  %v4547 = vpop.permute.xlu0 %4546
  %4548 = vrot.lane.b32.xlu0 %v3793, 5
  %v4549 = vpop.permute.xlu0 %4548
  %4550 = vrot.lane.b32.xlu0 %v3794, 5
  %v4551 = vpop.permute.xlu0 %4550
  %4552 = vrot.lane.b32.xlu0 %v3795, 5
  %v4553 = vpop.permute.xlu0 %4552
  %4554 = vrot.lane.b32.xlu0 %v3796, 5
  %v4555 = vpop.permute.xlu0 %4554
  %4556 = vrot.lane.b32.xlu0 %v3797, 5
  %v4557 = vpop.permute.xlu0 %4556
  %4558 = vrot.lane.b32.xlu0 %v3798, 5
  %v4559 = vpop.permute.xlu0 %4558
  %4560 = vrot.lane.b32.xlu0 %v3799, 5
  %v4561 = vpop.permute.xlu0 %4560
  %4562 = vrot.lane.b32.xlu0 %v3800, 5
  %v4563 = vpop.permute.xlu0 %4562
  %4564 = vrot.lane.b32.xlu0 %v3801, 5
  %v4565 = vpop.permute.xlu0 %4564
  %4566 = vrot.lane.b32.xlu0 %v3802, 5
  %v4567 = vpop.permute.xlu0 %4566
  %4568 = vrot.lane.b32.xlu0 %v3803, 5
  %v4569 = vpop.permute.xlu0 %4568
  %4570 = vrot.lane.b32.xlu0 %v3804, 5
  %v4571 = vpop.permute.xlu0 %4570
  %4572 = vrot.lane.b32.xlu0 %v3805, 5
  %v4573 = vpop.permute.xlu0 %4572
  %v4830 = vsel %vm292, %v35, %v4063
  %v4831 = vsel %vm292, %v36, %v4065
  %v4832 = vsel %vm292, %v37, %v4067
  %v4833 = vsel %vm292, %v38, %v4069
  %v4834 = vsel %vm292, %v39, %v4071
  %v4835 = vsel %vm292, %v40, %v4073
  %v4836 = vsel %vm292, %v41, %v4075
  %v4837 = vsel %vm292, %v42, %v4077
  %v4838 = vsel %vm292, %v43, %v4079
  %v4839 = vsel %vm292, %v44, %v4081
  %v4840 = vsel %vm292, %v45, %v4083
  %v4841 = vsel %vm292, %v46, %v4085
  %v4842 = vsel %vm292, %v47, %v4087
  %v4843 = vsel %vm292, %v48, %v4089
  %v4844 = vsel %vm292, %v49, %v4091
  %v4845 = vsel %vm292, %v50, %v4093
  %v4846 = vsel %vm292, %v51, %v4095
  %v4847 = vsel %vm292, %v52, %v4097
  %v4848 = vsel %vm292, %v53, %v4099
  %v4849 = vsel %vm292, %v54, %v4101
  %v4850 = vsel %vm292, %v55, %v4103
  %v4851 = vsel %vm292, %v56, %v4105
  %v4852 = vsel %vm292, %v57, %v4107
  %v4853 = vsel %vm292, %v58, %v4109
  %v4854 = vsel %vm292, %v59, %v4111
  %v4855 = vsel %vm292, %v60, %v4113
  %v4856 = vsel %vm292, %v61, %v4115
  %v4857 = vsel %vm292, %v62, %v4117
  %v4858 = vsel %vm292, %v63, %v4119
  %v4859 = vsel %vm292, %v64, %v4121
  %v4860 = vsel %vm292, %v65, %v4123
  %v4861 = vsel %vm292, %v66, %v4125
  %v4862 = vsel %vm292, %v67, %v4127
  %v4863 = vsel %vm292, %v68, %v4129
  %v4864 = vsel %vm292, %v69, %v4131
  %v4865 = vsel %vm292, %v70, %v4133
  %v4866 = vsel %vm292, %v71, %v4135
  %v4867 = vsel %vm292, %v72, %v4137
  %v4868 = vsel %vm292, %v73, %v4139
  %v4869 = vsel %vm292, %v74, %v4141
  %v4870 = vsel %vm292, %v75, %v4143
  %v4871 = vsel %vm292, %v76, %v4145
  %v4872 = vsel %vm292, %v77, %v4147
  %v4873 = vsel %vm292, %v78, %v4149
  %v4874 = vsel %vm292, %v79, %v4151
  %v4875 = vsel %vm292, %v80, %v4153
  %v4876 = vsel %vm292, %v81, %v4155
  %v4877 = vsel %vm292, %v82, %v4157
  %v4878 = vsel %vm292, %v83, %v4159
  %v4879 = vsel %vm292, %v84, %v4161
  %v4880 = vsel %vm292, %v85, %v4163
  %v4881 = vsel %vm292, %v86, %v4165
  %v4882 = vsel %vm292, %v87, %v4167
  %v4883 = vsel %vm292, %v88, %v4169
  %v4884 = vsel %vm292, %v89, %v4171
  %v4885 = vsel %vm292, %v90, %v4173
  %v4886 = vsel %vm292, %v91, %v4175
  %v4887 = vsel %vm292, %v92, %v4177
  %v4888 = vsel %vm292, %v93, %v4179
  %v4889 = vsel %vm292, %v94, %v4181
  %v4890 = vsel %vm292, %v95, %v4183
  %v4891 = vsel %vm292, %v96, %v4185
  %v4892 = vsel %vm292, %v97, %v4187
  %v4893 = vsel %vm292, %v98, %v4189
  %v4894 = vsel %vm292, %v99, %v4191
  %v4895 = vsel %vm292, %v100, %v4193
  %v4896 = vsel %vm292, %v101, %v4195
  %v4897 = vsel %vm292, %v102, %v4197
  %v4898 = vsel %vm292, %v103, %v4199
  %v4899 = vsel %vm292, %v104, %v4201
  %v4900 = vsel %vm292, %v105, %v4203
  %v4901 = vsel %vm292, %v106, %v4205
  %v4902 = vsel %vm292, %v107, %v4207
  %v4903 = vsel %vm292, %v108, %v4209
  %v4904 = vsel %vm292, %v109, %v4211
  %v4905 = vsel %vm292, %v110, %v4213
  %v4906 = vsel %vm292, %v111, %v4215
  %v4907 = vsel %vm292, %v112, %v4217
  %v4908 = vsel %vm292, %v113, %v4219
  %v4909 = vsel %vm292, %v114, %v4221
  %v4910 = vsel %vm292, %v115, %v4223
  %v4911 = vsel %vm292, %v116, %v4225
  %v4912 = vsel %vm292, %v117, %v4227
  %v4913 = vsel %vm292, %v118, %v4229
  %v4914 = vsel %vm292, %v119, %v4231
  %v4915 = vsel %vm292, %v120, %v4233
  %v4916 = vsel %vm292, %v121, %v4235
  %v4917 = vsel %vm292, %v122, %v4237
  %v4918 = vsel %vm292, %v123, %v4239
  %v4919 = vsel %vm292, %v124, %v4241
  %v4920 = vsel %vm292, %v125, %v4243
  %v4921 = vsel %vm292, %v126, %v4245
  %v4922 = vsel %vm292, %v127, %v4247
  %v4923 = vsel %vm292, %v128, %v4249
  %v4924 = vsel %vm292, %v129, %v4251
  %v4925 = vsel %vm292, %v130, %v4253
  %v4926 = vsel %vm292, %v131, %v4255
  %v4927 = vsel %vm292, %v132, %v4257
  %v4928 = vsel %vm292, %v133, %v4259
  %v4929 = vsel %vm292, %v134, %v4261
  %v4930 = vsel %vm292, %v135, %v4263
  %v4931 = vsel %vm292, %v136, %v4265
  %v4932 = vsel %vm292, %v137, %v4267
  %v4933 = vsel %vm292, %v138, %v4269
  %v4934 = vsel %vm292, %v139, %v4271
  %v4935 = vsel %vm292, %v140, %v4273
  %v4936 = vsel %vm292, %v141, %v4275
  %v4937 = vsel %vm292, %v142, %v4277
  %v4938 = vsel %vm292, %v143, %v4279
  %v4939 = vsel %vm292, %v144, %v4281
  %v4940 = vsel %vm292, %v145, %v4283
  %v4941 = vsel %vm292, %v146, %v4285
  %v4942 = vsel %vm292, %v147, %v4287
  %v4943 = vsel %vm292, %v148, %v4289
  %v4944 = vsel %vm292, %v149, %v4291
  %v4945 = vsel %vm292, %v150, %v4293
  %v4946 = vsel %vm292, %v151, %v4295
  %v4947 = vsel %vm292, %v152, %v4297
  %v4948 = vsel %vm292, %v153, %v4299
  %v4949 = vsel %vm292, %v154, %v4301
  %v4950 = vsel %vm292, %v155, %v4303
  %v4951 = vsel %vm292, %v156, %v4305
  %v4952 = vsel %vm292, %v157, %v4307
  %v4953 = vsel %vm292, %v158, %v4309
  %v4954 = vsel %vm292, %v159, %v4311
  %v4955 = vsel %vm292, %v160, %v4313
  %v4956 = vsel %vm292, %v161, %v4315
  %v4957 = vsel %vm292, %v162, %v4317
  %v4958 = vsel %vm292, %v163, %v4319
  %v4959 = vsel %vm292, %v164, %v4321
  %v4960 = vsel %vm292, %v165, %v4323
  %v4961 = vsel %vm292, %v166, %v4325
  %v4962 = vsel %vm292, %v167, %v4327
  %v4963 = vsel %vm292, %v168, %v4329
  %v4964 = vsel %vm292, %v169, %v4331
  %v4965 = vsel %vm292, %v170, %v4333
  %v4966 = vsel %vm292, %v171, %v4335
  %v4967 = vsel %vm292, %v172, %v4337
  %v4968 = vsel %vm292, %v173, %v4339
  %v4969 = vsel %vm292, %v174, %v4341
  %v4970 = vsel %vm292, %v175, %v4343
  %v4971 = vsel %vm292, %v176, %v4345
  %v4972 = vsel %vm292, %v177, %v4347
  %v4973 = vsel %vm292, %v178, %v4349
  %v4974 = vsel %vm292, %v179, %v4351
  %v4975 = vsel %vm292, %v180, %v4353
  %v4976 = vsel %vm292, %v181, %v4355
  %v4977 = vsel %vm292, %v182, %v4357
  %v4978 = vsel %vm292, %v183, %v4359
  %v4979 = vsel %vm292, %v184, %v4361
  %v4980 = vsel %vm292, %v185, %v4363
  %v4981 = vsel %vm292, %v186, %v4365
  %v4982 = vsel %vm292, %v187, %v4367
  %v4983 = vsel %vm292, %v188, %v4369
  %v4984 = vsel %vm292, %v189, %v4371
  %v4985 = vsel %vm292, %v190, %v4373
  %v4986 = vsel %vm292, %v191, %v4375
  %v4987 = vsel %vm292, %v192, %v4377
  %v4988 = vsel %vm292, %v193, %v4379
  %v4989 = vsel %vm292, %v194, %v4381
  %v4990 = vsel %vm292, %v195, %v4383
  %v4991 = vsel %vm292, %v196, %v4385
  %v4992 = vsel %vm292, %v197, %v4387
  %v4993 = vsel %vm292, %v198, %v4389
  %v4994 = vsel %vm292, %v199, %v4391
  %v4995 = vsel %vm292, %v200, %v4393
  %v4996 = vsel %vm292, %v201, %v4395
  %v4997 = vsel %vm292, %v202, %v4397
  %v4998 = vsel %vm292, %v203, %v4399
  %v4999 = vsel %vm292, %v204, %v4401
  %v5000 = vsel %vm292, %v205, %v4403
  %v5001 = vsel %vm292, %v206, %v4405
  %v5002 = vsel %vm292, %v207, %v4407
  %v5003 = vsel %vm292, %v208, %v4409
  %v5004 = vsel %vm292, %v209, %v4411
  %v5005 = vsel %vm292, %v210, %v4413
  %v5006 = vsel %vm292, %v211, %v4415
  %v5007 = vsel %vm292, %v212, %v4417
  %v5008 = vsel %vm292, %v213, %v4419
  %v5009 = vsel %vm292, %v214, %v4421
  %v5010 = vsel %vm292, %v215, %v4423
  %v5011 = vsel %vm292, %v216, %v4425
  %v5012 = vsel %vm292, %v217, %v4427
  %v5013 = vsel %vm292, %v218, %v4429
  %v5014 = vsel %vm292, %v219, %v4431
  %v5015 = vsel %vm292, %v220, %v4433
  %v5016 = vsel %vm292, %v221, %v4435
  %v5017 = vsel %vm292, %v222, %v4437
  %v5018 = vsel %vm292, %v223, %v4439
  %v5019 = vsel %vm292, %v224, %v4441
  %v5020 = vsel %vm292, %v225, %v4443
  %v5021 = vsel %vm292, %v226, %v4445
  %v5022 = vsel %vm292, %v227, %v4447
  %v5023 = vsel %vm292, %v228, %v4449
  %v5024 = vsel %vm292, %v229, %v4451
  %v5025 = vsel %vm292, %v230, %v4453
  %v5026 = vsel %vm292, %v231, %v4455
  %v5027 = vsel %vm292, %v232, %v4457
  %v5028 = vsel %vm292, %v233, %v4459
  %v5029 = vsel %vm292, %v234, %v4461
  %v5030 = vsel %vm292, %v235, %v4463
  %v5031 = vsel %vm292, %v236, %v4465
  %v5032 = vsel %vm292, %v237, %v4467
  %v5033 = vsel %vm292, %v238, %v4469
  %v5034 = vsel %vm292, %v239, %v4471
  %v5035 = vsel %vm292, %v240, %v4473
  %v5036 = vsel %vm292, %v241, %v4475
  %v5037 = vsel %vm292, %v242, %v4477
  %v5038 = vsel %vm292, %v243, %v4479
  %v5039 = vsel %vm292, %v244, %v4481
  %v5040 = vsel %vm292, %v245, %v4483
  %v5041 = vsel %vm292, %v246, %v4485
  %v5042 = vsel %vm292, %v247, %v4487
  %v5043 = vsel %vm292, %v248, %v4489
  %v5044 = vsel %vm292, %v249, %v4491
  %v5045 = vsel %vm292, %v250, %v4493
  %v5046 = vsel %vm292, %v251, %v4495
  %v5047 = vsel %vm292, %v252, %v4497
  %v5048 = vsel %vm292, %v253, %v4499
  %v5049 = vsel %vm292, %v254, %v4501
  %v5050 = vsel %vm292, %v255, %v4503
  %v5051 = vsel %vm292, %v256, %v4505
  %v5052 = vsel %vm292, %v257, %v4507
  %v5053 = vsel %vm292, %v258, %v4509
  %v5054 = vsel %vm292, %v259, %v4511
  %v5055 = vsel %vm292, %v260, %v4513
  %v5056 = vsel %vm292, %v261, %v4515
  %v5057 = vsel %vm292, %v262, %v4517
  %v5058 = vsel %vm292, %v263, %v4519
  %v5059 = vsel %vm292, %v264, %v4521
  %v5060 = vsel %vm292, %v265, %v4523
  %v5061 = vsel %vm292, %v266, %v4525
  %v5062 = vsel %vm292, %v267, %v4527
  %v5063 = vsel %vm292, %v268, %v4529
  %v5064 = vsel %vm292, %v269, %v4531
  %v5065 = vsel %vm292, %v270, %v4533
  %v5066 = vsel %vm292, %v271, %v4535
  %v5067 = vsel %vm292, %v272, %v4537
  %v5068 = vsel %vm292, %v273, %v4539
  %v5069 = vsel %vm292, %v274, %v4541
  %v5070 = vsel %vm292, %v275, %v4543
  %v5071 = vsel %vm292, %v276, %v4545
  %v5072 = vsel %vm292, %v277, %v4547
  %v5073 = vsel %vm292, %v278, %v4549
  %v5074 = vsel %vm292, %v279, %v4551
  %v5075 = vsel %vm292, %v280, %v4553
  %v5076 = vsel %vm292, %v281, %v4555
  %v5077 = vsel %vm292, %v282, %v4557
  %v5078 = vsel %vm292, %v283, %v4559
  %v5079 = vsel %vm292, %v284, %v4561
  %v5080 = vsel %vm292, %v285, %v4563
  %v5081 = vsel %vm292, %v286, %v4565
  %v5082 = vsel %vm292, %v287, %v4567
  %v5083 = vsel %vm292, %v288, %v4569
  %v5084 = vsel %vm292, %v289, %v4571
  %v5085 = vsel %vm292, %v290, %v4573
  %vm5086 = vcmask 236544
  %5087 = vst.msk [vmem:[%s10] sm:$0xff] %vm5086, %v4830
  %5088 = vst.msk [vmem:[%s10 + $0x8] sm:$0xff] %vm5086, %v4831
  %5089 = vst.msk [vmem:[%s10 + $0x10] sm:$0xff] %vm5086, %v4832
  %5090 = vst.msk [vmem:[%s10 + $0x18] sm:$0xff] %vm5086, %v4833
  %5091 = vst.msk [vmem:[%s10 + $0x20] sm:$0xff] %vm5086, %v4834
  %5092 = vst.msk [vmem:[%s10 + $0x28] sm:$0xff] %vm5086, %v4835
  %5093 = vst.msk [vmem:[%s10 + $0x30] sm:$0xff] %vm5086, %v4836
  %5094 = vst.msk [vmem:[%s10 + $0x38] sm:$0xff] %vm5086, %v4837
  %5095 = vst.msk [vmem:[%s10 + $0x40] sm:$0xff] %vm5086, %v4838
  %5096 = vst.msk [vmem:[%s10 + $0x48] sm:$0xff] %vm5086, %v4839
  %5097 = vst.msk [vmem:[%s10 + $0x50] sm:$0xff] %vm5086, %v4840
  %5098 = vst.msk [vmem:[%s10 + $0x58] sm:$0xff] %vm5086, %v4841
  %5099 = vst.msk [vmem:[%s10 + $0x60] sm:$0xff] %vm5086, %v4842
  %5100 = vst.msk [vmem:[%s10 + $0x68] sm:$0xff] %vm5086, %v4843
  %5101 = vst.msk [vmem:[%s10 + $0x70] sm:$0xff] %vm5086, %v4844
  %5102 = vst.msk [vmem:[%s10 + $0x78] sm:$0xff] %vm5086, %v4845
  %5103 = vst.msk [vmem:[%s10 + $0x80] sm:$0xff] %vm5086, %v4846
  %5104 = vst.msk [vmem:[%s10 + $0x88] sm:$0xff] %vm5086, %v4847
  %5105 = vst.msk [vmem:[%s10 + $0x90] sm:$0xff] %vm5086, %v4848
  %5106 = vst.msk [vmem:[%s10 + $0x98] sm:$0xff] %vm5086, %v4849
  %5107 = vst.msk [vmem:[%s10 + $0xa0] sm:$0xff] %vm5086, %v4850
  %5108 = vst.msk [vmem:[%s10 + $0xa8] sm:$0xff] %vm5086, %v4851
  %5109 = vst.msk [vmem:[%s10 + $0xb0] sm:$0xff] %vm5086, %v4852
  %5110 = vst.msk [vmem:[%s10 + $0xb8] sm:$0xff] %vm5086, %v4853
  %5111 = vst.msk [vmem:[%s10 + $0xc0] sm:$0xff] %vm5086, %v4854
  %5112 = vst.msk [vmem:[%s10 + $0xc8] sm:$0xff] %vm5086, %v4855
  %5113 = vst.msk [vmem:[%s10 + $0xd0] sm:$0xff] %vm5086, %v4856
  %5114 = vst.msk [vmem:[%s10 + $0xd8] sm:$0xff] %vm5086, %v4857
  %5115 = vst.msk [vmem:[%s10 + $0xe0] sm:$0xff] %vm5086, %v4858
  %5116 = vst.msk [vmem:[%s10 + $0xe8] sm:$0xff] %vm5086, %v4859
  %5117 = vst.msk [vmem:[%s10 + $0xf0] sm:$0xff] %vm5086, %v4860
  %5118 = vst.msk [vmem:[%s10 + $0xf8] sm:$0xff] %vm5086, %v4861
  %5119 = vst.msk [vmem:[%s10 + $0x100] sm:$0xff] %vm5086, %v4862
  %5120 = vst.msk [vmem:[%s10 + $0x108] sm:$0xff] %vm5086, %v4863
  %5121 = vst.msk [vmem:[%s10 + $0x110] sm:$0xff] %vm5086, %v4864
  %5122 = vst.msk [vmem:[%s10 + $0x118] sm:$0xff] %vm5086, %v4865
  %5123 = vst.msk [vmem:[%s10 + $0x120] sm:$0xff] %vm5086, %v4866
  %5124 = vst.msk [vmem:[%s10 + $0x128] sm:$0xff] %vm5086, %v4867
  %5125 = vst.msk [vmem:[%s10 + $0x130] sm:$0xff] %vm5086, %v4868
  %5126 = vst.msk [vmem:[%s10 + $0x138] sm:$0xff] %vm5086, %v4869
  %5127 = vst.msk [vmem:[%s10 + $0x140] sm:$0xff] %vm5086, %v4870
  %5128 = vst.msk [vmem:[%s10 + $0x148] sm:$0xff] %vm5086, %v4871
  %5129 = vst.msk [vmem:[%s10 + $0x150] sm:$0xff] %vm5086, %v4872
  %5130 = vst.msk [vmem:[%s10 + $0x158] sm:$0xff] %vm5086, %v4873
  %5131 = vst.msk [vmem:[%s10 + $0x160] sm:$0xff] %vm5086, %v4874
  %5132 = vst.msk [vmem:[%s10 + $0x168] sm:$0xff] %vm5086, %v4875
  %5133 = vst.msk [vmem:[%s10 + $0x170] sm:$0xff] %vm5086, %v4876
  %5134 = vst.msk [vmem:[%s10 + $0x178] sm:$0xff] %vm5086, %v4877
  %5135 = vst.msk [vmem:[%s10 + $0x180] sm:$0xff] %vm5086, %v4878
  %5136 = vst.msk [vmem:[%s10 + $0x188] sm:$0xff] %vm5086, %v4879
  %5137 = vst.msk [vmem:[%s10 + $0x190] sm:$0xff] %vm5086, %v4880
  %5138 = vst.msk [vmem:[%s10 + $0x198] sm:$0xff] %vm5086, %v4881
  %5139 = vst.msk [vmem:[%s10 + $0x1a0] sm:$0xff] %vm5086, %v4882
  %5140 = vst.msk [vmem:[%s10 + $0x1a8] sm:$0xff] %vm5086, %v4883
  %5141 = vst.msk [vmem:[%s10 + $0x1b0] sm:$0xff] %vm5086, %v4884
  %5142 = vst.msk [vmem:[%s10 + $0x1b8] sm:$0xff] %vm5086, %v4885
  %5143 = vst.msk [vmem:[%s10 + $0x1c0] sm:$0xff] %vm5086, %v4886
  %5144 = vst.msk [vmem:[%s10 + $0x1c8] sm:$0xff] %vm5086, %v4887
  %5145 = vst.msk [vmem:[%s10 + $0x1d0] sm:$0xff] %vm5086, %v4888
  %5146 = vst.msk [vmem:[%s10 + $0x1d8] sm:$0xff] %vm5086, %v4889
  %5147 = vst.msk [vmem:[%s10 + $0x1e0] sm:$0xff] %vm5086, %v4890
  %5148 = vst.msk [vmem:[%s10 + $0x1e8] sm:$0xff] %vm5086, %v4891
  %5149 = vst.msk [vmem:[%s10 + $0x1f0] sm:$0xff] %vm5086, %v4892
  %5150 = vst.msk [vmem:[%s10 + $0x1f8] sm:$0xff] %vm5086, %v4893
  %5151 = vst.msk [vmem:[%s10 + $0x200] sm:$0xff] %vm5086, %v4894
  %5152 = vst.msk [vmem:[%s10 + $0x208] sm:$0xff] %vm5086, %v4895
  %5153 = vst.msk [vmem:[%s10 + $0x210] sm:$0xff] %vm5086, %v4896
  %5154 = vst.msk [vmem:[%s10 + $0x218] sm:$0xff] %vm5086, %v4897
  %5155 = vst.msk [vmem:[%s10 + $0x220] sm:$0xff] %vm5086, %v4898
  %5156 = vst.msk [vmem:[%s10 + $0x228] sm:$0xff] %vm5086, %v4899
  %5157 = vst.msk [vmem:[%s10 + $0x230] sm:$0xff] %vm5086, %v4900
  %5158 = vst.msk [vmem:[%s10 + $0x238] sm:$0xff] %vm5086, %v4901
  %5159 = vst.msk [vmem:[%s10 + $0x240] sm:$0xff] %vm5086, %v4902
  %5160 = vst.msk [vmem:[%s10 + $0x248] sm:$0xff] %vm5086, %v4903
  %5161 = vst.msk [vmem:[%s10 + $0x250] sm:$0xff] %vm5086, %v4904
  %5162 = vst.msk [vmem:[%s10 + $0x258] sm:$0xff] %vm5086, %v4905
  %5163 = vst.msk [vmem:[%s10 + $0x260] sm:$0xff] %vm5086, %v4906
  %5164 = vst.msk [vmem:[%s10 + $0x268] sm:$0xff] %vm5086, %v4907
  %5165 = vst.msk [vmem:[%s10 + $0x270] sm:$0xff] %vm5086, %v4908
  %5166 = vst.msk [vmem:[%s10 + $0x278] sm:$0xff] %vm5086, %v4909
  %5167 = vst.msk [vmem:[%s10 + $0x280] sm:$0xff] %vm5086, %v4910
  %5168 = vst.msk [vmem:[%s10 + $0x288] sm:$0xff] %vm5086, %v4911
  %5169 = vst.msk [vmem:[%s10 + $0x290] sm:$0xff] %vm5086, %v4912
  %5170 = vst.msk [vmem:[%s10 + $0x298] sm:$0xff] %vm5086, %v4913
  %5171 = vst.msk [vmem:[%s10 + $0x2a0] sm:$0xff] %vm5086, %v4914
  %5172 = vst.msk [vmem:[%s10 + $0x2a8] sm:$0xff] %vm5086, %v4915
  %5173 = vst.msk [vmem:[%s10 + $0x2b0] sm:$0xff] %vm5086, %v4916
  %5174 = vst.msk [vmem:[%s10 + $0x2b8] sm:$0xff] %vm5086, %v4917
  %5175 = vst.msk [vmem:[%s10 + $0x2c0] sm:$0xff] %vm5086, %v4918
  %5176 = vst.msk [vmem:[%s10 + $0x2c8] sm:$0xff] %vm5086, %v4919
  %5177 = vst.msk [vmem:[%s10 + $0x2d0] sm:$0xff] %vm5086, %v4920
  %5178 = vst.msk [vmem:[%s10 + $0x2d8] sm:$0xff] %vm5086, %v4921
  %5179 = vst.msk [vmem:[%s10 + $0x2e0] sm:$0xff] %vm5086, %v4922
  %5180 = vst.msk [vmem:[%s10 + $0x2e8] sm:$0xff] %vm5086, %v4923
  %5181 = vst.msk [vmem:[%s10 + $0x2f0] sm:$0xff] %vm5086, %v4924
  %5182 = vst.msk [vmem:[%s10 + $0x2f8] sm:$0xff] %vm5086, %v4925
  %5183 = vst.msk [vmem:[%s10 + $0x300] sm:$0xff] %vm5086, %v4926
  %5184 = vst.msk [vmem:[%s10 + $0x308] sm:$0xff] %vm5086, %v4927
  %5185 = vst.msk [vmem:[%s10 + $0x310] sm:$0xff] %vm5086, %v4928
  %5186 = vst.msk [vmem:[%s10 + $0x318] sm:$0xff] %vm5086, %v4929
  %5187 = vst.msk [vmem:[%s10 + $0x320] sm:$0xff] %vm5086, %v4930
  %5188 = vst.msk [vmem:[%s10 + $0x328] sm:$0xff] %vm5086, %v4931
  %5189 = vst.msk [vmem:[%s10 + $0x330] sm:$0xff] %vm5086, %v4932
  %5190 = vst.msk [vmem:[%s10 + $0x338] sm:$0xff] %vm5086, %v4933
  %5191 = vst.msk [vmem:[%s10 + $0x340] sm:$0xff] %vm5086, %v4934
  %5192 = vst.msk [vmem:[%s10 + $0x348] sm:$0xff] %vm5086, %v4935
  %5193 = vst.msk [vmem:[%s10 + $0x350] sm:$0xff] %vm5086, %v4936
  %5194 = vst.msk [vmem:[%s10 + $0x358] sm:$0xff] %vm5086, %v4937
  %5195 = vst.msk [vmem:[%s10 + $0x360] sm:$0xff] %vm5086, %v4938
  %5196 = vst.msk [vmem:[%s10 + $0x368] sm:$0xff] %vm5086, %v4939
  %5197 = vst.msk [vmem:[%s10 + $0x370] sm:$0xff] %vm5086, %v4940
  %5198 = vst.msk [vmem:[%s10 + $0x378] sm:$0xff] %vm5086, %v4941
  %5199 = vst.msk [vmem:[%s10 + $0x380] sm:$0xff] %vm5086, %v4942
  %5200 = vst.msk [vmem:[%s10 + $0x388] sm:$0xff] %vm5086, %v4943
  %5201 = vst.msk [vmem:[%s10 + $0x390] sm:$0xff] %vm5086, %v4944
  %5202 = vst.msk [vmem:[%s10 + $0x398] sm:$0xff] %vm5086, %v4945
  %5203 = vst.msk [vmem:[%s10 + $0x3a0] sm:$0xff] %vm5086, %v4946
  %5204 = vst.msk [vmem:[%s10 + $0x3a8] sm:$0xff] %vm5086, %v4947
  %5205 = vst.msk [vmem:[%s10 + $0x3b0] sm:$0xff] %vm5086, %v4948
  %5206 = vst.msk [vmem:[%s10 + $0x3b8] sm:$0xff] %vm5086, %v4949
  %5207 = vst.msk [vmem:[%s10 + $0x3c0] sm:$0xff] %vm5086, %v4950
  %5208 = vst.msk [vmem:[%s10 + $0x3c8] sm:$0xff] %vm5086, %v4951
  %5209 = vst.msk [vmem:[%s10 + $0x3d0] sm:$0xff] %vm5086, %v4952
  %5210 = vst.msk [vmem:[%s10 + $0x3d8] sm:$0xff] %vm5086, %v4953
  %5211 = vst.msk [vmem:[%s10 + $0x3e0] sm:$0xff] %vm5086, %v4954
  %5212 = vst.msk [vmem:[%s10 + $0x3e8] sm:$0xff] %vm5086, %v4955
  %5213 = vst.msk [vmem:[%s10 + $0x3f0] sm:$0xff] %vm5086, %v4956
  %5214 = vst.msk [vmem:[%s10 + $0x3f8] sm:$0xff] %vm5086, %v4957
  %5215 = vst.msk [vmem:[%s10 + $0x400] sm:$0xff] %vm5086, %v4958
  %5216 = vst.msk [vmem:[%s10 + $0x408] sm:$0xff] %vm5086, %v4959
  %5217 = vst.msk [vmem:[%s10 + $0x410] sm:$0xff] %vm5086, %v4960
  %5218 = vst.msk [vmem:[%s10 + $0x418] sm:$0xff] %vm5086, %v4961
  %5219 = vst.msk [vmem:[%s10 + $0x420] sm:$0xff] %vm5086, %v4962
  %5220 = vst.msk [vmem:[%s10 + $0x428] sm:$0xff] %vm5086, %v4963
  %5221 = vst.msk [vmem:[%s10 + $0x430] sm:$0xff] %vm5086, %v4964
  %5222 = vst.msk [vmem:[%s10 + $0x438] sm:$0xff] %vm5086, %v4965
  %5223 = vst.msk [vmem:[%s10 + $0x440] sm:$0xff] %vm5086, %v4966
  %5224 = vst.msk [vmem:[%s10 + $0x448] sm:$0xff] %vm5086, %v4967
  %5225 = vst.msk [vmem:[%s10 + $0x450] sm:$0xff] %vm5086, %v4968
  %5226 = vst.msk [vmem:[%s10 + $0x458] sm:$0xff] %vm5086, %v4969
  %5227 = vst.msk [vmem:[%s10 + $0x460] sm:$0xff] %vm5086, %v4970
  %5228 = vst.msk [vmem:[%s10 + $0x468] sm:$0xff] %vm5086, %v4971
  %5229 = vst.msk [vmem:[%s10 + $0x470] sm:$0xff] %vm5086, %v4972
  %5230 = vst.msk [vmem:[%s10 + $0x478] sm:$0xff] %vm5086, %v4973
  %5231 = vst.msk [vmem:[%s10 + $0x480] sm:$0xff] %vm5086, %v4974
  %5232 = vst.msk [vmem:[%s10 + $0x488] sm:$0xff] %vm5086, %v4975
  %5233 = vst.msk [vmem:[%s10 + $0x490] sm:$0xff] %vm5086, %v4976
  %5234 = vst.msk [vmem:[%s10 + $0x498] sm:$0xff] %vm5086, %v4977
  %5235 = vst.msk [vmem:[%s10 + $0x4a0] sm:$0xff] %vm5086, %v4978
  %5236 = vst.msk [vmem:[%s10 + $0x4a8] sm:$0xff] %vm5086, %v4979
  %5237 = vst.msk [vmem:[%s10 + $0x4b0] sm:$0xff] %vm5086, %v4980
  %5238 = vst.msk [vmem:[%s10 + $0x4b8] sm:$0xff] %vm5086, %v4981
  %5239 = vst.msk [vmem:[%s10 + $0x4c0] sm:$0xff] %vm5086, %v4982
  %5240 = vst.msk [vmem:[%s10 + $0x4c8] sm:$0xff] %vm5086, %v4983
  %5241 = vst.msk [vmem:[%s10 + $0x4d0] sm:$0xff] %vm5086, %v4984
  %5242 = vst.msk [vmem:[%s10 + $0x4d8] sm:$0xff] %vm5086, %v4985
  %5243 = vst.msk [vmem:[%s10 + $0x4e0] sm:$0xff] %vm5086, %v4986
  %5244 = vst.msk [vmem:[%s10 + $0x4e8] sm:$0xff] %vm5086, %v4987
  %5245 = vst.msk [vmem:[%s10 + $0x4f0] sm:$0xff] %vm5086, %v4988
  %5246 = vst.msk [vmem:[%s10 + $0x4f8] sm:$0xff] %vm5086, %v4989
  %5247 = vst.msk [vmem:[%s10 + $0x500] sm:$0xff] %vm5086, %v4990
  %5248 = vst.msk [vmem:[%s10 + $0x508] sm:$0xff] %vm5086, %v4991
  %5249 = vst.msk [vmem:[%s10 + $0x510] sm:$0xff] %vm5086, %v4992
  %5250 = vst.msk [vmem:[%s10 + $0x518] sm:$0xff] %vm5086, %v4993
  %5251 = vst.msk [vmem:[%s10 + $0x520] sm:$0xff] %vm5086, %v4994
  %5252 = vst.msk [vmem:[%s10 + $0x528] sm:$0xff] %vm5086, %v4995
  %5253 = vst.msk [vmem:[%s10 + $0x530] sm:$0xff] %vm5086, %v4996
  %5254 = vst.msk [vmem:[%s10 + $0x538] sm:$0xff] %vm5086, %v4997
  %5255 = vst.msk [vmem:[%s10 + $0x540] sm:$0xff] %vm5086, %v4998
  %5256 = vst.msk [vmem:[%s10 + $0x548] sm:$0xff] %vm5086, %v4999
  %5257 = vst.msk [vmem:[%s10 + $0x550] sm:$0xff] %vm5086, %v5000
  %5258 = vst.msk [vmem:[%s10 + $0x558] sm:$0xff] %vm5086, %v5001
  %5259 = vst.msk [vmem:[%s10 + $0x560] sm:$0xff] %vm5086, %v5002
  %5260 = vst.msk [vmem:[%s10 + $0x568] sm:$0xff] %vm5086, %v5003
  %5261 = vst.msk [vmem:[%s10 + $0x570] sm:$0xff] %vm5086, %v5004
  %5262 = vst.msk [vmem:[%s10 + $0x578] sm:$0xff] %vm5086, %v5005
  %5263 = vst.msk [vmem:[%s10 + $0x580] sm:$0xff] %vm5086, %v5006
  %5264 = vst.msk [vmem:[%s10 + $0x588] sm:$0xff] %vm5086, %v5007
  %5265 = vst.msk [vmem:[%s10 + $0x590] sm:$0xff] %vm5086, %v5008
  %5266 = vst.msk [vmem:[%s10 + $0x598] sm:$0xff] %vm5086, %v5009
  %5267 = vst.msk [vmem:[%s10 + $0x5a0] sm:$0xff] %vm5086, %v5010
  %5268 = vst.msk [vmem:[%s10 + $0x5a8] sm:$0xff] %vm5086, %v5011
  %5269 = vst.msk [vmem:[%s10 + $0x5b0] sm:$0xff] %vm5086, %v5012
  %5270 = vst.msk [vmem:[%s10 + $0x5b8] sm:$0xff] %vm5086, %v5013
  %5271 = vst.msk [vmem:[%s10 + $0x5c0] sm:$0xff] %vm5086, %v5014
  %5272 = vst.msk [vmem:[%s10 + $0x5c8] sm:$0xff] %vm5086, %v5015
  %5273 = vst.msk [vmem:[%s10 + $0x5d0] sm:$0xff] %vm5086, %v5016
  %5274 = vst.msk [vmem:[%s10 + $0x5d8] sm:$0xff] %vm5086, %v5017
  %5275 = vst.msk [vmem:[%s10 + $0x5e0] sm:$0xff] %vm5086, %v5018
  %5276 = vst.msk [vmem:[%s10 + $0x5e8] sm:$0xff] %vm5086, %v5019
  %5277 = vst.msk [vmem:[%s10 + $0x5f0] sm:$0xff] %vm5086, %v5020
  %5278 = vst.msk [vmem:[%s10 + $0x5f8] sm:$0xff] %vm5086, %v5021
  %5279 = vst.msk [vmem:[%s10 + $0x600] sm:$0xff] %vm5086, %v5022
  %5280 = vst.msk [vmem:[%s10 + $0x608] sm:$0xff] %vm5086, %v5023
  %5281 = vst.msk [vmem:[%s10 + $0x610] sm:$0xff] %vm5086, %v5024
  %5282 = vst.msk [vmem:[%s10 + $0x618] sm:$0xff] %vm5086, %v5025
  %5283 = vst.msk [vmem:[%s10 + $0x620] sm:$0xff] %vm5086, %v5026
  %5284 = vst.msk [vmem:[%s10 + $0x628] sm:$0xff] %vm5086, %v5027
  %5285 = vst.msk [vmem:[%s10 + $0x630] sm:$0xff] %vm5086, %v5028
  %5286 = vst.msk [vmem:[%s10 + $0x638] sm:$0xff] %vm5086, %v5029
  %5287 = vst.msk [vmem:[%s10 + $0x640] sm:$0xff] %vm5086, %v5030
  %5288 = vst.msk [vmem:[%s10 + $0x648] sm:$0xff] %vm5086, %v5031
  %5289 = vst.msk [vmem:[%s10 + $0x650] sm:$0xff] %vm5086, %v5032
  %5290 = vst.msk [vmem:[%s10 + $0x658] sm:$0xff] %vm5086, %v5033
  %5291 = vst.msk [vmem:[%s10 + $0x660] sm:$0xff] %vm5086, %v5034
  %5292 = vst.msk [vmem:[%s10 + $0x668] sm:$0xff] %vm5086, %v5035
  %5293 = vst.msk [vmem:[%s10 + $0x670] sm:$0xff] %vm5086, %v5036
  %5294 = vst.msk [vmem:[%s10 + $0x678] sm:$0xff] %vm5086, %v5037
  %5295 = vst.msk [vmem:[%s10 + $0x680] sm:$0xff] %vm5086, %v5038
  %5296 = vst.msk [vmem:[%s10 + $0x688] sm:$0xff] %vm5086, %v5039
  %5297 = vst.msk [vmem:[%s10 + $0x690] sm:$0xff] %vm5086, %v5040
  %5298 = vst.msk [vmem:[%s10 + $0x698] sm:$0xff] %vm5086, %v5041
  %5299 = vst.msk [vmem:[%s10 + $0x6a0] sm:$0xff] %vm5086, %v5042
  %5300 = vst.msk [vmem:[%s10 + $0x6a8] sm:$0xff] %vm5086, %v5043
  %5301 = vst.msk [vmem:[%s10 + $0x6b0] sm:$0xff] %vm5086, %v5044
  %5302 = vst.msk [vmem:[%s10 + $0x6b8] sm:$0xff] %vm5086, %v5045
  %5303 = vst.msk [vmem:[%s10 + $0x6c0] sm:$0xff] %vm5086, %v5046
  %5304 = vst.msk [vmem:[%s10 + $0x6c8] sm:$0xff] %vm5086, %v5047
  %5305 = vst.msk [vmem:[%s10 + $0x6d0] sm:$0xff] %vm5086, %v5048
  %5306 = vst.msk [vmem:[%s10 + $0x6d8] sm:$0xff] %vm5086, %v5049
  %5307 = vst.msk [vmem:[%s10 + $0x6e0] sm:$0xff] %vm5086, %v5050
  %5308 = vst.msk [vmem:[%s10 + $0x6e8] sm:$0xff] %vm5086, %v5051
  %5309 = vst.msk [vmem:[%s10 + $0x6f0] sm:$0xff] %vm5086, %v5052
  %5310 = vst.msk [vmem:[%s10 + $0x6f8] sm:$0xff] %vm5086, %v5053
  %5311 = vst.msk [vmem:[%s10 + $0x700] sm:$0xff] %vm5086, %v5054
  %5312 = vst.msk [vmem:[%s10 + $0x708] sm:$0xff] %vm5086, %v5055
  %5313 = vst.msk [vmem:[%s10 + $0x710] sm:$0xff] %vm5086, %v5056
  %5314 = vst.msk [vmem:[%s10 + $0x718] sm:$0xff] %vm5086, %v5057
  %5315 = vst.msk [vmem:[%s10 + $0x720] sm:$0xff] %vm5086, %v5058
  %5316 = vst.msk [vmem:[%s10 + $0x728] sm:$0xff] %vm5086, %v5059
  %5317 = vst.msk [vmem:[%s10 + $0x730] sm:$0xff] %vm5086, %v5060
  %5318 = vst.msk [vmem:[%s10 + $0x738] sm:$0xff] %vm5086, %v5061
  %5319 = vst.msk [vmem:[%s10 + $0x740] sm:$0xff] %vm5086, %v5062
  %5320 = vst.msk [vmem:[%s10 + $0x748] sm:$0xff] %vm5086, %v5063
  %5321 = vst.msk [vmem:[%s10 + $0x750] sm:$0xff] %vm5086, %v5064
  %5322 = vst.msk [vmem:[%s10 + $0x758] sm:$0xff] %vm5086, %v5065
  %5323 = vst.msk [vmem:[%s10 + $0x760] sm:$0xff] %vm5086, %v5066
  %5324 = vst.msk [vmem:[%s10 + $0x768] sm:$0xff] %vm5086, %v5067
  %5325 = vst.msk [vmem:[%s10 + $0x770] sm:$0xff] %vm5086, %v5068
  %5326 = vst.msk [vmem:[%s10 + $0x778] sm:$0xff] %vm5086, %v5069
  %5327 = vst.msk [vmem:[%s10 + $0x780] sm:$0xff] %vm5086, %v5070
  %5328 = vst.msk [vmem:[%s10 + $0x788] sm:$0xff] %vm5086, %v5071
  %5329 = vst.msk [vmem:[%s10 + $0x790] sm:$0xff] %vm5086, %v5072
  %5330 = vst.msk [vmem:[%s10 + $0x798] sm:$0xff] %vm5086, %v5073
  %5331 = vst.msk [vmem:[%s10 + $0x7a0] sm:$0xff] %vm5086, %v5074
  %5332 = vst.msk [vmem:[%s10 + $0x7a8] sm:$0xff] %vm5086, %v5075
  %5333 = vst.msk [vmem:[%s10 + $0x7b0] sm:$0xff] %vm5086, %v5076
  %5334 = vst.msk [vmem:[%s10 + $0x7b8] sm:$0xff] %vm5086, %v5077
  %5335 = vst.msk [vmem:[%s10 + $0x7c0] sm:$0xff] %vm5086, %v5078
  %5336 = vst.msk [vmem:[%s10 + $0x7c8] sm:$0xff] %vm5086, %v5079
  %5337 = vst.msk [vmem:[%s10 + $0x7d0] sm:$0xff] %vm5086, %v5080
  %5338 = vst.msk [vmem:[%s10 + $0x7d8] sm:$0xff] %vm5086, %v5081
  %5339 = vst.msk [vmem:[%s10 + $0x7e0] sm:$0xff] %vm5086, %v5082
  %5340 = vst.msk [vmem:[%s10 + $0x7e8] sm:$0xff] %vm5086, %v5083
  %5341 = vst.msk [vmem:[%s10 + $0x7f0] sm:$0xff] %vm5086, %v5084
  %5342 = vst.msk [vmem:[%s10 + $0x7f8] sm:$0xff] %vm5086, %v5085
  // Predicated region
  $region42: #{base_point_tinet.7} parent=0 // pred_check
    _
  $region43: #{base_point_tinet.7} parent=0 // pred_check_branch
    %5344 = sbr.rel (0) target = $region45
  $region44: #{base_point_tinet.7} parent=0 // pred_region
    _
  $region45: #{base_point_tinet.7} parent=0 // pred_fallthru
    _
  // Predicated region
  $region46: #{base_point_tinet.7} parent=0 // pred_check
    _
  $region47: #{base_point_tinet.7} parent=0 // pred_check_branch
    %5346 = sbr.rel (0) target = $region49
  $region48: #{base_point_tinet.7} parent=0 // pred_region
    _
  $region49: #{base_point_tinet.7} parent=0 // pred_fallthru
    _

</llo_original>
